<compile_context>
chip_gen: v5e
topology: v5e:2x2
jax: 0.10.0
libtpu: 0.0.40
codegen_flags: <defaults>
</compile_context>

<pallas_src>
import math

import jax
import jax.numpy as jnp
from jax import lax
from jax.experimental import pallas as pl
from jax.experimental.pallas import tpu as pltpu

IN_DIM = 512
HID_DIM = 2048


def _gelu_exact(x):
    # nn.GELU() default = exact erf formulation (kept for numerical parity with PyTorch).
    return 0.5 * x * (1.0 + lax.erf(x * (1.0 / math.sqrt(2.0))))


def mlp_kernel(x_ref, w1_ref, b1_ref, w2_ref, b2_ref, o_ref):
    x = x_ref[...]                                      # (TB, 512)  bf16
    # fc1: contract x's last dim with w1's last dim (w1 is (2048, 512), PyTorch layout).
    h = lax.dot_general(
        x, w1_ref[...],
        dimension_numbers=(((1,), (1,)), ((), ())),
        preferred_element_type=jnp.float32,
    )                                                   # (TB, 2048) f32 accum
    h = h + b1_ref[...]
    h = _gelu_exact(h)
    # dropout -> identity (eval mode)
    h = h.astype(w2_ref.dtype)                          # back to bf16 for the second matmul
    # fc2: contract h's last dim with w2's last dim (w2 is (512, 2048), PyTorch layout).
    out = lax.dot_general(
        h, w2_ref[...],
        dimension_numbers=(((1,), (1,)), ((), ())),
        preferred_element_type=jnp.float32,
    )                                                   # (TB, 512) f32 accum
    out = out + b2_ref[...]
    # dropout -> identity (eval mode)
    o_ref[...] = out.astype(o_ref.dtype)


def mlp_forward(x, w1, b1, w2, b2, *, block_b=256, matmul_dtype=jnp.bfloat16):
    """x: (B, 512); w1: (2048, 512); b1: (2048,); w2: (512, 2048); b2: (512,).

    Weights/biases are taken in PyTorch nn.Linear layout; no transposes are materialized.
    """
    B = x.shape[0]
    out_dtype = x.dtype

    # Batch tile: big enough to feed the MXU, capped by B, rounded up to a multiple of 8
    # (sublane) so stores are unmasked. Pad B to a multiple of TB.
    TB = min(block_b, B)
    TB = max(8, ((TB + 7) // 8) * 8)
    n_blocks = pl.cdiv(B, TB)
    B_pad = n_blocks * TB
    if B_pad != B:
        x = jnp.pad(x, ((0, B_pad - B), (0, 0)))

    x_mm = x.astype(matmul_dtype)
    w1_mm = w1.astype(matmul_dtype)                     # (2048, 512)  PyTorch layout
    w2_mm = w2.astype(matmul_dtype)                     # (512, 2048)  PyTorch layout
    b1_2d = b1.reshape(1, HID_DIM).astype(jnp.float32)  # (1, 2048)
    b2_2d = b2.reshape(1, IN_DIM).astype(jnp.float32)   # (1, 512)

    itemsize = jnp.dtype(matmul_dtype).itemsize
    bytes_accessed = (
        B_pad * IN_DIM * itemsize            # x
        + HID_DIM * IN_DIM * itemsize        # w1
        + IN_DIM * HID_DIM * itemsize        # w2
        + (HID_DIM + IN_DIM) * 4             # biases (f32)
        + B_pad * IN_DIM * jnp.dtype(out_dtype).itemsize  # out
    )
    cost = pl.CostEstimate(
        flops=2 * 2 * B_pad * IN_DIM * HID_DIM,   # two matmuls
        transcendentals=B_pad * HID_DIM,          # erf per hidden element
        bytes_accessed=bytes_accessed,
    )

    out = pl.pallas_call(
        mlp_kernel,
        out_shape=jax.ShapeDtypeStruct((B_pad, IN_DIM), out_dtype),
        grid_spec=pltpu.PrefetchScalarGridSpec(
            num_scalar_prefetch=0,
            grid=(n_blocks,),
            in_specs=[
                pl.BlockSpec((TB, IN_DIM), lambda i: (i, 0)),          # x tile (pipelined)
                pl.BlockSpec((HID_DIM, IN_DIM), lambda i: (0, 0)),     # w1 (resident)
                pl.BlockSpec((1, HID_DIM), lambda i: (0, 0)),          # b1 (resident)
                pl.BlockSpec((IN_DIM, HID_DIM), lambda i: (0, 0)),     # w2 (resident)
                pl.BlockSpec((1, IN_DIM), lambda i: (0, 0)),           # b2 (resident)
            ],
            out_specs=pl.BlockSpec((TB, IN_DIM), lambda i: (i, 0)),
        ),
        compiler_params=pltpu.CompilerParams(
            dimension_semantics=("parallel",),       # v7x: shard batch tiles across both TCs
            vmem_limit_bytes=48 << 20,               # headroom below v7x 64 MiB physical
        ),
        cost_estimate=cost,
    )(x_mm, w1_mm, b1_2d, w2_mm, b2_2d)

    if B_pad != B:
        out = out[:B]
    return out


def _xavier_uniform(key, fan_out, fan_in, dtype=jnp.float32):
    # matches torch.nn.init.xavier_uniform_ for a (fan_out, fan_in) weight
    limit = math.sqrt(6.0 / (fan_in + fan_out))
    return jax.random.uniform(key, (fan_out, fan_in), dtype, -limit, limit)


if __name__ == "__main__":
    key = jax.random.PRNGKey(0)
    k_x, k_w1, k_b1, k_w2, k_b2 = jax.random.split(key, 5)

    # Small batch; block_b=8 exercises the multi-step grid + batch padding path.
    B = 12
    x = jax.random.normal(k_x, (B, IN_DIM), jnp.float32)

    # Deterministic parameter init mirroring MLP._init_weights
    w1 = _xavier_uniform(k_w1, HID_DIM, IN_DIM)            # fc1.weight (2048, 512)
    b1 = 1e-6 * jax.random.normal(k_b1, (HID_DIM,), jnp.float32)
    w2 = _xavier_uniform(k_w2, IN_DIM, HID_DIM)            # fc2.weight (512, 2048)
    b2 = 1e-6 * jax.random.normal(k_b2, (IN_DIM,), jnp.float32)

    out = mlp_forward(x, w1, b1, w2, b2, block_b=8)
    out = jax.block_until_ready(out)
    assert out.shape == (B, IN_DIM)
    assert out.dtype == jnp.float32

    # Also exercise the single-block default path (TB rounded to multiple of 8).
    out_default = jax.block_until_ready(mlp_forward(x, w1, b1, w2, b2))
    assert out_default.shape == (B, IN_DIM)
    assert jnp.allclose(out, out_default, atol=1e-5, rtol=1e-5)

    # Reference 1: bf16-matched matmuls (same precision policy as the kernel).
    xb = x.astype(jnp.bfloat16)
    w1b = w1.astype(jnp.bfloat16)
    w2b = w2.astype(jnp.bfloat16)
    h_ref = jnp.dot(xb, w1b.T, preferred_element_type=jnp.float32) + b1
    h_ref = 0.5 * h_ref * (1.0 + lax.erf(h_ref / math.sqrt(2.0)))
    ref_bf16 = jnp.dot(h_ref.astype(jnp.bfloat16), w2b.T,
                       preferred_element_type=jnp.float32) + b2
    assert jnp.allclose(out, ref_bf16, atol=1e-2, rtol=1e-2)

    # Reference 2: full f32 forward (loose tolerance for the bf16 operand rounding).
    h32 = x @ w1.T + b1
    h32 = 0.5 * h32 * (1.0 + lax.erf(h32 / math.sqrt(2.0)))
    ref_f32 = h32 @ w2.T + b2
    assert jnp.allclose(out, ref_f32, atol=6e-2, rtol=6e-2)

    print("KERNEL_OK")
</pallas_src>

<mosaic_0001>
module attributes {stable_mosaic.version = 11 : i64} {
  func.func @mlp_kernel(%arg0: i32, %arg1: memref<8x512xbf16, #tpu.memory_space<vmem>>, %arg2: memref<2048x512xbf16, #tpu.memory_space<vmem>>, %arg3: memref<1x2048xf32, #tpu.memory_space<vmem>>, %arg4: memref<512x2048xbf16, #tpu.memory_space<vmem>>, %arg5: memref<1x512xf32, #tpu.memory_space<vmem>>, %arg6: memref<8x512xf32, #tpu.memory_space<vmem>>) attributes {dimension_semantics = [#tpu.dimension_semantics<parallel>], iteration_bounds = array<i64: 2>, scalar_prefetch = 0 : i64, scratch_operands = 0 : i64, tpu.core_type = #tpu.core_type<tc>, window_params = [{transform_indices = @transform_0, window_bounds = array<i64: 8, 512>}, {pipeline_mode = #tpu.pipeline_mode<synchronous>, transform_indices = @transform_1, window_bounds = array<i64: 2048, 512>}, {pipeline_mode = #tpu.pipeline_mode<synchronous>, transform_indices = @transform_2, window_bounds = array<i64: 1, 2048>}, {pipeline_mode = #tpu.pipeline_mode<synchronous>, transform_indices = @transform_3, window_bounds = array<i64: 512, 2048>}, {pipeline_mode = #tpu.pipeline_mode<synchronous>, transform_indices = @transform_4, window_bounds = array<i64: 1, 512>}, {transform_indices = @transform_5, window_bounds = array<i64: 8, 512>}]} {
    %c0 = arith.constant 0 : index
    %c0_0 = arith.constant 0 : index
    %0 = vector.load %arg1[%c0, %c0_0] : memref<8x512xbf16, #tpu.memory_space<vmem>>, vector<8x512xbf16>
    %c0_1 = arith.constant 0 : index
    %c0_2 = arith.constant 0 : index
    %1 = vector.load %arg2[%c0_1, %c0_2] : memref<2048x512xbf16, #tpu.memory_space<vmem>>, vector<2048x512xbf16>
    %cst = arith.constant dense<0.000000e+00> : vector<8x2048xf32>
    %2 = tpu.matmul %0, %1, %cst {dimension_numbers = #tpu.dot_dimension_numbers<[1], [1], [0], [0], [0, 0, 1, 0], [], []>} : vector<8x512xbf16>, vector<2048x512xbf16>, vector<8x2048xf32> -> vector<8x2048xf32>
    %c0_3 = arith.constant 0 : index
    %c0_4 = arith.constant 0 : index
    %3 = vector.load %arg3[%c0_3, %c0_4] : memref<1x2048xf32, #tpu.memory_space<vmem>>, vector<1x2048xf32>
    %4 = vector.broadcast %3 : vector<1x2048xf32> to vector<8x2048xf32>
    %5 = arith.addf %2, %4 : vector<8x2048xf32>
    %cst_5 = arith.constant 5.000000e-01 : f32
    %6 = vector.broadcast %cst_5 : f32 to vector<8x2048xf32>
    %7 = arith.mulf %6, %5 : vector<8x2048xf32>
    %cst_6 = arith.constant 0.707106769 : f32
    %8 = vector.broadcast %cst_6 : f32 to vector<8x2048xf32>
    %9 = arith.mulf %5, %8 : vector<8x2048xf32>
    %10 = math.erf %9 : vector<8x2048xf32>
    %cst_7 = arith.constant 1.000000e+00 : f32
    %11 = vector.broadcast %cst_7 : f32 to vector<8x2048xf32>
    %12 = arith.addf %11, %10 : vector<8x2048xf32>
    %13 = arith.mulf %7, %12 : vector<8x2048xf32>
    %14 = arith.truncf %13 : vector<8x2048xf32> to vector<8x2048xbf16>
    %c0_8 = arith.constant 0 : index
    %c0_9 = arith.constant 0 : index
    %15 = vector.load %arg4[%c0_8, %c0_9] : memref<512x2048xbf16, #tpu.memory_space<vmem>>, vector<512x2048xbf16>
    %cst_10 = arith.constant dense<0.000000e+00> : vector<8x512xf32>
    %16 = tpu.matmul %14, %15, %cst_10 {dimension_numbers = #tpu.dot_dimension_numbers<[1], [1], [0], [0], [0, 0, 1, 0], [], []>} : vector<8x2048xbf16>, vector<512x2048xbf16>, vector<8x512xf32> -> vector<8x512xf32>
    %c0_11 = arith.constant 0 : index
    %c0_12 = arith.constant 0 : index
    %17 = vector.load %arg5[%c0_11, %c0_12] : memref<1x512xf32, #tpu.memory_space<vmem>>, vector<1x512xf32>
    %18 = vector.broadcast %17 : vector<1x512xf32> to vector<8x512xf32>
    %19 = arith.addf %16, %18 : vector<8x512xf32>
    %c0_13 = arith.constant 0 : index
    %c0_14 = arith.constant 0 : index
    %20 = vector.load %arg6[%c0_13, %c0_14] : memref<8x512xf32, #tpu.memory_space<vmem>>, vector<8x512xf32>
    tpu.vector_store %arg6[%c0_13, %c0_14], %19 {strides = array<i32>} : memref<8x512xf32, #tpu.memory_space<vmem>>, vector<8x512xf32>,
    return
  }
  func.func @transform_0(%arg0: i32) -> (i32, i32) {
    %c0_i32 = arith.constant 0 : i32
    %c0_i32_0 = arith.constant 0 : i32
    return %arg0, %c0_i32 : i32, i32
  }
  func.func @transform_1(%arg0: i32) -> (i32, i32) {
    %c0_i32 = arith.constant 0 : i32
    %c0_i32_0 = arith.constant 0 : i32
    %c0_i32_1 = arith.constant 0 : i32
    return %c0_i32, %c0_i32_0 : i32, i32
  }
  func.func @transform_2(%arg0: i32) -> (i32, i32) {
    %c0_i32 = arith.constant 0 : i32
    %c0_i32_0 = arith.constant 0 : i32
    %c0_i32_1 = arith.constant 0 : i32
    return %c0_i32, %c0_i32_0 : i32, i32
  }
  func.func @transform_3(%arg0: i32) -> (i32, i32) {
    %c0_i32 = arith.constant 0 : i32
    %c0_i32_0 = arith.constant 0 : i32
    %c0_i32_1 = arith.constant 0 : i32
    return %c0_i32, %c0_i32_0 : i32, i32
  }
  func.func @transform_4(%arg0: i32) -> (i32, i32) {
    %c0_i32 = arith.constant 0 : i32
    %c0_i32_0 = arith.constant 0 : i32
    %c0_i32_1 = arith.constant 0 : i32
    return %c0_i32, %c0_i32_0 : i32, i32
  }
  func.func @transform_5(%arg0: i32) -> (i32, i32) {
    %c0_i32 = arith.constant 0 : i32
    %c0_i32_0 = arith.constant 0 : i32
    return %arg0, %c0_i32 : i32, i32
  }
}

</mosaic_0001>

<llo_original>
// kernel: tpu_custom_call.1
$region0: #{tpu_custom_call.1}
  #allocation0 [shape = 'u32[]', space=smem, size = 0x4, offset = 0x4, fixed_abs, tag = 'smem constant byte address 0x4 - core index']
  #allocation1 [shape = 'u32[72,128]{1,0:T(1,128)}', space=vmem, size = 0x9000, scoped, tag = 'internal scratch']
  %s0 = inlined_call_operand.hbm [shape: bf16[16,512], index: 0, kind: input, shape index: {}]
  %s1 = inlined_call_operand.hbm [shape: bf16[2048,512], index: 1, kind: input, shape index: {}]
  %s2 = inlined_call_operand.hbm [shape: f32[1,2048], index: 2, kind: input, shape index: {}]
  %s3 = inlined_call_operand.hbm [shape: bf16[512,2048], index: 3, kind: input, shape index: {}]
  %s4 = inlined_call_operand.hbm [shape: f32[1,512], index: 4, kind: input, shape index: {}]
  %s5 = inlined_call_operand.hbm [shape: f32[16,512], index: 5, kind: output, shape index: {}]
  %s6 = sld [smem:[#allocation0]]
  $region73: #{tpu_custom_call.1} parent=0
    _
  %s8 = ssub.s32 1, %s6
  %s9 = scalar_select 0, %s8, %s6
  $region1: #{tpu_custom_call.1} parent=0
    #allocation2 [shape = 'u8[16384]{0}', space=vmem, size = 0x4000, scoped, tag = 'input window, operand 0']
    #allocation3 [shape = 's32[2]{0}', space=sflag, size = 0x8, scoped, tag = 'scoped memory for tpu_custom_call.1']
    #allocation4 [shape = 's32[2]{0}', space=sflag, size = 0x8, scoped, tag = 'scoped memory for tpu_custom_call.1']
    #allocation5 [shape = 'u8[2097152]{0}', space=vmem, size = 0x200000, scoped, tag = 'input window, operand 1, single buffered']
    #allocation6 [shape = 's32[1]{0}', space=sflag, size = 0x4, scoped, tag = 'scoped memory for tpu_custom_call.1']
    #allocation7 [shape = 'u8[8192]{0}', space=vmem, size = 0x2000, scoped, tag = 'input window, operand 2, single buffered']
    #allocation8 [shape = 'u8[2097152]{0}', space=vmem, size = 0x200000, scoped, tag = 'input window, operand 3, single buffered']
    #allocation9 [shape = 's32[1]{0}', space=sflag, size = 0x4, scoped, tag = 'scoped memory for tpu_custom_call.1']
    #allocation10 [shape = 'u8[2048]{0}', space=vmem, size = 0x800, scoped, tag = 'input window, operand 4, single buffered']
    #allocation11 [shape = 'u8[32768]{0}', space=vmem, size = 0x8000, scoped, tag = 'output window, operand 0']
    %10 = vsyncpa [#allocation3], 0
    %s11 = scalar_lea.sflag [#allocation3], 1
    %12 = vsyncpa %s11, 0
    %13 = vsyncpa [#allocation6], 0
    %14 = vsyncpa [#allocation9], 0
    %15 = vsyncpa [#allocation4], 0
    %s16 = scalar_lea.sflag [#allocation4], 1
    %17 = vsyncpa %s16, 0
    loop: start=0, step=1, limit=4
    $region2: #{tpu_custom_call.1} parent=1 // loop_pre_header
      _
    $region3: #{tpu_custom_call.1} parent=1 // loop_header
      %s19 = sphi 0, %s23
      %p20 = scmp.ge.s32.totalorder %s19, 4
      %s29 = sphi 0, %s31
      %s32 = sphi 0, %s29
      %s33 = sphi 0, %s32
      %s49 = sphi 0, %s33
      %s53 = sphi 0, %s53
      %s55 = sphi 0, %s53
      %s56 = sphi 0, %s55
      %s70 = sphi 0, %s56
      %s74 = sphi 0, %s74
      %s76 = sphi 0, %s74
      %s77 = sphi 0, %s76
      %s91 = sphi 0, %s77
      %s95 = sphi 0, %s95
      %s97 = sphi 0, %s95
      %s98 = sphi 0, %s97
      %s112 = sphi 0, %s98
      %s116 = sphi 0, %s116
      %s118 = sphi 0, %s116
      %s119 = sphi 0, %s118
      %s133 = sphi 0, %s119
      %s139 = sphi 0, %s141
      %s142 = sphi 0, %s139
      %s143 = sphi 0, %s142
      %s159 = sphi 0, %s143
    $region4: #{tpu_custom_call.1} parent=1 // loop_header_branch
      %22 = sbr.rel (%p20) target = $region8
    $region5: #{tpu_custom_call.1} parent=1 // loop_body
      %s24 = ssub.s32 %s19, 1
      %s25 = ssub.s32 %s19, 2
      %s26 = sadd.s32 %s19, 1
      %s27 = ssub.s32 %s19, %s26
      %p28 = scmp.eq.s32.totalorder %s27, 0
      %s30 = sadd.s32 %s29, 1
      %s31 = scalar_select %p28, %s29, %s30
      %p34 = pneg %p28
      %p35 = scmp.eq.s32.totalorder %s19, 1
      %p36 = por %p34, %p35
      %p37 = scmp.ne.s32.totalorder %s29, %s32
      %p38 = scmp.eq.s32.totalorder %s19, 0
      %p39 = por %p37, %p38
      %p40 = scmp.ne.s32.totalorder %s29, %s32
      %p41 = scmp.eq.s32.totalorder %s24, 1
      %p42 = por %p40, %p41
      %p43 = scmp.ne.s32.totalorder %s32, %s33
      %p44 = scmp.eq.s32.totalorder %s24, 0
      %p45 = por %p43, %p44
      %p46 = scmp.ne.s32.totalorder %s32, %s33
      %p47 = scmp.eq.s32.totalorder %s25, 1
      %p48 = por %p46, %p47
      %p50 = scmp.ne.s32.totalorder %s33, %s49
      %p51 = scmp.eq.s32.totalorder %s25, 0
      %p52 = por %p50, %p51
      %s54 = sadd.s32 %s53, 1
      %p57 = scmp.eq.s32.totalorder %s19, 1
      %p58 = scmp.ne.s32.totalorder %s53, %s55
      %p59 = scmp.eq.s32.totalorder %s19, 0
      %p60 = por %p58, %p59
      %p61 = scmp.ne.s32.totalorder %s53, %s55
      %p62 = scmp.eq.s32.totalorder %s24, 1
      %p63 = por %p61, %p62
      %p64 = scmp.ne.s32.totalorder %s55, %s56
      %p65 = scmp.eq.s32.totalorder %s24, 0
      %p66 = por %p64, %p65
      %p67 = scmp.ne.s32.totalorder %s55, %s56
      %p68 = scmp.eq.s32.totalorder %s25, 1
      %p69 = por %p67, %p68
      %p71 = scmp.ne.s32.totalorder %s56, %s70
      %p72 = scmp.eq.s32.totalorder %s25, 0
      %p73 = por %p71, %p72
      %s75 = sadd.s32 %s74, 1
      %p78 = scmp.eq.s32.totalorder %s19, 1
      %p79 = scmp.ne.s32.totalorder %s74, %s76
      %p80 = scmp.eq.s32.totalorder %s19, 0
      %p81 = por %p79, %p80
      %p82 = scmp.ne.s32.totalorder %s74, %s76
      %p83 = scmp.eq.s32.totalorder %s24, 1
      %p84 = por %p82, %p83
      %p85 = scmp.ne.s32.totalorder %s76, %s77
      %p86 = scmp.eq.s32.totalorder %s24, 0
      %p87 = por %p85, %p86
      %p88 = scmp.ne.s32.totalorder %s76, %s77
      %p89 = scmp.eq.s32.totalorder %s25, 1
      %p90 = por %p88, %p89
      %p92 = scmp.ne.s32.totalorder %s77, %s91
      %p93 = scmp.eq.s32.totalorder %s25, 0
      %p94 = por %p92, %p93
      %s96 = sadd.s32 %s95, 1
      %p99 = scmp.eq.s32.totalorder %s19, 1
      %p100 = scmp.ne.s32.totalorder %s95, %s97
      %p101 = scmp.eq.s32.totalorder %s19, 0
      %p102 = por %p100, %p101
      %p103 = scmp.ne.s32.totalorder %s95, %s97
      %p104 = scmp.eq.s32.totalorder %s24, 1
      %p105 = por %p103, %p104
      %p106 = scmp.ne.s32.totalorder %s97, %s98
      %p107 = scmp.eq.s32.totalorder %s24, 0
      %p108 = por %p106, %p107
      %p109 = scmp.ne.s32.totalorder %s97, %s98
      %p110 = scmp.eq.s32.totalorder %s25, 1
      %p111 = por %p109, %p110
      %p113 = scmp.ne.s32.totalorder %s98, %s112
      %p114 = scmp.eq.s32.totalorder %s25, 0
      %p115 = por %p113, %p114
      %s117 = sadd.s32 %s116, 1
      %p120 = scmp.eq.s32.totalorder %s19, 1
      %p121 = scmp.ne.s32.totalorder %s116, %s118
      %p122 = scmp.eq.s32.totalorder %s19, 0
      %p123 = por %p121, %p122
      %p124 = scmp.ne.s32.totalorder %s116, %s118
      %p125 = scmp.eq.s32.totalorder %s24, 1
      %p126 = por %p124, %p125
      %p127 = scmp.ne.s32.totalorder %s118, %s119
      %p128 = scmp.eq.s32.totalorder %s24, 0
      %p129 = por %p127, %p128
      %p130 = scmp.ne.s32.totalorder %s118, %s119
      %p131 = scmp.eq.s32.totalorder %s25, 1
      %p132 = por %p130, %p131
      %p134 = scmp.ne.s32.totalorder %s119, %s133
      %p135 = scmp.eq.s32.totalorder %s25, 0
      %p136 = por %p134, %p135
      %s137 = ssub.s32 %s19, %s26
      %p138 = scmp.eq.s32.totalorder %s137, 0
      %s140 = sadd.s32 %s139, 1
      %s141 = scalar_select %p138, %s139, %s140
      %p144 = pneg %p138
      %p145 = scmp.eq.s32.totalorder %s19, 1
      %p146 = por %p144, %p145
      %p147 = scmp.ne.s32.totalorder %s139, %s142
      %p148 = scmp.eq.s32.totalorder %s19, 0
      %p149 = por %p147, %p148
      %p150 = scmp.ne.s32.totalorder %s139, %s142
      %p151 = scmp.eq.s32.totalorder %s24, 1
      %p152 = por %p150, %p151
      %p153 = scmp.ne.s32.totalorder %s142, %s143
      %p154 = scmp.eq.s32.totalorder %s24, 0
      %p155 = por %p153, %p154
      %p156 = scmp.ne.s32.totalorder %s142, %s143
      %p157 = scmp.eq.s32.totalorder %s25, 1
      %p158 = por %p156, %p157
      %p160 = scmp.ne.s32.totalorder %s143, %s159
      %p161 = scmp.eq.s32.totalorder %s25, 0
      %p162 = por %p160, %p161
      %p163 = scmp.le.s32.totalorder 1, %s19
      %p164 = scmp.lt.s32.totalorder %s19, 3
      %p165 = pnand %p163, %p164
      %p166 = pneg %p165
      // Predicated region
      $region9: #{tpu_custom_call.1} parent=5 // pred_check
        _
      $region10: #{tpu_custom_call.1} parent=5 // pred_check_branch
        %168 = sbr.rel (%p165) target = $region12
      $region11: #{tpu_custom_call.1} parent=5 // pred_region
        %s169 = ssub.s32 %s19, 1
        // Predicated region
        $region13: #{tpu_custom_call.1} parent=11 // pred_check
          %p170 = pneg %p66
        $region14: #{tpu_custom_call.1} parent=11 // pred_check_branch
          %172 = sbr.rel (%p170) target = $region16
        $region15: #{tpu_custom_call.1} parent=11 // pred_region
          %174 = vsyncadd [#allocation6], 0
          %s175 = sshll.u32 %s1, 4
          %s176 = int_to_ptr.hbm [resolvable:$true] %s175
          %s177 = sshll.u32 [#allocation5], 4
          %s178 = int_to_ptr.vmem [resolvable:$true] %s177
          %183 = dma.hbm_to_vmem [thread:$0]  %s176, 65536, %s178, [#allocation6], 256, 256, 16
        $region16: #{tpu_custom_call.1} parent=11 // pred_fallthru
          _
        // Predicated region
        $region17: #{tpu_custom_call.1} parent=11 // pred_check
          %p184 = pneg %p87
        $region18: #{tpu_custom_call.1} parent=11 // pred_check_branch
          %186 = sbr.rel (%p184) target = $region20
        $region19: #{tpu_custom_call.1} parent=11 // pred_region
          %188 = vsyncadd [#allocation6], 0
          %s190 = sshll.u32 %s2, 4
          %s191 = int_to_ptr.hbm [resolvable:$true] %s190
          %s192 = sshll.u32 [#allocation7], 4
          %s193 = int_to_ptr.vmem [resolvable:$true] %s192
          %195 = dma.hbm_to_vmem [thread:$0]  %s191, 256, %s193, [#allocation6]
        $region20: #{tpu_custom_call.1} parent=11 // pred_fallthru
          _
        // Predicated region
        $region21: #{tpu_custom_call.1} parent=11 // pred_check
          %p196 = pneg %p108
        $region22: #{tpu_custom_call.1} parent=11 // pred_check_branch
          %198 = sbr.rel (%p196) target = $region24
        $region23: #{tpu_custom_call.1} parent=11 // pred_region
          %200 = vsyncadd [#allocation9], 0
          %s201 = sshll.u32 %s3, 4
          %s202 = int_to_ptr.hbm [resolvable:$true] %s201
          %s203 = sshll.u32 [#allocation8], 4
          %s204 = int_to_ptr.vmem [resolvable:$true] %s203
          %209 = dma.hbm_to_vmem [thread:$0]  %s202, 65536, %s204, [#allocation9], 1024, 1024, 64
        $region24: #{tpu_custom_call.1} parent=11 // pred_fallthru
          _
        // Predicated region
        $region25: #{tpu_custom_call.1} parent=11 // pred_check
          %p210 = pneg %p129
        $region26: #{tpu_custom_call.1} parent=11 // pred_check_branch
          %212 = sbr.rel (%p210) target = $region28
        $region27: #{tpu_custom_call.1} parent=11 // pred_region
          %214 = vsyncadd [#allocation9], 0
          %s216 = sshll.u32 %s4, 4
          %s217 = int_to_ptr.hbm [resolvable:$true] %s216
          %s218 = sshll.u32 [#allocation10], 4
          %s219 = int_to_ptr.vmem [resolvable:$true] %s218
          %221 = dma.hbm_to_vmem [thread:$0]  %s217, 64, %s219, [#allocation9]
        $region28: #{tpu_custom_call.1} parent=11 // pred_fallthru
          _
      $region12: #{tpu_custom_call.1} parent=5 // pred_fallthru
        _
      %p222 = scmp.lt.s32.totalorder %s19, 2
      // Predicated region
      $region29: #{tpu_custom_call.1} parent=5 // pred_check
        %p223 = pneg %p222
      $region30: #{tpu_custom_call.1} parent=5 // pred_check_branch
        %225 = sbr.rel (%p223) target = $region32
      $region31: #{tpu_custom_call.1} parent=5 // pred_region
        // Predicated region
        $region33: #{tpu_custom_call.1} parent=31 // pred_check
          %p226 = pneg %p39
        $region34: #{tpu_custom_call.1} parent=31 // pred_check_branch
          %228 = sbr.rel (%p226) target = $region36
        $region35: #{tpu_custom_call.1} parent=31 // pred_region
          %s229 = sand.u32 %s29, 1
          %s230 = scalar_lea.sflag [#allocation3], %s229
          %s231 = sand.u32 %s29, 1
          %s232 = smul.addr %s231, 16
          %s233 = scalar_lea.vmem [#allocation2], %s232
          %235 = vsyncadd %s230, 0
          %s236 = smul.addr %s19, 4
          %s237 = smul.addr %s236, 4
          %s238 = scalar_lea.hbm %s0, %s237
          %s240 = sshll.u32 %s238, 4
          %s241 = int_to_ptr.hbm [resolvable:$true] %s240
          %s242 = sshll.u32 %s233, 4
          %s243 = int_to_ptr.vmem [resolvable:$true] %s242
          %245 = dma.hbm_to_vmem [thread:$0]  %s241, 256, %s243, %s230
        $region36: #{tpu_custom_call.1} parent=31 // pred_fallthru
          _
      $region32: #{tpu_custom_call.1} parent=5 // pred_fallthru
        _
      %p246 = scmp.le.s32.totalorder 1, %s19
      %p247 = scmp.lt.s32.totalorder %s19, 3
      %p248 = pnand %p246, %p247
      %p249 = pneg %p248
      // Predicated region
      $region37: #{tpu_custom_call.1} parent=5 // pred_check
        _
      $region38: #{tpu_custom_call.1} parent=5 // pred_check_branch
        %251 = sbr.rel (%p248) target = $region40
      $region39: #{tpu_custom_call.1} parent=5 // pred_region
        %s252 = ssub.s32 %s19, 1
        %s253 = sand.u32 %s32, 1
        %s254 = scalar_lea.sflag [#allocation3], %s253
        %s255 = sand.u32 %s32, 1
        %s256 = smul.addr %s255, 16
        %s257 = scalar_lea.vmem [#allocation2], %s256
        // Predicated region
        $region41: #{tpu_custom_call.1} parent=39 // pred_check
          %p258 = pneg %p45
        $region42: #{tpu_custom_call.1} parent=39 // pred_check_branch
          %260 = sbr.rel (%p258) target = $region44
        $region43: #{tpu_custom_call.1} parent=39 // pred_region
          %262 = dma.done %s254, 256
        $region44: #{tpu_custom_call.1} parent=39 // pred_fallthru
          _
        // Predicated region
        $region45: #{tpu_custom_call.1} parent=39 // pred_check
          %p263 = pneg %p66
        $region46: #{tpu_custom_call.1} parent=39 // pred_check_branch
          %265 = sbr.rel (%p263) target = $region48
        $region47: #{tpu_custom_call.1} parent=39 // pred_region
          %267 = dma.done [#allocation6], 65536
        $region48: #{tpu_custom_call.1} parent=39 // pred_fallthru
          _
        // Predicated region
        $region49: #{tpu_custom_call.1} parent=39 // pred_check
          %p268 = pneg %p87
        $region50: #{tpu_custom_call.1} parent=39 // pred_check_branch
          %270 = sbr.rel (%p268) target = $region52
        $region51: #{tpu_custom_call.1} parent=39 // pred_region
          %272 = dma.done [#allocation6], 256
        $region52: #{tpu_custom_call.1} parent=39 // pred_fallthru
          _
        // Predicated region
        $region53: #{tpu_custom_call.1} parent=39 // pred_check
          %p273 = pneg %p108
        $region54: #{tpu_custom_call.1} parent=39 // pred_check_branch
          %275 = sbr.rel (%p273) target = $region56
        $region55: #{tpu_custom_call.1} parent=39 // pred_region
          %277 = dma.done [#allocation9], 65536
        $region56: #{tpu_custom_call.1} parent=39 // pred_fallthru
          _
        // Predicated region
        $region57: #{tpu_custom_call.1} parent=39 // pred_check
          %p278 = pneg %p129
        $region58: #{tpu_custom_call.1} parent=39 // pred_check_branch
          %280 = sbr.rel (%p278) target = $region60
        $region59: #{tpu_custom_call.1} parent=39 // pred_region
          %282 = dma.done [#allocation9], 64
        $region60: #{tpu_custom_call.1} parent=39 // pred_fallthru
          _
        %s283 = sand.u32 %s32, 1
        %s284 = scalar_lea.sflag [#allocation3], %s283
        %s285 = sand.u32 %s32, 1
        %s286 = smul.addr %s285, 16
        %s287 = scalar_lea.vmem [#allocation2], %s286
        %p288 = pneg %p45
        %p289 = pneg %p42
        %p290 = pneg %p66
        %p291 = pneg %p63
        %p292 = pneg %p87
        %p293 = pneg %p84
        %p294 = pneg %p108
        %p295 = pneg %p105
        %p296 = pneg %p129
        %p297 = pneg %p126
        %p298 = pneg %p155
        %p299 = pneg %p152
        %s300 = sand.u32 %s142, 1
        %s301 = scalar_lea.sflag [#allocation4], %s300
        %s302 = sand.u32 %s142, 1
        %s303 = smul.addr %s302, 32
        %s304 = scalar_lea.vmem [#allocation11], %s303
        %v305 = vld [vmem:[%s257] sm:$0xff]
        %v306 = vld [vmem:[%s257 + $0x8] sm:$0xff]
        %v307 = vld [vmem:[#allocation5] sm:$0xff]
        %v308 = vld [vmem:[#allocation5 + $0x8] sm:$0xff]
        %v309 = vld [vmem:[#allocation5 + $0x10] sm:$0xff]
        %v310 = vld [vmem:[#allocation5 + $0x18] sm:$0xff]
        %v311 = vld [vmem:[#allocation5 + $0x20] sm:$0xff]
        %v312 = vld [vmem:[#allocation5 + $0x28] sm:$0xff]
        %v313 = vld [vmem:[#allocation5 + $0x30] sm:$0xff]
        %v314 = vld [vmem:[#allocation5 + $0x38] sm:$0xff]
        %v315 = vld [vmem:[#allocation5 + $0x40] sm:$0xff]
        %v316 = vld [vmem:[#allocation5 + $0x48] sm:$0xff]
        %v317 = vld [vmem:[#allocation5 + $0x50] sm:$0xff]
        %v318 = vld [vmem:[#allocation5 + $0x58] sm:$0xff]
        %v319 = vld [vmem:[#allocation5 + $0x60] sm:$0xff]
        %v320 = vld [vmem:[#allocation5 + $0x68] sm:$0xff]
        %v321 = vld [vmem:[#allocation5 + $0x70] sm:$0xff]
        %v322 = vld [vmem:[#allocation5 + $0x78] sm:$0xff]
        %v323 = vld [vmem:[#allocation5 + $0x80] sm:$0xff]
        %v324 = vld [vmem:[#allocation5 + $0x88] sm:$0xff]
        %v325 = vld [vmem:[#allocation5 + $0x90] sm:$0xff]
        %v326 = vld [vmem:[#allocation5 + $0x98] sm:$0xff]
        %v327 = vld [vmem:[#allocation5 + $0xa0] sm:$0xff]
        %v328 = vld [vmem:[#allocation5 + $0xa8] sm:$0xff]
        %v329 = vld [vmem:[#allocation5 + $0xb0] sm:$0xff]
        %v330 = vld [vmem:[#allocation5 + $0xb8] sm:$0xff]
        %v331 = vld [vmem:[#allocation5 + $0xc0] sm:$0xff]
        %v332 = vld [vmem:[#allocation5 + $0xc8] sm:$0xff]
        %v333 = vld [vmem:[#allocation5 + $0xd0] sm:$0xff]
        %v334 = vld [vmem:[#allocation5 + $0xd8] sm:$0xff]
        %v335 = vld [vmem:[#allocation5 + $0xe0] sm:$0xff]
        %v336 = vld [vmem:[#allocation5 + $0xe8] sm:$0xff]
        %v337 = vld [vmem:[#allocation5 + $0xf0] sm:$0xff]
        %v338 = vld [vmem:[#allocation5 + $0xf8] sm:$0xff]
        %v339 = vld [vmem:[#allocation5 + $0x100] sm:$0xff]
        %v340 = vld [vmem:[#allocation5 + $0x108] sm:$0xff]
        %v341 = vld [vmem:[#allocation5 + $0x110] sm:$0xff]
        %v342 = vld [vmem:[#allocation5 + $0x118] sm:$0xff]
        %v343 = vld [vmem:[#allocation5 + $0x120] sm:$0xff]
        %v344 = vld [vmem:[#allocation5 + $0x128] sm:$0xff]
        %v345 = vld [vmem:[#allocation5 + $0x130] sm:$0xff]
        %v346 = vld [vmem:[#allocation5 + $0x138] sm:$0xff]
        %v347 = vld [vmem:[#allocation5 + $0x140] sm:$0xff]
        %v348 = vld [vmem:[#allocation5 + $0x148] sm:$0xff]
        %v349 = vld [vmem:[#allocation5 + $0x150] sm:$0xff]
        %v350 = vld [vmem:[#allocation5 + $0x158] sm:$0xff]
        %v351 = vld [vmem:[#allocation5 + $0x160] sm:$0xff]
        %v352 = vld [vmem:[#allocation5 + $0x168] sm:$0xff]
        %v353 = vld [vmem:[#allocation5 + $0x170] sm:$0xff]
        %v354 = vld [vmem:[#allocation5 + $0x178] sm:$0xff]
        %v355 = vld [vmem:[#allocation5 + $0x180] sm:$0xff]
        %v356 = vld [vmem:[#allocation5 + $0x188] sm:$0xff]
        %v357 = vld [vmem:[#allocation5 + $0x190] sm:$0xff]
        %v358 = vld [vmem:[#allocation5 + $0x198] sm:$0xff]
        %v359 = vld [vmem:[#allocation5 + $0x1a0] sm:$0xff]
        %v360 = vld [vmem:[#allocation5 + $0x1a8] sm:$0xff]
        %v361 = vld [vmem:[#allocation5 + $0x1b0] sm:$0xff]
        %v362 = vld [vmem:[#allocation5 + $0x1b8] sm:$0xff]
        %v363 = vld [vmem:[#allocation5 + $0x1c0] sm:$0xff]
        %v364 = vld [vmem:[#allocation5 + $0x1c8] sm:$0xff]
        %v365 = vld [vmem:[#allocation5 + $0x1d0] sm:$0xff]
        %v366 = vld [vmem:[#allocation5 + $0x1d8] sm:$0xff]
        %v367 = vld [vmem:[#allocation5 + $0x1e0] sm:$0xff]
        %v368 = vld [vmem:[#allocation5 + $0x1e8] sm:$0xff]
        %v369 = vld [vmem:[#allocation5 + $0x1f0] sm:$0xff]
        %v370 = vld [vmem:[#allocation5 + $0x1f8] sm:$0xff]
        %v371 = vld [vmem:[#allocation5 + $0x200] sm:$0xff]
        %v372 = vld [vmem:[#allocation5 + $0x208] sm:$0xff]
        %v373 = vld [vmem:[#allocation5 + $0x210] sm:$0xff]
        %v374 = vld [vmem:[#allocation5 + $0x218] sm:$0xff]
        %v375 = vld [vmem:[#allocation5 + $0x220] sm:$0xff]
        %v376 = vld [vmem:[#allocation5 + $0x228] sm:$0xff]
        %v377 = vld [vmem:[#allocation5 + $0x230] sm:$0xff]
        %v378 = vld [vmem:[#allocation5 + $0x238] sm:$0xff]
        %v379 = vld [vmem:[#allocation5 + $0x240] sm:$0xff]
        %v380 = vld [vmem:[#allocation5 + $0x248] sm:$0xff]
        %v381 = vld [vmem:[#allocation5 + $0x250] sm:$0xff]
        %v382 = vld [vmem:[#allocation5 + $0x258] sm:$0xff]
        %v383 = vld [vmem:[#allocation5 + $0x260] sm:$0xff]
        %v384 = vld [vmem:[#allocation5 + $0x268] sm:$0xff]
        %v385 = vld [vmem:[#allocation5 + $0x270] sm:$0xff]
        %v386 = vld [vmem:[#allocation5 + $0x278] sm:$0xff]
        %v387 = vld [vmem:[#allocation5 + $0x280] sm:$0xff]
        %v388 = vld [vmem:[#allocation5 + $0x288] sm:$0xff]
        %v389 = vld [vmem:[#allocation5 + $0x290] sm:$0xff]
        %v390 = vld [vmem:[#allocation5 + $0x298] sm:$0xff]
        %v391 = vld [vmem:[#allocation5 + $0x2a0] sm:$0xff]
        %v392 = vld [vmem:[#allocation5 + $0x2a8] sm:$0xff]
        %v393 = vld [vmem:[#allocation5 + $0x2b0] sm:$0xff]
        %v394 = vld [vmem:[#allocation5 + $0x2b8] sm:$0xff]
        %v395 = vld [vmem:[#allocation5 + $0x2c0] sm:$0xff]
        %v396 = vld [vmem:[#allocation5 + $0x2c8] sm:$0xff]
        %v397 = vld [vmem:[#allocation5 + $0x2d0] sm:$0xff]
        %v398 = vld [vmem:[#allocation5 + $0x2d8] sm:$0xff]
        %v399 = vld [vmem:[#allocation5 + $0x2e0] sm:$0xff]
        %v400 = vld [vmem:[#allocation5 + $0x2e8] sm:$0xff]
        %v401 = vld [vmem:[#allocation5 + $0x2f0] sm:$0xff]
        %v402 = vld [vmem:[#allocation5 + $0x2f8] sm:$0xff]
        %v403 = vld [vmem:[#allocation5 + $0x300] sm:$0xff]
        %v404 = vld [vmem:[#allocation5 + $0x308] sm:$0xff]
        %v405 = vld [vmem:[#allocation5 + $0x310] sm:$0xff]
        %v406 = vld [vmem:[#allocation5 + $0x318] sm:$0xff]
        %v407 = vld [vmem:[#allocation5 + $0x320] sm:$0xff]
        %v408 = vld [vmem:[#allocation5 + $0x328] sm:$0xff]
        %v409 = vld [vmem:[#allocation5 + $0x330] sm:$0xff]
        %v410 = vld [vmem:[#allocation5 + $0x338] sm:$0xff]
        %v411 = vld [vmem:[#allocation5 + $0x340] sm:$0xff]
        %v412 = vld [vmem:[#allocation5 + $0x348] sm:$0xff]
        %v413 = vld [vmem:[#allocation5 + $0x350] sm:$0xff]
        %v414 = vld [vmem:[#allocation5 + $0x358] sm:$0xff]
        %v415 = vld [vmem:[#allocation5 + $0x360] sm:$0xff]
        %v416 = vld [vmem:[#allocation5 + $0x368] sm:$0xff]
        %v417 = vld [vmem:[#allocation5 + $0x370] sm:$0xff]
        %v418 = vld [vmem:[#allocation5 + $0x378] sm:$0xff]
        %v419 = vld [vmem:[#allocation5 + $0x380] sm:$0xff]
        %v420 = vld [vmem:[#allocation5 + $0x388] sm:$0xff]
        %v421 = vld [vmem:[#allocation5 + $0x390] sm:$0xff]
        %v422 = vld [vmem:[#allocation5 + $0x398] sm:$0xff]
        %v423 = vld [vmem:[#allocation5 + $0x3a0] sm:$0xff]
        %v424 = vld [vmem:[#allocation5 + $0x3a8] sm:$0xff]
        %v425 = vld [vmem:[#allocation5 + $0x3b0] sm:$0xff]
        %v426 = vld [vmem:[#allocation5 + $0x3b8] sm:$0xff]
        %v427 = vld [vmem:[#allocation5 + $0x3c0] sm:$0xff]
        %v428 = vld [vmem:[#allocation5 + $0x3c8] sm:$0xff]
        %v429 = vld [vmem:[#allocation5 + $0x3d0] sm:$0xff]
        %v430 = vld [vmem:[#allocation5 + $0x3d8] sm:$0xff]
        %v431 = vld [vmem:[#allocation5 + $0x3e0] sm:$0xff]
        %v432 = vld [vmem:[#allocation5 + $0x3e8] sm:$0xff]
        %v433 = vld [vmem:[#allocation5 + $0x3f0] sm:$0xff]
        %v434 = vld [vmem:[#allocation5 + $0x3f8] sm:$0xff]
        %v435 = vld [vmem:[#allocation5 + $0x400] sm:$0xff]
        %v436 = vld [vmem:[#allocation5 + $0x408] sm:$0xff]
        %v437 = vld [vmem:[#allocation5 + $0x410] sm:$0xff]
        %v438 = vld [vmem:[#allocation5 + $0x418] sm:$0xff]
        %v439 = vld [vmem:[#allocation5 + $0x420] sm:$0xff]
        %v440 = vld [vmem:[#allocation5 + $0x428] sm:$0xff]
        %v441 = vld [vmem:[#allocation5 + $0x430] sm:$0xff]
        %v442 = vld [vmem:[#allocation5 + $0x438] sm:$0xff]
        %v443 = vld [vmem:[#allocation5 + $0x440] sm:$0xff]
        %v444 = vld [vmem:[#allocation5 + $0x448] sm:$0xff]
        %v445 = vld [vmem:[#allocation5 + $0x450] sm:$0xff]
        %v446 = vld [vmem:[#allocation5 + $0x458] sm:$0xff]
        %v447 = vld [vmem:[#allocation5 + $0x460] sm:$0xff]
        %v448 = vld [vmem:[#allocation5 + $0x468] sm:$0xff]
        %v449 = vld [vmem:[#allocation5 + $0x470] sm:$0xff]
        %v450 = vld [vmem:[#allocation5 + $0x478] sm:$0xff]
        %v451 = vld [vmem:[#allocation5 + $0x480] sm:$0xff]
        %v452 = vld [vmem:[#allocation5 + $0x488] sm:$0xff]
        %v453 = vld [vmem:[#allocation5 + $0x490] sm:$0xff]
        %v454 = vld [vmem:[#allocation5 + $0x498] sm:$0xff]
        %v455 = vld [vmem:[#allocation5 + $0x4a0] sm:$0xff]
        %v456 = vld [vmem:[#allocation5 + $0x4a8] sm:$0xff]
        %v457 = vld [vmem:[#allocation5 + $0x4b0] sm:$0xff]
        %v458 = vld [vmem:[#allocation5 + $0x4b8] sm:$0xff]
        %v459 = vld [vmem:[#allocation5 + $0x4c0] sm:$0xff]
        %v460 = vld [vmem:[#allocation5 + $0x4c8] sm:$0xff]
        %v461 = vld [vmem:[#allocation5 + $0x4d0] sm:$0xff]
        %v462 = vld [vmem:[#allocation5 + $0x4d8] sm:$0xff]
        %v463 = vld [vmem:[#allocation5 + $0x4e0] sm:$0xff]
        %v464 = vld [vmem:[#allocation5 + $0x4e8] sm:$0xff]
        %v465 = vld [vmem:[#allocation5 + $0x4f0] sm:$0xff]
        %v466 = vld [vmem:[#allocation5 + $0x4f8] sm:$0xff]
        %v467 = vld [vmem:[#allocation5 + $0x500] sm:$0xff]
        %v468 = vld [vmem:[#allocation5 + $0x508] sm:$0xff]
        %v469 = vld [vmem:[#allocation5 + $0x510] sm:$0xff]
        %v470 = vld [vmem:[#allocation5 + $0x518] sm:$0xff]
        %v471 = vld [vmem:[#allocation5 + $0x520] sm:$0xff]
        %v472 = vld [vmem:[#allocation5 + $0x528] sm:$0xff]
        %v473 = vld [vmem:[#allocation5 + $0x530] sm:$0xff]
        %v474 = vld [vmem:[#allocation5 + $0x538] sm:$0xff]
        %v475 = vld [vmem:[#allocation5 + $0x540] sm:$0xff]
        %v476 = vld [vmem:[#allocation5 + $0x548] sm:$0xff]
        %v477 = vld [vmem:[#allocation5 + $0x550] sm:$0xff]
        %v478 = vld [vmem:[#allocation5 + $0x558] sm:$0xff]
        %v479 = vld [vmem:[#allocation5 + $0x560] sm:$0xff]
        %v480 = vld [vmem:[#allocation5 + $0x568] sm:$0xff]
        %v481 = vld [vmem:[#allocation5 + $0x570] sm:$0xff]
        %v482 = vld [vmem:[#allocation5 + $0x578] sm:$0xff]
        %v483 = vld [vmem:[#allocation5 + $0x580] sm:$0xff]
        %v484 = vld [vmem:[#allocation5 + $0x588] sm:$0xff]
        %v485 = vld [vmem:[#allocation5 + $0x590] sm:$0xff]
        %v486 = vld [vmem:[#allocation5 + $0x598] sm:$0xff]
        %v487 = vld [vmem:[#allocation5 + $0x5a0] sm:$0xff]
        %v488 = vld [vmem:[#allocation5 + $0x5a8] sm:$0xff]
        %v489 = vld [vmem:[#allocation5 + $0x5b0] sm:$0xff]
        %v490 = vld [vmem:[#allocation5 + $0x5b8] sm:$0xff]
        %v491 = vld [vmem:[#allocation5 + $0x5c0] sm:$0xff]
        %v492 = vld [vmem:[#allocation5 + $0x5c8] sm:$0xff]
        %v493 = vld [vmem:[#allocation5 + $0x5d0] sm:$0xff]
        %v494 = vld [vmem:[#allocation5 + $0x5d8] sm:$0xff]
        %v495 = vld [vmem:[#allocation5 + $0x5e0] sm:$0xff]
        %v496 = vld [vmem:[#allocation5 + $0x5e8] sm:$0xff]
        %v497 = vld [vmem:[#allocation5 + $0x5f0] sm:$0xff]
        %v498 = vld [vmem:[#allocation5 + $0x5f8] sm:$0xff]
        %v499 = vld [vmem:[#allocation5 + $0x600] sm:$0xff]
        %v500 = vld [vmem:[#allocation5 + $0x608] sm:$0xff]
        %v501 = vld [vmem:[#allocation5 + $0x610] sm:$0xff]
        %v502 = vld [vmem:[#allocation5 + $0x618] sm:$0xff]
        %v503 = vld [vmem:[#allocation5 + $0x620] sm:$0xff]
        %v504 = vld [vmem:[#allocation5 + $0x628] sm:$0xff]
        %v505 = vld [vmem:[#allocation5 + $0x630] sm:$0xff]
        %v506 = vld [vmem:[#allocation5 + $0x638] sm:$0xff]
        %v507 = vld [vmem:[#allocation5 + $0x640] sm:$0xff]
        %v508 = vld [vmem:[#allocation5 + $0x648] sm:$0xff]
        %v509 = vld [vmem:[#allocation5 + $0x650] sm:$0xff]
        %v510 = vld [vmem:[#allocation5 + $0x658] sm:$0xff]
        %v511 = vld [vmem:[#allocation5 + $0x660] sm:$0xff]
        %v512 = vld [vmem:[#allocation5 + $0x668] sm:$0xff]
        %v513 = vld [vmem:[#allocation5 + $0x670] sm:$0xff]
        %v514 = vld [vmem:[#allocation5 + $0x678] sm:$0xff]
        %v515 = vld [vmem:[#allocation5 + $0x680] sm:$0xff]
        %v516 = vld [vmem:[#allocation5 + $0x688] sm:$0xff]
        %v517 = vld [vmem:[#allocation5 + $0x690] sm:$0xff]
        %v518 = vld [vmem:[#allocation5 + $0x698] sm:$0xff]
        %v519 = vld [vmem:[#allocation5 + $0x6a0] sm:$0xff]
        %v520 = vld [vmem:[#allocation5 + $0x6a8] sm:$0xff]
        %v521 = vld [vmem:[#allocation5 + $0x6b0] sm:$0xff]
        %v522 = vld [vmem:[#allocation5 + $0x6b8] sm:$0xff]
        %v523 = vld [vmem:[#allocation5 + $0x6c0] sm:$0xff]
        %v524 = vld [vmem:[#allocation5 + $0x6c8] sm:$0xff]
        %v525 = vld [vmem:[#allocation5 + $0x6d0] sm:$0xff]
        %v526 = vld [vmem:[#allocation5 + $0x6d8] sm:$0xff]
        %v527 = vld [vmem:[#allocation5 + $0x6e0] sm:$0xff]
        %v528 = vld [vmem:[#allocation5 + $0x6e8] sm:$0xff]
        %v529 = vld [vmem:[#allocation5 + $0x6f0] sm:$0xff]
        %v530 = vld [vmem:[#allocation5 + $0x6f8] sm:$0xff]
        %v531 = vld [vmem:[#allocation5 + $0x700] sm:$0xff]
        %v532 = vld [vmem:[#allocation5 + $0x708] sm:$0xff]
        %v533 = vld [vmem:[#allocation5 + $0x710] sm:$0xff]
        %v534 = vld [vmem:[#allocation5 + $0x718] sm:$0xff]
        %v535 = vld [vmem:[#allocation5 + $0x720] sm:$0xff]
        %v536 = vld [vmem:[#allocation5 + $0x728] sm:$0xff]
        %v537 = vld [vmem:[#allocation5 + $0x730] sm:$0xff]
        %v538 = vld [vmem:[#allocation5 + $0x738] sm:$0xff]
        %v539 = vld [vmem:[#allocation5 + $0x740] sm:$0xff]
        %v540 = vld [vmem:[#allocation5 + $0x748] sm:$0xff]
        %v541 = vld [vmem:[#allocation5 + $0x750] sm:$0xff]
        %v542 = vld [vmem:[#allocation5 + $0x758] sm:$0xff]
        %v543 = vld [vmem:[#allocation5 + $0x760] sm:$0xff]
        %v544 = vld [vmem:[#allocation5 + $0x768] sm:$0xff]
        %v545 = vld [vmem:[#allocation5 + $0x770] sm:$0xff]
        %v546 = vld [vmem:[#allocation5 + $0x778] sm:$0xff]
        %v547 = vld [vmem:[#allocation5 + $0x780] sm:$0xff]
        %v548 = vld [vmem:[#allocation5 + $0x788] sm:$0xff]
        %v549 = vld [vmem:[#allocation5 + $0x790] sm:$0xff]
        %v550 = vld [vmem:[#allocation5 + $0x798] sm:$0xff]
        %v551 = vld [vmem:[#allocation5 + $0x7a0] sm:$0xff]
        %v552 = vld [vmem:[#allocation5 + $0x7a8] sm:$0xff]
        %v553 = vld [vmem:[#allocation5 + $0x7b0] sm:$0xff]
        %v554 = vld [vmem:[#allocation5 + $0x7b8] sm:$0xff]
        %v555 = vld [vmem:[#allocation5 + $0x7c0] sm:$0xff]
        %v556 = vld [vmem:[#allocation5 + $0x7c8] sm:$0xff]
        %v557 = vld [vmem:[#allocation5 + $0x7d0] sm:$0xff]
        %v558 = vld [vmem:[#allocation5 + $0x7d8] sm:$0xff]
        %v559 = vld [vmem:[#allocation5 + $0x7e0] sm:$0xff]
        %v560 = vld [vmem:[#allocation5 + $0x7e8] sm:$0xff]
        %v561 = vld [vmem:[#allocation5 + $0x7f0] sm:$0xff]
        %v562 = vld [vmem:[#allocation5 + $0x7f8] sm:$0xff]
        %v563 = vld [vmem:[#allocation5 + $0x800] sm:$0xff]
        %v564 = vld [vmem:[#allocation5 + $0x808] sm:$0xff]
        %v565 = vld [vmem:[#allocation5 + $0x810] sm:$0xff]
        %v566 = vld [vmem:[#allocation5 + $0x818] sm:$0xff]
        %v567 = vld [vmem:[#allocation5 + $0x820] sm:$0xff]
        %v568 = vld [vmem:[#allocation5 + $0x828] sm:$0xff]
        %v569 = vld [vmem:[#allocation5 + $0x830] sm:$0xff]
        %v570 = vld [vmem:[#allocation5 + $0x838] sm:$0xff]
        %v571 = vld [vmem:[#allocation5 + $0x840] sm:$0xff]
        %v572 = vld [vmem:[#allocation5 + $0x848] sm:$0xff]
        %v573 = vld [vmem:[#allocation5 + $0x850] sm:$0xff]
        %v574 = vld [vmem:[#allocation5 + $0x858] sm:$0xff]
        %v575 = vld [vmem:[#allocation5 + $0x860] sm:$0xff]
        %v576 = vld [vmem:[#allocation5 + $0x868] sm:$0xff]
        %v577 = vld [vmem:[#allocation5 + $0x870] sm:$0xff]
        %v578 = vld [vmem:[#allocation5 + $0x878] sm:$0xff]
        %v579 = vld [vmem:[#allocation5 + $0x880] sm:$0xff]
        %v580 = vld [vmem:[#allocation5 + $0x888] sm:$0xff]
        %v581 = vld [vmem:[#allocation5 + $0x890] sm:$0xff]
        %v582 = vld [vmem:[#allocation5 + $0x898] sm:$0xff]
        %v583 = vld [vmem:[#allocation5 + $0x8a0] sm:$0xff]
        %v584 = vld [vmem:[#allocation5 + $0x8a8] sm:$0xff]
        %v585 = vld [vmem:[#allocation5 + $0x8b0] sm:$0xff]
        %v586 = vld [vmem:[#allocation5 + $0x8b8] sm:$0xff]
        %v587 = vld [vmem:[#allocation5 + $0x8c0] sm:$0xff]
        %v588 = vld [vmem:[#allocation5 + $0x8c8] sm:$0xff]
        %v589 = vld [vmem:[#allocation5 + $0x8d0] sm:$0xff]
        %v590 = vld [vmem:[#allocation5 + $0x8d8] sm:$0xff]
        %v591 = vld [vmem:[#allocation5 + $0x8e0] sm:$0xff]
        %v592 = vld [vmem:[#allocation5 + $0x8e8] sm:$0xff]
        %v593 = vld [vmem:[#allocation5 + $0x8f0] sm:$0xff]
        %v594 = vld [vmem:[#allocation5 + $0x8f8] sm:$0xff]
        %v595 = vld [vmem:[#allocation5 + $0x900] sm:$0xff]
        %v596 = vld [vmem:[#allocation5 + $0x908] sm:$0xff]
        %v597 = vld [vmem:[#allocation5 + $0x910] sm:$0xff]
        %v598 = vld [vmem:[#allocation5 + $0x918] sm:$0xff]
        %v599 = vld [vmem:[#allocation5 + $0x920] sm:$0xff]
        %v600 = vld [vmem:[#allocation5 + $0x928] sm:$0xff]
        %v601 = vld [vmem:[#allocation5 + $0x930] sm:$0xff]
        %v602 = vld [vmem:[#allocation5 + $0x938] sm:$0xff]
        %v603 = vld [vmem:[#allocation5 + $0x940] sm:$0xff]
        %v604 = vld [vmem:[#allocation5 + $0x948] sm:$0xff]
        %v605 = vld [vmem:[#allocation5 + $0x950] sm:$0xff]
        %v606 = vld [vmem:[#allocation5 + $0x958] sm:$0xff]
        %v607 = vld [vmem:[#allocation5 + $0x960] sm:$0xff]
        %v608 = vld [vmem:[#allocation5 + $0x968] sm:$0xff]
        %v609 = vld [vmem:[#allocation5 + $0x970] sm:$0xff]
        %v610 = vld [vmem:[#allocation5 + $0x978] sm:$0xff]
        %v611 = vld [vmem:[#allocation5 + $0x980] sm:$0xff]
        %v612 = vld [vmem:[#allocation5 + $0x988] sm:$0xff]
        %v613 = vld [vmem:[#allocation5 + $0x990] sm:$0xff]
        %v614 = vld [vmem:[#allocation5 + $0x998] sm:$0xff]
        %v615 = vld [vmem:[#allocation5 + $0x9a0] sm:$0xff]
        %v616 = vld [vmem:[#allocation5 + $0x9a8] sm:$0xff]
        %v617 = vld [vmem:[#allocation5 + $0x9b0] sm:$0xff]
        %v618 = vld [vmem:[#allocation5 + $0x9b8] sm:$0xff]
        %v619 = vld [vmem:[#allocation5 + $0x9c0] sm:$0xff]
        %v620 = vld [vmem:[#allocation5 + $0x9c8] sm:$0xff]
        %v621 = vld [vmem:[#allocation5 + $0x9d0] sm:$0xff]
        %v622 = vld [vmem:[#allocation5 + $0x9d8] sm:$0xff]
        %v623 = vld [vmem:[#allocation5 + $0x9e0] sm:$0xff]
        %v624 = vld [vmem:[#allocation5 + $0x9e8] sm:$0xff]
        %v625 = vld [vmem:[#allocation5 + $0x9f0] sm:$0xff]
        %v626 = vld [vmem:[#allocation5 + $0x9f8] sm:$0xff]
        %v627 = vld [vmem:[#allocation5 + $0xa00] sm:$0xff]
        %v628 = vld [vmem:[#allocation5 + $0xa08] sm:$0xff]
        %v629 = vld [vmem:[#allocation5 + $0xa10] sm:$0xff]
        %v630 = vld [vmem:[#allocation5 + $0xa18] sm:$0xff]
        %v631 = vld [vmem:[#allocation5 + $0xa20] sm:$0xff]
        %v632 = vld [vmem:[#allocation5 + $0xa28] sm:$0xff]
        %v633 = vld [vmem:[#allocation5 + $0xa30] sm:$0xff]
        %v634 = vld [vmem:[#allocation5 + $0xa38] sm:$0xff]
        %v635 = vld [vmem:[#allocation5 + $0xa40] sm:$0xff]
        %v636 = vld [vmem:[#allocation5 + $0xa48] sm:$0xff]
        %v637 = vld [vmem:[#allocation5 + $0xa50] sm:$0xff]
        %v638 = vld [vmem:[#allocation5 + $0xa58] sm:$0xff]
        %v639 = vld [vmem:[#allocation5 + $0xa60] sm:$0xff]
        %v640 = vld [vmem:[#allocation5 + $0xa68] sm:$0xff]
        %v641 = vld [vmem:[#allocation5 + $0xa70] sm:$0xff]
        %v642 = vld [vmem:[#allocation5 + $0xa78] sm:$0xff]
        %v643 = vld [vmem:[#allocation5 + $0xa80] sm:$0xff]
        %v644 = vld [vmem:[#allocation5 + $0xa88] sm:$0xff]
        %v645 = vld [vmem:[#allocation5 + $0xa90] sm:$0xff]
        %v646 = vld [vmem:[#allocation5 + $0xa98] sm:$0xff]
        %v647 = vld [vmem:[#allocation5 + $0xaa0] sm:$0xff]
        %v648 = vld [vmem:[#allocation5 + $0xaa8] sm:$0xff]
        %v649 = vld [vmem:[#allocation5 + $0xab0] sm:$0xff]
        %v650 = vld [vmem:[#allocation5 + $0xab8] sm:$0xff]
        %v651 = vld [vmem:[#allocation5 + $0xac0] sm:$0xff]
        %v652 = vld [vmem:[#allocation5 + $0xac8] sm:$0xff]
        %v653 = vld [vmem:[#allocation5 + $0xad0] sm:$0xff]
        %v654 = vld [vmem:[#allocation5 + $0xad8] sm:$0xff]
        %v655 = vld [vmem:[#allocation5 + $0xae0] sm:$0xff]
        %v656 = vld [vmem:[#allocation5 + $0xae8] sm:$0xff]
        %v657 = vld [vmem:[#allocation5 + $0xaf0] sm:$0xff]
        %v658 = vld [vmem:[#allocation5 + $0xaf8] sm:$0xff]
        %v659 = vld [vmem:[#allocation5 + $0xb00] sm:$0xff]
        %v660 = vld [vmem:[#allocation5 + $0xb08] sm:$0xff]
        %v661 = vld [vmem:[#allocation5 + $0xb10] sm:$0xff]
        %v662 = vld [vmem:[#allocation5 + $0xb18] sm:$0xff]
        %v663 = vld [vmem:[#allocation5 + $0xb20] sm:$0xff]
        %v664 = vld [vmem:[#allocation5 + $0xb28] sm:$0xff]
        %v665 = vld [vmem:[#allocation5 + $0xb30] sm:$0xff]
        %v666 = vld [vmem:[#allocation5 + $0xb38] sm:$0xff]
        %v667 = vld [vmem:[#allocation5 + $0xb40] sm:$0xff]
        %v668 = vld [vmem:[#allocation5 + $0xb48] sm:$0xff]
        %v669 = vld [vmem:[#allocation5 + $0xb50] sm:$0xff]
        %v670 = vld [vmem:[#allocation5 + $0xb58] sm:$0xff]
        %v671 = vld [vmem:[#allocation5 + $0xb60] sm:$0xff]
        %v672 = vld [vmem:[#allocation5 + $0xb68] sm:$0xff]
        %v673 = vld [vmem:[#allocation5 + $0xb70] sm:$0xff]
        %v674 = vld [vmem:[#allocation5 + $0xb78] sm:$0xff]
        %v675 = vld [vmem:[#allocation5 + $0xb80] sm:$0xff]
        %v676 = vld [vmem:[#allocation5 + $0xb88] sm:$0xff]
        %v677 = vld [vmem:[#allocation5 + $0xb90] sm:$0xff]
        %v678 = vld [vmem:[#allocation5 + $0xb98] sm:$0xff]
        %v679 = vld [vmem:[#allocation5 + $0xba0] sm:$0xff]
        %v680 = vld [vmem:[#allocation5 + $0xba8] sm:$0xff]
        %v681 = vld [vmem:[#allocation5 + $0xbb0] sm:$0xff]
        %v682 = vld [vmem:[#allocation5 + $0xbb8] sm:$0xff]
        %v683 = vld [vmem:[#allocation5 + $0xbc0] sm:$0xff]
        %v684 = vld [vmem:[#allocation5 + $0xbc8] sm:$0xff]
        %v685 = vld [vmem:[#allocation5 + $0xbd0] sm:$0xff]
        %v686 = vld [vmem:[#allocation5 + $0xbd8] sm:$0xff]
        %v687 = vld [vmem:[#allocation5 + $0xbe0] sm:$0xff]
        %v688 = vld [vmem:[#allocation5 + $0xbe8] sm:$0xff]
        %v689 = vld [vmem:[#allocation5 + $0xbf0] sm:$0xff]
        %v690 = vld [vmem:[#allocation5 + $0xbf8] sm:$0xff]
        %v691 = vld [vmem:[#allocation5 + $0xc00] sm:$0xff]
        %v692 = vld [vmem:[#allocation5 + $0xc08] sm:$0xff]
        %v693 = vld [vmem:[#allocation5 + $0xc10] sm:$0xff]
        %v694 = vld [vmem:[#allocation5 + $0xc18] sm:$0xff]
        %v695 = vld [vmem:[#allocation5 + $0xc20] sm:$0xff]
        %v696 = vld [vmem:[#allocation5 + $0xc28] sm:$0xff]
        %v697 = vld [vmem:[#allocation5 + $0xc30] sm:$0xff]
        %v698 = vld [vmem:[#allocation5 + $0xc38] sm:$0xff]
        %v699 = vld [vmem:[#allocation5 + $0xc40] sm:$0xff]
        %v700 = vld [vmem:[#allocation5 + $0xc48] sm:$0xff]
        %v701 = vld [vmem:[#allocation5 + $0xc50] sm:$0xff]
        %v702 = vld [vmem:[#allocation5 + $0xc58] sm:$0xff]
        %v703 = vld [vmem:[#allocation5 + $0xc60] sm:$0xff]
        %v704 = vld [vmem:[#allocation5 + $0xc68] sm:$0xff]
        %v705 = vld [vmem:[#allocation5 + $0xc70] sm:$0xff]
        %v706 = vld [vmem:[#allocation5 + $0xc78] sm:$0xff]
        %v707 = vld [vmem:[#allocation5 + $0xc80] sm:$0xff]
        %v708 = vld [vmem:[#allocation5 + $0xc88] sm:$0xff]
        %v709 = vld [vmem:[#allocation5 + $0xc90] sm:$0xff]
        %v710 = vld [vmem:[#allocation5 + $0xc98] sm:$0xff]
        %v711 = vld [vmem:[#allocation5 + $0xca0] sm:$0xff]
        %v712 = vld [vmem:[#allocation5 + $0xca8] sm:$0xff]
        %v713 = vld [vmem:[#allocation5 + $0xcb0] sm:$0xff]
        %v714 = vld [vmem:[#allocation5 + $0xcb8] sm:$0xff]
        %v715 = vld [vmem:[#allocation5 + $0xcc0] sm:$0xff]
        %v716 = vld [vmem:[#allocation5 + $0xcc8] sm:$0xff]
        %v717 = vld [vmem:[#allocation5 + $0xcd0] sm:$0xff]
        %v718 = vld [vmem:[#allocation5 + $0xcd8] sm:$0xff]
        %v719 = vld [vmem:[#allocation5 + $0xce0] sm:$0xff]
        %v720 = vld [vmem:[#allocation5 + $0xce8] sm:$0xff]
        %v721 = vld [vmem:[#allocation5 + $0xcf0] sm:$0xff]
        %v722 = vld [vmem:[#allocation5 + $0xcf8] sm:$0xff]
        %v723 = vld [vmem:[#allocation5 + $0xd00] sm:$0xff]
        %v724 = vld [vmem:[#allocation5 + $0xd08] sm:$0xff]
        %v725 = vld [vmem:[#allocation5 + $0xd10] sm:$0xff]
        %v726 = vld [vmem:[#allocation5 + $0xd18] sm:$0xff]
        %v727 = vld [vmem:[#allocation5 + $0xd20] sm:$0xff]
        %v728 = vld [vmem:[#allocation5 + $0xd28] sm:$0xff]
        %v729 = vld [vmem:[#allocation5 + $0xd30] sm:$0xff]
        %v730 = vld [vmem:[#allocation5 + $0xd38] sm:$0xff]
        %v731 = vld [vmem:[#allocation5 + $0xd40] sm:$0xff]
        %v732 = vld [vmem:[#allocation5 + $0xd48] sm:$0xff]
        %v733 = vld [vmem:[#allocation5 + $0xd50] sm:$0xff]
        %v734 = vld [vmem:[#allocation5 + $0xd58] sm:$0xff]
        %v735 = vld [vmem:[#allocation5 + $0xd60] sm:$0xff]
        %v736 = vld [vmem:[#allocation5 + $0xd68] sm:$0xff]
        %v737 = vld [vmem:[#allocation5 + $0xd70] sm:$0xff]
        %v738 = vld [vmem:[#allocation5 + $0xd78] sm:$0xff]
        %v739 = vld [vmem:[#allocation5 + $0xd80] sm:$0xff]
        %v740 = vld [vmem:[#allocation5 + $0xd88] sm:$0xff]
        %v741 = vld [vmem:[#allocation5 + $0xd90] sm:$0xff]
        %v742 = vld [vmem:[#allocation5 + $0xd98] sm:$0xff]
        %v743 = vld [vmem:[#allocation5 + $0xda0] sm:$0xff]
        %v744 = vld [vmem:[#allocation5 + $0xda8] sm:$0xff]
        %v745 = vld [vmem:[#allocation5 + $0xdb0] sm:$0xff]
        %v746 = vld [vmem:[#allocation5 + $0xdb8] sm:$0xff]
        %v747 = vld [vmem:[#allocation5 + $0xdc0] sm:$0xff]
        %v748 = vld [vmem:[#allocation5 + $0xdc8] sm:$0xff]
        %v749 = vld [vmem:[#allocation5 + $0xdd0] sm:$0xff]
        %v750 = vld [vmem:[#allocation5 + $0xdd8] sm:$0xff]
        %v751 = vld [vmem:[#allocation5 + $0xde0] sm:$0xff]
        %v752 = vld [vmem:[#allocation5 + $0xde8] sm:$0xff]
        %v753 = vld [vmem:[#allocation5 + $0xdf0] sm:$0xff]
        %v754 = vld [vmem:[#allocation5 + $0xdf8] sm:$0xff]
        %v755 = vld [vmem:[#allocation5 + $0xe00] sm:$0xff]
        %v756 = vld [vmem:[#allocation5 + $0xe08] sm:$0xff]
        %v757 = vld [vmem:[#allocation5 + $0xe10] sm:$0xff]
        %v758 = vld [vmem:[#allocation5 + $0xe18] sm:$0xff]
        %v759 = vld [vmem:[#allocation5 + $0xe20] sm:$0xff]
        %v760 = vld [vmem:[#allocation5 + $0xe28] sm:$0xff]
        %v761 = vld [vmem:[#allocation5 + $0xe30] sm:$0xff]
        %v762 = vld [vmem:[#allocation5 + $0xe38] sm:$0xff]
        %v763 = vld [vmem:[#allocation5 + $0xe40] sm:$0xff]
        %v764 = vld [vmem:[#allocation5 + $0xe48] sm:$0xff]
        %v765 = vld [vmem:[#allocation5 + $0xe50] sm:$0xff]
        %v766 = vld [vmem:[#allocation5 + $0xe58] sm:$0xff]
        %v767 = vld [vmem:[#allocation5 + $0xe60] sm:$0xff]
        %v768 = vld [vmem:[#allocation5 + $0xe68] sm:$0xff]
        %v769 = vld [vmem:[#allocation5 + $0xe70] sm:$0xff]
        %v770 = vld [vmem:[#allocation5 + $0xe78] sm:$0xff]
        %v771 = vld [vmem:[#allocation5 + $0xe80] sm:$0xff]
        %v772 = vld [vmem:[#allocation5 + $0xe88] sm:$0xff]
        %v773 = vld [vmem:[#allocation5 + $0xe90] sm:$0xff]
        %v774 = vld [vmem:[#allocation5 + $0xe98] sm:$0xff]
        %v775 = vld [vmem:[#allocation5 + $0xea0] sm:$0xff]
        %v776 = vld [vmem:[#allocation5 + $0xea8] sm:$0xff]
        %v777 = vld [vmem:[#allocation5 + $0xeb0] sm:$0xff]
        %v778 = vld [vmem:[#allocation5 + $0xeb8] sm:$0xff]
        %v779 = vld [vmem:[#allocation5 + $0xec0] sm:$0xff]
        %v780 = vld [vmem:[#allocation5 + $0xec8] sm:$0xff]
        %v781 = vld [vmem:[#allocation5 + $0xed0] sm:$0xff]
        %v782 = vld [vmem:[#allocation5 + $0xed8] sm:$0xff]
        %v783 = vld [vmem:[#allocation5 + $0xee0] sm:$0xff]
        %v784 = vld [vmem:[#allocation5 + $0xee8] sm:$0xff]
        %v785 = vld [vmem:[#allocation5 + $0xef0] sm:$0xff]
        %v786 = vld [vmem:[#allocation5 + $0xef8] sm:$0xff]
        %v787 = vld [vmem:[#allocation5 + $0xf00] sm:$0xff]
        %v788 = vld [vmem:[#allocation5 + $0xf08] sm:$0xff]
        %v789 = vld [vmem:[#allocation5 + $0xf10] sm:$0xff]
        %v790 = vld [vmem:[#allocation5 + $0xf18] sm:$0xff]
        %v791 = vld [vmem:[#allocation5 + $0xf20] sm:$0xff]
        %v792 = vld [vmem:[#allocation5 + $0xf28] sm:$0xff]
        %v793 = vld [vmem:[#allocation5 + $0xf30] sm:$0xff]
        %v794 = vld [vmem:[#allocation5 + $0xf38] sm:$0xff]
        %v795 = vld [vmem:[#allocation5 + $0xf40] sm:$0xff]
        %v796 = vld [vmem:[#allocation5 + $0xf48] sm:$0xff]
        %v797 = vld [vmem:[#allocation5 + $0xf50] sm:$0xff]
        %v798 = vld [vmem:[#allocation5 + $0xf58] sm:$0xff]
        %v799 = vld [vmem:[#allocation5 + $0xf60] sm:$0xff]
        %v800 = vld [vmem:[#allocation5 + $0xf68] sm:$0xff]
        %v801 = vld [vmem:[#allocation5 + $0xf70] sm:$0xff]
        %v802 = vld [vmem:[#allocation5 + $0xf78] sm:$0xff]
        %v803 = vld [vmem:[#allocation5 + $0xf80] sm:$0xff]
        %v804 = vld [vmem:[#allocation5 + $0xf88] sm:$0xff]
        %v805 = vld [vmem:[#allocation5 + $0xf90] sm:$0xff]
        %v806 = vld [vmem:[#allocation5 + $0xf98] sm:$0xff]
        %v807 = vld [vmem:[#allocation5 + $0xfa0] sm:$0xff]
        %v808 = vld [vmem:[#allocation5 + $0xfa8] sm:$0xff]
        %v809 = vld [vmem:[#allocation5 + $0xfb0] sm:$0xff]
        %v810 = vld [vmem:[#allocation5 + $0xfb8] sm:$0xff]
        %v811 = vld [vmem:[#allocation5 + $0xfc0] sm:$0xff]
        %v812 = vld [vmem:[#allocation5 + $0xfc8] sm:$0xff]
        %v813 = vld [vmem:[#allocation5 + $0xfd0] sm:$0xff]
        %v814 = vld [vmem:[#allocation5 + $0xfd8] sm:$0xff]
        %v815 = vld [vmem:[#allocation5 + $0xfe0] sm:$0xff]
        %v816 = vld [vmem:[#allocation5 + $0xfe8] sm:$0xff]
        %v817 = vld [vmem:[#allocation5 + $0xff0] sm:$0xff]
        %v818 = vld [vmem:[#allocation5 + $0xff8] sm:$0xff]
        %v819 = vld [vmem:[#allocation7] sm:$0xff]
        %v820 = vld [vmem:[#allocation7 + $0x8] sm:$0xff]
        %v823 = vperm.slane %v819, 0
        %v824 = vperm.slane %v819, 1
        %v825 = vperm.slane %v819, 2
        %v826 = vperm.slane %v819, 3
        %v827 = vperm.slane %v819, 4
        %v828 = vperm.slane %v819, 5
        %v829 = vperm.slane %v819, 6
        %v830 = vperm.slane %v819, 7
        %v831 = vperm.slane %v820, 0
        %v832 = vperm.slane %v820, 1
        %v833 = vperm.slane %v820, 2
        %v834 = vperm.slane %v820, 3
        %v835 = vperm.slane %v820, 4
        %v836 = vperm.slane %v820, 5
        %v837 = vperm.slane %v820, 6
        %v838 = vperm.slane %v820, 7
        %v857 = vunpack.c.l.b16 %v305
        %v858 = vunpack.c.h.b16 %v305
        %v859 = vunpack.c.l.b16 %v306
        %v860 = vunpack.c.h.b16 %v306
        %v861 = vpack.c.b16 %v857, %v857
        %v862 = vpack.c.b16 %v858, %v858
        %v863 = vpack.c.b16 %v859, %v859
        %v864 = vpack.c.b16 %v860, %v860
        %v1381 = vunpack.c.l.b16 %v307
        %v1382 = vunpack.c.h.b16 %v307
        %v1383 = vunpack.c.l.b16 %v308
        %v1384 = vunpack.c.h.b16 %v308
        %v1385 = vunpack.c.l.b16 %v309
        %v1386 = vunpack.c.h.b16 %v309
        %v1387 = vunpack.c.l.b16 %v310
        %v1388 = vunpack.c.h.b16 %v310
        %v1389 = vunpack.c.l.b16 %v311
        %v1390 = vunpack.c.h.b16 %v311
        %v1391 = vunpack.c.l.b16 %v312
        %v1392 = vunpack.c.h.b16 %v312
        %v1393 = vunpack.c.l.b16 %v313
        %v1394 = vunpack.c.h.b16 %v313
        %v1395 = vunpack.c.l.b16 %v314
        %v1396 = vunpack.c.h.b16 %v314
        %v1397 = vunpack.c.l.b16 %v315
        %v1398 = vunpack.c.h.b16 %v315
        %v1399 = vunpack.c.l.b16 %v316
        %v1400 = vunpack.c.h.b16 %v316
        %v1401 = vunpack.c.l.b16 %v317
        %v1402 = vunpack.c.h.b16 %v317
        %v1403 = vunpack.c.l.b16 %v318
        %v1404 = vunpack.c.h.b16 %v318
        %v1405 = vunpack.c.l.b16 %v319
        %v1406 = vunpack.c.h.b16 %v319
        %v1407 = vunpack.c.l.b16 %v320
        %v1408 = vunpack.c.h.b16 %v320
        %v1409 = vunpack.c.l.b16 %v321
        %v1410 = vunpack.c.h.b16 %v321
        %v1411 = vunpack.c.l.b16 %v322
        %v1412 = vunpack.c.h.b16 %v322
        %v1413 = vunpack.c.l.b16 %v323
        %v1414 = vunpack.c.h.b16 %v323
        %v1415 = vunpack.c.l.b16 %v324
        %v1416 = vunpack.c.h.b16 %v324
        %v1417 = vunpack.c.l.b16 %v325
        %v1418 = vunpack.c.h.b16 %v325
        %v1419 = vunpack.c.l.b16 %v326
        %v1420 = vunpack.c.h.b16 %v326
        %v1421 = vunpack.c.l.b16 %v327
        %v1422 = vunpack.c.h.b16 %v327
        %v1423 = vunpack.c.l.b16 %v328
        %v1424 = vunpack.c.h.b16 %v328
        %v1425 = vunpack.c.l.b16 %v329
        %v1426 = vunpack.c.h.b16 %v329
        %v1427 = vunpack.c.l.b16 %v330
        %v1428 = vunpack.c.h.b16 %v330
        %v1429 = vunpack.c.l.b16 %v331
        %v1430 = vunpack.c.h.b16 %v331
        %v1431 = vunpack.c.l.b16 %v332
        %v1432 = vunpack.c.h.b16 %v332
        %v1433 = vunpack.c.l.b16 %v333
        %v1434 = vunpack.c.h.b16 %v333
        %v1435 = vunpack.c.l.b16 %v334
        %v1436 = vunpack.c.h.b16 %v334
        %v1437 = vunpack.c.l.b16 %v335
        %v1438 = vunpack.c.h.b16 %v335
        %v1439 = vunpack.c.l.b16 %v336
        %v1440 = vunpack.c.h.b16 %v336
        %v1441 = vunpack.c.l.b16 %v337
        %v1442 = vunpack.c.h.b16 %v337
        %v1443 = vunpack.c.l.b16 %v338
        %v1444 = vunpack.c.h.b16 %v338
        %v1445 = vunpack.c.l.b16 %v339
        %v1446 = vunpack.c.h.b16 %v339
        %v1447 = vunpack.c.l.b16 %v340
        %v1448 = vunpack.c.h.b16 %v340
        %v1449 = vunpack.c.l.b16 %v341
        %v1450 = vunpack.c.h.b16 %v341
        %v1451 = vunpack.c.l.b16 %v342
        %v1452 = vunpack.c.h.b16 %v342
        %v1453 = vunpack.c.l.b16 %v343
        %v1454 = vunpack.c.h.b16 %v343
        %v1455 = vunpack.c.l.b16 %v344
        %v1456 = vunpack.c.h.b16 %v344
        %v1457 = vunpack.c.l.b16 %v345
        %v1458 = vunpack.c.h.b16 %v345
        %v1459 = vunpack.c.l.b16 %v346
        %v1460 = vunpack.c.h.b16 %v346
        %v1461 = vunpack.c.l.b16 %v347
        %v1462 = vunpack.c.h.b16 %v347
        %v1463 = vunpack.c.l.b16 %v348
        %v1464 = vunpack.c.h.b16 %v348
        %v1465 = vunpack.c.l.b16 %v349
        %v1466 = vunpack.c.h.b16 %v349
        %v1467 = vunpack.c.l.b16 %v350
        %v1468 = vunpack.c.h.b16 %v350
        %v1469 = vunpack.c.l.b16 %v351
        %v1470 = vunpack.c.h.b16 %v351
        %v1471 = vunpack.c.l.b16 %v352
        %v1472 = vunpack.c.h.b16 %v352
        %v1473 = vunpack.c.l.b16 %v353
        %v1474 = vunpack.c.h.b16 %v353
        %v1475 = vunpack.c.l.b16 %v354
        %v1476 = vunpack.c.h.b16 %v354
        %v1477 = vunpack.c.l.b16 %v355
        %v1478 = vunpack.c.h.b16 %v355
        %v1479 = vunpack.c.l.b16 %v356
        %v1480 = vunpack.c.h.b16 %v356
        %v1481 = vunpack.c.l.b16 %v357
        %v1482 = vunpack.c.h.b16 %v357
        %v1483 = vunpack.c.l.b16 %v358
        %v1484 = vunpack.c.h.b16 %v358
        %v1485 = vunpack.c.l.b16 %v359
        %v1486 = vunpack.c.h.b16 %v359
        %v1487 = vunpack.c.l.b16 %v360
        %v1488 = vunpack.c.h.b16 %v360
        %v1489 = vunpack.c.l.b16 %v361
        %v1490 = vunpack.c.h.b16 %v361
        %v1491 = vunpack.c.l.b16 %v362
        %v1492 = vunpack.c.h.b16 %v362
        %v1493 = vunpack.c.l.b16 %v363
        %v1494 = vunpack.c.h.b16 %v363
        %v1495 = vunpack.c.l.b16 %v364
        %v1496 = vunpack.c.h.b16 %v364
        %v1497 = vunpack.c.l.b16 %v365
        %v1498 = vunpack.c.h.b16 %v365
        %v1499 = vunpack.c.l.b16 %v366
        %v1500 = vunpack.c.h.b16 %v366
        %v1501 = vunpack.c.l.b16 %v367
        %v1502 = vunpack.c.h.b16 %v367
        %v1503 = vunpack.c.l.b16 %v368
        %v1504 = vunpack.c.h.b16 %v368
        %v1505 = vunpack.c.l.b16 %v369
        %v1506 = vunpack.c.h.b16 %v369
        %v1507 = vunpack.c.l.b16 %v370
        %v1508 = vunpack.c.h.b16 %v370
        %v1509 = vunpack.c.l.b16 %v371
        %v1510 = vunpack.c.h.b16 %v371
        %v1511 = vunpack.c.l.b16 %v372
        %v1512 = vunpack.c.h.b16 %v372
        %v1513 = vunpack.c.l.b16 %v373
        %v1514 = vunpack.c.h.b16 %v373
        %v1515 = vunpack.c.l.b16 %v374
        %v1516 = vunpack.c.h.b16 %v374
        %v1517 = vunpack.c.l.b16 %v375
        %v1518 = vunpack.c.h.b16 %v375
        %v1519 = vunpack.c.l.b16 %v376
        %v1520 = vunpack.c.h.b16 %v376
        %v1521 = vunpack.c.l.b16 %v377
        %v1522 = vunpack.c.h.b16 %v377
        %v1523 = vunpack.c.l.b16 %v378
        %v1524 = vunpack.c.h.b16 %v378
        %v1525 = vunpack.c.l.b16 %v379
        %v1526 = vunpack.c.h.b16 %v379
        %v1527 = vunpack.c.l.b16 %v380
        %v1528 = vunpack.c.h.b16 %v380
        %v1529 = vunpack.c.l.b16 %v381
        %v1530 = vunpack.c.h.b16 %v381
        %v1531 = vunpack.c.l.b16 %v382
        %v1532 = vunpack.c.h.b16 %v382
        %v1533 = vunpack.c.l.b16 %v383
        %v1534 = vunpack.c.h.b16 %v383
        %v1535 = vunpack.c.l.b16 %v384
        %v1536 = vunpack.c.h.b16 %v384
        %v1537 = vunpack.c.l.b16 %v385
        %v1538 = vunpack.c.h.b16 %v385
        %v1539 = vunpack.c.l.b16 %v386
        %v1540 = vunpack.c.h.b16 %v386
        %v1541 = vunpack.c.l.b16 %v387
        %v1542 = vunpack.c.h.b16 %v387
        %v1543 = vunpack.c.l.b16 %v388
        %v1544 = vunpack.c.h.b16 %v388
        %v1545 = vunpack.c.l.b16 %v389
        %v1546 = vunpack.c.h.b16 %v389
        %v1547 = vunpack.c.l.b16 %v390
        %v1548 = vunpack.c.h.b16 %v390
        %v1549 = vunpack.c.l.b16 %v391
        %v1550 = vunpack.c.h.b16 %v391
        %v1551 = vunpack.c.l.b16 %v392
        %v1552 = vunpack.c.h.b16 %v392
        %v1553 = vunpack.c.l.b16 %v393
        %v1554 = vunpack.c.h.b16 %v393
        %v1555 = vunpack.c.l.b16 %v394
        %v1556 = vunpack.c.h.b16 %v394
        %v1557 = vunpack.c.l.b16 %v395
        %v1558 = vunpack.c.h.b16 %v395
        %v1559 = vunpack.c.l.b16 %v396
        %v1560 = vunpack.c.h.b16 %v396
        %v1561 = vunpack.c.l.b16 %v397
        %v1562 = vunpack.c.h.b16 %v397
        %v1563 = vunpack.c.l.b16 %v398
        %v1564 = vunpack.c.h.b16 %v398
        %v1565 = vunpack.c.l.b16 %v399
        %v1566 = vunpack.c.h.b16 %v399
        %v1567 = vunpack.c.l.b16 %v400
        %v1568 = vunpack.c.h.b16 %v400
        %v1569 = vunpack.c.l.b16 %v401
        %v1570 = vunpack.c.h.b16 %v401
        %v1571 = vunpack.c.l.b16 %v402
        %v1572 = vunpack.c.h.b16 %v402
        %v1573 = vunpack.c.l.b16 %v403
        %v1574 = vunpack.c.h.b16 %v403
        %v1575 = vunpack.c.l.b16 %v404
        %v1576 = vunpack.c.h.b16 %v404
        %v1577 = vunpack.c.l.b16 %v405
        %v1578 = vunpack.c.h.b16 %v405
        %v1579 = vunpack.c.l.b16 %v406
        %v1580 = vunpack.c.h.b16 %v406
        %v1581 = vunpack.c.l.b16 %v407
        %v1582 = vunpack.c.h.b16 %v407
        %v1583 = vunpack.c.l.b16 %v408
        %v1584 = vunpack.c.h.b16 %v408
        %v1585 = vunpack.c.l.b16 %v409
        %v1586 = vunpack.c.h.b16 %v409
        %v1587 = vunpack.c.l.b16 %v410
        %v1588 = vunpack.c.h.b16 %v410
        %v1589 = vunpack.c.l.b16 %v411
        %v1590 = vunpack.c.h.b16 %v411
        %v1591 = vunpack.c.l.b16 %v412
        %v1592 = vunpack.c.h.b16 %v412
        %v1593 = vunpack.c.l.b16 %v413
        %v1594 = vunpack.c.h.b16 %v413
        %v1595 = vunpack.c.l.b16 %v414
        %v1596 = vunpack.c.h.b16 %v414
        %v1597 = vunpack.c.l.b16 %v415
        %v1598 = vunpack.c.h.b16 %v415
        %v1599 = vunpack.c.l.b16 %v416
        %v1600 = vunpack.c.h.b16 %v416
        %v1601 = vunpack.c.l.b16 %v417
        %v1602 = vunpack.c.h.b16 %v417
        %v1603 = vunpack.c.l.b16 %v418
        %v1604 = vunpack.c.h.b16 %v418
        %v1605 = vunpack.c.l.b16 %v419
        %v1606 = vunpack.c.h.b16 %v419
        %v1607 = vunpack.c.l.b16 %v420
        %v1608 = vunpack.c.h.b16 %v420
        %v1609 = vunpack.c.l.b16 %v421
        %v1610 = vunpack.c.h.b16 %v421
        %v1611 = vunpack.c.l.b16 %v422
        %v1612 = vunpack.c.h.b16 %v422
        %v1613 = vunpack.c.l.b16 %v423
        %v1614 = vunpack.c.h.b16 %v423
        %v1615 = vunpack.c.l.b16 %v424
        %v1616 = vunpack.c.h.b16 %v424
        %v1617 = vunpack.c.l.b16 %v425
        %v1618 = vunpack.c.h.b16 %v425
        %v1619 = vunpack.c.l.b16 %v426
        %v1620 = vunpack.c.h.b16 %v426
        %v1621 = vunpack.c.l.b16 %v427
        %v1622 = vunpack.c.h.b16 %v427
        %v1623 = vunpack.c.l.b16 %v428
        %v1624 = vunpack.c.h.b16 %v428
        %v1625 = vunpack.c.l.b16 %v429
        %v1626 = vunpack.c.h.b16 %v429
        %v1627 = vunpack.c.l.b16 %v430
        %v1628 = vunpack.c.h.b16 %v430
        %v1629 = vunpack.c.l.b16 %v431
        %v1630 = vunpack.c.h.b16 %v431
        %v1631 = vunpack.c.l.b16 %v432
        %v1632 = vunpack.c.h.b16 %v432
        %v1633 = vunpack.c.l.b16 %v433
        %v1634 = vunpack.c.h.b16 %v433
        %v1635 = vunpack.c.l.b16 %v434
        %v1636 = vunpack.c.h.b16 %v434
        %v1637 = vunpack.c.l.b16 %v435
        %v1638 = vunpack.c.h.b16 %v435
        %v1639 = vunpack.c.l.b16 %v436
        %v1640 = vunpack.c.h.b16 %v436
        %v1641 = vunpack.c.l.b16 %v437
        %v1642 = vunpack.c.h.b16 %v437
        %v1643 = vunpack.c.l.b16 %v438
        %v1644 = vunpack.c.h.b16 %v438
        %v1645 = vunpack.c.l.b16 %v439
        %v1646 = vunpack.c.h.b16 %v439
        %v1647 = vunpack.c.l.b16 %v440
        %v1648 = vunpack.c.h.b16 %v440
        %v1649 = vunpack.c.l.b16 %v441
        %v1650 = vunpack.c.h.b16 %v441
        %v1651 = vunpack.c.l.b16 %v442
        %v1652 = vunpack.c.h.b16 %v442
        %v1653 = vunpack.c.l.b16 %v443
        %v1654 = vunpack.c.h.b16 %v443
        %v1655 = vunpack.c.l.b16 %v444
        %v1656 = vunpack.c.h.b16 %v444
        %v1657 = vunpack.c.l.b16 %v445
        %v1658 = vunpack.c.h.b16 %v445
        %v1659 = vunpack.c.l.b16 %v446
        %v1660 = vunpack.c.h.b16 %v446
        %v1661 = vunpack.c.l.b16 %v447
        %v1662 = vunpack.c.h.b16 %v447
        %v1663 = vunpack.c.l.b16 %v448
        %v1664 = vunpack.c.h.b16 %v448
        %v1665 = vunpack.c.l.b16 %v449
        %v1666 = vunpack.c.h.b16 %v449
        %v1667 = vunpack.c.l.b16 %v450
        %v1668 = vunpack.c.h.b16 %v450
        %v1669 = vunpack.c.l.b16 %v451
        %v1670 = vunpack.c.h.b16 %v451
        %v1671 = vunpack.c.l.b16 %v452
        %v1672 = vunpack.c.h.b16 %v452
        %v1673 = vunpack.c.l.b16 %v453
        %v1674 = vunpack.c.h.b16 %v453
        %v1675 = vunpack.c.l.b16 %v454
        %v1676 = vunpack.c.h.b16 %v454
        %v1677 = vunpack.c.l.b16 %v455
        %v1678 = vunpack.c.h.b16 %v455
        %v1679 = vunpack.c.l.b16 %v456
        %v1680 = vunpack.c.h.b16 %v456
        %v1681 = vunpack.c.l.b16 %v457
        %v1682 = vunpack.c.h.b16 %v457
        %v1683 = vunpack.c.l.b16 %v458
        %v1684 = vunpack.c.h.b16 %v458
        %v1685 = vunpack.c.l.b16 %v459
        %v1686 = vunpack.c.h.b16 %v459
        %v1687 = vunpack.c.l.b16 %v460
        %v1688 = vunpack.c.h.b16 %v460
        %v1689 = vunpack.c.l.b16 %v461
        %v1690 = vunpack.c.h.b16 %v461
        %v1691 = vunpack.c.l.b16 %v462
        %v1692 = vunpack.c.h.b16 %v462
        %v1693 = vunpack.c.l.b16 %v463
        %v1694 = vunpack.c.h.b16 %v463
        %v1695 = vunpack.c.l.b16 %v464
        %v1696 = vunpack.c.h.b16 %v464
        %v1697 = vunpack.c.l.b16 %v465
        %v1698 = vunpack.c.h.b16 %v465
        %v1699 = vunpack.c.l.b16 %v466
        %v1700 = vunpack.c.h.b16 %v466
        %v1701 = vunpack.c.l.b16 %v467
        %v1702 = vunpack.c.h.b16 %v467
        %v1703 = vunpack.c.l.b16 %v468
        %v1704 = vunpack.c.h.b16 %v468
        %v1705 = vunpack.c.l.b16 %v469
        %v1706 = vunpack.c.h.b16 %v469
        %v1707 = vunpack.c.l.b16 %v470
        %v1708 = vunpack.c.h.b16 %v470
        %v1709 = vunpack.c.l.b16 %v471
        %v1710 = vunpack.c.h.b16 %v471
        %v1711 = vunpack.c.l.b16 %v472
        %v1712 = vunpack.c.h.b16 %v472
        %v1713 = vunpack.c.l.b16 %v473
        %v1714 = vunpack.c.h.b16 %v473
        %v1715 = vunpack.c.l.b16 %v474
        %v1716 = vunpack.c.h.b16 %v474
        %v1717 = vunpack.c.l.b16 %v475
        %v1718 = vunpack.c.h.b16 %v475
        %v1719 = vunpack.c.l.b16 %v476
        %v1720 = vunpack.c.h.b16 %v476
        %v1721 = vunpack.c.l.b16 %v477
        %v1722 = vunpack.c.h.b16 %v477
        %v1723 = vunpack.c.l.b16 %v478
        %v1724 = vunpack.c.h.b16 %v478
        %v1725 = vunpack.c.l.b16 %v479
        %v1726 = vunpack.c.h.b16 %v479
        %v1727 = vunpack.c.l.b16 %v480
        %v1728 = vunpack.c.h.b16 %v480
        %v1729 = vunpack.c.l.b16 %v481
        %v1730 = vunpack.c.h.b16 %v481
        %v1731 = vunpack.c.l.b16 %v482
        %v1732 = vunpack.c.h.b16 %v482
        %v1733 = vunpack.c.l.b16 %v483
        %v1734 = vunpack.c.h.b16 %v483
        %v1735 = vunpack.c.l.b16 %v484
        %v1736 = vunpack.c.h.b16 %v484
        %v1737 = vunpack.c.l.b16 %v485
        %v1738 = vunpack.c.h.b16 %v485
        %v1739 = vunpack.c.l.b16 %v486
        %v1740 = vunpack.c.h.b16 %v486
        %v1741 = vunpack.c.l.b16 %v487
        %v1742 = vunpack.c.h.b16 %v487
        %v1743 = vunpack.c.l.b16 %v488
        %v1744 = vunpack.c.h.b16 %v488
        %v1745 = vunpack.c.l.b16 %v489
        %v1746 = vunpack.c.h.b16 %v489
        %v1747 = vunpack.c.l.b16 %v490
        %v1748 = vunpack.c.h.b16 %v490
        %v1749 = vunpack.c.l.b16 %v491
        %v1750 = vunpack.c.h.b16 %v491
        %v1751 = vunpack.c.l.b16 %v492
        %v1752 = vunpack.c.h.b16 %v492
        %v1753 = vunpack.c.l.b16 %v493
        %v1754 = vunpack.c.h.b16 %v493
        %v1755 = vunpack.c.l.b16 %v494
        %v1756 = vunpack.c.h.b16 %v494
        %v1757 = vunpack.c.l.b16 %v495
        %v1758 = vunpack.c.h.b16 %v495
        %v1759 = vunpack.c.l.b16 %v496
        %v1760 = vunpack.c.h.b16 %v496
        %v1761 = vunpack.c.l.b16 %v497
        %v1762 = vunpack.c.h.b16 %v497
        %v1763 = vunpack.c.l.b16 %v498
        %v1764 = vunpack.c.h.b16 %v498
        %v1765 = vunpack.c.l.b16 %v499
        %v1766 = vunpack.c.h.b16 %v499
        %v1767 = vunpack.c.l.b16 %v500
        %v1768 = vunpack.c.h.b16 %v500
        %v1769 = vunpack.c.l.b16 %v501
        %v1770 = vunpack.c.h.b16 %v501
        %v1771 = vunpack.c.l.b16 %v502
        %v1772 = vunpack.c.h.b16 %v502
        %v1773 = vunpack.c.l.b16 %v503
        %v1774 = vunpack.c.h.b16 %v503
        %v1775 = vunpack.c.l.b16 %v504
        %v1776 = vunpack.c.h.b16 %v504
        %v1777 = vunpack.c.l.b16 %v505
        %v1778 = vunpack.c.h.b16 %v505
        %v1779 = vunpack.c.l.b16 %v506
        %v1780 = vunpack.c.h.b16 %v506
        %v1781 = vunpack.c.l.b16 %v507
        %v1782 = vunpack.c.h.b16 %v507
        %v1783 = vunpack.c.l.b16 %v508
        %v1784 = vunpack.c.h.b16 %v508
        %v1785 = vunpack.c.l.b16 %v509
        %v1786 = vunpack.c.h.b16 %v509
        %v1787 = vunpack.c.l.b16 %v510
        %v1788 = vunpack.c.h.b16 %v510
        %v1789 = vunpack.c.l.b16 %v511
        %v1790 = vunpack.c.h.b16 %v511
        %v1791 = vunpack.c.l.b16 %v512
        %v1792 = vunpack.c.h.b16 %v512
        %v1793 = vunpack.c.l.b16 %v513
        %v1794 = vunpack.c.h.b16 %v513
        %v1795 = vunpack.c.l.b16 %v514
        %v1796 = vunpack.c.h.b16 %v514
        %v1797 = vunpack.c.l.b16 %v515
        %v1798 = vunpack.c.h.b16 %v515
        %v1799 = vunpack.c.l.b16 %v516
        %v1800 = vunpack.c.h.b16 %v516
        %v1801 = vunpack.c.l.b16 %v517
        %v1802 = vunpack.c.h.b16 %v517
        %v1803 = vunpack.c.l.b16 %v518
        %v1804 = vunpack.c.h.b16 %v518
        %v1805 = vunpack.c.l.b16 %v519
        %v1806 = vunpack.c.h.b16 %v519
        %v1807 = vunpack.c.l.b16 %v520
        %v1808 = vunpack.c.h.b16 %v520
        %v1809 = vunpack.c.l.b16 %v521
        %v1810 = vunpack.c.h.b16 %v521
        %v1811 = vunpack.c.l.b16 %v522
        %v1812 = vunpack.c.h.b16 %v522
        %v1813 = vunpack.c.l.b16 %v523
        %v1814 = vunpack.c.h.b16 %v523
        %v1815 = vunpack.c.l.b16 %v524
        %v1816 = vunpack.c.h.b16 %v524
        %v1817 = vunpack.c.l.b16 %v525
        %v1818 = vunpack.c.h.b16 %v525
        %v1819 = vunpack.c.l.b16 %v526
        %v1820 = vunpack.c.h.b16 %v526
        %v1821 = vunpack.c.l.b16 %v527
        %v1822 = vunpack.c.h.b16 %v527
        %v1823 = vunpack.c.l.b16 %v528
        %v1824 = vunpack.c.h.b16 %v528
        %v1825 = vunpack.c.l.b16 %v529
        %v1826 = vunpack.c.h.b16 %v529
        %v1827 = vunpack.c.l.b16 %v530
        %v1828 = vunpack.c.h.b16 %v530
        %v1829 = vunpack.c.l.b16 %v531
        %v1830 = vunpack.c.h.b16 %v531
        %v1831 = vunpack.c.l.b16 %v532
        %v1832 = vunpack.c.h.b16 %v532
        %v1833 = vunpack.c.l.b16 %v533
        %v1834 = vunpack.c.h.b16 %v533
        %v1835 = vunpack.c.l.b16 %v534
        %v1836 = vunpack.c.h.b16 %v534
        %v1837 = vunpack.c.l.b16 %v535
        %v1838 = vunpack.c.h.b16 %v535
        %v1839 = vunpack.c.l.b16 %v536
        %v1840 = vunpack.c.h.b16 %v536
        %v1841 = vunpack.c.l.b16 %v537
        %v1842 = vunpack.c.h.b16 %v537
        %v1843 = vunpack.c.l.b16 %v538
        %v1844 = vunpack.c.h.b16 %v538
        %v1845 = vunpack.c.l.b16 %v539
        %v1846 = vunpack.c.h.b16 %v539
        %v1847 = vunpack.c.l.b16 %v540
        %v1848 = vunpack.c.h.b16 %v540
        %v1849 = vunpack.c.l.b16 %v541
        %v1850 = vunpack.c.h.b16 %v541
        %v1851 = vunpack.c.l.b16 %v542
        %v1852 = vunpack.c.h.b16 %v542
        %v1853 = vunpack.c.l.b16 %v543
        %v1854 = vunpack.c.h.b16 %v543
        %v1855 = vunpack.c.l.b16 %v544
        %v1856 = vunpack.c.h.b16 %v544
        %v1857 = vunpack.c.l.b16 %v545
        %v1858 = vunpack.c.h.b16 %v545
        %v1859 = vunpack.c.l.b16 %v546
        %v1860 = vunpack.c.h.b16 %v546
        %v1861 = vunpack.c.l.b16 %v547
        %v1862 = vunpack.c.h.b16 %v547
        %v1863 = vunpack.c.l.b16 %v548
        %v1864 = vunpack.c.h.b16 %v548
        %v1865 = vunpack.c.l.b16 %v549
        %v1866 = vunpack.c.h.b16 %v549
        %v1867 = vunpack.c.l.b16 %v550
        %v1868 = vunpack.c.h.b16 %v550
        %v1869 = vunpack.c.l.b16 %v551
        %v1870 = vunpack.c.h.b16 %v551
        %v1871 = vunpack.c.l.b16 %v552
        %v1872 = vunpack.c.h.b16 %v552
        %v1873 = vunpack.c.l.b16 %v553
        %v1874 = vunpack.c.h.b16 %v553
        %v1875 = vunpack.c.l.b16 %v554
        %v1876 = vunpack.c.h.b16 %v554
        %v1877 = vunpack.c.l.b16 %v555
        %v1878 = vunpack.c.h.b16 %v555
        %v1879 = vunpack.c.l.b16 %v556
        %v1880 = vunpack.c.h.b16 %v556
        %v1881 = vunpack.c.l.b16 %v557
        %v1882 = vunpack.c.h.b16 %v557
        %v1883 = vunpack.c.l.b16 %v558
        %v1884 = vunpack.c.h.b16 %v558
        %v1885 = vunpack.c.l.b16 %v559
        %v1886 = vunpack.c.h.b16 %v559
        %v1887 = vunpack.c.l.b16 %v560
        %v1888 = vunpack.c.h.b16 %v560
        %v1889 = vunpack.c.l.b16 %v561
        %v1890 = vunpack.c.h.b16 %v561
        %v1891 = vunpack.c.l.b16 %v562
        %v1892 = vunpack.c.h.b16 %v562
        %v1893 = vunpack.c.l.b16 %v563
        %v1894 = vunpack.c.h.b16 %v563
        %v1895 = vunpack.c.l.b16 %v564
        %v1896 = vunpack.c.h.b16 %v564
        %v1897 = vunpack.c.l.b16 %v565
        %v1898 = vunpack.c.h.b16 %v565
        %v1899 = vunpack.c.l.b16 %v566
        %v1900 = vunpack.c.h.b16 %v566
        %v1901 = vunpack.c.l.b16 %v567
        %v1902 = vunpack.c.h.b16 %v567
        %v1903 = vunpack.c.l.b16 %v568
        %v1904 = vunpack.c.h.b16 %v568
        %v1905 = vunpack.c.l.b16 %v569
        %v1906 = vunpack.c.h.b16 %v569
        %v1907 = vunpack.c.l.b16 %v570
        %v1908 = vunpack.c.h.b16 %v570
        %v1909 = vunpack.c.l.b16 %v571
        %v1910 = vunpack.c.h.b16 %v571
        %v1911 = vunpack.c.l.b16 %v572
        %v1912 = vunpack.c.h.b16 %v572
        %v1913 = vunpack.c.l.b16 %v573
        %v1914 = vunpack.c.h.b16 %v573
        %v1915 = vunpack.c.l.b16 %v574
        %v1916 = vunpack.c.h.b16 %v574
        %v1917 = vunpack.c.l.b16 %v575
        %v1918 = vunpack.c.h.b16 %v575
        %v1919 = vunpack.c.l.b16 %v576
        %v1920 = vunpack.c.h.b16 %v576
        %v1921 = vunpack.c.l.b16 %v577
        %v1922 = vunpack.c.h.b16 %v577
        %v1923 = vunpack.c.l.b16 %v578
        %v1924 = vunpack.c.h.b16 %v578
        %v1925 = vunpack.c.l.b16 %v579
        %v1926 = vunpack.c.h.b16 %v579
        %v1927 = vunpack.c.l.b16 %v580
        %v1928 = vunpack.c.h.b16 %v580
        %v1929 = vunpack.c.l.b16 %v581
        %v1930 = vunpack.c.h.b16 %v581
        %v1931 = vunpack.c.l.b16 %v582
        %v1932 = vunpack.c.h.b16 %v582
        %v1933 = vunpack.c.l.b16 %v583
        %v1934 = vunpack.c.h.b16 %v583
        %v1935 = vunpack.c.l.b16 %v584
        %v1936 = vunpack.c.h.b16 %v584
        %v1937 = vunpack.c.l.b16 %v585
        %v1938 = vunpack.c.h.b16 %v585
        %v1939 = vunpack.c.l.b16 %v586
        %v1940 = vunpack.c.h.b16 %v586
        %v1941 = vunpack.c.l.b16 %v587
        %v1942 = vunpack.c.h.b16 %v587
        %v1943 = vunpack.c.l.b16 %v588
        %v1944 = vunpack.c.h.b16 %v588
        %v1945 = vunpack.c.l.b16 %v589
        %v1946 = vunpack.c.h.b16 %v589
        %v1947 = vunpack.c.l.b16 %v590
        %v1948 = vunpack.c.h.b16 %v590
        %v1949 = vunpack.c.l.b16 %v591
        %v1950 = vunpack.c.h.b16 %v591
        %v1951 = vunpack.c.l.b16 %v592
        %v1952 = vunpack.c.h.b16 %v592
        %v1953 = vunpack.c.l.b16 %v593
        %v1954 = vunpack.c.h.b16 %v593
        %v1955 = vunpack.c.l.b16 %v594
        %v1956 = vunpack.c.h.b16 %v594
        %v1957 = vunpack.c.l.b16 %v595
        %v1958 = vunpack.c.h.b16 %v595
        %v1959 = vunpack.c.l.b16 %v596
        %v1960 = vunpack.c.h.b16 %v596
        %v1961 = vunpack.c.l.b16 %v597
        %v1962 = vunpack.c.h.b16 %v597
        %v1963 = vunpack.c.l.b16 %v598
        %v1964 = vunpack.c.h.b16 %v598
        %v1965 = vunpack.c.l.b16 %v599
        %v1966 = vunpack.c.h.b16 %v599
        %v1967 = vunpack.c.l.b16 %v600
        %v1968 = vunpack.c.h.b16 %v600
        %v1969 = vunpack.c.l.b16 %v601
        %v1970 = vunpack.c.h.b16 %v601
        %v1971 = vunpack.c.l.b16 %v602
        %v1972 = vunpack.c.h.b16 %v602
        %v1973 = vunpack.c.l.b16 %v603
        %v1974 = vunpack.c.h.b16 %v603
        %v1975 = vunpack.c.l.b16 %v604
        %v1976 = vunpack.c.h.b16 %v604
        %v1977 = vunpack.c.l.b16 %v605
        %v1978 = vunpack.c.h.b16 %v605
        %v1979 = vunpack.c.l.b16 %v606
        %v1980 = vunpack.c.h.b16 %v606
        %v1981 = vunpack.c.l.b16 %v607
        %v1982 = vunpack.c.h.b16 %v607
        %v1983 = vunpack.c.l.b16 %v608
        %v1984 = vunpack.c.h.b16 %v608
        %v1985 = vunpack.c.l.b16 %v609
        %v1986 = vunpack.c.h.b16 %v609
        %v1987 = vunpack.c.l.b16 %v610
        %v1988 = vunpack.c.h.b16 %v610
        %v1989 = vunpack.c.l.b16 %v611
        %v1990 = vunpack.c.h.b16 %v611
        %v1991 = vunpack.c.l.b16 %v612
        %v1992 = vunpack.c.h.b16 %v612
        %v1993 = vunpack.c.l.b16 %v613
        %v1994 = vunpack.c.h.b16 %v613
        %v1995 = vunpack.c.l.b16 %v614
        %v1996 = vunpack.c.h.b16 %v614
        %v1997 = vunpack.c.l.b16 %v615
        %v1998 = vunpack.c.h.b16 %v615
        %v1999 = vunpack.c.l.b16 %v616
        %v2000 = vunpack.c.h.b16 %v616
        %v2001 = vunpack.c.l.b16 %v617
        %v2002 = vunpack.c.h.b16 %v617
        %v2003 = vunpack.c.l.b16 %v618
        %v2004 = vunpack.c.h.b16 %v618
        %v2005 = vunpack.c.l.b16 %v619
        %v2006 = vunpack.c.h.b16 %v619
        %v2007 = vunpack.c.l.b16 %v620
        %v2008 = vunpack.c.h.b16 %v620
        %v2009 = vunpack.c.l.b16 %v621
        %v2010 = vunpack.c.h.b16 %v621
        %v2011 = vunpack.c.l.b16 %v622
        %v2012 = vunpack.c.h.b16 %v622
        %v2013 = vunpack.c.l.b16 %v623
        %v2014 = vunpack.c.h.b16 %v623
        %v2015 = vunpack.c.l.b16 %v624
        %v2016 = vunpack.c.h.b16 %v624
        %v2017 = vunpack.c.l.b16 %v625
        %v2018 = vunpack.c.h.b16 %v625
        %v2019 = vunpack.c.l.b16 %v626
        %v2020 = vunpack.c.h.b16 %v626
        %v2021 = vunpack.c.l.b16 %v627
        %v2022 = vunpack.c.h.b16 %v627
        %v2023 = vunpack.c.l.b16 %v628
        %v2024 = vunpack.c.h.b16 %v628
        %v2025 = vunpack.c.l.b16 %v629
        %v2026 = vunpack.c.h.b16 %v629
        %v2027 = vunpack.c.l.b16 %v630
        %v2028 = vunpack.c.h.b16 %v630
        %v2029 = vunpack.c.l.b16 %v631
        %v2030 = vunpack.c.h.b16 %v631
        %v2031 = vunpack.c.l.b16 %v632
        %v2032 = vunpack.c.h.b16 %v632
        %v2033 = vunpack.c.l.b16 %v633
        %v2034 = vunpack.c.h.b16 %v633
        %v2035 = vunpack.c.l.b16 %v634
        %v2036 = vunpack.c.h.b16 %v634
        %v2037 = vunpack.c.l.b16 %v635
        %v2038 = vunpack.c.h.b16 %v635
        %v2039 = vunpack.c.l.b16 %v636
        %v2040 = vunpack.c.h.b16 %v636
        %v2041 = vunpack.c.l.b16 %v637
        %v2042 = vunpack.c.h.b16 %v637
        %v2043 = vunpack.c.l.b16 %v638
        %v2044 = vunpack.c.h.b16 %v638
        %v2045 = vunpack.c.l.b16 %v639
        %v2046 = vunpack.c.h.b16 %v639
        %v2047 = vunpack.c.l.b16 %v640
        %v2048 = vunpack.c.h.b16 %v640
        %v2049 = vunpack.c.l.b16 %v641
        %v2050 = vunpack.c.h.b16 %v641
        %v2051 = vunpack.c.l.b16 %v642
        %v2052 = vunpack.c.h.b16 %v642
        %v2053 = vunpack.c.l.b16 %v643
        %v2054 = vunpack.c.h.b16 %v643
        %v2055 = vunpack.c.l.b16 %v644
        %v2056 = vunpack.c.h.b16 %v644
        %v2057 = vunpack.c.l.b16 %v645
        %v2058 = vunpack.c.h.b16 %v645
        %v2059 = vunpack.c.l.b16 %v646
        %v2060 = vunpack.c.h.b16 %v646
        %v2061 = vunpack.c.l.b16 %v647
        %v2062 = vunpack.c.h.b16 %v647
        %v2063 = vunpack.c.l.b16 %v648
        %v2064 = vunpack.c.h.b16 %v648
        %v2065 = vunpack.c.l.b16 %v649
        %v2066 = vunpack.c.h.b16 %v649
        %v2067 = vunpack.c.l.b16 %v650
        %v2068 = vunpack.c.h.b16 %v650
        %v2069 = vunpack.c.l.b16 %v651
        %v2070 = vunpack.c.h.b16 %v651
        %v2071 = vunpack.c.l.b16 %v652
        %v2072 = vunpack.c.h.b16 %v652
        %v2073 = vunpack.c.l.b16 %v653
        %v2074 = vunpack.c.h.b16 %v653
        %v2075 = vunpack.c.l.b16 %v654
        %v2076 = vunpack.c.h.b16 %v654
        %v2077 = vunpack.c.l.b16 %v655
        %v2078 = vunpack.c.h.b16 %v655
        %v2079 = vunpack.c.l.b16 %v656
        %v2080 = vunpack.c.h.b16 %v656
        %v2081 = vunpack.c.l.b16 %v657
        %v2082 = vunpack.c.h.b16 %v657
        %v2083 = vunpack.c.l.b16 %v658
        %v2084 = vunpack.c.h.b16 %v658
        %v2085 = vunpack.c.l.b16 %v659
        %v2086 = vunpack.c.h.b16 %v659
        %v2087 = vunpack.c.l.b16 %v660
        %v2088 = vunpack.c.h.b16 %v660
        %v2089 = vunpack.c.l.b16 %v661
        %v2090 = vunpack.c.h.b16 %v661
        %v2091 = vunpack.c.l.b16 %v662
        %v2092 = vunpack.c.h.b16 %v662
        %v2093 = vunpack.c.l.b16 %v663
        %v2094 = vunpack.c.h.b16 %v663
        %v2095 = vunpack.c.l.b16 %v664
        %v2096 = vunpack.c.h.b16 %v664
        %v2097 = vunpack.c.l.b16 %v665
        %v2098 = vunpack.c.h.b16 %v665
        %v2099 = vunpack.c.l.b16 %v666
        %v2100 = vunpack.c.h.b16 %v666
        %v2101 = vunpack.c.l.b16 %v667
        %v2102 = vunpack.c.h.b16 %v667
        %v2103 = vunpack.c.l.b16 %v668
        %v2104 = vunpack.c.h.b16 %v668
        %v2105 = vunpack.c.l.b16 %v669
        %v2106 = vunpack.c.h.b16 %v669
        %v2107 = vunpack.c.l.b16 %v670
        %v2108 = vunpack.c.h.b16 %v670
        %v2109 = vunpack.c.l.b16 %v671
        %v2110 = vunpack.c.h.b16 %v671
        %v2111 = vunpack.c.l.b16 %v672
        %v2112 = vunpack.c.h.b16 %v672
        %v2113 = vunpack.c.l.b16 %v673
        %v2114 = vunpack.c.h.b16 %v673
        %v2115 = vunpack.c.l.b16 %v674
        %v2116 = vunpack.c.h.b16 %v674
        %v2117 = vunpack.c.l.b16 %v675
        %v2118 = vunpack.c.h.b16 %v675
        %v2119 = vunpack.c.l.b16 %v676
        %v2120 = vunpack.c.h.b16 %v676
        %v2121 = vunpack.c.l.b16 %v677
        %v2122 = vunpack.c.h.b16 %v677
        %v2123 = vunpack.c.l.b16 %v678
        %v2124 = vunpack.c.h.b16 %v678
        %v2125 = vunpack.c.l.b16 %v679
        %v2126 = vunpack.c.h.b16 %v679
        %v2127 = vunpack.c.l.b16 %v680
        %v2128 = vunpack.c.h.b16 %v680
        %v2129 = vunpack.c.l.b16 %v681
        %v2130 = vunpack.c.h.b16 %v681
        %v2131 = vunpack.c.l.b16 %v682
        %v2132 = vunpack.c.h.b16 %v682
        %v2133 = vunpack.c.l.b16 %v683
        %v2134 = vunpack.c.h.b16 %v683
        %v2135 = vunpack.c.l.b16 %v684
        %v2136 = vunpack.c.h.b16 %v684
        %v2137 = vunpack.c.l.b16 %v685
        %v2138 = vunpack.c.h.b16 %v685
        %v2139 = vunpack.c.l.b16 %v686
        %v2140 = vunpack.c.h.b16 %v686
        %v2141 = vunpack.c.l.b16 %v687
        %v2142 = vunpack.c.h.b16 %v687
        %v2143 = vunpack.c.l.b16 %v688
        %v2144 = vunpack.c.h.b16 %v688
        %v2145 = vunpack.c.l.b16 %v689
        %v2146 = vunpack.c.h.b16 %v689
        %v2147 = vunpack.c.l.b16 %v690
        %v2148 = vunpack.c.h.b16 %v690
        %v2149 = vunpack.c.l.b16 %v691
        %v2150 = vunpack.c.h.b16 %v691
        %v2151 = vunpack.c.l.b16 %v692
        %v2152 = vunpack.c.h.b16 %v692
        %v2153 = vunpack.c.l.b16 %v693
        %v2154 = vunpack.c.h.b16 %v693
        %v2155 = vunpack.c.l.b16 %v694
        %v2156 = vunpack.c.h.b16 %v694
        %v2157 = vunpack.c.l.b16 %v695
        %v2158 = vunpack.c.h.b16 %v695
        %v2159 = vunpack.c.l.b16 %v696
        %v2160 = vunpack.c.h.b16 %v696
        %v2161 = vunpack.c.l.b16 %v697
        %v2162 = vunpack.c.h.b16 %v697
        %v2163 = vunpack.c.l.b16 %v698
        %v2164 = vunpack.c.h.b16 %v698
        %v2165 = vunpack.c.l.b16 %v699
        %v2166 = vunpack.c.h.b16 %v699
        %v2167 = vunpack.c.l.b16 %v700
        %v2168 = vunpack.c.h.b16 %v700
        %v2169 = vunpack.c.l.b16 %v701
        %v2170 = vunpack.c.h.b16 %v701
        %v2171 = vunpack.c.l.b16 %v702
        %v2172 = vunpack.c.h.b16 %v702
        %v2173 = vunpack.c.l.b16 %v703
        %v2174 = vunpack.c.h.b16 %v703
        %v2175 = vunpack.c.l.b16 %v704
        %v2176 = vunpack.c.h.b16 %v704
        %v2177 = vunpack.c.l.b16 %v705
        %v2178 = vunpack.c.h.b16 %v705
        %v2179 = vunpack.c.l.b16 %v706
        %v2180 = vunpack.c.h.b16 %v706
        %v2181 = vunpack.c.l.b16 %v707
        %v2182 = vunpack.c.h.b16 %v707
        %v2183 = vunpack.c.l.b16 %v708
        %v2184 = vunpack.c.h.b16 %v708
        %v2185 = vunpack.c.l.b16 %v709
        %v2186 = vunpack.c.h.b16 %v709
        %v2187 = vunpack.c.l.b16 %v710
        %v2188 = vunpack.c.h.b16 %v710
        %v2189 = vunpack.c.l.b16 %v711
        %v2190 = vunpack.c.h.b16 %v711
        %v2191 = vunpack.c.l.b16 %v712
        %v2192 = vunpack.c.h.b16 %v712
        %v2193 = vunpack.c.l.b16 %v713
        %v2194 = vunpack.c.h.b16 %v713
        %v2195 = vunpack.c.l.b16 %v714
        %v2196 = vunpack.c.h.b16 %v714
        %v2197 = vunpack.c.l.b16 %v715
        %v2198 = vunpack.c.h.b16 %v715
        %v2199 = vunpack.c.l.b16 %v716
        %v2200 = vunpack.c.h.b16 %v716
        %v2201 = vunpack.c.l.b16 %v717
        %v2202 = vunpack.c.h.b16 %v717
        %v2203 = vunpack.c.l.b16 %v718
        %v2204 = vunpack.c.h.b16 %v718
        %v2205 = vunpack.c.l.b16 %v719
        %v2206 = vunpack.c.h.b16 %v719
        %v2207 = vunpack.c.l.b16 %v720
        %v2208 = vunpack.c.h.b16 %v720
        %v2209 = vunpack.c.l.b16 %v721
        %v2210 = vunpack.c.h.b16 %v721
        %v2211 = vunpack.c.l.b16 %v722
        %v2212 = vunpack.c.h.b16 %v722
        %v2213 = vunpack.c.l.b16 %v723
        %v2214 = vunpack.c.h.b16 %v723
        %v2215 = vunpack.c.l.b16 %v724
        %v2216 = vunpack.c.h.b16 %v724
        %v2217 = vunpack.c.l.b16 %v725
        %v2218 = vunpack.c.h.b16 %v725
        %v2219 = vunpack.c.l.b16 %v726
        %v2220 = vunpack.c.h.b16 %v726
        %v2221 = vunpack.c.l.b16 %v727
        %v2222 = vunpack.c.h.b16 %v727
        %v2223 = vunpack.c.l.b16 %v728
        %v2224 = vunpack.c.h.b16 %v728
        %v2225 = vunpack.c.l.b16 %v729
        %v2226 = vunpack.c.h.b16 %v729
        %v2227 = vunpack.c.l.b16 %v730
        %v2228 = vunpack.c.h.b16 %v730
        %v2229 = vunpack.c.l.b16 %v731
        %v2230 = vunpack.c.h.b16 %v731
        %v2231 = vunpack.c.l.b16 %v732
        %v2232 = vunpack.c.h.b16 %v732
        %v2233 = vunpack.c.l.b16 %v733
        %v2234 = vunpack.c.h.b16 %v733
        %v2235 = vunpack.c.l.b16 %v734
        %v2236 = vunpack.c.h.b16 %v734
        %v2237 = vunpack.c.l.b16 %v735
        %v2238 = vunpack.c.h.b16 %v735
        %v2239 = vunpack.c.l.b16 %v736
        %v2240 = vunpack.c.h.b16 %v736
        %v2241 = vunpack.c.l.b16 %v737
        %v2242 = vunpack.c.h.b16 %v737
        %v2243 = vunpack.c.l.b16 %v738
        %v2244 = vunpack.c.h.b16 %v738
        %v2245 = vunpack.c.l.b16 %v739
        %v2246 = vunpack.c.h.b16 %v739
        %v2247 = vunpack.c.l.b16 %v740
        %v2248 = vunpack.c.h.b16 %v740
        %v2249 = vunpack.c.l.b16 %v741
        %v2250 = vunpack.c.h.b16 %v741
        %v2251 = vunpack.c.l.b16 %v742
        %v2252 = vunpack.c.h.b16 %v742
        %v2253 = vunpack.c.l.b16 %v743
        %v2254 = vunpack.c.h.b16 %v743
        %v2255 = vunpack.c.l.b16 %v744
        %v2256 = vunpack.c.h.b16 %v744
        %v2257 = vunpack.c.l.b16 %v745
        %v2258 = vunpack.c.h.b16 %v745
        %v2259 = vunpack.c.l.b16 %v746
        %v2260 = vunpack.c.h.b16 %v746
        %v2261 = vunpack.c.l.b16 %v747
        %v2262 = vunpack.c.h.b16 %v747
        %v2263 = vunpack.c.l.b16 %v748
        %v2264 = vunpack.c.h.b16 %v748
        %v2265 = vunpack.c.l.b16 %v749
        %v2266 = vunpack.c.h.b16 %v749
        %v2267 = vunpack.c.l.b16 %v750
        %v2268 = vunpack.c.h.b16 %v750
        %v2269 = vunpack.c.l.b16 %v751
        %v2270 = vunpack.c.h.b16 %v751
        %v2271 = vunpack.c.l.b16 %v752
        %v2272 = vunpack.c.h.b16 %v752
        %v2273 = vunpack.c.l.b16 %v753
        %v2274 = vunpack.c.h.b16 %v753
        %v2275 = vunpack.c.l.b16 %v754
        %v2276 = vunpack.c.h.b16 %v754
        %v2277 = vunpack.c.l.b16 %v755
        %v2278 = vunpack.c.h.b16 %v755
        %v2279 = vunpack.c.l.b16 %v756
        %v2280 = vunpack.c.h.b16 %v756
        %v2281 = vunpack.c.l.b16 %v757
        %v2282 = vunpack.c.h.b16 %v757
        %v2283 = vunpack.c.l.b16 %v758
        %v2284 = vunpack.c.h.b16 %v758
        %v2285 = vunpack.c.l.b16 %v759
        %v2286 = vunpack.c.h.b16 %v759
        %v2287 = vunpack.c.l.b16 %v760
        %v2288 = vunpack.c.h.b16 %v760
        %v2289 = vunpack.c.l.b16 %v761
        %v2290 = vunpack.c.h.b16 %v761
        %v2291 = vunpack.c.l.b16 %v762
        %v2292 = vunpack.c.h.b16 %v762
        %v2293 = vunpack.c.l.b16 %v763
        %v2294 = vunpack.c.h.b16 %v763
        %v2295 = vunpack.c.l.b16 %v764
        %v2296 = vunpack.c.h.b16 %v764
        %v2297 = vunpack.c.l.b16 %v765
        %v2298 = vunpack.c.h.b16 %v765
        %v2299 = vunpack.c.l.b16 %v766
        %v2300 = vunpack.c.h.b16 %v766
        %v2301 = vunpack.c.l.b16 %v767
        %v2302 = vunpack.c.h.b16 %v767
        %v2303 = vunpack.c.l.b16 %v768
        %v2304 = vunpack.c.h.b16 %v768
        %v2305 = vunpack.c.l.b16 %v769
        %v2306 = vunpack.c.h.b16 %v769
        %v2307 = vunpack.c.l.b16 %v770
        %v2308 = vunpack.c.h.b16 %v770
        %v2309 = vunpack.c.l.b16 %v771
        %v2310 = vunpack.c.h.b16 %v771
        %v2311 = vunpack.c.l.b16 %v772
        %v2312 = vunpack.c.h.b16 %v772
        %v2313 = vunpack.c.l.b16 %v773
        %v2314 = vunpack.c.h.b16 %v773
        %v2315 = vunpack.c.l.b16 %v774
        %v2316 = vunpack.c.h.b16 %v774
        %v2317 = vunpack.c.l.b16 %v775
        %v2318 = vunpack.c.h.b16 %v775
        %v2319 = vunpack.c.l.b16 %v776
        %v2320 = vunpack.c.h.b16 %v776
        %v2321 = vunpack.c.l.b16 %v777
        %v2322 = vunpack.c.h.b16 %v777
        %v2323 = vunpack.c.l.b16 %v778
        %v2324 = vunpack.c.h.b16 %v778
        %v2325 = vunpack.c.l.b16 %v779
        %v2326 = vunpack.c.h.b16 %v779
        %v2327 = vunpack.c.l.b16 %v780
        %v2328 = vunpack.c.h.b16 %v780
        %v2329 = vunpack.c.l.b16 %v781
        %v2330 = vunpack.c.h.b16 %v781
        %v2331 = vunpack.c.l.b16 %v782
        %v2332 = vunpack.c.h.b16 %v782
        %v2333 = vunpack.c.l.b16 %v783
        %v2334 = vunpack.c.h.b16 %v783
        %v2335 = vunpack.c.l.b16 %v784
        %v2336 = vunpack.c.h.b16 %v784
        %v2337 = vunpack.c.l.b16 %v785
        %v2338 = vunpack.c.h.b16 %v785
        %v2339 = vunpack.c.l.b16 %v786
        %v2340 = vunpack.c.h.b16 %v786
        %v2341 = vunpack.c.l.b16 %v787
        %v2342 = vunpack.c.h.b16 %v787
        %v2343 = vunpack.c.l.b16 %v788
        %v2344 = vunpack.c.h.b16 %v788
        %v2345 = vunpack.c.l.b16 %v789
        %v2346 = vunpack.c.h.b16 %v789
        %v2347 = vunpack.c.l.b16 %v790
        %v2348 = vunpack.c.h.b16 %v790
        %v2349 = vunpack.c.l.b16 %v791
        %v2350 = vunpack.c.h.b16 %v791
        %v2351 = vunpack.c.l.b16 %v792
        %v2352 = vunpack.c.h.b16 %v792
        %v2353 = vunpack.c.l.b16 %v793
        %v2354 = vunpack.c.h.b16 %v793
        %v2355 = vunpack.c.l.b16 %v794
        %v2356 = vunpack.c.h.b16 %v794
        %v2357 = vunpack.c.l.b16 %v795
        %v2358 = vunpack.c.h.b16 %v795
        %v2359 = vunpack.c.l.b16 %v796
        %v2360 = vunpack.c.h.b16 %v796
        %v2361 = vunpack.c.l.b16 %v797
        %v2362 = vunpack.c.h.b16 %v797
        %v2363 = vunpack.c.l.b16 %v798
        %v2364 = vunpack.c.h.b16 %v798
        %v2365 = vunpack.c.l.b16 %v799
        %v2366 = vunpack.c.h.b16 %v799
        %v2367 = vunpack.c.l.b16 %v800
        %v2368 = vunpack.c.h.b16 %v800
        %v2369 = vunpack.c.l.b16 %v801
        %v2370 = vunpack.c.h.b16 %v801
        %v2371 = vunpack.c.l.b16 %v802
        %v2372 = vunpack.c.h.b16 %v802
        %v2373 = vunpack.c.l.b16 %v803
        %v2374 = vunpack.c.h.b16 %v803
        %v2375 = vunpack.c.l.b16 %v804
        %v2376 = vunpack.c.h.b16 %v804
        %v2377 = vunpack.c.l.b16 %v805
        %v2378 = vunpack.c.h.b16 %v805
        %v2379 = vunpack.c.l.b16 %v806
        %v2380 = vunpack.c.h.b16 %v806
        %v2381 = vunpack.c.l.b16 %v807
        %v2382 = vunpack.c.h.b16 %v807
        %v2383 = vunpack.c.l.b16 %v808
        %v2384 = vunpack.c.h.b16 %v808
        %v2385 = vunpack.c.l.b16 %v809
        %v2386 = vunpack.c.h.b16 %v809
        %v2387 = vunpack.c.l.b16 %v810
        %v2388 = vunpack.c.h.b16 %v810
        %v2389 = vunpack.c.l.b16 %v811
        %v2390 = vunpack.c.h.b16 %v811
        %v2391 = vunpack.c.l.b16 %v812
        %v2392 = vunpack.c.h.b16 %v812
        %v2393 = vunpack.c.l.b16 %v813
        %v2394 = vunpack.c.h.b16 %v813
        %v2395 = vunpack.c.l.b16 %v814
        %v2396 = vunpack.c.h.b16 %v814
        %v2397 = vunpack.c.l.b16 %v815
        %v2398 = vunpack.c.h.b16 %v815
        %v2399 = vunpack.c.l.b16 %v816
        %v2400 = vunpack.c.h.b16 %v816
        %v2401 = vunpack.c.l.b16 %v817
        %v2402 = vunpack.c.h.b16 %v817
        %v2403 = vunpack.c.l.b16 %v818
        %v2404 = vunpack.c.h.b16 %v818
        %v2405 = vpack.c.b16 %v1385, %v1381
        %v2406 = vpack.c.b16 %v1386, %v1382
        %v2407 = vpack.c.b16 %v1387, %v1383
        %v2408 = vpack.c.b16 %v1388, %v1384
        %v2409 = vpack.c.b16 %v1393, %v1389
        %v2410 = vpack.c.b16 %v1394, %v1390
        %v2411 = vpack.c.b16 %v1395, %v1391
        %v2412 = vpack.c.b16 %v1396, %v1392
        %v2413 = vpack.c.b16 %v1401, %v1397
        %v2414 = vpack.c.b16 %v1402, %v1398
        %v2415 = vpack.c.b16 %v1403, %v1399
        %v2416 = vpack.c.b16 %v1404, %v1400
        %v2417 = vpack.c.b16 %v1409, %v1405
        %v2418 = vpack.c.b16 %v1410, %v1406
        %v2419 = vpack.c.b16 %v1411, %v1407
        %v2420 = vpack.c.b16 %v1412, %v1408
        %v2421 = vpack.c.b16 %v1417, %v1413
        %v2422 = vpack.c.b16 %v1418, %v1414
        %v2423 = vpack.c.b16 %v1419, %v1415
        %v2424 = vpack.c.b16 %v1420, %v1416
        %v2425 = vpack.c.b16 %v1425, %v1421
        %v2426 = vpack.c.b16 %v1426, %v1422
        %v2427 = vpack.c.b16 %v1427, %v1423
        %v2428 = vpack.c.b16 %v1428, %v1424
        %v2429 = vpack.c.b16 %v1433, %v1429
        %v2430 = vpack.c.b16 %v1434, %v1430
        %v2431 = vpack.c.b16 %v1435, %v1431
        %v2432 = vpack.c.b16 %v1436, %v1432
        %v2433 = vpack.c.b16 %v1441, %v1437
        %v2434 = vpack.c.b16 %v1442, %v1438
        %v2435 = vpack.c.b16 %v1443, %v1439
        %v2436 = vpack.c.b16 %v1444, %v1440
        %v2437 = vpack.c.b16 %v1449, %v1445
        %v2438 = vpack.c.b16 %v1450, %v1446
        %v2439 = vpack.c.b16 %v1451, %v1447
        %v2440 = vpack.c.b16 %v1452, %v1448
        %v2441 = vpack.c.b16 %v1457, %v1453
        %v2442 = vpack.c.b16 %v1458, %v1454
        %v2443 = vpack.c.b16 %v1459, %v1455
        %v2444 = vpack.c.b16 %v1460, %v1456
        %v2445 = vpack.c.b16 %v1465, %v1461
        %v2446 = vpack.c.b16 %v1466, %v1462
        %v2447 = vpack.c.b16 %v1467, %v1463
        %v2448 = vpack.c.b16 %v1468, %v1464
        %v2449 = vpack.c.b16 %v1473, %v1469
        %v2450 = vpack.c.b16 %v1474, %v1470
        %v2451 = vpack.c.b16 %v1475, %v1471
        %v2452 = vpack.c.b16 %v1476, %v1472
        %v2453 = vpack.c.b16 %v1481, %v1477
        %v2454 = vpack.c.b16 %v1482, %v1478
        %v2455 = vpack.c.b16 %v1483, %v1479
        %v2456 = vpack.c.b16 %v1484, %v1480
        %v2457 = vpack.c.b16 %v1489, %v1485
        %v2458 = vpack.c.b16 %v1490, %v1486
        %v2459 = vpack.c.b16 %v1491, %v1487
        %v2460 = vpack.c.b16 %v1492, %v1488
        %v2461 = vpack.c.b16 %v1497, %v1493
        %v2462 = vpack.c.b16 %v1498, %v1494
        %v2463 = vpack.c.b16 %v1499, %v1495
        %v2464 = vpack.c.b16 %v1500, %v1496
        %v2465 = vpack.c.b16 %v1505, %v1501
        %v2466 = vpack.c.b16 %v1506, %v1502
        %v2467 = vpack.c.b16 %v1507, %v1503
        %v2468 = vpack.c.b16 %v1508, %v1504
        %v2469 = vpack.c.b16 %v1513, %v1509
        %v2470 = vpack.c.b16 %v1514, %v1510
        %v2471 = vpack.c.b16 %v1515, %v1511
        %v2472 = vpack.c.b16 %v1516, %v1512
        %v2473 = vpack.c.b16 %v1521, %v1517
        %v2474 = vpack.c.b16 %v1522, %v1518
        %v2475 = vpack.c.b16 %v1523, %v1519
        %v2476 = vpack.c.b16 %v1524, %v1520
        %v2477 = vpack.c.b16 %v1529, %v1525
        %v2478 = vpack.c.b16 %v1530, %v1526
        %v2479 = vpack.c.b16 %v1531, %v1527
        %v2480 = vpack.c.b16 %v1532, %v1528
        %v2481 = vpack.c.b16 %v1537, %v1533
        %v2482 = vpack.c.b16 %v1538, %v1534
        %v2483 = vpack.c.b16 %v1539, %v1535
        %v2484 = vpack.c.b16 %v1540, %v1536
        %v2485 = vpack.c.b16 %v1545, %v1541
        %v2486 = vpack.c.b16 %v1546, %v1542
        %v2487 = vpack.c.b16 %v1547, %v1543
        %v2488 = vpack.c.b16 %v1548, %v1544
        %v2489 = vpack.c.b16 %v1553, %v1549
        %v2490 = vpack.c.b16 %v1554, %v1550
        %v2491 = vpack.c.b16 %v1555, %v1551
        %v2492 = vpack.c.b16 %v1556, %v1552
        %v2493 = vpack.c.b16 %v1561, %v1557
        %v2494 = vpack.c.b16 %v1562, %v1558
        %v2495 = vpack.c.b16 %v1563, %v1559
        %v2496 = vpack.c.b16 %v1564, %v1560
        %v2497 = vpack.c.b16 %v1569, %v1565
        %v2498 = vpack.c.b16 %v1570, %v1566
        %v2499 = vpack.c.b16 %v1571, %v1567
        %v2500 = vpack.c.b16 %v1572, %v1568
        %v2501 = vpack.c.b16 %v1577, %v1573
        %v2502 = vpack.c.b16 %v1578, %v1574
        %v2503 = vpack.c.b16 %v1579, %v1575
        %v2504 = vpack.c.b16 %v1580, %v1576
        %v2505 = vpack.c.b16 %v1585, %v1581
        %v2506 = vpack.c.b16 %v1586, %v1582
        %v2507 = vpack.c.b16 %v1587, %v1583
        %v2508 = vpack.c.b16 %v1588, %v1584
        %v2509 = vpack.c.b16 %v1593, %v1589
        %v2510 = vpack.c.b16 %v1594, %v1590
        %v2511 = vpack.c.b16 %v1595, %v1591
        %v2512 = vpack.c.b16 %v1596, %v1592
        %v2513 = vpack.c.b16 %v1601, %v1597
        %v2514 = vpack.c.b16 %v1602, %v1598
        %v2515 = vpack.c.b16 %v1603, %v1599
        %v2516 = vpack.c.b16 %v1604, %v1600
        %v2517 = vpack.c.b16 %v1609, %v1605
        %v2518 = vpack.c.b16 %v1610, %v1606
        %v2519 = vpack.c.b16 %v1611, %v1607
        %v2520 = vpack.c.b16 %v1612, %v1608
        %v2521 = vpack.c.b16 %v1617, %v1613
        %v2522 = vpack.c.b16 %v1618, %v1614
        %v2523 = vpack.c.b16 %v1619, %v1615
        %v2524 = vpack.c.b16 %v1620, %v1616
        %v2525 = vpack.c.b16 %v1625, %v1621
        %v2526 = vpack.c.b16 %v1626, %v1622
        %v2527 = vpack.c.b16 %v1627, %v1623
        %v2528 = vpack.c.b16 %v1628, %v1624
        %v2529 = vpack.c.b16 %v1633, %v1629
        %v2530 = vpack.c.b16 %v1634, %v1630
        %v2531 = vpack.c.b16 %v1635, %v1631
        %v2532 = vpack.c.b16 %v1636, %v1632
        %v2533 = vpack.c.b16 %v1641, %v1637
        %v2534 = vpack.c.b16 %v1642, %v1638
        %v2535 = vpack.c.b16 %v1643, %v1639
        %v2536 = vpack.c.b16 %v1644, %v1640
        %v2537 = vpack.c.b16 %v1649, %v1645
        %v2538 = vpack.c.b16 %v1650, %v1646
        %v2539 = vpack.c.b16 %v1651, %v1647
        %v2540 = vpack.c.b16 %v1652, %v1648
        %v2541 = vpack.c.b16 %v1657, %v1653
        %v2542 = vpack.c.b16 %v1658, %v1654
        %v2543 = vpack.c.b16 %v1659, %v1655
        %v2544 = vpack.c.b16 %v1660, %v1656
        %v2545 = vpack.c.b16 %v1665, %v1661
        %v2546 = vpack.c.b16 %v1666, %v1662
        %v2547 = vpack.c.b16 %v1667, %v1663
        %v2548 = vpack.c.b16 %v1668, %v1664
        %v2549 = vpack.c.b16 %v1673, %v1669
        %v2550 = vpack.c.b16 %v1674, %v1670
        %v2551 = vpack.c.b16 %v1675, %v1671
        %v2552 = vpack.c.b16 %v1676, %v1672
        %v2553 = vpack.c.b16 %v1681, %v1677
        %v2554 = vpack.c.b16 %v1682, %v1678
        %v2555 = vpack.c.b16 %v1683, %v1679
        %v2556 = vpack.c.b16 %v1684, %v1680
        %v2557 = vpack.c.b16 %v1689, %v1685
        %v2558 = vpack.c.b16 %v1690, %v1686
        %v2559 = vpack.c.b16 %v1691, %v1687
        %v2560 = vpack.c.b16 %v1692, %v1688
        %v2561 = vpack.c.b16 %v1697, %v1693
        %v2562 = vpack.c.b16 %v1698, %v1694
        %v2563 = vpack.c.b16 %v1699, %v1695
        %v2564 = vpack.c.b16 %v1700, %v1696
        %v2565 = vpack.c.b16 %v1705, %v1701
        %v2566 = vpack.c.b16 %v1706, %v1702
        %v2567 = vpack.c.b16 %v1707, %v1703
        %v2568 = vpack.c.b16 %v1708, %v1704
        %v2569 = vpack.c.b16 %v1713, %v1709
        %v2570 = vpack.c.b16 %v1714, %v1710
        %v2571 = vpack.c.b16 %v1715, %v1711
        %v2572 = vpack.c.b16 %v1716, %v1712
        %v2573 = vpack.c.b16 %v1721, %v1717
        %v2574 = vpack.c.b16 %v1722, %v1718
        %v2575 = vpack.c.b16 %v1723, %v1719
        %v2576 = vpack.c.b16 %v1724, %v1720
        %v2577 = vpack.c.b16 %v1729, %v1725
        %v2578 = vpack.c.b16 %v1730, %v1726
        %v2579 = vpack.c.b16 %v1731, %v1727
        %v2580 = vpack.c.b16 %v1732, %v1728
        %v2581 = vpack.c.b16 %v1737, %v1733
        %v2582 = vpack.c.b16 %v1738, %v1734
        %v2583 = vpack.c.b16 %v1739, %v1735
        %v2584 = vpack.c.b16 %v1740, %v1736
        %v2585 = vpack.c.b16 %v1745, %v1741
        %v2586 = vpack.c.b16 %v1746, %v1742
        %v2587 = vpack.c.b16 %v1747, %v1743
        %v2588 = vpack.c.b16 %v1748, %v1744
        %v2589 = vpack.c.b16 %v1753, %v1749
        %v2590 = vpack.c.b16 %v1754, %v1750
        %v2591 = vpack.c.b16 %v1755, %v1751
        %v2592 = vpack.c.b16 %v1756, %v1752
        %v2593 = vpack.c.b16 %v1761, %v1757
        %v2594 = vpack.c.b16 %v1762, %v1758
        %v2595 = vpack.c.b16 %v1763, %v1759
        %v2596 = vpack.c.b16 %v1764, %v1760
        %v2597 = vpack.c.b16 %v1769, %v1765
        %v2598 = vpack.c.b16 %v1770, %v1766
        %v2599 = vpack.c.b16 %v1771, %v1767
        %v2600 = vpack.c.b16 %v1772, %v1768
        %v2601 = vpack.c.b16 %v1777, %v1773
        %v2602 = vpack.c.b16 %v1778, %v1774
        %v2603 = vpack.c.b16 %v1779, %v1775
        %v2604 = vpack.c.b16 %v1780, %v1776
        %v2605 = vpack.c.b16 %v1785, %v1781
        %v2606 = vpack.c.b16 %v1786, %v1782
        %v2607 = vpack.c.b16 %v1787, %v1783
        %v2608 = vpack.c.b16 %v1788, %v1784
        %v2609 = vpack.c.b16 %v1793, %v1789
        %v2610 = vpack.c.b16 %v1794, %v1790
        %v2611 = vpack.c.b16 %v1795, %v1791
        %v2612 = vpack.c.b16 %v1796, %v1792
        %v2613 = vpack.c.b16 %v1801, %v1797
        %v2614 = vpack.c.b16 %v1802, %v1798
        %v2615 = vpack.c.b16 %v1803, %v1799
        %v2616 = vpack.c.b16 %v1804, %v1800
        %v2617 = vpack.c.b16 %v1809, %v1805
        %v2618 = vpack.c.b16 %v1810, %v1806
        %v2619 = vpack.c.b16 %v1811, %v1807
        %v2620 = vpack.c.b16 %v1812, %v1808
        %v2621 = vpack.c.b16 %v1817, %v1813
        %v2622 = vpack.c.b16 %v1818, %v1814
        %v2623 = vpack.c.b16 %v1819, %v1815
        %v2624 = vpack.c.b16 %v1820, %v1816
        %v2625 = vpack.c.b16 %v1825, %v1821
        %v2626 = vpack.c.b16 %v1826, %v1822
        %v2627 = vpack.c.b16 %v1827, %v1823
        %v2628 = vpack.c.b16 %v1828, %v1824
        %v2629 = vpack.c.b16 %v1833, %v1829
        %v2630 = vpack.c.b16 %v1834, %v1830
        %v2631 = vpack.c.b16 %v1835, %v1831
        %v2632 = vpack.c.b16 %v1836, %v1832
        %v2633 = vpack.c.b16 %v1841, %v1837
        %v2634 = vpack.c.b16 %v1842, %v1838
        %v2635 = vpack.c.b16 %v1843, %v1839
        %v2636 = vpack.c.b16 %v1844, %v1840
        %v2637 = vpack.c.b16 %v1849, %v1845
        %v2638 = vpack.c.b16 %v1850, %v1846
        %v2639 = vpack.c.b16 %v1851, %v1847
        %v2640 = vpack.c.b16 %v1852, %v1848
        %v2641 = vpack.c.b16 %v1857, %v1853
        %v2642 = vpack.c.b16 %v1858, %v1854
        %v2643 = vpack.c.b16 %v1859, %v1855
        %v2644 = vpack.c.b16 %v1860, %v1856
        %v2645 = vpack.c.b16 %v1865, %v1861
        %v2646 = vpack.c.b16 %v1866, %v1862
        %v2647 = vpack.c.b16 %v1867, %v1863
        %v2648 = vpack.c.b16 %v1868, %v1864
        %v2649 = vpack.c.b16 %v1873, %v1869
        %v2650 = vpack.c.b16 %v1874, %v1870
        %v2651 = vpack.c.b16 %v1875, %v1871
        %v2652 = vpack.c.b16 %v1876, %v1872
        %v2653 = vpack.c.b16 %v1881, %v1877
        %v2654 = vpack.c.b16 %v1882, %v1878
        %v2655 = vpack.c.b16 %v1883, %v1879
        %v2656 = vpack.c.b16 %v1884, %v1880
        %v2657 = vpack.c.b16 %v1889, %v1885
        %v2658 = vpack.c.b16 %v1890, %v1886
        %v2659 = vpack.c.b16 %v1891, %v1887
        %v2660 = vpack.c.b16 %v1892, %v1888
        %v2661 = vpack.c.b16 %v1897, %v1893
        %v2662 = vpack.c.b16 %v1898, %v1894
        %v2663 = vpack.c.b16 %v1899, %v1895
        %v2664 = vpack.c.b16 %v1900, %v1896
        %v2665 = vpack.c.b16 %v1905, %v1901
        %v2666 = vpack.c.b16 %v1906, %v1902
        %v2667 = vpack.c.b16 %v1907, %v1903
        %v2668 = vpack.c.b16 %v1908, %v1904
        %v2669 = vpack.c.b16 %v1913, %v1909
        %v2670 = vpack.c.b16 %v1914, %v1910
        %v2671 = vpack.c.b16 %v1915, %v1911
        %v2672 = vpack.c.b16 %v1916, %v1912
        %v2673 = vpack.c.b16 %v1921, %v1917
        %v2674 = vpack.c.b16 %v1922, %v1918
        %v2675 = vpack.c.b16 %v1923, %v1919
        %v2676 = vpack.c.b16 %v1924, %v1920
        %v2677 = vpack.c.b16 %v1929, %v1925
        %v2678 = vpack.c.b16 %v1930, %v1926
        %v2679 = vpack.c.b16 %v1931, %v1927
        %v2680 = vpack.c.b16 %v1932, %v1928
        %v2681 = vpack.c.b16 %v1937, %v1933
        %v2682 = vpack.c.b16 %v1938, %v1934
        %v2683 = vpack.c.b16 %v1939, %v1935
        %v2684 = vpack.c.b16 %v1940, %v1936
        %v2685 = vpack.c.b16 %v1945, %v1941
        %v2686 = vpack.c.b16 %v1946, %v1942
        %v2687 = vpack.c.b16 %v1947, %v1943
        %v2688 = vpack.c.b16 %v1948, %v1944
        %v2689 = vpack.c.b16 %v1953, %v1949
        %v2690 = vpack.c.b16 %v1954, %v1950
        %v2691 = vpack.c.b16 %v1955, %v1951
        %v2692 = vpack.c.b16 %v1956, %v1952
        %v2693 = vpack.c.b16 %v1961, %v1957
        %v2694 = vpack.c.b16 %v1962, %v1958
        %v2695 = vpack.c.b16 %v1963, %v1959
        %v2696 = vpack.c.b16 %v1964, %v1960
        %v2697 = vpack.c.b16 %v1969, %v1965
        %v2698 = vpack.c.b16 %v1970, %v1966
        %v2699 = vpack.c.b16 %v1971, %v1967
        %v2700 = vpack.c.b16 %v1972, %v1968
        %v2701 = vpack.c.b16 %v1977, %v1973
        %v2702 = vpack.c.b16 %v1978, %v1974
        %v2703 = vpack.c.b16 %v1979, %v1975
        %v2704 = vpack.c.b16 %v1980, %v1976
        %v2705 = vpack.c.b16 %v1985, %v1981
        %v2706 = vpack.c.b16 %v1986, %v1982
        %v2707 = vpack.c.b16 %v1987, %v1983
        %v2708 = vpack.c.b16 %v1988, %v1984
        %v2709 = vpack.c.b16 %v1993, %v1989
        %v2710 = vpack.c.b16 %v1994, %v1990
        %v2711 = vpack.c.b16 %v1995, %v1991
        %v2712 = vpack.c.b16 %v1996, %v1992
        %v2713 = vpack.c.b16 %v2001, %v1997
        %v2714 = vpack.c.b16 %v2002, %v1998
        %v2715 = vpack.c.b16 %v2003, %v1999
        %v2716 = vpack.c.b16 %v2004, %v2000
        %v2717 = vpack.c.b16 %v2009, %v2005
        %v2718 = vpack.c.b16 %v2010, %v2006
        %v2719 = vpack.c.b16 %v2011, %v2007
        %v2720 = vpack.c.b16 %v2012, %v2008
        %v2721 = vpack.c.b16 %v2017, %v2013
        %v2722 = vpack.c.b16 %v2018, %v2014
        %v2723 = vpack.c.b16 %v2019, %v2015
        %v2724 = vpack.c.b16 %v2020, %v2016
        %v2725 = vpack.c.b16 %v2025, %v2021
        %v2726 = vpack.c.b16 %v2026, %v2022
        %v2727 = vpack.c.b16 %v2027, %v2023
        %v2728 = vpack.c.b16 %v2028, %v2024
        %v2729 = vpack.c.b16 %v2033, %v2029
        %v2730 = vpack.c.b16 %v2034, %v2030
        %v2731 = vpack.c.b16 %v2035, %v2031
        %v2732 = vpack.c.b16 %v2036, %v2032
        %v2733 = vpack.c.b16 %v2041, %v2037
        %v2734 = vpack.c.b16 %v2042, %v2038
        %v2735 = vpack.c.b16 %v2043, %v2039
        %v2736 = vpack.c.b16 %v2044, %v2040
        %v2737 = vpack.c.b16 %v2049, %v2045
        %v2738 = vpack.c.b16 %v2050, %v2046
        %v2739 = vpack.c.b16 %v2051, %v2047
        %v2740 = vpack.c.b16 %v2052, %v2048
        %v2741 = vpack.c.b16 %v2057, %v2053
        %v2742 = vpack.c.b16 %v2058, %v2054
        %v2743 = vpack.c.b16 %v2059, %v2055
        %v2744 = vpack.c.b16 %v2060, %v2056
        %v2745 = vpack.c.b16 %v2065, %v2061
        %v2746 = vpack.c.b16 %v2066, %v2062
        %v2747 = vpack.c.b16 %v2067, %v2063
        %v2748 = vpack.c.b16 %v2068, %v2064
        %v2749 = vpack.c.b16 %v2073, %v2069
        %v2750 = vpack.c.b16 %v2074, %v2070
        %v2751 = vpack.c.b16 %v2075, %v2071
        %v2752 = vpack.c.b16 %v2076, %v2072
        %v2753 = vpack.c.b16 %v2081, %v2077
        %v2754 = vpack.c.b16 %v2082, %v2078
        %v2755 = vpack.c.b16 %v2083, %v2079
        %v2756 = vpack.c.b16 %v2084, %v2080
        %v2757 = vpack.c.b16 %v2089, %v2085
        %v2758 = vpack.c.b16 %v2090, %v2086
        %v2759 = vpack.c.b16 %v2091, %v2087
        %v2760 = vpack.c.b16 %v2092, %v2088
        %v2761 = vpack.c.b16 %v2097, %v2093
        %v2762 = vpack.c.b16 %v2098, %v2094
        %v2763 = vpack.c.b16 %v2099, %v2095
        %v2764 = vpack.c.b16 %v2100, %v2096
        %v2765 = vpack.c.b16 %v2105, %v2101
        %v2766 = vpack.c.b16 %v2106, %v2102
        %v2767 = vpack.c.b16 %v2107, %v2103
        %v2768 = vpack.c.b16 %v2108, %v2104
        %v2769 = vpack.c.b16 %v2113, %v2109
        %v2770 = vpack.c.b16 %v2114, %v2110
        %v2771 = vpack.c.b16 %v2115, %v2111
        %v2772 = vpack.c.b16 %v2116, %v2112
        %v2773 = vpack.c.b16 %v2121, %v2117
        %v2774 = vpack.c.b16 %v2122, %v2118
        %v2775 = vpack.c.b16 %v2123, %v2119
        %v2776 = vpack.c.b16 %v2124, %v2120
        %v2777 = vpack.c.b16 %v2129, %v2125
        %v2778 = vpack.c.b16 %v2130, %v2126
        %v2779 = vpack.c.b16 %v2131, %v2127
        %v2780 = vpack.c.b16 %v2132, %v2128
        %v2781 = vpack.c.b16 %v2137, %v2133
        %v2782 = vpack.c.b16 %v2138, %v2134
        %v2783 = vpack.c.b16 %v2139, %v2135
        %v2784 = vpack.c.b16 %v2140, %v2136
        %v2785 = vpack.c.b16 %v2145, %v2141
        %v2786 = vpack.c.b16 %v2146, %v2142
        %v2787 = vpack.c.b16 %v2147, %v2143
        %v2788 = vpack.c.b16 %v2148, %v2144
        %v2789 = vpack.c.b16 %v2153, %v2149
        %v2790 = vpack.c.b16 %v2154, %v2150
        %v2791 = vpack.c.b16 %v2155, %v2151
        %v2792 = vpack.c.b16 %v2156, %v2152
        %v2793 = vpack.c.b16 %v2161, %v2157
        %v2794 = vpack.c.b16 %v2162, %v2158
        %v2795 = vpack.c.b16 %v2163, %v2159
        %v2796 = vpack.c.b16 %v2164, %v2160
        %v2797 = vpack.c.b16 %v2169, %v2165
        %v2798 = vpack.c.b16 %v2170, %v2166
        %v2799 = vpack.c.b16 %v2171, %v2167
        %v2800 = vpack.c.b16 %v2172, %v2168
        %v2801 = vpack.c.b16 %v2177, %v2173
        %v2802 = vpack.c.b16 %v2178, %v2174
        %v2803 = vpack.c.b16 %v2179, %v2175
        %v2804 = vpack.c.b16 %v2180, %v2176
        %v2805 = vpack.c.b16 %v2185, %v2181
        %v2806 = vpack.c.b16 %v2186, %v2182
        %v2807 = vpack.c.b16 %v2187, %v2183
        %v2808 = vpack.c.b16 %v2188, %v2184
        %v2809 = vpack.c.b16 %v2193, %v2189
        %v2810 = vpack.c.b16 %v2194, %v2190
        %v2811 = vpack.c.b16 %v2195, %v2191
        %v2812 = vpack.c.b16 %v2196, %v2192
        %v2813 = vpack.c.b16 %v2201, %v2197
        %v2814 = vpack.c.b16 %v2202, %v2198
        %v2815 = vpack.c.b16 %v2203, %v2199
        %v2816 = vpack.c.b16 %v2204, %v2200
        %v2817 = vpack.c.b16 %v2209, %v2205
        %v2818 = vpack.c.b16 %v2210, %v2206
        %v2819 = vpack.c.b16 %v2211, %v2207
        %v2820 = vpack.c.b16 %v2212, %v2208
        %v2821 = vpack.c.b16 %v2217, %v2213
        %v2822 = vpack.c.b16 %v2218, %v2214
        %v2823 = vpack.c.b16 %v2219, %v2215
        %v2824 = vpack.c.b16 %v2220, %v2216
        %v2825 = vpack.c.b16 %v2225, %v2221
        %v2826 = vpack.c.b16 %v2226, %v2222
        %v2827 = vpack.c.b16 %v2227, %v2223
        %v2828 = vpack.c.b16 %v2228, %v2224
        %v2829 = vpack.c.b16 %v2233, %v2229
        %v2830 = vpack.c.b16 %v2234, %v2230
        %v2831 = vpack.c.b16 %v2235, %v2231
        %v2832 = vpack.c.b16 %v2236, %v2232
        %v2833 = vpack.c.b16 %v2241, %v2237
        %v2834 = vpack.c.b16 %v2242, %v2238
        %v2835 = vpack.c.b16 %v2243, %v2239
        %v2836 = vpack.c.b16 %v2244, %v2240
        %v2837 = vpack.c.b16 %v2249, %v2245
        %v2838 = vpack.c.b16 %v2250, %v2246
        %v2839 = vpack.c.b16 %v2251, %v2247
        %v2840 = vpack.c.b16 %v2252, %v2248
        %v2841 = vpack.c.b16 %v2257, %v2253
        %v2842 = vpack.c.b16 %v2258, %v2254
        %v2843 = vpack.c.b16 %v2259, %v2255
        %v2844 = vpack.c.b16 %v2260, %v2256
        %v2845 = vpack.c.b16 %v2265, %v2261
        %v2846 = vpack.c.b16 %v2266, %v2262
        %v2847 = vpack.c.b16 %v2267, %v2263
        %v2848 = vpack.c.b16 %v2268, %v2264
        %v2849 = vpack.c.b16 %v2273, %v2269
        %v2850 = vpack.c.b16 %v2274, %v2270
        %v2851 = vpack.c.b16 %v2275, %v2271
        %v2852 = vpack.c.b16 %v2276, %v2272
        %v2853 = vpack.c.b16 %v2281, %v2277
        %v2854 = vpack.c.b16 %v2282, %v2278
        %v2855 = vpack.c.b16 %v2283, %v2279
        %v2856 = vpack.c.b16 %v2284, %v2280
        %v2857 = vpack.c.b16 %v2289, %v2285
        %v2858 = vpack.c.b16 %v2290, %v2286
        %v2859 = vpack.c.b16 %v2291, %v2287
        %v2860 = vpack.c.b16 %v2292, %v2288
        %v2861 = vpack.c.b16 %v2297, %v2293
        %v2862 = vpack.c.b16 %v2298, %v2294
        %v2863 = vpack.c.b16 %v2299, %v2295
        %v2864 = vpack.c.b16 %v2300, %v2296
        %v2865 = vpack.c.b16 %v2305, %v2301
        %v2866 = vpack.c.b16 %v2306, %v2302
        %v2867 = vpack.c.b16 %v2307, %v2303
        %v2868 = vpack.c.b16 %v2308, %v2304
        %v2869 = vpack.c.b16 %v2313, %v2309
        %v2870 = vpack.c.b16 %v2314, %v2310
        %v2871 = vpack.c.b16 %v2315, %v2311
        %v2872 = vpack.c.b16 %v2316, %v2312
        %v2873 = vpack.c.b16 %v2321, %v2317
        %v2874 = vpack.c.b16 %v2322, %v2318
        %v2875 = vpack.c.b16 %v2323, %v2319
        %v2876 = vpack.c.b16 %v2324, %v2320
        %v2877 = vpack.c.b16 %v2329, %v2325
        %v2878 = vpack.c.b16 %v2330, %v2326
        %v2879 = vpack.c.b16 %v2331, %v2327
        %v2880 = vpack.c.b16 %v2332, %v2328
        %v2881 = vpack.c.b16 %v2337, %v2333
        %v2882 = vpack.c.b16 %v2338, %v2334
        %v2883 = vpack.c.b16 %v2339, %v2335
        %v2884 = vpack.c.b16 %v2340, %v2336
        %v2885 = vpack.c.b16 %v2345, %v2341
        %v2886 = vpack.c.b16 %v2346, %v2342
        %v2887 = vpack.c.b16 %v2347, %v2343
        %v2888 = vpack.c.b16 %v2348, %v2344
        %v2889 = vpack.c.b16 %v2353, %v2349
        %v2890 = vpack.c.b16 %v2354, %v2350
        %v2891 = vpack.c.b16 %v2355, %v2351
        %v2892 = vpack.c.b16 %v2356, %v2352
        %v2893 = vpack.c.b16 %v2361, %v2357
        %v2894 = vpack.c.b16 %v2362, %v2358
        %v2895 = vpack.c.b16 %v2363, %v2359
        %v2896 = vpack.c.b16 %v2364, %v2360
        %v2897 = vpack.c.b16 %v2369, %v2365
        %v2898 = vpack.c.b16 %v2370, %v2366
        %v2899 = vpack.c.b16 %v2371, %v2367
        %v2900 = vpack.c.b16 %v2372, %v2368
        %v2901 = vpack.c.b16 %v2377, %v2373
        %v2902 = vpack.c.b16 %v2378, %v2374
        %v2903 = vpack.c.b16 %v2379, %v2375
        %v2904 = vpack.c.b16 %v2380, %v2376
        %v2905 = vpack.c.b16 %v2385, %v2381
        %v2906 = vpack.c.b16 %v2386, %v2382
        %v2907 = vpack.c.b16 %v2387, %v2383
        %v2908 = vpack.c.b16 %v2388, %v2384
        %v2909 = vpack.c.b16 %v2393, %v2389
        %v2910 = vpack.c.b16 %v2394, %v2390
        %v2911 = vpack.c.b16 %v2395, %v2391
        %v2912 = vpack.c.b16 %v2396, %v2392
        %v2913 = vpack.c.b16 %v2401, %v2397
        %v2914 = vpack.c.b16 %v2402, %v2398
        %v2915 = vpack.c.b16 %v2403, %v2399
        %v2916 = vpack.c.b16 %v2404, %v2400
        %3429 = vmatpush.bf16.xpose.msra.mxu0 %v2433
        %3430 = vmatpush.bf16.xpose.msra.mxu0 %v2429
        %3431 = vmatpush.bf16.xpose.msra.mxu0 %v2425
        %3432 = vmatpush.bf16.xpose.msra.mxu0 %v2421
        %3433 = vmatpush.bf16.xpose.msra.mxu0 %v2417
        %3434 = vmatpush.bf16.xpose.msra.mxu0 %v2413
        %3435 = vmatpush.bf16.xpose.msra.mxu0 %v2409
        %3436 = vmatpush.bf16.xpose.msra.mxu0 %v2405
        %3437 = vmatmul.bf16.gmra.mxu0 %v861
        %v3438 = vpop.f32.mrf.mxu0
        %v3439 = vadd.f32 %v823, %v3438
        %v3440 = vpop.f32.mrf.mxu0
        %3441 = vdwg.mxu0
        %3442 = vmatpush.bf16.xpose.msra.mxu0 %v2434
        %3443 = vmatpush.bf16.xpose.msra.mxu0 %v2430
        %3444 = vmatpush.bf16.xpose.msra.mxu0 %v2426
        %3445 = vmatpush.bf16.xpose.msra.mxu0 %v2422
        %3446 = vmatpush.bf16.xpose.msra.mxu0 %v2418
        %3447 = vmatpush.bf16.xpose.msra.mxu0 %v2414
        %3448 = vmatpush.bf16.xpose.msra.mxu0 %v2410
        %3449 = vmatpush.bf16.xpose.msra.mxu0 %v2406
        %3450 = vmatmul.bf16.gmra.mxu0 %v862
        %v3451 = vpop.f32.mrf.mxu0
        %v3452 = vadd.f32 %v3439, %v3451
        %v3453 = vpop.f32.mrf.mxu0
        %3454 = vdwg.mxu0
        %3455 = vmatpush.bf16.xpose.msra.mxu0 %v2435
        %3456 = vmatpush.bf16.xpose.msra.mxu0 %v2431
        %3457 = vmatpush.bf16.xpose.msra.mxu0 %v2427
        %3458 = vmatpush.bf16.xpose.msra.mxu0 %v2423
        %3459 = vmatpush.bf16.xpose.msra.mxu0 %v2419
        %3460 = vmatpush.bf16.xpose.msra.mxu0 %v2415
        %3461 = vmatpush.bf16.xpose.msra.mxu0 %v2411
        %3462 = vmatpush.bf16.xpose.msra.mxu0 %v2407
        %3463 = vmatmul.bf16.gmra.mxu0 %v863
        %v3464 = vpop.f32.mrf.mxu0
        %v3465 = vadd.f32 %v3452, %v3464
        %v3466 = vpop.f32.mrf.mxu0
        %3467 = vdwg.mxu0
        %3468 = vmatpush.bf16.xpose.msra.mxu0 %v2436
        %3469 = vmatpush.bf16.xpose.msra.mxu0 %v2432
        %3470 = vmatpush.bf16.xpose.msra.mxu0 %v2428
        %3471 = vmatpush.bf16.xpose.msra.mxu0 %v2424
        %3472 = vmatpush.bf16.xpose.msra.mxu0 %v2420
        %3473 = vmatpush.bf16.xpose.msra.mxu0 %v2416
        %3474 = vmatpush.bf16.xpose.msra.mxu0 %v2412
        %3475 = vmatpush.bf16.xpose.msra.mxu0 %v2408
        %3476 = vmatmul.bf16.gmra.mxu0 %v864
        %v3477 = vpop.f32.mrf.mxu0
        %v3478 = vadd.f32 %v3465, %v3477
        %v3479 = vpop.f32.mrf.mxu0
        %3480 = vdwg.mxu0
        %3481 = vmatpush.bf16.xpose.msra.mxu0 %v2465
        %3482 = vmatpush.bf16.xpose.msra.mxu0 %v2461
        %3483 = vmatpush.bf16.xpose.msra.mxu0 %v2457
        %3484 = vmatpush.bf16.xpose.msra.mxu0 %v2453
        %3485 = vmatpush.bf16.xpose.msra.mxu0 %v2449
        %3486 = vmatpush.bf16.xpose.msra.mxu0 %v2445
        %3487 = vmatpush.bf16.xpose.msra.mxu0 %v2441
        %3488 = vmatpush.bf16.xpose.msra.mxu0 %v2437
        %3489 = vmatmul.bf16.gmra.mxu0 %v861
        %v3490 = vpop.f32.mrf.mxu0
        %v3491 = vadd.f32 %v824, %v3490
        %v3492 = vpop.f32.mrf.mxu0
        %3493 = vdwg.mxu0
        %3494 = vmatpush.bf16.xpose.msra.mxu0 %v2466
        %3495 = vmatpush.bf16.xpose.msra.mxu0 %v2462
        %3496 = vmatpush.bf16.xpose.msra.mxu0 %v2458
        %3497 = vmatpush.bf16.xpose.msra.mxu0 %v2454
        %3498 = vmatpush.bf16.xpose.msra.mxu0 %v2450
        %3499 = vmatpush.bf16.xpose.msra.mxu0 %v2446
        %3500 = vmatpush.bf16.xpose.msra.mxu0 %v2442
        %3501 = vmatpush.bf16.xpose.msra.mxu0 %v2438
        %3502 = vmatmul.bf16.gmra.mxu0 %v862
        %v3503 = vpop.f32.mrf.mxu0
        %v3504 = vadd.f32 %v3491, %v3503
        %v3505 = vpop.f32.mrf.mxu0
        %3506 = vdwg.mxu0
        %3507 = vmatpush.bf16.xpose.msra.mxu0 %v2467
        %3508 = vmatpush.bf16.xpose.msra.mxu0 %v2463
        %3509 = vmatpush.bf16.xpose.msra.mxu0 %v2459
        %3510 = vmatpush.bf16.xpose.msra.mxu0 %v2455
        %3511 = vmatpush.bf16.xpose.msra.mxu0 %v2451
        %3512 = vmatpush.bf16.xpose.msra.mxu0 %v2447
        %3513 = vmatpush.bf16.xpose.msra.mxu0 %v2443
        %3514 = vmatpush.bf16.xpose.msra.mxu0 %v2439
        %3515 = vmatmul.bf16.gmra.mxu0 %v863
        %v3516 = vpop.f32.mrf.mxu0
        %v3517 = vadd.f32 %v3504, %v3516
        %v3518 = vpop.f32.mrf.mxu0
        %3519 = vdwg.mxu0
        %3520 = vmatpush.bf16.xpose.msra.mxu0 %v2468
        %3521 = vmatpush.bf16.xpose.msra.mxu0 %v2464
        %3522 = vmatpush.bf16.xpose.msra.mxu0 %v2460
        %3523 = vmatpush.bf16.xpose.msra.mxu0 %v2456
        %3524 = vmatpush.bf16.xpose.msra.mxu0 %v2452
        %3525 = vmatpush.bf16.xpose.msra.mxu0 %v2448
        %3526 = vmatpush.bf16.xpose.msra.mxu0 %v2444
        %3527 = vmatpush.bf16.xpose.msra.mxu0 %v2440
        %3528 = vmatmul.bf16.gmra.mxu0 %v864
        %v3529 = vpop.f32.mrf.mxu0
        %v3530 = vadd.f32 %v3517, %v3529
        %v3531 = vpop.f32.mrf.mxu0
        %3532 = vdwg.mxu0
        %3533 = vmatpush.bf16.xpose.msra.mxu0 %v2497
        %3534 = vmatpush.bf16.xpose.msra.mxu0 %v2493
        %3535 = vmatpush.bf16.xpose.msra.mxu0 %v2489
        %3536 = vmatpush.bf16.xpose.msra.mxu0 %v2485
        %3537 = vmatpush.bf16.xpose.msra.mxu0 %v2481
        %3538 = vmatpush.bf16.xpose.msra.mxu0 %v2477
        %3539 = vmatpush.bf16.xpose.msra.mxu0 %v2473
        %3540 = vmatpush.bf16.xpose.msra.mxu0 %v2469
        %3541 = vmatmul.bf16.gmra.mxu0 %v861
        %v3542 = vpop.f32.mrf.mxu0
        %v3543 = vadd.f32 %v825, %v3542
        %v3544 = vpop.f32.mrf.mxu0
        %3545 = vdwg.mxu0
        %3546 = vmatpush.bf16.xpose.msra.mxu0 %v2498
        %3547 = vmatpush.bf16.xpose.msra.mxu0 %v2494
        %3548 = vmatpush.bf16.xpose.msra.mxu0 %v2490
        %3549 = vmatpush.bf16.xpose.msra.mxu0 %v2486
        %3550 = vmatpush.bf16.xpose.msra.mxu0 %v2482
        %3551 = vmatpush.bf16.xpose.msra.mxu0 %v2478
        %3552 = vmatpush.bf16.xpose.msra.mxu0 %v2474
        %3553 = vmatpush.bf16.xpose.msra.mxu0 %v2470
        %3554 = vmatmul.bf16.gmra.mxu0 %v862
        %v3555 = vpop.f32.mrf.mxu0
        %v3556 = vadd.f32 %v3543, %v3555
        %v3557 = vpop.f32.mrf.mxu0
        %3558 = vdwg.mxu0
        %3559 = vmatpush.bf16.xpose.msra.mxu0 %v2499
        %3560 = vmatpush.bf16.xpose.msra.mxu0 %v2495
        %3561 = vmatpush.bf16.xpose.msra.mxu0 %v2491
        %3562 = vmatpush.bf16.xpose.msra.mxu0 %v2487
        %3563 = vmatpush.bf16.xpose.msra.mxu0 %v2483
        %3564 = vmatpush.bf16.xpose.msra.mxu0 %v2479
        %3565 = vmatpush.bf16.xpose.msra.mxu0 %v2475
        %3566 = vmatpush.bf16.xpose.msra.mxu0 %v2471
        %3567 = vmatmul.bf16.gmra.mxu0 %v863
        %v3568 = vpop.f32.mrf.mxu0
        %v3569 = vadd.f32 %v3556, %v3568
        %v3570 = vpop.f32.mrf.mxu0
        %3571 = vdwg.mxu0
        %3572 = vmatpush.bf16.xpose.msra.mxu0 %v2500
        %3573 = vmatpush.bf16.xpose.msra.mxu0 %v2496
        %3574 = vmatpush.bf16.xpose.msra.mxu0 %v2492
        %3575 = vmatpush.bf16.xpose.msra.mxu0 %v2488
        %3576 = vmatpush.bf16.xpose.msra.mxu0 %v2484
        %3577 = vmatpush.bf16.xpose.msra.mxu0 %v2480
        %3578 = vmatpush.bf16.xpose.msra.mxu0 %v2476
        %3579 = vmatpush.bf16.xpose.msra.mxu0 %v2472
        %3580 = vmatmul.bf16.gmra.mxu0 %v864
        %v3581 = vpop.f32.mrf.mxu0
        %v3582 = vadd.f32 %v3569, %v3581
        %v3583 = vpop.f32.mrf.mxu0
        %3584 = vdwg.mxu0
        %3585 = vmatpush.bf16.xpose.msra.mxu0 %v2529
        %3586 = vmatpush.bf16.xpose.msra.mxu0 %v2525
        %3587 = vmatpush.bf16.xpose.msra.mxu0 %v2521
        %3588 = vmatpush.bf16.xpose.msra.mxu0 %v2517
        %3589 = vmatpush.bf16.xpose.msra.mxu0 %v2513
        %3590 = vmatpush.bf16.xpose.msra.mxu0 %v2509
        %3591 = vmatpush.bf16.xpose.msra.mxu0 %v2505
        %3592 = vmatpush.bf16.xpose.msra.mxu0 %v2501
        %3593 = vmatmul.bf16.gmra.mxu0 %v861
        %v3594 = vpop.f32.mrf.mxu0
        %v3595 = vadd.f32 %v826, %v3594
        %v3596 = vpop.f32.mrf.mxu0
        %3597 = vdwg.mxu0
        %3598 = vmatpush.bf16.xpose.msra.mxu0 %v2530
        %3599 = vmatpush.bf16.xpose.msra.mxu0 %v2526
        %3600 = vmatpush.bf16.xpose.msra.mxu0 %v2522
        %3601 = vmatpush.bf16.xpose.msra.mxu0 %v2518
        %3602 = vmatpush.bf16.xpose.msra.mxu0 %v2514
        %3603 = vmatpush.bf16.xpose.msra.mxu0 %v2510
        %3604 = vmatpush.bf16.xpose.msra.mxu0 %v2506
        %3605 = vmatpush.bf16.xpose.msra.mxu0 %v2502
        %3606 = vmatmul.bf16.gmra.mxu0 %v862
        %v3607 = vpop.f32.mrf.mxu0
        %v3608 = vadd.f32 %v3595, %v3607
        %v3609 = vpop.f32.mrf.mxu0
        %3610 = vdwg.mxu0
        %3611 = vmatpush.bf16.xpose.msra.mxu0 %v2531
        %3612 = vmatpush.bf16.xpose.msra.mxu0 %v2527
        %3613 = vmatpush.bf16.xpose.msra.mxu0 %v2523
        %3614 = vmatpush.bf16.xpose.msra.mxu0 %v2519
        %3615 = vmatpush.bf16.xpose.msra.mxu0 %v2515
        %3616 = vmatpush.bf16.xpose.msra.mxu0 %v2511
        %3617 = vmatpush.bf16.xpose.msra.mxu0 %v2507
        %3618 = vmatpush.bf16.xpose.msra.mxu0 %v2503
        %3619 = vmatmul.bf16.gmra.mxu0 %v863
        %v3620 = vpop.f32.mrf.mxu0
        %v3621 = vadd.f32 %v3608, %v3620
        %v3622 = vpop.f32.mrf.mxu0
        %3623 = vdwg.mxu0
        %3624 = vmatpush.bf16.xpose.msra.mxu0 %v2532
        %3625 = vmatpush.bf16.xpose.msra.mxu0 %v2528
        %3626 = vmatpush.bf16.xpose.msra.mxu0 %v2524
        %3627 = vmatpush.bf16.xpose.msra.mxu0 %v2520
        %3628 = vmatpush.bf16.xpose.msra.mxu0 %v2516
        %3629 = vmatpush.bf16.xpose.msra.mxu0 %v2512
        %3630 = vmatpush.bf16.xpose.msra.mxu0 %v2508
        %3631 = vmatpush.bf16.xpose.msra.mxu0 %v2504
        %3632 = vmatmul.bf16.gmra.mxu0 %v864
        %v3633 = vpop.f32.mrf.mxu0
        %v3634 = vadd.f32 %v3621, %v3633
        %v3635 = vpop.f32.mrf.mxu0
        %3636 = vdwg.mxu0
        %3637 = vmatpush.bf16.xpose.msra.mxu0 %v2561
        %3638 = vmatpush.bf16.xpose.msra.mxu0 %v2557
        %3639 = vmatpush.bf16.xpose.msra.mxu0 %v2553
        %3640 = vmatpush.bf16.xpose.msra.mxu0 %v2549
        %3641 = vmatpush.bf16.xpose.msra.mxu0 %v2545
        %3642 = vmatpush.bf16.xpose.msra.mxu0 %v2541
        %3643 = vmatpush.bf16.xpose.msra.mxu0 %v2537
        %3644 = vmatpush.bf16.xpose.msra.mxu0 %v2533
        %3645 = vmatmul.bf16.gmra.mxu0 %v861
        %v3646 = vpop.f32.mrf.mxu0
        %v3647 = vadd.f32 %v827, %v3646
        %v3648 = vpop.f32.mrf.mxu0
        %3649 = vdwg.mxu0
        %3650 = vmatpush.bf16.xpose.msra.mxu0 %v2562
        %3651 = vmatpush.bf16.xpose.msra.mxu0 %v2558
        %3652 = vmatpush.bf16.xpose.msra.mxu0 %v2554
        %3653 = vmatpush.bf16.xpose.msra.mxu0 %v2550
        %3654 = vmatpush.bf16.xpose.msra.mxu0 %v2546
        %3655 = vmatpush.bf16.xpose.msra.mxu0 %v2542
        %3656 = vmatpush.bf16.xpose.msra.mxu0 %v2538
        %3657 = vmatpush.bf16.xpose.msra.mxu0 %v2534
        %3658 = vmatmul.bf16.gmra.mxu0 %v862
        %v3659 = vpop.f32.mrf.mxu0
        %v3660 = vadd.f32 %v3647, %v3659
        %v3661 = vpop.f32.mrf.mxu0
        %3662 = vdwg.mxu0
        %3663 = vmatpush.bf16.xpose.msra.mxu0 %v2563
        %3664 = vmatpush.bf16.xpose.msra.mxu0 %v2559
        %3665 = vmatpush.bf16.xpose.msra.mxu0 %v2555
        %3666 = vmatpush.bf16.xpose.msra.mxu0 %v2551
        %3667 = vmatpush.bf16.xpose.msra.mxu0 %v2547
        %3668 = vmatpush.bf16.xpose.msra.mxu0 %v2543
        %3669 = vmatpush.bf16.xpose.msra.mxu0 %v2539
        %3670 = vmatpush.bf16.xpose.msra.mxu0 %v2535
        %3671 = vmatmul.bf16.gmra.mxu0 %v863
        %v3672 = vpop.f32.mrf.mxu0
        %v3673 = vadd.f32 %v3660, %v3672
        %v3674 = vpop.f32.mrf.mxu0
        %3675 = vdwg.mxu0
        %3676 = vmatpush.bf16.xpose.msra.mxu0 %v2564
        %3677 = vmatpush.bf16.xpose.msra.mxu0 %v2560
        %3678 = vmatpush.bf16.xpose.msra.mxu0 %v2556
        %3679 = vmatpush.bf16.xpose.msra.mxu0 %v2552
        %3680 = vmatpush.bf16.xpose.msra.mxu0 %v2548
        %3681 = vmatpush.bf16.xpose.msra.mxu0 %v2544
        %3682 = vmatpush.bf16.xpose.msra.mxu0 %v2540
        %3683 = vmatpush.bf16.xpose.msra.mxu0 %v2536
        %3684 = vmatmul.bf16.gmra.mxu0 %v864
        %v3685 = vpop.f32.mrf.mxu0
        %v3686 = vadd.f32 %v3673, %v3685
        %v3687 = vpop.f32.mrf.mxu0
        %3688 = vdwg.mxu0
        %3689 = vmatpush.bf16.xpose.msra.mxu0 %v2593
        %3690 = vmatpush.bf16.xpose.msra.mxu0 %v2589
        %3691 = vmatpush.bf16.xpose.msra.mxu0 %v2585
        %3692 = vmatpush.bf16.xpose.msra.mxu0 %v2581
        %3693 = vmatpush.bf16.xpose.msra.mxu0 %v2577
        %3694 = vmatpush.bf16.xpose.msra.mxu0 %v2573
        %3695 = vmatpush.bf16.xpose.msra.mxu0 %v2569
        %3696 = vmatpush.bf16.xpose.msra.mxu0 %v2565
        %3697 = vmatmul.bf16.gmra.mxu0 %v861
        %v3698 = vpop.f32.mrf.mxu0
        %v3699 = vadd.f32 %v828, %v3698
        %v3700 = vpop.f32.mrf.mxu0
        %3701 = vdwg.mxu0
        %3702 = vmatpush.bf16.xpose.msra.mxu0 %v2594
        %3703 = vmatpush.bf16.xpose.msra.mxu0 %v2590
        %3704 = vmatpush.bf16.xpose.msra.mxu0 %v2586
        %3705 = vmatpush.bf16.xpose.msra.mxu0 %v2582
        %3706 = vmatpush.bf16.xpose.msra.mxu0 %v2578
        %3707 = vmatpush.bf16.xpose.msra.mxu0 %v2574
        %3708 = vmatpush.bf16.xpose.msra.mxu0 %v2570
        %3709 = vmatpush.bf16.xpose.msra.mxu0 %v2566
        %3710 = vmatmul.bf16.gmra.mxu0 %v862
        %v3711 = vpop.f32.mrf.mxu0
        %v3712 = vadd.f32 %v3699, %v3711
        %v3713 = vpop.f32.mrf.mxu0
        %3714 = vdwg.mxu0
        %3715 = vmatpush.bf16.xpose.msra.mxu0 %v2595
        %3716 = vmatpush.bf16.xpose.msra.mxu0 %v2591
        %3717 = vmatpush.bf16.xpose.msra.mxu0 %v2587
        %3718 = vmatpush.bf16.xpose.msra.mxu0 %v2583
        %3719 = vmatpush.bf16.xpose.msra.mxu0 %v2579
        %3720 = vmatpush.bf16.xpose.msra.mxu0 %v2575
        %3721 = vmatpush.bf16.xpose.msra.mxu0 %v2571
        %3722 = vmatpush.bf16.xpose.msra.mxu0 %v2567
        %3723 = vmatmul.bf16.gmra.mxu0 %v863
        %v3724 = vpop.f32.mrf.mxu0
        %v3725 = vadd.f32 %v3712, %v3724
        %v3726 = vpop.f32.mrf.mxu0
        %3727 = vdwg.mxu0
        %3728 = vmatpush.bf16.xpose.msra.mxu0 %v2596
        %3729 = vmatpush.bf16.xpose.msra.mxu0 %v2592
        %3730 = vmatpush.bf16.xpose.msra.mxu0 %v2588
        %3731 = vmatpush.bf16.xpose.msra.mxu0 %v2584
        %3732 = vmatpush.bf16.xpose.msra.mxu0 %v2580
        %3733 = vmatpush.bf16.xpose.msra.mxu0 %v2576
        %3734 = vmatpush.bf16.xpose.msra.mxu0 %v2572
        %3735 = vmatpush.bf16.xpose.msra.mxu0 %v2568
        %3736 = vmatmul.bf16.gmra.mxu0 %v864
        %v3737 = vpop.f32.mrf.mxu0
        %v3738 = vadd.f32 %v3725, %v3737
        %v3739 = vpop.f32.mrf.mxu0
        %3740 = vdwg.mxu0
        %3741 = vmatpush.bf16.xpose.msra.mxu0 %v2625
        %3742 = vmatpush.bf16.xpose.msra.mxu0 %v2621
        %3743 = vmatpush.bf16.xpose.msra.mxu0 %v2617
        %3744 = vmatpush.bf16.xpose.msra.mxu0 %v2613
        %3745 = vmatpush.bf16.xpose.msra.mxu0 %v2609
        %3746 = vmatpush.bf16.xpose.msra.mxu0 %v2605
        %3747 = vmatpush.bf16.xpose.msra.mxu0 %v2601
        %3748 = vmatpush.bf16.xpose.msra.mxu0 %v2597
        %3749 = vmatmul.bf16.gmra.mxu0 %v861
        %v3750 = vpop.f32.mrf.mxu0
        %v3751 = vadd.f32 %v829, %v3750
        %v3752 = vpop.f32.mrf.mxu0
        %3753 = vdwg.mxu0
        %3754 = vmatpush.bf16.xpose.msra.mxu0 %v2626
        %3755 = vmatpush.bf16.xpose.msra.mxu0 %v2622
        %3756 = vmatpush.bf16.xpose.msra.mxu0 %v2618
        %3757 = vmatpush.bf16.xpose.msra.mxu0 %v2614
        %3758 = vmatpush.bf16.xpose.msra.mxu0 %v2610
        %3759 = vmatpush.bf16.xpose.msra.mxu0 %v2606
        %3760 = vmatpush.bf16.xpose.msra.mxu0 %v2602
        %3761 = vmatpush.bf16.xpose.msra.mxu0 %v2598
        %3762 = vmatmul.bf16.gmra.mxu0 %v862
        %v3763 = vpop.f32.mrf.mxu0
        %v3764 = vadd.f32 %v3751, %v3763
        %v3765 = vpop.f32.mrf.mxu0
        %3766 = vdwg.mxu0
        %3767 = vmatpush.bf16.xpose.msra.mxu0 %v2627
        %3768 = vmatpush.bf16.xpose.msra.mxu0 %v2623
        %3769 = vmatpush.bf16.xpose.msra.mxu0 %v2619
        %3770 = vmatpush.bf16.xpose.msra.mxu0 %v2615
        %3771 = vmatpush.bf16.xpose.msra.mxu0 %v2611
        %3772 = vmatpush.bf16.xpose.msra.mxu0 %v2607
        %3773 = vmatpush.bf16.xpose.msra.mxu0 %v2603
        %3774 = vmatpush.bf16.xpose.msra.mxu0 %v2599
        %3775 = vmatmul.bf16.gmra.mxu0 %v863
        %v3776 = vpop.f32.mrf.mxu0
        %v3777 = vadd.f32 %v3764, %v3776
        %v3778 = vpop.f32.mrf.mxu0
        %3779 = vdwg.mxu0
        %3780 = vmatpush.bf16.xpose.msra.mxu0 %v2628
        %3781 = vmatpush.bf16.xpose.msra.mxu0 %v2624
        %3782 = vmatpush.bf16.xpose.msra.mxu0 %v2620
        %3783 = vmatpush.bf16.xpose.msra.mxu0 %v2616
        %3784 = vmatpush.bf16.xpose.msra.mxu0 %v2612
        %3785 = vmatpush.bf16.xpose.msra.mxu0 %v2608
        %3786 = vmatpush.bf16.xpose.msra.mxu0 %v2604
        %3787 = vmatpush.bf16.xpose.msra.mxu0 %v2600
        %3788 = vmatmul.bf16.gmra.mxu0 %v864
        %v3789 = vpop.f32.mrf.mxu0
        %v3790 = vadd.f32 %v3777, %v3789
        %v3791 = vpop.f32.mrf.mxu0
        %3792 = vdwg.mxu0
        %3793 = vmatpush.bf16.xpose.msra.mxu0 %v2657
        %3794 = vmatpush.bf16.xpose.msra.mxu0 %v2653
        %3795 = vmatpush.bf16.xpose.msra.mxu0 %v2649
        %3796 = vmatpush.bf16.xpose.msra.mxu0 %v2645
        %3797 = vmatpush.bf16.xpose.msra.mxu0 %v2641
        %3798 = vmatpush.bf16.xpose.msra.mxu0 %v2637
        %3799 = vmatpush.bf16.xpose.msra.mxu0 %v2633
        %3800 = vmatpush.bf16.xpose.msra.mxu0 %v2629
        %3801 = vmatmul.bf16.gmra.mxu0 %v861
        %v3802 = vpop.f32.mrf.mxu0
        %v3803 = vadd.f32 %v830, %v3802
        %v3804 = vpop.f32.mrf.mxu0
        %3805 = vdwg.mxu0
        %3806 = vmatpush.bf16.xpose.msra.mxu0 %v2658
        %3807 = vmatpush.bf16.xpose.msra.mxu0 %v2654
        %3808 = vmatpush.bf16.xpose.msra.mxu0 %v2650
        %3809 = vmatpush.bf16.xpose.msra.mxu0 %v2646
        %3810 = vmatpush.bf16.xpose.msra.mxu0 %v2642
        %3811 = vmatpush.bf16.xpose.msra.mxu0 %v2638
        %3812 = vmatpush.bf16.xpose.msra.mxu0 %v2634
        %3813 = vmatpush.bf16.xpose.msra.mxu0 %v2630
        %3814 = vmatmul.bf16.gmra.mxu0 %v862
        %v3815 = vpop.f32.mrf.mxu0
        %v3816 = vadd.f32 %v3803, %v3815
        %v3817 = vpop.f32.mrf.mxu0
        %3818 = vdwg.mxu0
        %3819 = vmatpush.bf16.xpose.msra.mxu0 %v2659
        %3820 = vmatpush.bf16.xpose.msra.mxu0 %v2655
        %3821 = vmatpush.bf16.xpose.msra.mxu0 %v2651
        %3822 = vmatpush.bf16.xpose.msra.mxu0 %v2647
        %3823 = vmatpush.bf16.xpose.msra.mxu0 %v2643
        %3824 = vmatpush.bf16.xpose.msra.mxu0 %v2639
        %3825 = vmatpush.bf16.xpose.msra.mxu0 %v2635
        %3826 = vmatpush.bf16.xpose.msra.mxu0 %v2631
        %3827 = vmatmul.bf16.gmra.mxu0 %v863
        %v3828 = vpop.f32.mrf.mxu0
        %v3829 = vadd.f32 %v3816, %v3828
        %v3830 = vpop.f32.mrf.mxu0
        %3831 = vdwg.mxu0
        %3832 = vmatpush.bf16.xpose.msra.mxu0 %v2660
        %3833 = vmatpush.bf16.xpose.msra.mxu0 %v2656
        %3834 = vmatpush.bf16.xpose.msra.mxu0 %v2652
        %3835 = vmatpush.bf16.xpose.msra.mxu0 %v2648
        %3836 = vmatpush.bf16.xpose.msra.mxu0 %v2644
        %3837 = vmatpush.bf16.xpose.msra.mxu0 %v2640
        %3838 = vmatpush.bf16.xpose.msra.mxu0 %v2636
        %3839 = vmatpush.bf16.xpose.msra.mxu0 %v2632
        %3840 = vmatmul.bf16.gmra.mxu0 %v864
        %v3841 = vpop.f32.mrf.mxu0
        %v3842 = vadd.f32 %v3829, %v3841
        %v3843 = vpop.f32.mrf.mxu0
        %3844 = vdwg.mxu0
        %3845 = vmatpush.bf16.xpose.msra.mxu0 %v2689
        %3846 = vmatpush.bf16.xpose.msra.mxu0 %v2685
        %3847 = vmatpush.bf16.xpose.msra.mxu0 %v2681
        %3848 = vmatpush.bf16.xpose.msra.mxu0 %v2677
        %3849 = vmatpush.bf16.xpose.msra.mxu0 %v2673
        %3850 = vmatpush.bf16.xpose.msra.mxu0 %v2669
        %3851 = vmatpush.bf16.xpose.msra.mxu0 %v2665
        %3852 = vmatpush.bf16.xpose.msra.mxu0 %v2661
        %3853 = vmatmul.bf16.gmra.mxu0 %v861
        %v3854 = vpop.f32.mrf.mxu0
        %v3855 = vadd.f32 %v831, %v3854
        %v3856 = vpop.f32.mrf.mxu0
        %3857 = vdwg.mxu0
        %3858 = vmatpush.bf16.xpose.msra.mxu0 %v2690
        %3859 = vmatpush.bf16.xpose.msra.mxu0 %v2686
        %3860 = vmatpush.bf16.xpose.msra.mxu0 %v2682
        %3861 = vmatpush.bf16.xpose.msra.mxu0 %v2678
        %3862 = vmatpush.bf16.xpose.msra.mxu0 %v2674
        %3863 = vmatpush.bf16.xpose.msra.mxu0 %v2670
        %3864 = vmatpush.bf16.xpose.msra.mxu0 %v2666
        %3865 = vmatpush.bf16.xpose.msra.mxu0 %v2662
        %3866 = vmatmul.bf16.gmra.mxu0 %v862
        %v3867 = vpop.f32.mrf.mxu0
        %v3868 = vadd.f32 %v3855, %v3867
        %v3869 = vpop.f32.mrf.mxu0
        %3870 = vdwg.mxu0
        %3871 = vmatpush.bf16.xpose.msra.mxu0 %v2691
        %3872 = vmatpush.bf16.xpose.msra.mxu0 %v2687
        %3873 = vmatpush.bf16.xpose.msra.mxu0 %v2683
        %3874 = vmatpush.bf16.xpose.msra.mxu0 %v2679
        %3875 = vmatpush.bf16.xpose.msra.mxu0 %v2675
        %3876 = vmatpush.bf16.xpose.msra.mxu0 %v2671
        %3877 = vmatpush.bf16.xpose.msra.mxu0 %v2667
        %3878 = vmatpush.bf16.xpose.msra.mxu0 %v2663
        %3879 = vmatmul.bf16.gmra.mxu0 %v863
        %v3880 = vpop.f32.mrf.mxu0
        %v3881 = vadd.f32 %v3868, %v3880
        %v3882 = vpop.f32.mrf.mxu0
        %3883 = vdwg.mxu0
        %3884 = vmatpush.bf16.xpose.msra.mxu0 %v2692
        %3885 = vmatpush.bf16.xpose.msra.mxu0 %v2688
        %3886 = vmatpush.bf16.xpose.msra.mxu0 %v2684
        %3887 = vmatpush.bf16.xpose.msra.mxu0 %v2680
        %3888 = vmatpush.bf16.xpose.msra.mxu0 %v2676
        %3889 = vmatpush.bf16.xpose.msra.mxu0 %v2672
        %3890 = vmatpush.bf16.xpose.msra.mxu0 %v2668
        %3891 = vmatpush.bf16.xpose.msra.mxu0 %v2664
        %3892 = vmatmul.bf16.gmra.mxu0 %v864
        %v3893 = vpop.f32.mrf.mxu0
        %v3894 = vadd.f32 %v3881, %v3893
        %v3895 = vpop.f32.mrf.mxu0
        %3896 = vdwg.mxu0
        %3897 = vmatpush.bf16.xpose.msra.mxu0 %v2721
        %3898 = vmatpush.bf16.xpose.msra.mxu0 %v2717
        %3899 = vmatpush.bf16.xpose.msra.mxu0 %v2713
        %3900 = vmatpush.bf16.xpose.msra.mxu0 %v2709
        %3901 = vmatpush.bf16.xpose.msra.mxu0 %v2705
        %3902 = vmatpush.bf16.xpose.msra.mxu0 %v2701
        %3903 = vmatpush.bf16.xpose.msra.mxu0 %v2697
        %3904 = vmatpush.bf16.xpose.msra.mxu0 %v2693
        %3905 = vmatmul.bf16.gmra.mxu0 %v861
        %v3906 = vpop.f32.mrf.mxu0
        %v3907 = vadd.f32 %v832, %v3906
        %v3908 = vpop.f32.mrf.mxu0
        %3909 = vdwg.mxu0
        %3910 = vmatpush.bf16.xpose.msra.mxu0 %v2722
        %3911 = vmatpush.bf16.xpose.msra.mxu0 %v2718
        %3912 = vmatpush.bf16.xpose.msra.mxu0 %v2714
        %3913 = vmatpush.bf16.xpose.msra.mxu0 %v2710
        %3914 = vmatpush.bf16.xpose.msra.mxu0 %v2706
        %3915 = vmatpush.bf16.xpose.msra.mxu0 %v2702
        %3916 = vmatpush.bf16.xpose.msra.mxu0 %v2698
        %3917 = vmatpush.bf16.xpose.msra.mxu0 %v2694
        %3918 = vmatmul.bf16.gmra.mxu0 %v862
        %v3919 = vpop.f32.mrf.mxu0
        %v3920 = vadd.f32 %v3907, %v3919
        %v3921 = vpop.f32.mrf.mxu0
        %3922 = vdwg.mxu0
        %3923 = vmatpush.bf16.xpose.msra.mxu0 %v2723
        %3924 = vmatpush.bf16.xpose.msra.mxu0 %v2719
        %3925 = vmatpush.bf16.xpose.msra.mxu0 %v2715
        %3926 = vmatpush.bf16.xpose.msra.mxu0 %v2711
        %3927 = vmatpush.bf16.xpose.msra.mxu0 %v2707
        %3928 = vmatpush.bf16.xpose.msra.mxu0 %v2703
        %3929 = vmatpush.bf16.xpose.msra.mxu0 %v2699
        %3930 = vmatpush.bf16.xpose.msra.mxu0 %v2695
        %3931 = vmatmul.bf16.gmra.mxu0 %v863
        %v3932 = vpop.f32.mrf.mxu0
        %v3933 = vadd.f32 %v3920, %v3932
        %v3934 = vpop.f32.mrf.mxu0
        %3935 = vdwg.mxu0
        %3936 = vmatpush.bf16.xpose.msra.mxu0 %v2724
        %3937 = vmatpush.bf16.xpose.msra.mxu0 %v2720
        %3938 = vmatpush.bf16.xpose.msra.mxu0 %v2716
        %3939 = vmatpush.bf16.xpose.msra.mxu0 %v2712
        %3940 = vmatpush.bf16.xpose.msra.mxu0 %v2708
        %3941 = vmatpush.bf16.xpose.msra.mxu0 %v2704
        %3942 = vmatpush.bf16.xpose.msra.mxu0 %v2700
        %3943 = vmatpush.bf16.xpose.msra.mxu0 %v2696
        %3944 = vmatmul.bf16.gmra.mxu0 %v864
        %v3945 = vpop.f32.mrf.mxu0
        %v3946 = vadd.f32 %v3933, %v3945
        %v3947 = vpop.f32.mrf.mxu0
        %3948 = vdwg.mxu0
        %3949 = vmatpush.bf16.xpose.msra.mxu0 %v2753
        %3950 = vmatpush.bf16.xpose.msra.mxu0 %v2749
        %3951 = vmatpush.bf16.xpose.msra.mxu0 %v2745
        %3952 = vmatpush.bf16.xpose.msra.mxu0 %v2741
        %3953 = vmatpush.bf16.xpose.msra.mxu0 %v2737
        %3954 = vmatpush.bf16.xpose.msra.mxu0 %v2733
        %3955 = vmatpush.bf16.xpose.msra.mxu0 %v2729
        %3956 = vmatpush.bf16.xpose.msra.mxu0 %v2725
        %3957 = vmatmul.bf16.gmra.mxu0 %v861
        %v3958 = vpop.f32.mrf.mxu0
        %v3959 = vadd.f32 %v833, %v3958
        %v3960 = vpop.f32.mrf.mxu0
        %3961 = vdwg.mxu0
        %3962 = vmatpush.bf16.xpose.msra.mxu0 %v2754
        %3963 = vmatpush.bf16.xpose.msra.mxu0 %v2750
        %3964 = vmatpush.bf16.xpose.msra.mxu0 %v2746
        %3965 = vmatpush.bf16.xpose.msra.mxu0 %v2742
        %3966 = vmatpush.bf16.xpose.msra.mxu0 %v2738
        %3967 = vmatpush.bf16.xpose.msra.mxu0 %v2734
        %3968 = vmatpush.bf16.xpose.msra.mxu0 %v2730
        %3969 = vmatpush.bf16.xpose.msra.mxu0 %v2726
        %3970 = vmatmul.bf16.gmra.mxu0 %v862
        %v3971 = vpop.f32.mrf.mxu0
        %v3972 = vadd.f32 %v3959, %v3971
        %v3973 = vpop.f32.mrf.mxu0
        %3974 = vdwg.mxu0
        %3975 = vmatpush.bf16.xpose.msra.mxu0 %v2755
        %3976 = vmatpush.bf16.xpose.msra.mxu0 %v2751
        %3977 = vmatpush.bf16.xpose.msra.mxu0 %v2747
        %3978 = vmatpush.bf16.xpose.msra.mxu0 %v2743
        %3979 = vmatpush.bf16.xpose.msra.mxu0 %v2739
        %3980 = vmatpush.bf16.xpose.msra.mxu0 %v2735
        %3981 = vmatpush.bf16.xpose.msra.mxu0 %v2731
        %3982 = vmatpush.bf16.xpose.msra.mxu0 %v2727
        %3983 = vmatmul.bf16.gmra.mxu0 %v863
        %v3984 = vpop.f32.mrf.mxu0
        %v3985 = vadd.f32 %v3972, %v3984
        %v3986 = vpop.f32.mrf.mxu0
        %3987 = vdwg.mxu0
        %3988 = vmatpush.bf16.xpose.msra.mxu0 %v2756
        %3989 = vmatpush.bf16.xpose.msra.mxu0 %v2752
        %3990 = vmatpush.bf16.xpose.msra.mxu0 %v2748
        %3991 = vmatpush.bf16.xpose.msra.mxu0 %v2744
        %3992 = vmatpush.bf16.xpose.msra.mxu0 %v2740
        %3993 = vmatpush.bf16.xpose.msra.mxu0 %v2736
        %3994 = vmatpush.bf16.xpose.msra.mxu0 %v2732
        %3995 = vmatpush.bf16.xpose.msra.mxu0 %v2728
        %3996 = vmatmul.bf16.gmra.mxu0 %v864
        %v3997 = vpop.f32.mrf.mxu0
        %v3998 = vadd.f32 %v3985, %v3997
        %v3999 = vpop.f32.mrf.mxu0
        %4000 = vdwg.mxu0
        %4001 = vmatpush.bf16.xpose.msra.mxu0 %v2785
        %4002 = vmatpush.bf16.xpose.msra.mxu0 %v2781
        %4003 = vmatpush.bf16.xpose.msra.mxu0 %v2777
        %4004 = vmatpush.bf16.xpose.msra.mxu0 %v2773
        %4005 = vmatpush.bf16.xpose.msra.mxu0 %v2769
        %4006 = vmatpush.bf16.xpose.msra.mxu0 %v2765
        %4007 = vmatpush.bf16.xpose.msra.mxu0 %v2761
        %4008 = vmatpush.bf16.xpose.msra.mxu0 %v2757
        %4009 = vmatmul.bf16.gmra.mxu0 %v861
        %v4010 = vpop.f32.mrf.mxu0
        %v4011 = vadd.f32 %v834, %v4010
        %v4012 = vpop.f32.mrf.mxu0
        %4013 = vdwg.mxu0
        %4014 = vmatpush.bf16.xpose.msra.mxu0 %v2786
        %4015 = vmatpush.bf16.xpose.msra.mxu0 %v2782
        %4016 = vmatpush.bf16.xpose.msra.mxu0 %v2778
        %4017 = vmatpush.bf16.xpose.msra.mxu0 %v2774
        %4018 = vmatpush.bf16.xpose.msra.mxu0 %v2770
        %4019 = vmatpush.bf16.xpose.msra.mxu0 %v2766
        %4020 = vmatpush.bf16.xpose.msra.mxu0 %v2762
        %4021 = vmatpush.bf16.xpose.msra.mxu0 %v2758
        %4022 = vmatmul.bf16.gmra.mxu0 %v862
        %v4023 = vpop.f32.mrf.mxu0
        %v4024 = vadd.f32 %v4011, %v4023
        %v4025 = vpop.f32.mrf.mxu0
        %4026 = vdwg.mxu0
        %4027 = vmatpush.bf16.xpose.msra.mxu0 %v2787
        %4028 = vmatpush.bf16.xpose.msra.mxu0 %v2783
        %4029 = vmatpush.bf16.xpose.msra.mxu0 %v2779
        %4030 = vmatpush.bf16.xpose.msra.mxu0 %v2775
        %4031 = vmatpush.bf16.xpose.msra.mxu0 %v2771
        %4032 = vmatpush.bf16.xpose.msra.mxu0 %v2767
        %4033 = vmatpush.bf16.xpose.msra.mxu0 %v2763
        %4034 = vmatpush.bf16.xpose.msra.mxu0 %v2759
        %4035 = vmatmul.bf16.gmra.mxu0 %v863
        %v4036 = vpop.f32.mrf.mxu0
        %v4037 = vadd.f32 %v4024, %v4036
        %v4038 = vpop.f32.mrf.mxu0
        %4039 = vdwg.mxu0
        %4040 = vmatpush.bf16.xpose.msra.mxu0 %v2788
        %4041 = vmatpush.bf16.xpose.msra.mxu0 %v2784
        %4042 = vmatpush.bf16.xpose.msra.mxu0 %v2780
        %4043 = vmatpush.bf16.xpose.msra.mxu0 %v2776
        %4044 = vmatpush.bf16.xpose.msra.mxu0 %v2772
        %4045 = vmatpush.bf16.xpose.msra.mxu0 %v2768
        %4046 = vmatpush.bf16.xpose.msra.mxu0 %v2764
        %4047 = vmatpush.bf16.xpose.msra.mxu0 %v2760
        %4048 = vmatmul.bf16.gmra.mxu0 %v864
        %v4049 = vpop.f32.mrf.mxu0
        %v4050 = vadd.f32 %v4037, %v4049
        %v4051 = vpop.f32.mrf.mxu0
        %4052 = vdwg.mxu0
        %4053 = vmatpush.bf16.xpose.msra.mxu0 %v2817
        %4054 = vmatpush.bf16.xpose.msra.mxu0 %v2813
        %4055 = vmatpush.bf16.xpose.msra.mxu0 %v2809
        %4056 = vmatpush.bf16.xpose.msra.mxu0 %v2805
        %4057 = vmatpush.bf16.xpose.msra.mxu0 %v2801
        %4058 = vmatpush.bf16.xpose.msra.mxu0 %v2797
        %4059 = vmatpush.bf16.xpose.msra.mxu0 %v2793
        %4060 = vmatpush.bf16.xpose.msra.mxu0 %v2789
        %4061 = vmatmul.bf16.gmra.mxu0 %v861
        %v4062 = vpop.f32.mrf.mxu0
        %v4063 = vadd.f32 %v835, %v4062
        %v4064 = vpop.f32.mrf.mxu0
        %4065 = vdwg.mxu0
        %4066 = vmatpush.bf16.xpose.msra.mxu0 %v2818
        %4067 = vmatpush.bf16.xpose.msra.mxu0 %v2814
        %4068 = vmatpush.bf16.xpose.msra.mxu0 %v2810
        %4069 = vmatpush.bf16.xpose.msra.mxu0 %v2806
        %4070 = vmatpush.bf16.xpose.msra.mxu0 %v2802
        %4071 = vmatpush.bf16.xpose.msra.mxu0 %v2798
        %4072 = vmatpush.bf16.xpose.msra.mxu0 %v2794
        %4073 = vmatpush.bf16.xpose.msra.mxu0 %v2790
        %4074 = vmatmul.bf16.gmra.mxu0 %v862
        %v4075 = vpop.f32.mrf.mxu0
        %v4076 = vadd.f32 %v4063, %v4075
        %v4077 = vpop.f32.mrf.mxu0
        %4078 = vdwg.mxu0
        %4079 = vmatpush.bf16.xpose.msra.mxu0 %v2819
        %4080 = vmatpush.bf16.xpose.msra.mxu0 %v2815
        %4081 = vmatpush.bf16.xpose.msra.mxu0 %v2811
        %4082 = vmatpush.bf16.xpose.msra.mxu0 %v2807
        %4083 = vmatpush.bf16.xpose.msra.mxu0 %v2803
        %4084 = vmatpush.bf16.xpose.msra.mxu0 %v2799
        %4085 = vmatpush.bf16.xpose.msra.mxu0 %v2795
        %4086 = vmatpush.bf16.xpose.msra.mxu0 %v2791
        %4087 = vmatmul.bf16.gmra.mxu0 %v863
        %v4088 = vpop.f32.mrf.mxu0
        %v4089 = vadd.f32 %v4076, %v4088
        %v4090 = vpop.f32.mrf.mxu0
        %4091 = vdwg.mxu0
        %4092 = vmatpush.bf16.xpose.msra.mxu0 %v2820
        %4093 = vmatpush.bf16.xpose.msra.mxu0 %v2816
        %4094 = vmatpush.bf16.xpose.msra.mxu0 %v2812
        %4095 = vmatpush.bf16.xpose.msra.mxu0 %v2808
        %4096 = vmatpush.bf16.xpose.msra.mxu0 %v2804
        %4097 = vmatpush.bf16.xpose.msra.mxu0 %v2800
        %4098 = vmatpush.bf16.xpose.msra.mxu0 %v2796
        %4099 = vmatpush.bf16.xpose.msra.mxu0 %v2792
        %4100 = vmatmul.bf16.gmra.mxu0 %v864
        %v4101 = vpop.f32.mrf.mxu0
        %v4102 = vadd.f32 %v4089, %v4101
        %v4103 = vpop.f32.mrf.mxu0
        %4104 = vdwg.mxu0
        %4105 = vmatpush.bf16.xpose.msra.mxu0 %v2849
        %4106 = vmatpush.bf16.xpose.msra.mxu0 %v2845
        %4107 = vmatpush.bf16.xpose.msra.mxu0 %v2841
        %4108 = vmatpush.bf16.xpose.msra.mxu0 %v2837
        %4109 = vmatpush.bf16.xpose.msra.mxu0 %v2833
        %4110 = vmatpush.bf16.xpose.msra.mxu0 %v2829
        %4111 = vmatpush.bf16.xpose.msra.mxu0 %v2825
        %4112 = vmatpush.bf16.xpose.msra.mxu0 %v2821
        %4113 = vmatmul.bf16.gmra.mxu0 %v861
        %v4114 = vpop.f32.mrf.mxu0
        %v4115 = vadd.f32 %v836, %v4114
        %v4116 = vpop.f32.mrf.mxu0
        %4117 = vdwg.mxu0
        %4118 = vmatpush.bf16.xpose.msra.mxu0 %v2850
        %4119 = vmatpush.bf16.xpose.msra.mxu0 %v2846
        %4120 = vmatpush.bf16.xpose.msra.mxu0 %v2842
        %4121 = vmatpush.bf16.xpose.msra.mxu0 %v2838
        %4122 = vmatpush.bf16.xpose.msra.mxu0 %v2834
        %4123 = vmatpush.bf16.xpose.msra.mxu0 %v2830
        %4124 = vmatpush.bf16.xpose.msra.mxu0 %v2826
        %4125 = vmatpush.bf16.xpose.msra.mxu0 %v2822
        %4126 = vmatmul.bf16.gmra.mxu0 %v862
        %v4127 = vpop.f32.mrf.mxu0
        %v4128 = vadd.f32 %v4115, %v4127
        %v4129 = vpop.f32.mrf.mxu0
        %4130 = vdwg.mxu0
        %4131 = vmatpush.bf16.xpose.msra.mxu0 %v2851
        %4132 = vmatpush.bf16.xpose.msra.mxu0 %v2847
        %4133 = vmatpush.bf16.xpose.msra.mxu0 %v2843
        %4134 = vmatpush.bf16.xpose.msra.mxu0 %v2839
        %4135 = vmatpush.bf16.xpose.msra.mxu0 %v2835
        %4136 = vmatpush.bf16.xpose.msra.mxu0 %v2831
        %4137 = vmatpush.bf16.xpose.msra.mxu0 %v2827
        %4138 = vmatpush.bf16.xpose.msra.mxu0 %v2823
        %4139 = vmatmul.bf16.gmra.mxu0 %v863
        %v4140 = vpop.f32.mrf.mxu0
        %v4141 = vadd.f32 %v4128, %v4140
        %v4142 = vpop.f32.mrf.mxu0
        %4143 = vdwg.mxu0
        %4144 = vmatpush.bf16.xpose.msra.mxu0 %v2852
        %4145 = vmatpush.bf16.xpose.msra.mxu0 %v2848
        %4146 = vmatpush.bf16.xpose.msra.mxu0 %v2844
        %4147 = vmatpush.bf16.xpose.msra.mxu0 %v2840
        %4148 = vmatpush.bf16.xpose.msra.mxu0 %v2836
        %4149 = vmatpush.bf16.xpose.msra.mxu0 %v2832
        %4150 = vmatpush.bf16.xpose.msra.mxu0 %v2828
        %4151 = vmatpush.bf16.xpose.msra.mxu0 %v2824
        %4152 = vmatmul.bf16.gmra.mxu0 %v864
        %v4153 = vpop.f32.mrf.mxu0
        %v4154 = vadd.f32 %v4141, %v4153
        %v4155 = vpop.f32.mrf.mxu0
        %4156 = vdwg.mxu0
        %4157 = vmatpush.bf16.xpose.msra.mxu0 %v2881
        %4158 = vmatpush.bf16.xpose.msra.mxu0 %v2877
        %4159 = vmatpush.bf16.xpose.msra.mxu0 %v2873
        %4160 = vmatpush.bf16.xpose.msra.mxu0 %v2869
        %4161 = vmatpush.bf16.xpose.msra.mxu0 %v2865
        %4162 = vmatpush.bf16.xpose.msra.mxu0 %v2861
        %4163 = vmatpush.bf16.xpose.msra.mxu0 %v2857
        %4164 = vmatpush.bf16.xpose.msra.mxu0 %v2853
        %4165 = vmatmul.bf16.gmra.mxu0 %v861
        %v4166 = vpop.f32.mrf.mxu0
        %v4167 = vadd.f32 %v837, %v4166
        %v4168 = vpop.f32.mrf.mxu0
        %4169 = vdwg.mxu0
        %4170 = vmatpush.bf16.xpose.msra.mxu0 %v2882
        %4171 = vmatpush.bf16.xpose.msra.mxu0 %v2878
        %4172 = vmatpush.bf16.xpose.msra.mxu0 %v2874
        %4173 = vmatpush.bf16.xpose.msra.mxu0 %v2870
        %4174 = vmatpush.bf16.xpose.msra.mxu0 %v2866
        %4175 = vmatpush.bf16.xpose.msra.mxu0 %v2862
        %4176 = vmatpush.bf16.xpose.msra.mxu0 %v2858
        %4177 = vmatpush.bf16.xpose.msra.mxu0 %v2854
        %4178 = vmatmul.bf16.gmra.mxu0 %v862
        %v4179 = vpop.f32.mrf.mxu0
        %v4180 = vadd.f32 %v4167, %v4179
        %v4181 = vpop.f32.mrf.mxu0
        %4182 = vdwg.mxu0
        %4183 = vmatpush.bf16.xpose.msra.mxu0 %v2883
        %4184 = vmatpush.bf16.xpose.msra.mxu0 %v2879
        %4185 = vmatpush.bf16.xpose.msra.mxu0 %v2875
        %4186 = vmatpush.bf16.xpose.msra.mxu0 %v2871
        %4187 = vmatpush.bf16.xpose.msra.mxu0 %v2867
        %4188 = vmatpush.bf16.xpose.msra.mxu0 %v2863
        %4189 = vmatpush.bf16.xpose.msra.mxu0 %v2859
        %4190 = vmatpush.bf16.xpose.msra.mxu0 %v2855
        %4191 = vmatmul.bf16.gmra.mxu0 %v863
        %v4192 = vpop.f32.mrf.mxu0
        %v4193 = vadd.f32 %v4180, %v4192
        %v4194 = vpop.f32.mrf.mxu0
        %4195 = vdwg.mxu0
        %4196 = vmatpush.bf16.xpose.msra.mxu0 %v2884
        %4197 = vmatpush.bf16.xpose.msra.mxu0 %v2880
        %4198 = vmatpush.bf16.xpose.msra.mxu0 %v2876
        %4199 = vmatpush.bf16.xpose.msra.mxu0 %v2872
        %4200 = vmatpush.bf16.xpose.msra.mxu0 %v2868
        %4201 = vmatpush.bf16.xpose.msra.mxu0 %v2864
        %4202 = vmatpush.bf16.xpose.msra.mxu0 %v2860
        %4203 = vmatpush.bf16.xpose.msra.mxu0 %v2856
        %4204 = vmatmul.bf16.gmra.mxu0 %v864
        %v4205 = vpop.f32.mrf.mxu0
        %v4206 = vadd.f32 %v4193, %v4205
        %v4207 = vpop.f32.mrf.mxu0
        %4208 = vdwg.mxu0
        %4209 = vmatpush.bf16.xpose.msra.mxu0 %v2913
        %4210 = vmatpush.bf16.xpose.msra.mxu0 %v2909
        %4211 = vmatpush.bf16.xpose.msra.mxu0 %v2905
        %4212 = vmatpush.bf16.xpose.msra.mxu0 %v2901
        %4213 = vmatpush.bf16.xpose.msra.mxu0 %v2897
        %4214 = vmatpush.bf16.xpose.msra.mxu0 %v2893
        %4215 = vmatpush.bf16.xpose.msra.mxu0 %v2889
        %4216 = vmatpush.bf16.xpose.msra.mxu0 %v2885
        %4217 = vmatmul.bf16.gmra.mxu0 %v861
        %v4218 = vpop.f32.mrf.mxu0
        %v4219 = vadd.f32 %v838, %v4218
        %v4220 = vpop.f32.mrf.mxu0
        %4221 = vdwg.mxu0
        %4222 = vmatpush.bf16.xpose.msra.mxu0 %v2914
        %4223 = vmatpush.bf16.xpose.msra.mxu0 %v2910
        %4224 = vmatpush.bf16.xpose.msra.mxu0 %v2906
        %4225 = vmatpush.bf16.xpose.msra.mxu0 %v2902
        %4226 = vmatpush.bf16.xpose.msra.mxu0 %v2898
        %4227 = vmatpush.bf16.xpose.msra.mxu0 %v2894
        %4228 = vmatpush.bf16.xpose.msra.mxu0 %v2890
        %4229 = vmatpush.bf16.xpose.msra.mxu0 %v2886
        %4230 = vmatmul.bf16.gmra.mxu0 %v862
        %v4231 = vpop.f32.mrf.mxu0
        %v4232 = vadd.f32 %v4219, %v4231
        %v4233 = vpop.f32.mrf.mxu0
        %4234 = vdwg.mxu0
        %4235 = vmatpush.bf16.xpose.msra.mxu0 %v2915
        %4236 = vmatpush.bf16.xpose.msra.mxu0 %v2911
        %4237 = vmatpush.bf16.xpose.msra.mxu0 %v2907
        %4238 = vmatpush.bf16.xpose.msra.mxu0 %v2903
        %4239 = vmatpush.bf16.xpose.msra.mxu0 %v2899
        %4240 = vmatpush.bf16.xpose.msra.mxu0 %v2895
        %4241 = vmatpush.bf16.xpose.msra.mxu0 %v2891
        %4242 = vmatpush.bf16.xpose.msra.mxu0 %v2887
        %4243 = vmatmul.bf16.gmra.mxu0 %v863
        %v4244 = vpop.f32.mrf.mxu0
        %v4245 = vadd.f32 %v4232, %v4244
        %v4246 = vpop.f32.mrf.mxu0
        %4247 = vdwg.mxu0
        %4248 = vmatpush.bf16.xpose.msra.mxu0 %v2916
        %4249 = vmatpush.bf16.xpose.msra.mxu0 %v2912
        %4250 = vmatpush.bf16.xpose.msra.mxu0 %v2908
        %4251 = vmatpush.bf16.xpose.msra.mxu0 %v2904
        %4252 = vmatpush.bf16.xpose.msra.mxu0 %v2900
        %4253 = vmatpush.bf16.xpose.msra.mxu0 %v2896
        %4254 = vmatpush.bf16.xpose.msra.mxu0 %v2892
        %4255 = vmatpush.bf16.xpose.msra.mxu0 %v2888
        %4256 = vmatmul.bf16.gmra.mxu0 %v864
        %v4257 = vpop.f32.mrf.mxu0
        %v4258 = vadd.f32 %v4245, %v4257
        %v4259 = vpop.f32.mrf.mxu0
        %4260 = vdwg.mxu0
        %v4261 = vmul.f32 %v3478, 0.5
        %v4262 = vmul.f32 %v3530, 0.5
        %v4263 = vmul.f32 %v3582, 0.5
        %v4264 = vmul.f32 %v3634, 0.5
        %v4265 = vmul.f32 %v3686, 0.5
        %v4266 = vmul.f32 %v3738, 0.5
        %v4267 = vmul.f32 %v3790, 0.5
        %v4268 = vmul.f32 %v3842, 0.5
        %v4269 = vmul.f32 %v3894, 0.5
        %v4270 = vmul.f32 %v3946, 0.5
        %v4271 = vmul.f32 %v3998, 0.5
        %v4272 = vmul.f32 %v4050, 0.5
        %v4273 = vmul.f32 %v4102, 0.5
        %v4274 = vmul.f32 %v4154, 0.5
        %v4275 = vmul.f32 %v4206, 0.5
        %v4276 = vmul.f32 %v4258, 0.5
        %v4277 = vmul.f32 %v3478, 0.70710677
        %v4278 = vmul.f32 %v3530, 0.70710677
        %v4279 = vmul.f32 %v3582, 0.70710677
        %v4280 = vmul.f32 %v3634, 0.70710677
        %v4281 = vmul.f32 %v3686, 0.70710677
        %v4282 = vmul.f32 %v3738, 0.70710677
        %v4283 = vmul.f32 %v3790, 0.70710677
        %v4284 = vmul.f32 %v3842, 0.70710677
        %v4285 = vmul.f32 %v3894, 0.70710677
        %v4286 = vmul.f32 %v3946, 0.70710677
        %v4287 = vmul.f32 %v3998, 0.70710677
        %v4288 = vmul.f32 %v4050, 0.70710677
        %v4289 = vmul.f32 %v4102, 0.70710677
        %v4290 = vmul.f32 %v4154, 0.70710677
        %v4291 = vmul.f32 %v4206, 0.70710677
        %v4292 = vmul.f32 %v4258, 0.70710677
        %v4293 = vmul.f32 %v4277, %v4277
        %v4294 = vmin.f32 16.0, %v4293
        %v4295 = vmul.f32 %v4294, 2.1237322e-06
        %v4296 = vadd.f32 %v4295, 0.00028619796
        %v4297 = vmul.f32 %v4294, %v4296
        %v4298 = vadd.f32 %v4297, 0.0036580483
        %v4299 = vmul.f32 %v4294, %v4298
        %v4300 = vadd.f32 %v4299, 0.05243302
        %v4301 = vmul.f32 %v4294, %v4300
        %v4302 = vadd.f32 %v4301, 0.18741608
        %v4303 = vmul.f32 %v4294, %v4302
        %v4304 = vadd.f32 %v4303, 1.1283791
        %v4305 = vmul.f32 %v4277, %v4304
        %v4306 = vmul.f32 %v4294, 3.8918573e-05
        %v4307 = vadd.f32 %v4306, 0.001143296
        %v4308 = vmul.f32 %v4294, %v4307
        %v4309 = vadd.f32 %v4308, 0.014752088
        %v4310 = vmul.f32 %v4294, %v4309
        %v4311 = vadd.f32 %v4310, 0.112945676
        %v4312 = vmul.f32 %v4294, %v4311
        %v4313 = vadd.f32 %v4312, 0.4994258
        %v4314 = vmul.f32 %v4294, %v4313
        %v4315 = vadd.f32 %v4314, 1.0
        %v4316 = vrcp.pop %v4315
        %v4317 = vmul.f32 %v4315, %v4316
        %v4318 = vsub.f32 1.0, %v4317
        %v4319 = vmul.f32 %v4316, %v4318
        %v4320 = vadd.f32 %v4316, %v4319
        %vm4321 = vweird.f32 %v4315
        %vm4322 = vweird.f32 %v4316
        %vm4323 = vmor %vm4321, %vm4322
        %v4324 = vsel %vm4323, %v4316, %v4320
        %v4325 = vand.u32 2147483647, %v4315
        %vm4326 = vcmp.eq.f32.partialorder %v4325, 8.507059e+37
        %v4327 = vand.u32 %v4315, 2147483648
        %v4328 = vor.u32 1.1754944e-38, %v4327
        %v4329 = vsel %vm4326, %v4328, %v4324
        %v4330 = vmul.f32 %v4305, %v4329
        %v4331 = vmin.f32 %v4330, 1.0
        %v4332 = vmax.f32 %v4331, -1.0
        %v4333 = vmul.f32 %v4278, %v4278
        %v4334 = vmin.f32 16.0, %v4333
        %v4335 = vmul.f32 %v4334, 2.1237322e-06
        %v4336 = vadd.f32 %v4335, 0.00028619796
        %v4337 = vmul.f32 %v4334, %v4336
        %v4338 = vadd.f32 %v4337, 0.0036580483
        %v4339 = vmul.f32 %v4334, %v4338
        %v4340 = vadd.f32 %v4339, 0.05243302
        %v4341 = vmul.f32 %v4334, %v4340
        %v4342 = vadd.f32 %v4341, 0.18741608
        %v4343 = vmul.f32 %v4334, %v4342
        %v4344 = vadd.f32 %v4343, 1.1283791
        %v4345 = vmul.f32 %v4278, %v4344
        %v4346 = vmul.f32 %v4334, 3.8918573e-05
        %v4347 = vadd.f32 %v4346, 0.001143296
        %v4348 = vmul.f32 %v4334, %v4347
        %v4349 = vadd.f32 %v4348, 0.014752088
        %v4350 = vmul.f32 %v4334, %v4349
        %v4351 = vadd.f32 %v4350, 0.112945676
        %v4352 = vmul.f32 %v4334, %v4351
        %v4353 = vadd.f32 %v4352, 0.4994258
        %v4354 = vmul.f32 %v4334, %v4353
        %v4355 = vadd.f32 %v4354, 1.0
        %v4356 = vrcp.pop %v4355
        %v4357 = vmul.f32 %v4355, %v4356
        %v4358 = vsub.f32 1.0, %v4357
        %v4359 = vmul.f32 %v4356, %v4358
        %v4360 = vadd.f32 %v4356, %v4359
        %vm4361 = vweird.f32 %v4355
        %vm4362 = vweird.f32 %v4356
        %vm4363 = vmor %vm4361, %vm4362
        %v4364 = vsel %vm4363, %v4356, %v4360
        %v4365 = vand.u32 2147483647, %v4355
        %vm4366 = vcmp.eq.f32.partialorder %v4365, 8.507059e+37
        %v4367 = vand.u32 %v4355, 2147483648
        %v4368 = vor.u32 1.1754944e-38, %v4367
        %v4369 = vsel %vm4366, %v4368, %v4364
        %v4370 = vmul.f32 %v4345, %v4369
        %v4371 = vmin.f32 %v4370, 1.0
        %v4372 = vmax.f32 %v4371, -1.0
        %v4373 = vmul.f32 %v4279, %v4279
        %v4374 = vmin.f32 16.0, %v4373
        %v4375 = vmul.f32 %v4374, 2.1237322e-06
        %v4376 = vadd.f32 %v4375, 0.00028619796
        %v4377 = vmul.f32 %v4374, %v4376
        %v4378 = vadd.f32 %v4377, 0.0036580483
        %v4379 = vmul.f32 %v4374, %v4378
        %v4380 = vadd.f32 %v4379, 0.05243302
        %v4381 = vmul.f32 %v4374, %v4380
        %v4382 = vadd.f32 %v4381, 0.18741608
        %v4383 = vmul.f32 %v4374, %v4382
        %v4384 = vadd.f32 %v4383, 1.1283791
        %v4385 = vmul.f32 %v4279, %v4384
        %v4386 = vmul.f32 %v4374, 3.8918573e-05
        %v4387 = vadd.f32 %v4386, 0.001143296
        %v4388 = vmul.f32 %v4374, %v4387
        %v4389 = vadd.f32 %v4388, 0.014752088
        %v4390 = vmul.f32 %v4374, %v4389
        %v4391 = vadd.f32 %v4390, 0.112945676
        %v4392 = vmul.f32 %v4374, %v4391
        %v4393 = vadd.f32 %v4392, 0.4994258
        %v4394 = vmul.f32 %v4374, %v4393
        %v4395 = vadd.f32 %v4394, 1.0
        %v4396 = vrcp.pop %v4395
        %v4397 = vmul.f32 %v4395, %v4396
        %v4398 = vsub.f32 1.0, %v4397
        %v4399 = vmul.f32 %v4396, %v4398
        %v4400 = vadd.f32 %v4396, %v4399
        %vm4401 = vweird.f32 %v4395
        %vm4402 = vweird.f32 %v4396
        %vm4403 = vmor %vm4401, %vm4402
        %v4404 = vsel %vm4403, %v4396, %v4400
        %v4405 = vand.u32 2147483647, %v4395
        %vm4406 = vcmp.eq.f32.partialorder %v4405, 8.507059e+37
        %v4407 = vand.u32 %v4395, 2147483648
        %v4408 = vor.u32 1.1754944e-38, %v4407
        %v4409 = vsel %vm4406, %v4408, %v4404
        %v4410 = vmul.f32 %v4385, %v4409
        %v4411 = vmin.f32 %v4410, 1.0
        %v4412 = vmax.f32 %v4411, -1.0
        %v4413 = vmul.f32 %v4280, %v4280
        %v4414 = vmin.f32 16.0, %v4413
        %v4415 = vmul.f32 %v4414, 2.1237322e-06
        %v4416 = vadd.f32 %v4415, 0.00028619796
        %v4417 = vmul.f32 %v4414, %v4416
        %v4418 = vadd.f32 %v4417, 0.0036580483
        %v4419 = vmul.f32 %v4414, %v4418
        %v4420 = vadd.f32 %v4419, 0.05243302
        %v4421 = vmul.f32 %v4414, %v4420
        %v4422 = vadd.f32 %v4421, 0.18741608
        %v4423 = vmul.f32 %v4414, %v4422
        %v4424 = vadd.f32 %v4423, 1.1283791
        %v4425 = vmul.f32 %v4280, %v4424
        %v4426 = vmul.f32 %v4414, 3.8918573e-05
        %v4427 = vadd.f32 %v4426, 0.001143296
        %v4428 = vmul.f32 %v4414, %v4427
        %v4429 = vadd.f32 %v4428, 0.014752088
        %v4430 = vmul.f32 %v4414, %v4429
        %v4431 = vadd.f32 %v4430, 0.112945676
        %v4432 = vmul.f32 %v4414, %v4431
        %v4433 = vadd.f32 %v4432, 0.4994258
        %v4434 = vmul.f32 %v4414, %v4433
        %v4435 = vadd.f32 %v4434, 1.0
        %v4436 = vrcp.pop %v4435
        %v4437 = vmul.f32 %v4435, %v4436
        %v4438 = vsub.f32 1.0, %v4437
        %v4439 = vmul.f32 %v4436, %v4438
        %v4440 = vadd.f32 %v4436, %v4439
        %vm4441 = vweird.f32 %v4435
        %vm4442 = vweird.f32 %v4436
        %vm4443 = vmor %vm4441, %vm4442
        %v4444 = vsel %vm4443, %v4436, %v4440
        %v4445 = vand.u32 2147483647, %v4435
        %vm4446 = vcmp.eq.f32.partialorder %v4445, 8.507059e+37
        %v4447 = vand.u32 %v4435, 2147483648
        %v4448 = vor.u32 1.1754944e-38, %v4447
        %v4449 = vsel %vm4446, %v4448, %v4444
        %v4450 = vmul.f32 %v4425, %v4449
        %v4451 = vmin.f32 %v4450, 1.0
        %v4452 = vmax.f32 %v4451, -1.0
        %v4453 = vmul.f32 %v4281, %v4281
        %v4454 = vmin.f32 16.0, %v4453
        %v4455 = vmul.f32 %v4454, 2.1237322e-06
        %v4456 = vadd.f32 %v4455, 0.00028619796
        %v4457 = vmul.f32 %v4454, %v4456
        %v4458 = vadd.f32 %v4457, 0.0036580483
        %v4459 = vmul.f32 %v4454, %v4458
        %v4460 = vadd.f32 %v4459, 0.05243302
        %v4461 = vmul.f32 %v4454, %v4460
        %v4462 = vadd.f32 %v4461, 0.18741608
        %v4463 = vmul.f32 %v4454, %v4462
        %v4464 = vadd.f32 %v4463, 1.1283791
        %v4465 = vmul.f32 %v4281, %v4464
        %v4466 = vmul.f32 %v4454, 3.8918573e-05
        %v4467 = vadd.f32 %v4466, 0.001143296
        %v4468 = vmul.f32 %v4454, %v4467
        %v4469 = vadd.f32 %v4468, 0.014752088
        %v4470 = vmul.f32 %v4454, %v4469
        %v4471 = vadd.f32 %v4470, 0.112945676
        %v4472 = vmul.f32 %v4454, %v4471
        %v4473 = vadd.f32 %v4472, 0.4994258
        %v4474 = vmul.f32 %v4454, %v4473
        %v4475 = vadd.f32 %v4474, 1.0
        %v4476 = vrcp.pop %v4475
        %v4477 = vmul.f32 %v4475, %v4476
        %v4478 = vsub.f32 1.0, %v4477
        %v4479 = vmul.f32 %v4476, %v4478
        %v4480 = vadd.f32 %v4476, %v4479
        %vm4481 = vweird.f32 %v4475
        %vm4482 = vweird.f32 %v4476
        %vm4483 = vmor %vm4481, %vm4482
        %v4484 = vsel %vm4483, %v4476, %v4480
        %v4485 = vand.u32 2147483647, %v4475
        %vm4486 = vcmp.eq.f32.partialorder %v4485, 8.507059e+37
        %v4487 = vand.u32 %v4475, 2147483648
        %v4488 = vor.u32 1.1754944e-38, %v4487
        %v4489 = vsel %vm4486, %v4488, %v4484
        %v4490 = vmul.f32 %v4465, %v4489
        %v4491 = vmin.f32 %v4490, 1.0
        %v4492 = vmax.f32 %v4491, -1.0
        %v4493 = vmul.f32 %v4282, %v4282
        %v4494 = vmin.f32 16.0, %v4493
        %v4495 = vmul.f32 %v4494, 2.1237322e-06
        %v4496 = vadd.f32 %v4495, 0.00028619796
        %v4497 = vmul.f32 %v4494, %v4496
        %v4498 = vadd.f32 %v4497, 0.0036580483
        %v4499 = vmul.f32 %v4494, %v4498
        %v4500 = vadd.f32 %v4499, 0.05243302
        %v4501 = vmul.f32 %v4494, %v4500
        %v4502 = vadd.f32 %v4501, 0.18741608
        %v4503 = vmul.f32 %v4494, %v4502
        %v4504 = vadd.f32 %v4503, 1.1283791
        %v4505 = vmul.f32 %v4282, %v4504
        %v4506 = vmul.f32 %v4494, 3.8918573e-05
        %v4507 = vadd.f32 %v4506, 0.001143296
        %v4508 = vmul.f32 %v4494, %v4507
        %v4509 = vadd.f32 %v4508, 0.014752088
        %v4510 = vmul.f32 %v4494, %v4509
        %v4511 = vadd.f32 %v4510, 0.112945676
        %v4512 = vmul.f32 %v4494, %v4511
        %v4513 = vadd.f32 %v4512, 0.4994258
        %v4514 = vmul.f32 %v4494, %v4513
        %v4515 = vadd.f32 %v4514, 1.0
        %v4516 = vrcp.pop %v4515
        %v4517 = vmul.f32 %v4515, %v4516
        %v4518 = vsub.f32 1.0, %v4517
        %v4519 = vmul.f32 %v4516, %v4518
        %v4520 = vadd.f32 %v4516, %v4519
        %vm4521 = vweird.f32 %v4515
        %vm4522 = vweird.f32 %v4516
        %vm4523 = vmor %vm4521, %vm4522
        %v4524 = vsel %vm4523, %v4516, %v4520
        %v4525 = vand.u32 2147483647, %v4515
        %vm4526 = vcmp.eq.f32.partialorder %v4525, 8.507059e+37
        %v4527 = vand.u32 %v4515, 2147483648
        %v4528 = vor.u32 1.1754944e-38, %v4527
        %v4529 = vsel %vm4526, %v4528, %v4524
        %v4530 = vmul.f32 %v4505, %v4529
        %v4531 = vmin.f32 %v4530, 1.0
        %v4532 = vmax.f32 %v4531, -1.0
        %v4533 = vmul.f32 %v4283, %v4283
        %v4534 = vmin.f32 16.0, %v4533
        %v4535 = vmul.f32 %v4534, 2.1237322e-06
        %v4536 = vadd.f32 %v4535, 0.00028619796
        %v4537 = vmul.f32 %v4534, %v4536
        %v4538 = vadd.f32 %v4537, 0.0036580483
        %v4539 = vmul.f32 %v4534, %v4538
        %v4540 = vadd.f32 %v4539, 0.05243302
        %v4541 = vmul.f32 %v4534, %v4540
        %v4542 = vadd.f32 %v4541, 0.18741608
        %v4543 = vmul.f32 %v4534, %v4542
        %v4544 = vadd.f32 %v4543, 1.1283791
        %v4545 = vmul.f32 %v4283, %v4544
        %v4546 = vmul.f32 %v4534, 3.8918573e-05
        %v4547 = vadd.f32 %v4546, 0.001143296
        %v4548 = vmul.f32 %v4534, %v4547
        %v4549 = vadd.f32 %v4548, 0.014752088
        %v4550 = vmul.f32 %v4534, %v4549
        %v4551 = vadd.f32 %v4550, 0.112945676
        %v4552 = vmul.f32 %v4534, %v4551
        %v4553 = vadd.f32 %v4552, 0.4994258
        %v4554 = vmul.f32 %v4534, %v4553
        %v4555 = vadd.f32 %v4554, 1.0
        %v4556 = vrcp.pop %v4555
        %v4557 = vmul.f32 %v4555, %v4556
        %v4558 = vsub.f32 1.0, %v4557
        %v4559 = vmul.f32 %v4556, %v4558
        %v4560 = vadd.f32 %v4556, %v4559
        %vm4561 = vweird.f32 %v4555
        %vm4562 = vweird.f32 %v4556
        %vm4563 = vmor %vm4561, %vm4562
        %v4564 = vsel %vm4563, %v4556, %v4560
        %v4565 = vand.u32 2147483647, %v4555
        %vm4566 = vcmp.eq.f32.partialorder %v4565, 8.507059e+37
        %v4567 = vand.u32 %v4555, 2147483648
        %v4568 = vor.u32 1.1754944e-38, %v4567
        %v4569 = vsel %vm4566, %v4568, %v4564
        %v4570 = vmul.f32 %v4545, %v4569
        %v4571 = vmin.f32 %v4570, 1.0
        %v4572 = vmax.f32 %v4571, -1.0
        %v4573 = vmul.f32 %v4284, %v4284
        %v4574 = vmin.f32 16.0, %v4573
        %v4575 = vmul.f32 %v4574, 2.1237322e-06
        %v4576 = vadd.f32 %v4575, 0.00028619796
        %v4577 = vmul.f32 %v4574, %v4576
        %v4578 = vadd.f32 %v4577, 0.0036580483
        %v4579 = vmul.f32 %v4574, %v4578
        %v4580 = vadd.f32 %v4579, 0.05243302
        %v4581 = vmul.f32 %v4574, %v4580
        %v4582 = vadd.f32 %v4581, 0.18741608
        %v4583 = vmul.f32 %v4574, %v4582
        %v4584 = vadd.f32 %v4583, 1.1283791
        %v4585 = vmul.f32 %v4284, %v4584
        %v4586 = vmul.f32 %v4574, 3.8918573e-05
        %v4587 = vadd.f32 %v4586, 0.001143296
        %v4588 = vmul.f32 %v4574, %v4587
        %v4589 = vadd.f32 %v4588, 0.014752088
        %v4590 = vmul.f32 %v4574, %v4589
        %v4591 = vadd.f32 %v4590, 0.112945676
        %v4592 = vmul.f32 %v4574, %v4591
        %v4593 = vadd.f32 %v4592, 0.4994258
        %v4594 = vmul.f32 %v4574, %v4593
        %v4595 = vadd.f32 %v4594, 1.0
        %v4596 = vrcp.pop %v4595
        %v4597 = vmul.f32 %v4595, %v4596
        %v4598 = vsub.f32 1.0, %v4597
        %v4599 = vmul.f32 %v4596, %v4598
        %v4600 = vadd.f32 %v4596, %v4599
        %vm4601 = vweird.f32 %v4595
        %vm4602 = vweird.f32 %v4596
        %vm4603 = vmor %vm4601, %vm4602
        %v4604 = vsel %vm4603, %v4596, %v4600
        %v4605 = vand.u32 2147483647, %v4595
        %vm4606 = vcmp.eq.f32.partialorder %v4605, 8.507059e+37
        %v4607 = vand.u32 %v4595, 2147483648
        %v4608 = vor.u32 1.1754944e-38, %v4607
        %v4609 = vsel %vm4606, %v4608, %v4604
        %v4610 = vmul.f32 %v4585, %v4609
        %v4611 = vmin.f32 %v4610, 1.0
        %v4612 = vmax.f32 %v4611, -1.0
        %v4613 = vmul.f32 %v4285, %v4285
        %v4614 = vmin.f32 16.0, %v4613
        %v4615 = vmul.f32 %v4614, 2.1237322e-06
        %v4616 = vadd.f32 %v4615, 0.00028619796
        %v4617 = vmul.f32 %v4614, %v4616
        %v4618 = vadd.f32 %v4617, 0.0036580483
        %v4619 = vmul.f32 %v4614, %v4618
        %v4620 = vadd.f32 %v4619, 0.05243302
        %v4621 = vmul.f32 %v4614, %v4620
        %v4622 = vadd.f32 %v4621, 0.18741608
        %v4623 = vmul.f32 %v4614, %v4622
        %v4624 = vadd.f32 %v4623, 1.1283791
        %v4625 = vmul.f32 %v4285, %v4624
        %v4626 = vmul.f32 %v4614, 3.8918573e-05
        %v4627 = vadd.f32 %v4626, 0.001143296
        %v4628 = vmul.f32 %v4614, %v4627
        %v4629 = vadd.f32 %v4628, 0.014752088
        %v4630 = vmul.f32 %v4614, %v4629
        %v4631 = vadd.f32 %v4630, 0.112945676
        %v4632 = vmul.f32 %v4614, %v4631
        %v4633 = vadd.f32 %v4632, 0.4994258
        %v4634 = vmul.f32 %v4614, %v4633
        %v4635 = vadd.f32 %v4634, 1.0
        %v4636 = vrcp.pop %v4635
        %v4637 = vmul.f32 %v4635, %v4636
        %v4638 = vsub.f32 1.0, %v4637
        %v4639 = vmul.f32 %v4636, %v4638
        %v4640 = vadd.f32 %v4636, %v4639
        %vm4641 = vweird.f32 %v4635
        %vm4642 = vweird.f32 %v4636
        %vm4643 = vmor %vm4641, %vm4642
        %v4644 = vsel %vm4643, %v4636, %v4640
        %v4645 = vand.u32 2147483647, %v4635
        %vm4646 = vcmp.eq.f32.partialorder %v4645, 8.507059e+37
        %v4647 = vand.u32 %v4635, 2147483648
        %v4648 = vor.u32 1.1754944e-38, %v4647
        %v4649 = vsel %vm4646, %v4648, %v4644
        %v4650 = vmul.f32 %v4625, %v4649
        %v4651 = vmin.f32 %v4650, 1.0
        %v4652 = vmax.f32 %v4651, -1.0
        %v4653 = vmul.f32 %v4286, %v4286
        %v4654 = vmin.f32 16.0, %v4653
        %v4655 = vmul.f32 %v4654, 2.1237322e-06
        %v4656 = vadd.f32 %v4655, 0.00028619796
        %v4657 = vmul.f32 %v4654, %v4656
        %v4658 = vadd.f32 %v4657, 0.0036580483
        %v4659 = vmul.f32 %v4654, %v4658
        %v4660 = vadd.f32 %v4659, 0.05243302
        %v4661 = vmul.f32 %v4654, %v4660
        %v4662 = vadd.f32 %v4661, 0.18741608
        %v4663 = vmul.f32 %v4654, %v4662
        %v4664 = vadd.f32 %v4663, 1.1283791
        %v4665 = vmul.f32 %v4286, %v4664
        %v4666 = vmul.f32 %v4654, 3.8918573e-05
        %v4667 = vadd.f32 %v4666, 0.001143296
        %v4668 = vmul.f32 %v4654, %v4667
        %v4669 = vadd.f32 %v4668, 0.014752088
        %v4670 = vmul.f32 %v4654, %v4669
        %v4671 = vadd.f32 %v4670, 0.112945676
        %v4672 = vmul.f32 %v4654, %v4671
        %v4673 = vadd.f32 %v4672, 0.4994258
        %v4674 = vmul.f32 %v4654, %v4673
        %v4675 = vadd.f32 %v4674, 1.0
        %v4676 = vrcp.pop %v4675
        %v4677 = vmul.f32 %v4675, %v4676
        %v4678 = vsub.f32 1.0, %v4677
        %v4679 = vmul.f32 %v4676, %v4678
        %v4680 = vadd.f32 %v4676, %v4679
        %vm4681 = vweird.f32 %v4675
        %vm4682 = vweird.f32 %v4676
        %vm4683 = vmor %vm4681, %vm4682
        %v4684 = vsel %vm4683, %v4676, %v4680
        %v4685 = vand.u32 2147483647, %v4675
        %vm4686 = vcmp.eq.f32.partialorder %v4685, 8.507059e+37
        %v4687 = vand.u32 %v4675, 2147483648
        %v4688 = vor.u32 1.1754944e-38, %v4687
        %v4689 = vsel %vm4686, %v4688, %v4684
        %v4690 = vmul.f32 %v4665, %v4689
        %v4691 = vmin.f32 %v4690, 1.0
        %v4692 = vmax.f32 %v4691, -1.0
        %v4693 = vmul.f32 %v4287, %v4287
        %v4694 = vmin.f32 16.0, %v4693
        %v4695 = vmul.f32 %v4694, 2.1237322e-06
        %v4696 = vadd.f32 %v4695, 0.00028619796
        %v4697 = vmul.f32 %v4694, %v4696
        %v4698 = vadd.f32 %v4697, 0.0036580483
        %v4699 = vmul.f32 %v4694, %v4698
        %v4700 = vadd.f32 %v4699, 0.05243302
        %v4701 = vmul.f32 %v4694, %v4700
        %v4702 = vadd.f32 %v4701, 0.18741608
        %v4703 = vmul.f32 %v4694, %v4702
        %v4704 = vadd.f32 %v4703, 1.1283791
        %v4705 = vmul.f32 %v4287, %v4704
        %v4706 = vmul.f32 %v4694, 3.8918573e-05
        %v4707 = vadd.f32 %v4706, 0.001143296
        %v4708 = vmul.f32 %v4694, %v4707
        %v4709 = vadd.f32 %v4708, 0.014752088
        %v4710 = vmul.f32 %v4694, %v4709
        %v4711 = vadd.f32 %v4710, 0.112945676
        %v4712 = vmul.f32 %v4694, %v4711
        %v4713 = vadd.f32 %v4712, 0.4994258
        %v4714 = vmul.f32 %v4694, %v4713
        %v4715 = vadd.f32 %v4714, 1.0
        %v4716 = vrcp.pop %v4715
        %v4717 = vmul.f32 %v4715, %v4716
        %v4718 = vsub.f32 1.0, %v4717
        %v4719 = vmul.f32 %v4716, %v4718
        %v4720 = vadd.f32 %v4716, %v4719
        %vm4721 = vweird.f32 %v4715
        %vm4722 = vweird.f32 %v4716
        %vm4723 = vmor %vm4721, %vm4722
        %v4724 = vsel %vm4723, %v4716, %v4720
        %v4725 = vand.u32 2147483647, %v4715
        %vm4726 = vcmp.eq.f32.partialorder %v4725, 8.507059e+37
        %v4727 = vand.u32 %v4715, 2147483648
        %v4728 = vor.u32 1.1754944e-38, %v4727
        %v4729 = vsel %vm4726, %v4728, %v4724
        %v4730 = vmul.f32 %v4705, %v4729
        %v4731 = vmin.f32 %v4730, 1.0
        %v4732 = vmax.f32 %v4731, -1.0
        %v4733 = vmul.f32 %v4288, %v4288
        %v4734 = vmin.f32 16.0, %v4733
        %v4735 = vmul.f32 %v4734, 2.1237322e-06
        %v4736 = vadd.f32 %v4735, 0.00028619796
        %v4737 = vmul.f32 %v4734, %v4736
        %v4738 = vadd.f32 %v4737, 0.0036580483
        %v4739 = vmul.f32 %v4734, %v4738
        %v4740 = vadd.f32 %v4739, 0.05243302
        %v4741 = vmul.f32 %v4734, %v4740
        %v4742 = vadd.f32 %v4741, 0.18741608
        %v4743 = vmul.f32 %v4734, %v4742
        %v4744 = vadd.f32 %v4743, 1.1283791
        %v4745 = vmul.f32 %v4288, %v4744
        %v4746 = vmul.f32 %v4734, 3.8918573e-05
        %v4747 = vadd.f32 %v4746, 0.001143296
        %v4748 = vmul.f32 %v4734, %v4747
        %v4749 = vadd.f32 %v4748, 0.014752088
        %v4750 = vmul.f32 %v4734, %v4749
        %v4751 = vadd.f32 %v4750, 0.112945676
        %v4752 = vmul.f32 %v4734, %v4751
        %v4753 = vadd.f32 %v4752, 0.4994258
        %v4754 = vmul.f32 %v4734, %v4753
        %v4755 = vadd.f32 %v4754, 1.0
        %v4756 = vrcp.pop %v4755
        %v4757 = vmul.f32 %v4755, %v4756
        %v4758 = vsub.f32 1.0, %v4757
        %v4759 = vmul.f32 %v4756, %v4758
        %v4760 = vadd.f32 %v4756, %v4759
        %vm4761 = vweird.f32 %v4755
        %vm4762 = vweird.f32 %v4756
        %vm4763 = vmor %vm4761, %vm4762
        %v4764 = vsel %vm4763, %v4756, %v4760
        %v4765 = vand.u32 2147483647, %v4755
        %vm4766 = vcmp.eq.f32.partialorder %v4765, 8.507059e+37
        %v4767 = vand.u32 %v4755, 2147483648
        %v4768 = vor.u32 1.1754944e-38, %v4767
        %v4769 = vsel %vm4766, %v4768, %v4764
        %v4770 = vmul.f32 %v4745, %v4769
        %v4771 = vmin.f32 %v4770, 1.0
        %v4772 = vmax.f32 %v4771, -1.0
        %v4773 = vmul.f32 %v4289, %v4289
        %v4774 = vmin.f32 16.0, %v4773
        %v4775 = vmul.f32 %v4774, 2.1237322e-06
        %v4776 = vadd.f32 %v4775, 0.00028619796
        %v4777 = vmul.f32 %v4774, %v4776
        %v4778 = vadd.f32 %v4777, 0.0036580483
        %v4779 = vmul.f32 %v4774, %v4778
        %v4780 = vadd.f32 %v4779, 0.05243302
        %v4781 = vmul.f32 %v4774, %v4780
        %v4782 = vadd.f32 %v4781, 0.18741608
        %v4783 = vmul.f32 %v4774, %v4782
        %v4784 = vadd.f32 %v4783, 1.1283791
        %v4785 = vmul.f32 %v4289, %v4784
        %v4786 = vmul.f32 %v4774, 3.8918573e-05
        %v4787 = vadd.f32 %v4786, 0.001143296
        %v4788 = vmul.f32 %v4774, %v4787
        %v4789 = vadd.f32 %v4788, 0.014752088
        %v4790 = vmul.f32 %v4774, %v4789
        %v4791 = vadd.f32 %v4790, 0.112945676
        %v4792 = vmul.f32 %v4774, %v4791
        %v4793 = vadd.f32 %v4792, 0.4994258
        %v4794 = vmul.f32 %v4774, %v4793
        %v4795 = vadd.f32 %v4794, 1.0
        %v4796 = vrcp.pop %v4795
        %v4797 = vmul.f32 %v4795, %v4796
        %v4798 = vsub.f32 1.0, %v4797
        %v4799 = vmul.f32 %v4796, %v4798
        %v4800 = vadd.f32 %v4796, %v4799
        %vm4801 = vweird.f32 %v4795
        %vm4802 = vweird.f32 %v4796
        %vm4803 = vmor %vm4801, %vm4802
        %v4804 = vsel %vm4803, %v4796, %v4800
        %v4805 = vand.u32 2147483647, %v4795
        %vm4806 = vcmp.eq.f32.partialorder %v4805, 8.507059e+37
        %v4807 = vand.u32 %v4795, 2147483648
        %v4808 = vor.u32 1.1754944e-38, %v4807
        %v4809 = vsel %vm4806, %v4808, %v4804
        %v4810 = vmul.f32 %v4785, %v4809
        %v4811 = vmin.f32 %v4810, 1.0
        %v4812 = vmax.f32 %v4811, -1.0
        %v4813 = vmul.f32 %v4290, %v4290
        %v4814 = vmin.f32 16.0, %v4813
        %v4815 = vmul.f32 %v4814, 2.1237322e-06
        %v4816 = vadd.f32 %v4815, 0.00028619796
        %v4817 = vmul.f32 %v4814, %v4816
        %v4818 = vadd.f32 %v4817, 0.0036580483
        %v4819 = vmul.f32 %v4814, %v4818
        %v4820 = vadd.f32 %v4819, 0.05243302
        %v4821 = vmul.f32 %v4814, %v4820
        %v4822 = vadd.f32 %v4821, 0.18741608
        %v4823 = vmul.f32 %v4814, %v4822
        %v4824 = vadd.f32 %v4823, 1.1283791
        %v4825 = vmul.f32 %v4290, %v4824
        %v4826 = vmul.f32 %v4814, 3.8918573e-05
        %v4827 = vadd.f32 %v4826, 0.001143296
        %v4828 = vmul.f32 %v4814, %v4827
        %v4829 = vadd.f32 %v4828, 0.014752088
        %v4830 = vmul.f32 %v4814, %v4829
        %v4831 = vadd.f32 %v4830, 0.112945676
        %v4832 = vmul.f32 %v4814, %v4831
        %v4833 = vadd.f32 %v4832, 0.4994258
        %v4834 = vmul.f32 %v4814, %v4833
        %v4835 = vadd.f32 %v4834, 1.0
        %v4836 = vrcp.pop %v4835
        %v4837 = vmul.f32 %v4835, %v4836
        %v4838 = vsub.f32 1.0, %v4837
        %v4839 = vmul.f32 %v4836, %v4838
        %v4840 = vadd.f32 %v4836, %v4839
        %vm4841 = vweird.f32 %v4835
        %vm4842 = vweird.f32 %v4836
        %vm4843 = vmor %vm4841, %vm4842
        %v4844 = vsel %vm4843, %v4836, %v4840
        %v4845 = vand.u32 2147483647, %v4835
        %vm4846 = vcmp.eq.f32.partialorder %v4845, 8.507059e+37
        %v4847 = vand.u32 %v4835, 2147483648
        %v4848 = vor.u32 1.1754944e-38, %v4847
        %v4849 = vsel %vm4846, %v4848, %v4844
        %v4850 = vmul.f32 %v4825, %v4849
        %v4851 = vmin.f32 %v4850, 1.0
        %v4852 = vmax.f32 %v4851, -1.0
        %v4853 = vmul.f32 %v4291, %v4291
        %v4854 = vmin.f32 16.0, %v4853
        %v4855 = vmul.f32 %v4854, 2.1237322e-06
        %v4856 = vadd.f32 %v4855, 0.00028619796
        %v4857 = vmul.f32 %v4854, %v4856
        %v4858 = vadd.f32 %v4857, 0.0036580483
        %v4859 = vmul.f32 %v4854, %v4858
        %v4860 = vadd.f32 %v4859, 0.05243302
        %v4861 = vmul.f32 %v4854, %v4860
        %v4862 = vadd.f32 %v4861, 0.18741608
        %v4863 = vmul.f32 %v4854, %v4862
        %v4864 = vadd.f32 %v4863, 1.1283791
        %v4865 = vmul.f32 %v4291, %v4864
        %v4866 = vmul.f32 %v4854, 3.8918573e-05
        %v4867 = vadd.f32 %v4866, 0.001143296
        %v4868 = vmul.f32 %v4854, %v4867
        %v4869 = vadd.f32 %v4868, 0.014752088
        %v4870 = vmul.f32 %v4854, %v4869
        %v4871 = vadd.f32 %v4870, 0.112945676
        %v4872 = vmul.f32 %v4854, %v4871
        %v4873 = vadd.f32 %v4872, 0.4994258
        %v4874 = vmul.f32 %v4854, %v4873
        %v4875 = vadd.f32 %v4874, 1.0
        %v4876 = vrcp.pop %v4875
        %v4877 = vmul.f32 %v4875, %v4876
        %v4878 = vsub.f32 1.0, %v4877
        %v4879 = vmul.f32 %v4876, %v4878
        %v4880 = vadd.f32 %v4876, %v4879
        %vm4881 = vweird.f32 %v4875
        %vm4882 = vweird.f32 %v4876
        %vm4883 = vmor %vm4881, %vm4882
        %v4884 = vsel %vm4883, %v4876, %v4880
        %v4885 = vand.u32 2147483647, %v4875
        %vm4886 = vcmp.eq.f32.partialorder %v4885, 8.507059e+37
        %v4887 = vand.u32 %v4875, 2147483648
        %v4888 = vor.u32 1.1754944e-38, %v4887
        %v4889 = vsel %vm4886, %v4888, %v4884
        %v4890 = vmul.f32 %v4865, %v4889
        %v4891 = vmin.f32 %v4890, 1.0
        %v4892 = vmax.f32 %v4891, -1.0
        %v4893 = vmul.f32 %v4292, %v4292
        %v4894 = vmin.f32 16.0, %v4893
        %v4895 = vmul.f32 %v4894, 2.1237322e-06
        %v4896 = vadd.f32 %v4895, 0.00028619796
        %v4897 = vmul.f32 %v4894, %v4896
        %v4898 = vadd.f32 %v4897, 0.0036580483
        %v4899 = vmul.f32 %v4894, %v4898
        %v4900 = vadd.f32 %v4899, 0.05243302
        %v4901 = vmul.f32 %v4894, %v4900
        %v4902 = vadd.f32 %v4901, 0.18741608
        %v4903 = vmul.f32 %v4894, %v4902
        %v4904 = vadd.f32 %v4903, 1.1283791
        %v4905 = vmul.f32 %v4292, %v4904
        %v4906 = vmul.f32 %v4894, 3.8918573e-05
        %v4907 = vadd.f32 %v4906, 0.001143296
        %v4908 = vmul.f32 %v4894, %v4907
        %v4909 = vadd.f32 %v4908, 0.014752088
        %v4910 = vmul.f32 %v4894, %v4909
        %v4911 = vadd.f32 %v4910, 0.112945676
        %v4912 = vmul.f32 %v4894, %v4911
        %v4913 = vadd.f32 %v4912, 0.4994258
        %v4914 = vmul.f32 %v4894, %v4913
        %v4915 = vadd.f32 %v4914, 1.0
        %v4916 = vrcp.pop %v4915
        %v4917 = vmul.f32 %v4915, %v4916
        %v4918 = vsub.f32 1.0, %v4917
        %v4919 = vmul.f32 %v4916, %v4918
        %v4920 = vadd.f32 %v4916, %v4919
        %vm4921 = vweird.f32 %v4915
        %vm4922 = vweird.f32 %v4916
        %vm4923 = vmor %vm4921, %vm4922
        %v4924 = vsel %vm4923, %v4916, %v4920
        %v4925 = vand.u32 2147483647, %v4915
        %vm4926 = vcmp.eq.f32.partialorder %v4925, 8.507059e+37
        %v4927 = vand.u32 %v4915, 2147483648
        %v4928 = vor.u32 1.1754944e-38, %v4927
        %v4929 = vsel %vm4926, %v4928, %v4924
        %v4930 = vmul.f32 %v4905, %v4929
        %v4931 = vmin.f32 %v4930, 1.0
        %v4932 = vmax.f32 %v4931, -1.0
        %v4933 = vadd.f32 %v4332, 1.0
        %v4934 = vadd.f32 %v4372, 1.0
        %v4935 = vadd.f32 %v4412, 1.0
        %v4936 = vadd.f32 %v4452, 1.0
        %v4937 = vadd.f32 %v4492, 1.0
        %v4938 = vadd.f32 %v4532, 1.0
        %v4939 = vadd.f32 %v4572, 1.0
        %v4940 = vadd.f32 %v4612, 1.0
        %v4941 = vadd.f32 %v4652, 1.0
        %v4942 = vadd.f32 %v4692, 1.0
        %v4943 = vadd.f32 %v4732, 1.0
        %v4944 = vadd.f32 %v4772, 1.0
        %v4945 = vadd.f32 %v4812, 1.0
        %v4946 = vadd.f32 %v4852, 1.0
        %v4947 = vadd.f32 %v4892, 1.0
        %v4948 = vadd.f32 %v4932, 1.0
        %v4949 = vmul.f32 %v4261, %v4933
        %v4950 = vmul.f32 %v4262, %v4934
        %v4951 = vmul.f32 %v4263, %v4935
        %v4952 = vmul.f32 %v4264, %v4936
        %v4953 = vmul.f32 %v4265, %v4937
        %v4954 = vmul.f32 %v4266, %v4938
        %v4955 = vmul.f32 %v4267, %v4939
        %v4956 = vmul.f32 %v4268, %v4940
        %v4957 = vmul.f32 %v4269, %v4941
        %v4958 = vmul.f32 %v4270, %v4942
        %v4959 = vmul.f32 %v4271, %v4943
        %v4960 = vmul.f32 %v4272, %v4944
        %v4961 = vmul.f32 %v4273, %v4945
        %v4962 = vmul.f32 %v4274, %v4946
        %v4963 = vmul.f32 %v4275, %v4947
        %v4964 = vmul.f32 %v4276, %v4948
        %v4965 = vpack.c.bf16 %v4949, %v4949
        %v4966 = vpack.c.bf16 %v4950, %v4950
        %v4967 = vpack.c.bf16 %v4951, %v4951
        %v4968 = vpack.c.bf16 %v4952, %v4952
        %v4969 = vpack.c.bf16 %v4953, %v4953
        %v4970 = vpack.c.bf16 %v4954, %v4954
        %v4971 = vpack.c.bf16 %v4955, %v4955
        %v4972 = vpack.c.bf16 %v4956, %v4956
        %v4973 = vpack.c.bf16 %v4957, %v4957
        %v4974 = vpack.c.bf16 %v4958, %v4958
        %v4975 = vpack.c.bf16 %v4959, %v4959
        %v4976 = vpack.c.bf16 %v4960, %v4960
        %v4977 = vpack.c.bf16 %v4961, %v4961
        %v4978 = vpack.c.bf16 %v4962, %v4962
        %v4979 = vpack.c.bf16 %v4963, %v4963
        %v4980 = vpack.c.bf16 %v4964, %v4964
        %v4981 = vld [vmem:[#allocation8] sm:$0xff]
        %v4982 = vld [vmem:[#allocation8 + $0x8] sm:$0xff]
        %v4983 = vld [vmem:[#allocation8 + $0x10] sm:$0xff]
        %v4984 = vld [vmem:[#allocation8 + $0x18] sm:$0xff]
        %v4985 = vld [vmem:[#allocation8 + $0x20] sm:$0xff]
        %v4986 = vld [vmem:[#allocation8 + $0x28] sm:$0xff]
        %v4987 = vld [vmem:[#allocation8 + $0x30] sm:$0xff]
        %v4988 = vld [vmem:[#allocation8 + $0x38] sm:$0xff]
        %v4989 = vld [vmem:[#allocation8 + $0x40] sm:$0xff]
        %v4990 = vld [vmem:[#allocation8 + $0x48] sm:$0xff]
        %v4991 = vld [vmem:[#allocation8 + $0x50] sm:$0xff]
        %v4992 = vld [vmem:[#allocation8 + $0x58] sm:$0xff]
        %v4993 = vld [vmem:[#allocation8 + $0x60] sm:$0xff]
        %v4994 = vld [vmem:[#allocation8 + $0x68] sm:$0xff]
        %v4995 = vld [vmem:[#allocation8 + $0x70] sm:$0xff]
        %v4996 = vld [vmem:[#allocation8 + $0x78] sm:$0xff]
        %v4997 = vld [vmem:[#allocation8 + $0x80] sm:$0xff]
        %v4998 = vld [vmem:[#allocation8 + $0x88] sm:$0xff]
        %v4999 = vld [vmem:[#allocation8 + $0x90] sm:$0xff]
        %v5000 = vld [vmem:[#allocation8 + $0x98] sm:$0xff]
        %v5001 = vld [vmem:[#allocation8 + $0xa0] sm:$0xff]
        %v5002 = vld [vmem:[#allocation8 + $0xa8] sm:$0xff]
        %v5003 = vld [vmem:[#allocation8 + $0xb0] sm:$0xff]
        %v5004 = vld [vmem:[#allocation8 + $0xb8] sm:$0xff]
        %v5005 = vld [vmem:[#allocation8 + $0xc0] sm:$0xff]
        %v5006 = vld [vmem:[#allocation8 + $0xc8] sm:$0xff]
        %v5007 = vld [vmem:[#allocation8 + $0xd0] sm:$0xff]
        %v5008 = vld [vmem:[#allocation8 + $0xd8] sm:$0xff]
        %v5009 = vld [vmem:[#allocation8 + $0xe0] sm:$0xff]
        %v5010 = vld [vmem:[#allocation8 + $0xe8] sm:$0xff]
        %v5011 = vld [vmem:[#allocation8 + $0xf0] sm:$0xff]
        %v5012 = vld [vmem:[#allocation8 + $0xf8] sm:$0xff]
        %v5013 = vld [vmem:[#allocation8 + $0x100] sm:$0xff]
        %v5014 = vld [vmem:[#allocation8 + $0x108] sm:$0xff]
        %v5015 = vld [vmem:[#allocation8 + $0x110] sm:$0xff]
        %v5016 = vld [vmem:[#allocation8 + $0x118] sm:$0xff]
        %v5017 = vld [vmem:[#allocation8 + $0x120] sm:$0xff]
        %v5018 = vld [vmem:[#allocation8 + $0x128] sm:$0xff]
        %v5019 = vld [vmem:[#allocation8 + $0x130] sm:$0xff]
        %v5020 = vld [vmem:[#allocation8 + $0x138] sm:$0xff]
        %v5021 = vld [vmem:[#allocation8 + $0x140] sm:$0xff]
        %v5022 = vld [vmem:[#allocation8 + $0x148] sm:$0xff]
        %v5023 = vld [vmem:[#allocation8 + $0x150] sm:$0xff]
        %v5024 = vld [vmem:[#allocation8 + $0x158] sm:$0xff]
        %v5025 = vld [vmem:[#allocation8 + $0x160] sm:$0xff]
        %v5026 = vld [vmem:[#allocation8 + $0x168] sm:$0xff]
        %v5027 = vld [vmem:[#allocation8 + $0x170] sm:$0xff]
        %v5028 = vld [vmem:[#allocation8 + $0x178] sm:$0xff]
        %v5029 = vld [vmem:[#allocation8 + $0x180] sm:$0xff]
        %v5030 = vld [vmem:[#allocation8 + $0x188] sm:$0xff]
        %v5031 = vld [vmem:[#allocation8 + $0x190] sm:$0xff]
        %v5032 = vld [vmem:[#allocation8 + $0x198] sm:$0xff]
        %v5033 = vld [vmem:[#allocation8 + $0x1a0] sm:$0xff]
        %v5034 = vld [vmem:[#allocation8 + $0x1a8] sm:$0xff]
        %v5035 = vld [vmem:[#allocation8 + $0x1b0] sm:$0xff]
        %v5036 = vld [vmem:[#allocation8 + $0x1b8] sm:$0xff]
        %v5037 = vld [vmem:[#allocation8 + $0x1c0] sm:$0xff]
        %v5038 = vld [vmem:[#allocation8 + $0x1c8] sm:$0xff]
        %v5039 = vld [vmem:[#allocation8 + $0x1d0] sm:$0xff]
        %v5040 = vld [vmem:[#allocation8 + $0x1d8] sm:$0xff]
        %v5041 = vld [vmem:[#allocation8 + $0x1e0] sm:$0xff]
        %v5042 = vld [vmem:[#allocation8 + $0x1e8] sm:$0xff]
        %v5043 = vld [vmem:[#allocation8 + $0x1f0] sm:$0xff]
        %v5044 = vld [vmem:[#allocation8 + $0x1f8] sm:$0xff]
        %v5045 = vld [vmem:[#allocation8 + $0x200] sm:$0xff]
        %v5046 = vld [vmem:[#allocation8 + $0x208] sm:$0xff]
        %v5047 = vld [vmem:[#allocation8 + $0x210] sm:$0xff]
        %v5048 = vld [vmem:[#allocation8 + $0x218] sm:$0xff]
        %v5049 = vld [vmem:[#allocation8 + $0x220] sm:$0xff]
        %v5050 = vld [vmem:[#allocation8 + $0x228] sm:$0xff]
        %v5051 = vld [vmem:[#allocation8 + $0x230] sm:$0xff]
        %v5052 = vld [vmem:[#allocation8 + $0x238] sm:$0xff]
        %v5053 = vld [vmem:[#allocation8 + $0x240] sm:$0xff]
        %v5054 = vld [vmem:[#allocation8 + $0x248] sm:$0xff]
        %v5055 = vld [vmem:[#allocation8 + $0x250] sm:$0xff]
        %v5056 = vld [vmem:[#allocation8 + $0x258] sm:$0xff]
        %v5057 = vld [vmem:[#allocation8 + $0x260] sm:$0xff]
        %v5058 = vld [vmem:[#allocation8 + $0x268] sm:$0xff]
        %v5059 = vld [vmem:[#allocation8 + $0x270] sm:$0xff]
        %v5060 = vld [vmem:[#allocation8 + $0x278] sm:$0xff]
        %v5061 = vld [vmem:[#allocation8 + $0x280] sm:$0xff]
        %v5062 = vld [vmem:[#allocation8 + $0x288] sm:$0xff]
        %v5063 = vld [vmem:[#allocation8 + $0x290] sm:$0xff]
        %v5064 = vld [vmem:[#allocation8 + $0x298] sm:$0xff]
        %v5065 = vld [vmem:[#allocation8 + $0x2a0] sm:$0xff]
        %v5066 = vld [vmem:[#allocation8 + $0x2a8] sm:$0xff]
        %v5067 = vld [vmem:[#allocation8 + $0x2b0] sm:$0xff]
        %v5068 = vld [vmem:[#allocation8 + $0x2b8] sm:$0xff]
        %v5069 = vld [vmem:[#allocation8 + $0x2c0] sm:$0xff]
        %v5070 = vld [vmem:[#allocation8 + $0x2c8] sm:$0xff]
        %v5071 = vld [vmem:[#allocation8 + $0x2d0] sm:$0xff]
        %v5072 = vld [vmem:[#allocation8 + $0x2d8] sm:$0xff]
        %v5073 = vld [vmem:[#allocation8 + $0x2e0] sm:$0xff]
        %v5074 = vld [vmem:[#allocation8 + $0x2e8] sm:$0xff]
        %v5075 = vld [vmem:[#allocation8 + $0x2f0] sm:$0xff]
        %v5076 = vld [vmem:[#allocation8 + $0x2f8] sm:$0xff]
        %v5077 = vld [vmem:[#allocation8 + $0x300] sm:$0xff]
        %v5078 = vld [vmem:[#allocation8 + $0x308] sm:$0xff]
        %v5079 = vld [vmem:[#allocation8 + $0x310] sm:$0xff]
        %v5080 = vld [vmem:[#allocation8 + $0x318] sm:$0xff]
        %v5081 = vld [vmem:[#allocation8 + $0x320] sm:$0xff]
        %v5082 = vld [vmem:[#allocation8 + $0x328] sm:$0xff]
        %v5083 = vld [vmem:[#allocation8 + $0x330] sm:$0xff]
        %v5084 = vld [vmem:[#allocation8 + $0x338] sm:$0xff]
        %v5085 = vld [vmem:[#allocation8 + $0x340] sm:$0xff]
        %v5086 = vld [vmem:[#allocation8 + $0x348] sm:$0xff]
        %v5087 = vld [vmem:[#allocation8 + $0x350] sm:$0xff]
        %v5088 = vld [vmem:[#allocation8 + $0x358] sm:$0xff]
        %v5089 = vld [vmem:[#allocation8 + $0x360] sm:$0xff]
        %v5090 = vld [vmem:[#allocation8 + $0x368] sm:$0xff]
        %v5091 = vld [vmem:[#allocation8 + $0x370] sm:$0xff]
        %v5092 = vld [vmem:[#allocation8 + $0x378] sm:$0xff]
        %v5093 = vld [vmem:[#allocation8 + $0x380] sm:$0xff]
        %v5094 = vld [vmem:[#allocation8 + $0x388] sm:$0xff]
        %v5095 = vld [vmem:[#allocation8 + $0x390] sm:$0xff]
        %v5096 = vld [vmem:[#allocation8 + $0x398] sm:$0xff]
        %v5097 = vld [vmem:[#allocation8 + $0x3a0] sm:$0xff]
        %v5098 = vld [vmem:[#allocation8 + $0x3a8] sm:$0xff]
        %v5099 = vld [vmem:[#allocation8 + $0x3b0] sm:$0xff]
        %v5100 = vld [vmem:[#allocation8 + $0x3b8] sm:$0xff]
        %v5101 = vld [vmem:[#allocation8 + $0x3c0] sm:$0xff]
        %v5102 = vld [vmem:[#allocation8 + $0x3c8] sm:$0xff]
        %v5103 = vld [vmem:[#allocation8 + $0x3d0] sm:$0xff]
        %v5104 = vld [vmem:[#allocation8 + $0x3d8] sm:$0xff]
        %v5105 = vld [vmem:[#allocation8 + $0x3e0] sm:$0xff]
        %v5106 = vld [vmem:[#allocation8 + $0x3e8] sm:$0xff]
        %v5107 = vld [vmem:[#allocation8 + $0x3f0] sm:$0xff]
        %v5108 = vld [vmem:[#allocation8 + $0x3f8] sm:$0xff]
        %v5109 = vld [vmem:[#allocation8 + $0x400] sm:$0xff]
        %v5110 = vld [vmem:[#allocation8 + $0x408] sm:$0xff]
        %v5111 = vld [vmem:[#allocation8 + $0x410] sm:$0xff]
        %v5112 = vld [vmem:[#allocation8 + $0x418] sm:$0xff]
        %v5113 = vld [vmem:[#allocation8 + $0x420] sm:$0xff]
        %v5114 = vld [vmem:[#allocation8 + $0x428] sm:$0xff]
        %v5115 = vld [vmem:[#allocation8 + $0x430] sm:$0xff]
        %v5116 = vld [vmem:[#allocation8 + $0x438] sm:$0xff]
        %v5117 = vld [vmem:[#allocation8 + $0x440] sm:$0xff]
        %v5118 = vld [vmem:[#allocation8 + $0x448] sm:$0xff]
        %v5119 = vld [vmem:[#allocation8 + $0x450] sm:$0xff]
        %v5120 = vld [vmem:[#allocation8 + $0x458] sm:$0xff]
        %v5121 = vld [vmem:[#allocation8 + $0x460] sm:$0xff]
        %v5122 = vld [vmem:[#allocation8 + $0x468] sm:$0xff]
        %v5123 = vld [vmem:[#allocation8 + $0x470] sm:$0xff]
        %v5124 = vld [vmem:[#allocation8 + $0x478] sm:$0xff]
        %v5125 = vld [vmem:[#allocation8 + $0x480] sm:$0xff]
        %v5126 = vld [vmem:[#allocation8 + $0x488] sm:$0xff]
        %v5127 = vld [vmem:[#allocation8 + $0x490] sm:$0xff]
        %v5128 = vld [vmem:[#allocation8 + $0x498] sm:$0xff]
        %v5129 = vld [vmem:[#allocation8 + $0x4a0] sm:$0xff]
        %v5130 = vld [vmem:[#allocation8 + $0x4a8] sm:$0xff]
        %v5131 = vld [vmem:[#allocation8 + $0x4b0] sm:$0xff]
        %v5132 = vld [vmem:[#allocation8 + $0x4b8] sm:$0xff]
        %v5133 = vld [vmem:[#allocation8 + $0x4c0] sm:$0xff]
        %v5134 = vld [vmem:[#allocation8 + $0x4c8] sm:$0xff]
        %v5135 = vld [vmem:[#allocation8 + $0x4d0] sm:$0xff]
        %v5136 = vld [vmem:[#allocation8 + $0x4d8] sm:$0xff]
        %v5137 = vld [vmem:[#allocation8 + $0x4e0] sm:$0xff]
        %v5138 = vld [vmem:[#allocation8 + $0x4e8] sm:$0xff]
        %v5139 = vld [vmem:[#allocation8 + $0x4f0] sm:$0xff]
        %v5140 = vld [vmem:[#allocation8 + $0x4f8] sm:$0xff]
        %v5141 = vld [vmem:[#allocation8 + $0x500] sm:$0xff]
        %v5142 = vld [vmem:[#allocation8 + $0x508] sm:$0xff]
        %v5143 = vld [vmem:[#allocation8 + $0x510] sm:$0xff]
        %v5144 = vld [vmem:[#allocation8 + $0x518] sm:$0xff]
        %v5145 = vld [vmem:[#allocation8 + $0x520] sm:$0xff]
        %v5146 = vld [vmem:[#allocation8 + $0x528] sm:$0xff]
        %v5147 = vld [vmem:[#allocation8 + $0x530] sm:$0xff]
        %v5148 = vld [vmem:[#allocation8 + $0x538] sm:$0xff]
        %v5149 = vld [vmem:[#allocation8 + $0x540] sm:$0xff]
        %v5150 = vld [vmem:[#allocation8 + $0x548] sm:$0xff]
        %v5151 = vld [vmem:[#allocation8 + $0x550] sm:$0xff]
        %v5152 = vld [vmem:[#allocation8 + $0x558] sm:$0xff]
        %v5153 = vld [vmem:[#allocation8 + $0x560] sm:$0xff]
        %v5154 = vld [vmem:[#allocation8 + $0x568] sm:$0xff]
        %v5155 = vld [vmem:[#allocation8 + $0x570] sm:$0xff]
        %v5156 = vld [vmem:[#allocation8 + $0x578] sm:$0xff]
        %v5157 = vld [vmem:[#allocation8 + $0x580] sm:$0xff]
        %v5158 = vld [vmem:[#allocation8 + $0x588] sm:$0xff]
        %v5159 = vld [vmem:[#allocation8 + $0x590] sm:$0xff]
        %v5160 = vld [vmem:[#allocation8 + $0x598] sm:$0xff]
        %v5161 = vld [vmem:[#allocation8 + $0x5a0] sm:$0xff]
        %v5162 = vld [vmem:[#allocation8 + $0x5a8] sm:$0xff]
        %v5163 = vld [vmem:[#allocation8 + $0x5b0] sm:$0xff]
        %v5164 = vld [vmem:[#allocation8 + $0x5b8] sm:$0xff]
        %v5165 = vld [vmem:[#allocation8 + $0x5c0] sm:$0xff]
        %v5166 = vld [vmem:[#allocation8 + $0x5c8] sm:$0xff]
        %v5167 = vld [vmem:[#allocation8 + $0x5d0] sm:$0xff]
        %v5168 = vld [vmem:[#allocation8 + $0x5d8] sm:$0xff]
        %v5169 = vld [vmem:[#allocation8 + $0x5e0] sm:$0xff]
        %v5170 = vld [vmem:[#allocation8 + $0x5e8] sm:$0xff]
        %v5171 = vld [vmem:[#allocation8 + $0x5f0] sm:$0xff]
        %v5172 = vld [vmem:[#allocation8 + $0x5f8] sm:$0xff]
        %v5173 = vld [vmem:[#allocation8 + $0x600] sm:$0xff]
        %v5174 = vld [vmem:[#allocation8 + $0x608] sm:$0xff]
        %v5175 = vld [vmem:[#allocation8 + $0x610] sm:$0xff]
        %v5176 = vld [vmem:[#allocation8 + $0x618] sm:$0xff]
        %v5177 = vld [vmem:[#allocation8 + $0x620] sm:$0xff]
        %v5178 = vld [vmem:[#allocation8 + $0x628] sm:$0xff]
        %v5179 = vld [vmem:[#allocation8 + $0x630] sm:$0xff]
        %v5180 = vld [vmem:[#allocation8 + $0x638] sm:$0xff]
        %v5181 = vld [vmem:[#allocation8 + $0x640] sm:$0xff]
        %v5182 = vld [vmem:[#allocation8 + $0x648] sm:$0xff]
        %v5183 = vld [vmem:[#allocation8 + $0x650] sm:$0xff]
        %v5184 = vld [vmem:[#allocation8 + $0x658] sm:$0xff]
        %v5185 = vld [vmem:[#allocation8 + $0x660] sm:$0xff]
        %v5186 = vld [vmem:[#allocation8 + $0x668] sm:$0xff]
        %v5187 = vld [vmem:[#allocation8 + $0x670] sm:$0xff]
        %v5188 = vld [vmem:[#allocation8 + $0x678] sm:$0xff]
        %v5189 = vld [vmem:[#allocation8 + $0x680] sm:$0xff]
        %v5190 = vld [vmem:[#allocation8 + $0x688] sm:$0xff]
        %v5191 = vld [vmem:[#allocation8 + $0x690] sm:$0xff]
        %v5192 = vld [vmem:[#allocation8 + $0x698] sm:$0xff]
        %v5193 = vld [vmem:[#allocation8 + $0x6a0] sm:$0xff]
        %v5194 = vld [vmem:[#allocation8 + $0x6a8] sm:$0xff]
        %v5195 = vld [vmem:[#allocation8 + $0x6b0] sm:$0xff]
        %v5196 = vld [vmem:[#allocation8 + $0x6b8] sm:$0xff]
        %v5197 = vld [vmem:[#allocation8 + $0x6c0] sm:$0xff]
        %v5198 = vld [vmem:[#allocation8 + $0x6c8] sm:$0xff]
        %v5199 = vld [vmem:[#allocation8 + $0x6d0] sm:$0xff]
        %v5200 = vld [vmem:[#allocation8 + $0x6d8] sm:$0xff]
        %v5201 = vld [vmem:[#allocation8 + $0x6e0] sm:$0xff]
        %v5202 = vld [vmem:[#allocation8 + $0x6e8] sm:$0xff]
        %v5203 = vld [vmem:[#allocation8 + $0x6f0] sm:$0xff]
        %v5204 = vld [vmem:[#allocation8 + $0x6f8] sm:$0xff]
        %v5205 = vld [vmem:[#allocation8 + $0x700] sm:$0xff]
        %v5206 = vld [vmem:[#allocation8 + $0x708] sm:$0xff]
        %v5207 = vld [vmem:[#allocation8 + $0x710] sm:$0xff]
        %v5208 = vld [vmem:[#allocation8 + $0x718] sm:$0xff]
        %v5209 = vld [vmem:[#allocation8 + $0x720] sm:$0xff]
        %v5210 = vld [vmem:[#allocation8 + $0x728] sm:$0xff]
        %v5211 = vld [vmem:[#allocation8 + $0x730] sm:$0xff]
        %v5212 = vld [vmem:[#allocation8 + $0x738] sm:$0xff]
        %v5213 = vld [vmem:[#allocation8 + $0x740] sm:$0xff]
        %v5214 = vld [vmem:[#allocation8 + $0x748] sm:$0xff]
        %v5215 = vld [vmem:[#allocation8 + $0x750] sm:$0xff]
        %v5216 = vld [vmem:[#allocation8 + $0x758] sm:$0xff]
        %v5217 = vld [vmem:[#allocation8 + $0x760] sm:$0xff]
        %v5218 = vld [vmem:[#allocation8 + $0x768] sm:$0xff]
        %v5219 = vld [vmem:[#allocation8 + $0x770] sm:$0xff]
        %v5220 = vld [vmem:[#allocation8 + $0x778] sm:$0xff]
        %v5221 = vld [vmem:[#allocation8 + $0x780] sm:$0xff]
        %v5222 = vld [vmem:[#allocation8 + $0x788] sm:$0xff]
        %v5223 = vld [vmem:[#allocation8 + $0x790] sm:$0xff]
        %v5224 = vld [vmem:[#allocation8 + $0x798] sm:$0xff]
        %v5225 = vld [vmem:[#allocation8 + $0x7a0] sm:$0xff]
        %v5226 = vld [vmem:[#allocation8 + $0x7a8] sm:$0xff]
        %v5227 = vld [vmem:[#allocation8 + $0x7b0] sm:$0xff]
        %v5228 = vld [vmem:[#allocation8 + $0x7b8] sm:$0xff]
        %v5229 = vld [vmem:[#allocation8 + $0x7c0] sm:$0xff]
        %v5230 = vld [vmem:[#allocation8 + $0x7c8] sm:$0xff]
        %v5231 = vld [vmem:[#allocation8 + $0x7d0] sm:$0xff]
        %v5232 = vld [vmem:[#allocation8 + $0x7d8] sm:$0xff]
        %v5233 = vld [vmem:[#allocation8 + $0x7e0] sm:$0xff]
        %v5234 = vld [vmem:[#allocation8 + $0x7e8] sm:$0xff]
        %v5235 = vld [vmem:[#allocation8 + $0x7f0] sm:$0xff]
        %v5236 = vld [vmem:[#allocation8 + $0x7f8] sm:$0xff]
        %v5237 = vld [vmem:[#allocation8 + $0x800] sm:$0xff]
        %v5238 = vld [vmem:[#allocation8 + $0x808] sm:$0xff]
        %v5239 = vld [vmem:[#allocation8 + $0x810] sm:$0xff]
        %v5240 = vld [vmem:[#allocation8 + $0x818] sm:$0xff]
        %v5241 = vld [vmem:[#allocation8 + $0x820] sm:$0xff]
        %v5242 = vld [vmem:[#allocation8 + $0x828] sm:$0xff]
        %v5243 = vld [vmem:[#allocation8 + $0x830] sm:$0xff]
        %v5244 = vld [vmem:[#allocation8 + $0x838] sm:$0xff]
        %v5245 = vld [vmem:[#allocation8 + $0x840] sm:$0xff]
        %v5246 = vld [vmem:[#allocation8 + $0x848] sm:$0xff]
        %v5247 = vld [vmem:[#allocation8 + $0x850] sm:$0xff]
        %v5248 = vld [vmem:[#allocation8 + $0x858] sm:$0xff]
        %v5249 = vld [vmem:[#allocation8 + $0x860] sm:$0xff]
        %v5250 = vld [vmem:[#allocation8 + $0x868] sm:$0xff]
        %v5251 = vld [vmem:[#allocation8 + $0x870] sm:$0xff]
        %v5252 = vld [vmem:[#allocation8 + $0x878] sm:$0xff]
        %v5253 = vld [vmem:[#allocation8 + $0x880] sm:$0xff]
        %v5254 = vld [vmem:[#allocation8 + $0x888] sm:$0xff]
        %v5255 = vld [vmem:[#allocation8 + $0x890] sm:$0xff]
        %v5256 = vld [vmem:[#allocation8 + $0x898] sm:$0xff]
        %v5257 = vld [vmem:[#allocation8 + $0x8a0] sm:$0xff]
        %v5258 = vld [vmem:[#allocation8 + $0x8a8] sm:$0xff]
        %v5259 = vld [vmem:[#allocation8 + $0x8b0] sm:$0xff]
        %v5260 = vld [vmem:[#allocation8 + $0x8b8] sm:$0xff]
        %v5261 = vld [vmem:[#allocation8 + $0x8c0] sm:$0xff]
        %v5262 = vld [vmem:[#allocation8 + $0x8c8] sm:$0xff]
        %v5263 = vld [vmem:[#allocation8 + $0x8d0] sm:$0xff]
        %v5264 = vld [vmem:[#allocation8 + $0x8d8] sm:$0xff]
        %v5265 = vld [vmem:[#allocation8 + $0x8e0] sm:$0xff]
        %v5266 = vld [vmem:[#allocation8 + $0x8e8] sm:$0xff]
        %v5267 = vld [vmem:[#allocation8 + $0x8f0] sm:$0xff]
        %v5268 = vld [vmem:[#allocation8 + $0x8f8] sm:$0xff]
        %v5269 = vld [vmem:[#allocation8 + $0x900] sm:$0xff]
        %v5270 = vld [vmem:[#allocation8 + $0x908] sm:$0xff]
        %v5271 = vld [vmem:[#allocation8 + $0x910] sm:$0xff]
        %v5272 = vld [vmem:[#allocation8 + $0x918] sm:$0xff]
        %v5273 = vld [vmem:[#allocation8 + $0x920] sm:$0xff]
        %v5274 = vld [vmem:[#allocation8 + $0x928] sm:$0xff]
        %v5275 = vld [vmem:[#allocation8 + $0x930] sm:$0xff]
        %v5276 = vld [vmem:[#allocation8 + $0x938] sm:$0xff]
        %v5277 = vld [vmem:[#allocation8 + $0x940] sm:$0xff]
        %v5278 = vld [vmem:[#allocation8 + $0x948] sm:$0xff]
        %v5279 = vld [vmem:[#allocation8 + $0x950] sm:$0xff]
        %v5280 = vld [vmem:[#allocation8 + $0x958] sm:$0xff]
        %v5281 = vld [vmem:[#allocation8 + $0x960] sm:$0xff]
        %v5282 = vld [vmem:[#allocation8 + $0x968] sm:$0xff]
        %v5283 = vld [vmem:[#allocation8 + $0x970] sm:$0xff]
        %v5284 = vld [vmem:[#allocation8 + $0x978] sm:$0xff]
        %v5285 = vld [vmem:[#allocation8 + $0x980] sm:$0xff]
        %v5286 = vld [vmem:[#allocation8 + $0x988] sm:$0xff]
        %v5287 = vld [vmem:[#allocation8 + $0x990] sm:$0xff]
        %v5288 = vld [vmem:[#allocation8 + $0x998] sm:$0xff]
        %v5289 = vld [vmem:[#allocation8 + $0x9a0] sm:$0xff]
        %v5290 = vld [vmem:[#allocation8 + $0x9a8] sm:$0xff]
        %v5291 = vld [vmem:[#allocation8 + $0x9b0] sm:$0xff]
        %v5292 = vld [vmem:[#allocation8 + $0x9b8] sm:$0xff]
        %v5293 = vld [vmem:[#allocation8 + $0x9c0] sm:$0xff]
        %v5294 = vld [vmem:[#allocation8 + $0x9c8] sm:$0xff]
        %v5295 = vld [vmem:[#allocation8 + $0x9d0] sm:$0xff]
        %v5296 = vld [vmem:[#allocation8 + $0x9d8] sm:$0xff]
        %v5297 = vld [vmem:[#allocation8 + $0x9e0] sm:$0xff]
        %v5298 = vld [vmem:[#allocation8 + $0x9e8] sm:$0xff]
        %v5299 = vld [vmem:[#allocation8 + $0x9f0] sm:$0xff]
        %v5300 = vld [vmem:[#allocation8 + $0x9f8] sm:$0xff]
        %v5301 = vld [vmem:[#allocation8 + $0xa00] sm:$0xff]
        %v5302 = vld [vmem:[#allocation8 + $0xa08] sm:$0xff]
        %v5303 = vld [vmem:[#allocation8 + $0xa10] sm:$0xff]
        %v5304 = vld [vmem:[#allocation8 + $0xa18] sm:$0xff]
        %v5305 = vld [vmem:[#allocation8 + $0xa20] sm:$0xff]
        %v5306 = vld [vmem:[#allocation8 + $0xa28] sm:$0xff]
        %v5307 = vld [vmem:[#allocation8 + $0xa30] sm:$0xff]
        %v5308 = vld [vmem:[#allocation8 + $0xa38] sm:$0xff]
        %v5309 = vld [vmem:[#allocation8 + $0xa40] sm:$0xff]
        %v5310 = vld [vmem:[#allocation8 + $0xa48] sm:$0xff]
        %v5311 = vld [vmem:[#allocation8 + $0xa50] sm:$0xff]
        %v5312 = vld [vmem:[#allocation8 + $0xa58] sm:$0xff]
        %v5313 = vld [vmem:[#allocation8 + $0xa60] sm:$0xff]
        %v5314 = vld [vmem:[#allocation8 + $0xa68] sm:$0xff]
        %v5315 = vld [vmem:[#allocation8 + $0xa70] sm:$0xff]
        %v5316 = vld [vmem:[#allocation8 + $0xa78] sm:$0xff]
        %v5317 = vld [vmem:[#allocation8 + $0xa80] sm:$0xff]
        %v5318 = vld [vmem:[#allocation8 + $0xa88] sm:$0xff]
        %v5319 = vld [vmem:[#allocation8 + $0xa90] sm:$0xff]
        %v5320 = vld [vmem:[#allocation8 + $0xa98] sm:$0xff]
        %v5321 = vld [vmem:[#allocation8 + $0xaa0] sm:$0xff]
        %v5322 = vld [vmem:[#allocation8 + $0xaa8] sm:$0xff]
        %v5323 = vld [vmem:[#allocation8 + $0xab0] sm:$0xff]
        %v5324 = vld [vmem:[#allocation8 + $0xab8] sm:$0xff]
        %v5325 = vld [vmem:[#allocation8 + $0xac0] sm:$0xff]
        %v5326 = vld [vmem:[#allocation8 + $0xac8] sm:$0xff]
        %v5327 = vld [vmem:[#allocation8 + $0xad0] sm:$0xff]
        %v5328 = vld [vmem:[#allocation8 + $0xad8] sm:$0xff]
        %v5329 = vld [vmem:[#allocation8 + $0xae0] sm:$0xff]
        %v5330 = vld [vmem:[#allocation8 + $0xae8] sm:$0xff]
        %v5331 = vld [vmem:[#allocation8 + $0xaf0] sm:$0xff]
        %v5332 = vld [vmem:[#allocation8 + $0xaf8] sm:$0xff]
        %v5333 = vld [vmem:[#allocation8 + $0xb00] sm:$0xff]
        %v5334 = vld [vmem:[#allocation8 + $0xb08] sm:$0xff]
        %v5335 = vld [vmem:[#allocation8 + $0xb10] sm:$0xff]
        %v5336 = vld [vmem:[#allocation8 + $0xb18] sm:$0xff]
        %v5337 = vld [vmem:[#allocation8 + $0xb20] sm:$0xff]
        %v5338 = vld [vmem:[#allocation8 + $0xb28] sm:$0xff]
        %v5339 = vld [vmem:[#allocation8 + $0xb30] sm:$0xff]
        %v5340 = vld [vmem:[#allocation8 + $0xb38] sm:$0xff]
        %v5341 = vld [vmem:[#allocation8 + $0xb40] sm:$0xff]
        %v5342 = vld [vmem:[#allocation8 + $0xb48] sm:$0xff]
        %v5343 = vld [vmem:[#allocation8 + $0xb50] sm:$0xff]
        %v5344 = vld [vmem:[#allocation8 + $0xb58] sm:$0xff]
        %v5345 = vld [vmem:[#allocation8 + $0xb60] sm:$0xff]
        %v5346 = vld [vmem:[#allocation8 + $0xb68] sm:$0xff]
        %v5347 = vld [vmem:[#allocation8 + $0xb70] sm:$0xff]
        %v5348 = vld [vmem:[#allocation8 + $0xb78] sm:$0xff]
        %v5349 = vld [vmem:[#allocation8 + $0xb80] sm:$0xff]
        %v5350 = vld [vmem:[#allocation8 + $0xb88] sm:$0xff]
        %v5351 = vld [vmem:[#allocation8 + $0xb90] sm:$0xff]
        %v5352 = vld [vmem:[#allocation8 + $0xb98] sm:$0xff]
        %v5353 = vld [vmem:[#allocation8 + $0xba0] sm:$0xff]
        %v5354 = vld [vmem:[#allocation8 + $0xba8] sm:$0xff]
        %v5355 = vld [vmem:[#allocation8 + $0xbb0] sm:$0xff]
        %v5356 = vld [vmem:[#allocation8 + $0xbb8] sm:$0xff]
        %v5357 = vld [vmem:[#allocation8 + $0xbc0] sm:$0xff]
        %v5358 = vld [vmem:[#allocation8 + $0xbc8] sm:$0xff]
        %v5359 = vld [vmem:[#allocation8 + $0xbd0] sm:$0xff]
        %v5360 = vld [vmem:[#allocation8 + $0xbd8] sm:$0xff]
        %v5361 = vld [vmem:[#allocation8 + $0xbe0] sm:$0xff]
        %v5362 = vld [vmem:[#allocation8 + $0xbe8] sm:$0xff]
        %v5363 = vld [vmem:[#allocation8 + $0xbf0] sm:$0xff]
        %v5364 = vld [vmem:[#allocation8 + $0xbf8] sm:$0xff]
        %v5365 = vld [vmem:[#allocation8 + $0xc00] sm:$0xff]
        %v5366 = vld [vmem:[#allocation8 + $0xc08] sm:$0xff]
        %v5367 = vld [vmem:[#allocation8 + $0xc10] sm:$0xff]
        %v5368 = vld [vmem:[#allocation8 + $0xc18] sm:$0xff]
        %v5369 = vld [vmem:[#allocation8 + $0xc20] sm:$0xff]
        %v5370 = vld [vmem:[#allocation8 + $0xc28] sm:$0xff]
        %v5371 = vld [vmem:[#allocation8 + $0xc30] sm:$0xff]
        %v5372 = vld [vmem:[#allocation8 + $0xc38] sm:$0xff]
        %v5373 = vld [vmem:[#allocation8 + $0xc40] sm:$0xff]
        %v5374 = vld [vmem:[#allocation8 + $0xc48] sm:$0xff]
        %v5375 = vld [vmem:[#allocation8 + $0xc50] sm:$0xff]
        %v5376 = vld [vmem:[#allocation8 + $0xc58] sm:$0xff]
        %v5377 = vld [vmem:[#allocation8 + $0xc60] sm:$0xff]
        %v5378 = vld [vmem:[#allocation8 + $0xc68] sm:$0xff]
        %v5379 = vld [vmem:[#allocation8 + $0xc70] sm:$0xff]
        %v5380 = vld [vmem:[#allocation8 + $0xc78] sm:$0xff]
        %v5381 = vld [vmem:[#allocation8 + $0xc80] sm:$0xff]
        %v5382 = vld [vmem:[#allocation8 + $0xc88] sm:$0xff]
        %v5383 = vld [vmem:[#allocation8 + $0xc90] sm:$0xff]
        %v5384 = vld [vmem:[#allocation8 + $0xc98] sm:$0xff]
        %v5385 = vld [vmem:[#allocation8 + $0xca0] sm:$0xff]
        %v5386 = vld [vmem:[#allocation8 + $0xca8] sm:$0xff]
        %v5387 = vld [vmem:[#allocation8 + $0xcb0] sm:$0xff]
        %v5388 = vld [vmem:[#allocation8 + $0xcb8] sm:$0xff]
        %v5389 = vld [vmem:[#allocation8 + $0xcc0] sm:$0xff]
        %v5390 = vld [vmem:[#allocation8 + $0xcc8] sm:$0xff]
        %v5391 = vld [vmem:[#allocation8 + $0xcd0] sm:$0xff]
        %v5392 = vld [vmem:[#allocation8 + $0xcd8] sm:$0xff]
        %v5393 = vld [vmem:[#allocation8 + $0xce0] sm:$0xff]
        %v5394 = vld [vmem:[#allocation8 + $0xce8] sm:$0xff]
        %v5395 = vld [vmem:[#allocation8 + $0xcf0] sm:$0xff]
        %v5396 = vld [vmem:[#allocation8 + $0xcf8] sm:$0xff]
        %v5397 = vld [vmem:[#allocation8 + $0xd00] sm:$0xff]
        %v5398 = vld [vmem:[#allocation8 + $0xd08] sm:$0xff]
        %v5399 = vld [vmem:[#allocation8 + $0xd10] sm:$0xff]
        %v5400 = vld [vmem:[#allocation8 + $0xd18] sm:$0xff]
        %v5401 = vld [vmem:[#allocation8 + $0xd20] sm:$0xff]
        %v5402 = vld [vmem:[#allocation8 + $0xd28] sm:$0xff]
        %v5403 = vld [vmem:[#allocation8 + $0xd30] sm:$0xff]
        %v5404 = vld [vmem:[#allocation8 + $0xd38] sm:$0xff]
        %v5405 = vld [vmem:[#allocation8 + $0xd40] sm:$0xff]
        %v5406 = vld [vmem:[#allocation8 + $0xd48] sm:$0xff]
        %v5407 = vld [vmem:[#allocation8 + $0xd50] sm:$0xff]
        %v5408 = vld [vmem:[#allocation8 + $0xd58] sm:$0xff]
        %v5409 = vld [vmem:[#allocation8 + $0xd60] sm:$0xff]
        %v5410 = vld [vmem:[#allocation8 + $0xd68] sm:$0xff]
        %v5411 = vld [vmem:[#allocation8 + $0xd70] sm:$0xff]
        %v5412 = vld [vmem:[#allocation8 + $0xd78] sm:$0xff]
        %v5413 = vld [vmem:[#allocation8 + $0xd80] sm:$0xff]
        %v5414 = vld [vmem:[#allocation8 + $0xd88] sm:$0xff]
        %v5415 = vld [vmem:[#allocation8 + $0xd90] sm:$0xff]
        %v5416 = vld [vmem:[#allocation8 + $0xd98] sm:$0xff]
        %v5417 = vld [vmem:[#allocation8 + $0xda0] sm:$0xff]
        %v5418 = vld [vmem:[#allocation8 + $0xda8] sm:$0xff]
        %v5419 = vld [vmem:[#allocation8 + $0xdb0] sm:$0xff]
        %v5420 = vld [vmem:[#allocation8 + $0xdb8] sm:$0xff]
        %v5421 = vld [vmem:[#allocation8 + $0xdc0] sm:$0xff]
        %v5422 = vld [vmem:[#allocation8 + $0xdc8] sm:$0xff]
        %v5423 = vld [vmem:[#allocation8 + $0xdd0] sm:$0xff]
        %v5424 = vld [vmem:[#allocation8 + $0xdd8] sm:$0xff]
        %v5425 = vld [vmem:[#allocation8 + $0xde0] sm:$0xff]
        %v5426 = vld [vmem:[#allocation8 + $0xde8] sm:$0xff]
        %v5427 = vld [vmem:[#allocation8 + $0xdf0] sm:$0xff]
        %v5428 = vld [vmem:[#allocation8 + $0xdf8] sm:$0xff]
        %v5429 = vld [vmem:[#allocation8 + $0xe00] sm:$0xff]
        %v5430 = vld [vmem:[#allocation8 + $0xe08] sm:$0xff]
        %v5431 = vld [vmem:[#allocation8 + $0xe10] sm:$0xff]
        %v5432 = vld [vmem:[#allocation8 + $0xe18] sm:$0xff]
        %v5433 = vld [vmem:[#allocation8 + $0xe20] sm:$0xff]
        %v5434 = vld [vmem:[#allocation8 + $0xe28] sm:$0xff]
        %v5435 = vld [vmem:[#allocation8 + $0xe30] sm:$0xff]
        %v5436 = vld [vmem:[#allocation8 + $0xe38] sm:$0xff]
        %v5437 = vld [vmem:[#allocation8 + $0xe40] sm:$0xff]
        %v5438 = vld [vmem:[#allocation8 + $0xe48] sm:$0xff]
        %v5439 = vld [vmem:[#allocation8 + $0xe50] sm:$0xff]
        %v5440 = vld [vmem:[#allocation8 + $0xe58] sm:$0xff]
        %v5441 = vld [vmem:[#allocation8 + $0xe60] sm:$0xff]
        %v5442 = vld [vmem:[#allocation8 + $0xe68] sm:$0xff]
        %v5443 = vld [vmem:[#allocation8 + $0xe70] sm:$0xff]
        %v5444 = vld [vmem:[#allocation8 + $0xe78] sm:$0xff]
        %v5445 = vld [vmem:[#allocation8 + $0xe80] sm:$0xff]
        %v5446 = vld [vmem:[#allocation8 + $0xe88] sm:$0xff]
        %v5447 = vld [vmem:[#allocation8 + $0xe90] sm:$0xff]
        %v5448 = vld [vmem:[#allocation8 + $0xe98] sm:$0xff]
        %v5449 = vld [vmem:[#allocation8 + $0xea0] sm:$0xff]
        %v5450 = vld [vmem:[#allocation8 + $0xea8] sm:$0xff]
        %v5451 = vld [vmem:[#allocation8 + $0xeb0] sm:$0xff]
        %v5452 = vld [vmem:[#allocation8 + $0xeb8] sm:$0xff]
        %v5453 = vld [vmem:[#allocation8 + $0xec0] sm:$0xff]
        %v5454 = vld [vmem:[#allocation8 + $0xec8] sm:$0xff]
        %v5455 = vld [vmem:[#allocation8 + $0xed0] sm:$0xff]
        %v5456 = vld [vmem:[#allocation8 + $0xed8] sm:$0xff]
        %v5457 = vld [vmem:[#allocation8 + $0xee0] sm:$0xff]
        %v5458 = vld [vmem:[#allocation8 + $0xee8] sm:$0xff]
        %v5459 = vld [vmem:[#allocation8 + $0xef0] sm:$0xff]
        %v5460 = vld [vmem:[#allocation8 + $0xef8] sm:$0xff]
        %v5461 = vld [vmem:[#allocation8 + $0xf00] sm:$0xff]
        %v5462 = vld [vmem:[#allocation8 + $0xf08] sm:$0xff]
        %v5463 = vld [vmem:[#allocation8 + $0xf10] sm:$0xff]
        %v5464 = vld [vmem:[#allocation8 + $0xf18] sm:$0xff]
        %v5465 = vld [vmem:[#allocation8 + $0xf20] sm:$0xff]
        %v5466 = vld [vmem:[#allocation8 + $0xf28] sm:$0xff]
        %v5467 = vld [vmem:[#allocation8 + $0xf30] sm:$0xff]
        %v5468 = vld [vmem:[#allocation8 + $0xf38] sm:$0xff]
        %v5469 = vld [vmem:[#allocation8 + $0xf40] sm:$0xff]
        %v5470 = vld [vmem:[#allocation8 + $0xf48] sm:$0xff]
        %v5471 = vld [vmem:[#allocation8 + $0xf50] sm:$0xff]
        %v5472 = vld [vmem:[#allocation8 + $0xf58] sm:$0xff]
        %v5473 = vld [vmem:[#allocation8 + $0xf60] sm:$0xff]
        %v5474 = vld [vmem:[#allocation8 + $0xf68] sm:$0xff]
        %v5475 = vld [vmem:[#allocation8 + $0xf70] sm:$0xff]
        %v5476 = vld [vmem:[#allocation8 + $0xf78] sm:$0xff]
        %v5477 = vld [vmem:[#allocation8 + $0xf80] sm:$0xff]
        %v5478 = vld [vmem:[#allocation8 + $0xf88] sm:$0xff]
        %v5479 = vld [vmem:[#allocation8 + $0xf90] sm:$0xff]
        %v5480 = vld [vmem:[#allocation8 + $0xf98] sm:$0xff]
        %v5481 = vld [vmem:[#allocation8 + $0xfa0] sm:$0xff]
        %v5482 = vld [vmem:[#allocation8 + $0xfa8] sm:$0xff]
        %v5483 = vld [vmem:[#allocation8 + $0xfb0] sm:$0xff]
        %v5484 = vld [vmem:[#allocation8 + $0xfb8] sm:$0xff]
        %v5485 = vld [vmem:[#allocation8 + $0xfc0] sm:$0xff]
        %v5486 = vld [vmem:[#allocation8 + $0xfc8] sm:$0xff]
        %v5487 = vld [vmem:[#allocation8 + $0xfd0] sm:$0xff]
        %v5488 = vld [vmem:[#allocation8 + $0xfd8] sm:$0xff]
        %v5489 = vld [vmem:[#allocation8 + $0xfe0] sm:$0xff]
        %v5490 = vld [vmem:[#allocation8 + $0xfe8] sm:$0xff]
        %v5491 = vld [vmem:[#allocation8 + $0xff0] sm:$0xff]
        %v5492 = vld [vmem:[#allocation8 + $0xff8] sm:$0xff]
        %v5493 = vld [vmem:[#allocation10] sm:$0xf]
        %v5495 = vperm.slane %v5493, 0
        %v5496 = vperm.slane %v5493, 1
        %v5497 = vperm.slane %v5493, 2
        %v5498 = vperm.slane %v5493, 3
        %v6015 = vunpack.c.l.b16 %v4981
        %v6016 = vunpack.c.h.b16 %v4981
        %v6017 = vunpack.c.l.b16 %v4982
        %v6018 = vunpack.c.h.b16 %v4982
        %v6019 = vunpack.c.l.b16 %v4983
        %v6020 = vunpack.c.h.b16 %v4983
        %v6021 = vunpack.c.l.b16 %v4984
        %v6022 = vunpack.c.h.b16 %v4984
        %v6023 = vunpack.c.l.b16 %v4985
        %v6024 = vunpack.c.h.b16 %v4985
        %v6025 = vunpack.c.l.b16 %v4986
        %v6026 = vunpack.c.h.b16 %v4986
        %v6027 = vunpack.c.l.b16 %v4987
        %v6028 = vunpack.c.h.b16 %v4987
        %v6029 = vunpack.c.l.b16 %v4988
        %v6030 = vunpack.c.h.b16 %v4988
        %v6031 = vunpack.c.l.b16 %v4989
        %v6032 = vunpack.c.h.b16 %v4989
        %v6033 = vunpack.c.l.b16 %v4990
        %v6034 = vunpack.c.h.b16 %v4990
        %v6035 = vunpack.c.l.b16 %v4991
        %v6036 = vunpack.c.h.b16 %v4991
        %v6037 = vunpack.c.l.b16 %v4992
        %v6038 = vunpack.c.h.b16 %v4992
        %v6039 = vunpack.c.l.b16 %v4993
        %v6040 = vunpack.c.h.b16 %v4993
        %v6041 = vunpack.c.l.b16 %v4994
        %v6042 = vunpack.c.h.b16 %v4994
        %v6043 = vunpack.c.l.b16 %v4995
        %v6044 = vunpack.c.h.b16 %v4995
        %v6045 = vunpack.c.l.b16 %v4996
        %v6046 = vunpack.c.h.b16 %v4996
        %v6047 = vunpack.c.l.b16 %v4997
        %v6048 = vunpack.c.h.b16 %v4997
        %v6049 = vunpack.c.l.b16 %v4998
        %v6050 = vunpack.c.h.b16 %v4998
        %v6051 = vunpack.c.l.b16 %v4999
        %v6052 = vunpack.c.h.b16 %v4999
        %v6053 = vunpack.c.l.b16 %v5000
        %v6054 = vunpack.c.h.b16 %v5000
        %v6055 = vunpack.c.l.b16 %v5001
        %v6056 = vunpack.c.h.b16 %v5001
        %v6057 = vunpack.c.l.b16 %v5002
        %v6058 = vunpack.c.h.b16 %v5002
        %v6059 = vunpack.c.l.b16 %v5003
        %v6060 = vunpack.c.h.b16 %v5003
        %v6061 = vunpack.c.l.b16 %v5004
        %v6062 = vunpack.c.h.b16 %v5004
        %v6063 = vunpack.c.l.b16 %v5005
        %v6064 = vunpack.c.h.b16 %v5005
        %v6065 = vunpack.c.l.b16 %v5006
        %v6066 = vunpack.c.h.b16 %v5006
        %v6067 = vunpack.c.l.b16 %v5007
        %v6068 = vunpack.c.h.b16 %v5007
        %v6069 = vunpack.c.l.b16 %v5008
        %v6070 = vunpack.c.h.b16 %v5008
        %v6071 = vunpack.c.l.b16 %v5009
        %v6072 = vunpack.c.h.b16 %v5009
        %v6073 = vunpack.c.l.b16 %v5010
        %v6074 = vunpack.c.h.b16 %v5010
        %v6075 = vunpack.c.l.b16 %v5011
        %v6076 = vunpack.c.h.b16 %v5011
        %v6077 = vunpack.c.l.b16 %v5012
        %v6078 = vunpack.c.h.b16 %v5012
        %v6079 = vunpack.c.l.b16 %v5013
        %v6080 = vunpack.c.h.b16 %v5013
        %v6081 = vunpack.c.l.b16 %v5014
        %v6082 = vunpack.c.h.b16 %v5014
        %v6083 = vunpack.c.l.b16 %v5015
        %v6084 = vunpack.c.h.b16 %v5015
        %v6085 = vunpack.c.l.b16 %v5016
        %v6086 = vunpack.c.h.b16 %v5016
        %v6087 = vunpack.c.l.b16 %v5017
        %v6088 = vunpack.c.h.b16 %v5017
        %v6089 = vunpack.c.l.b16 %v5018
        %v6090 = vunpack.c.h.b16 %v5018
        %v6091 = vunpack.c.l.b16 %v5019
        %v6092 = vunpack.c.h.b16 %v5019
        %v6093 = vunpack.c.l.b16 %v5020
        %v6094 = vunpack.c.h.b16 %v5020
        %v6095 = vunpack.c.l.b16 %v5021
        %v6096 = vunpack.c.h.b16 %v5021
        %v6097 = vunpack.c.l.b16 %v5022
        %v6098 = vunpack.c.h.b16 %v5022
        %v6099 = vunpack.c.l.b16 %v5023
        %v6100 = vunpack.c.h.b16 %v5023
        %v6101 = vunpack.c.l.b16 %v5024
        %v6102 = vunpack.c.h.b16 %v5024
        %v6103 = vunpack.c.l.b16 %v5025
        %v6104 = vunpack.c.h.b16 %v5025
        %v6105 = vunpack.c.l.b16 %v5026
        %v6106 = vunpack.c.h.b16 %v5026
        %v6107 = vunpack.c.l.b16 %v5027
        %v6108 = vunpack.c.h.b16 %v5027
        %v6109 = vunpack.c.l.b16 %v5028
        %v6110 = vunpack.c.h.b16 %v5028
        %v6111 = vunpack.c.l.b16 %v5029
        %v6112 = vunpack.c.h.b16 %v5029
        %v6113 = vunpack.c.l.b16 %v5030
        %v6114 = vunpack.c.h.b16 %v5030
        %v6115 = vunpack.c.l.b16 %v5031
        %v6116 = vunpack.c.h.b16 %v5031
        %v6117 = vunpack.c.l.b16 %v5032
        %v6118 = vunpack.c.h.b16 %v5032
        %v6119 = vunpack.c.l.b16 %v5033
        %v6120 = vunpack.c.h.b16 %v5033
        %v6121 = vunpack.c.l.b16 %v5034
        %v6122 = vunpack.c.h.b16 %v5034
        %v6123 = vunpack.c.l.b16 %v5035
        %v6124 = vunpack.c.h.b16 %v5035
        %v6125 = vunpack.c.l.b16 %v5036
        %v6126 = vunpack.c.h.b16 %v5036
        %v6127 = vunpack.c.l.b16 %v5037
        %v6128 = vunpack.c.h.b16 %v5037
        %v6129 = vunpack.c.l.b16 %v5038
        %v6130 = vunpack.c.h.b16 %v5038
        %v6131 = vunpack.c.l.b16 %v5039
        %v6132 = vunpack.c.h.b16 %v5039
        %v6133 = vunpack.c.l.b16 %v5040
        %v6134 = vunpack.c.h.b16 %v5040
        %v6135 = vunpack.c.l.b16 %v5041
        %v6136 = vunpack.c.h.b16 %v5041
        %v6137 = vunpack.c.l.b16 %v5042
        %v6138 = vunpack.c.h.b16 %v5042
        %v6139 = vunpack.c.l.b16 %v5043
        %v6140 = vunpack.c.h.b16 %v5043
        %v6141 = vunpack.c.l.b16 %v5044
        %v6142 = vunpack.c.h.b16 %v5044
        %v6143 = vunpack.c.l.b16 %v5045
        %v6144 = vunpack.c.h.b16 %v5045
        %v6145 = vunpack.c.l.b16 %v5046
        %v6146 = vunpack.c.h.b16 %v5046
        %v6147 = vunpack.c.l.b16 %v5047
        %v6148 = vunpack.c.h.b16 %v5047
        %v6149 = vunpack.c.l.b16 %v5048
        %v6150 = vunpack.c.h.b16 %v5048
        %v6151 = vunpack.c.l.b16 %v5049
        %v6152 = vunpack.c.h.b16 %v5049
        %v6153 = vunpack.c.l.b16 %v5050
        %v6154 = vunpack.c.h.b16 %v5050
        %v6155 = vunpack.c.l.b16 %v5051
        %v6156 = vunpack.c.h.b16 %v5051
        %v6157 = vunpack.c.l.b16 %v5052
        %v6158 = vunpack.c.h.b16 %v5052
        %v6159 = vunpack.c.l.b16 %v5053
        %v6160 = vunpack.c.h.b16 %v5053
        %v6161 = vunpack.c.l.b16 %v5054
        %v6162 = vunpack.c.h.b16 %v5054
        %v6163 = vunpack.c.l.b16 %v5055
        %v6164 = vunpack.c.h.b16 %v5055
        %v6165 = vunpack.c.l.b16 %v5056
        %v6166 = vunpack.c.h.b16 %v5056
        %v6167 = vunpack.c.l.b16 %v5057
        %v6168 = vunpack.c.h.b16 %v5057
        %v6169 = vunpack.c.l.b16 %v5058
        %v6170 = vunpack.c.h.b16 %v5058
        %v6171 = vunpack.c.l.b16 %v5059
        %v6172 = vunpack.c.h.b16 %v5059
        %v6173 = vunpack.c.l.b16 %v5060
        %v6174 = vunpack.c.h.b16 %v5060
        %v6175 = vunpack.c.l.b16 %v5061
        %v6176 = vunpack.c.h.b16 %v5061
        %v6177 = vunpack.c.l.b16 %v5062
        %v6178 = vunpack.c.h.b16 %v5062
        %v6179 = vunpack.c.l.b16 %v5063
        %v6180 = vunpack.c.h.b16 %v5063
        %v6181 = vunpack.c.l.b16 %v5064
        %v6182 = vunpack.c.h.b16 %v5064
        %v6183 = vunpack.c.l.b16 %v5065
        %v6184 = vunpack.c.h.b16 %v5065
        %v6185 = vunpack.c.l.b16 %v5066
        %v6186 = vunpack.c.h.b16 %v5066
        %v6187 = vunpack.c.l.b16 %v5067
        %v6188 = vunpack.c.h.b16 %v5067
        %v6189 = vunpack.c.l.b16 %v5068
        %v6190 = vunpack.c.h.b16 %v5068
        %v6191 = vunpack.c.l.b16 %v5069
        %v6192 = vunpack.c.h.b16 %v5069
        %v6193 = vunpack.c.l.b16 %v5070
        %v6194 = vunpack.c.h.b16 %v5070
        %v6195 = vunpack.c.l.b16 %v5071
        %v6196 = vunpack.c.h.b16 %v5071
        %v6197 = vunpack.c.l.b16 %v5072
        %v6198 = vunpack.c.h.b16 %v5072
        %v6199 = vunpack.c.l.b16 %v5073
        %v6200 = vunpack.c.h.b16 %v5073
        %v6201 = vunpack.c.l.b16 %v5074
        %v6202 = vunpack.c.h.b16 %v5074
        %v6203 = vunpack.c.l.b16 %v5075
        %v6204 = vunpack.c.h.b16 %v5075
        %v6205 = vunpack.c.l.b16 %v5076
        %v6206 = vunpack.c.h.b16 %v5076
        %v6207 = vunpack.c.l.b16 %v5077
        %v6208 = vunpack.c.h.b16 %v5077
        %v6209 = vunpack.c.l.b16 %v5078
        %v6210 = vunpack.c.h.b16 %v5078
        %v6211 = vunpack.c.l.b16 %v5079
        %v6212 = vunpack.c.h.b16 %v5079
        %v6213 = vunpack.c.l.b16 %v5080
        %v6214 = vunpack.c.h.b16 %v5080
        %v6215 = vunpack.c.l.b16 %v5081
        %v6216 = vunpack.c.h.b16 %v5081
        %v6217 = vunpack.c.l.b16 %v5082
        %v6218 = vunpack.c.h.b16 %v5082
        %v6219 = vunpack.c.l.b16 %v5083
        %v6220 = vunpack.c.h.b16 %v5083
        %v6221 = vunpack.c.l.b16 %v5084
        %v6222 = vunpack.c.h.b16 %v5084
        %v6223 = vunpack.c.l.b16 %v5085
        %v6224 = vunpack.c.h.b16 %v5085
        %v6225 = vunpack.c.l.b16 %v5086
        %v6226 = vunpack.c.h.b16 %v5086
        %v6227 = vunpack.c.l.b16 %v5087
        %v6228 = vunpack.c.h.b16 %v5087
        %v6229 = vunpack.c.l.b16 %v5088
        %v6230 = vunpack.c.h.b16 %v5088
        %v6231 = vunpack.c.l.b16 %v5089
        %v6232 = vunpack.c.h.b16 %v5089
        %v6233 = vunpack.c.l.b16 %v5090
        %v6234 = vunpack.c.h.b16 %v5090
        %v6235 = vunpack.c.l.b16 %v5091
        %v6236 = vunpack.c.h.b16 %v5091
        %v6237 = vunpack.c.l.b16 %v5092
        %v6238 = vunpack.c.h.b16 %v5092
        %v6239 = vunpack.c.l.b16 %v5093
        %v6240 = vunpack.c.h.b16 %v5093
        %v6241 = vunpack.c.l.b16 %v5094
        %v6242 = vunpack.c.h.b16 %v5094
        %v6243 = vunpack.c.l.b16 %v5095
        %v6244 = vunpack.c.h.b16 %v5095
        %v6245 = vunpack.c.l.b16 %v5096
        %v6246 = vunpack.c.h.b16 %v5096
        %v6247 = vunpack.c.l.b16 %v5097
        %v6248 = vunpack.c.h.b16 %v5097
        %v6249 = vunpack.c.l.b16 %v5098
        %v6250 = vunpack.c.h.b16 %v5098
        %v6251 = vunpack.c.l.b16 %v5099
        %v6252 = vunpack.c.h.b16 %v5099
        %v6253 = vunpack.c.l.b16 %v5100
        %v6254 = vunpack.c.h.b16 %v5100
        %v6255 = vunpack.c.l.b16 %v5101
        %v6256 = vunpack.c.h.b16 %v5101
        %v6257 = vunpack.c.l.b16 %v5102
        %v6258 = vunpack.c.h.b16 %v5102
        %v6259 = vunpack.c.l.b16 %v5103
        %v6260 = vunpack.c.h.b16 %v5103
        %v6261 = vunpack.c.l.b16 %v5104
        %v6262 = vunpack.c.h.b16 %v5104
        %v6263 = vunpack.c.l.b16 %v5105
        %v6264 = vunpack.c.h.b16 %v5105
        %v6265 = vunpack.c.l.b16 %v5106
        %v6266 = vunpack.c.h.b16 %v5106
        %v6267 = vunpack.c.l.b16 %v5107
        %v6268 = vunpack.c.h.b16 %v5107
        %v6269 = vunpack.c.l.b16 %v5108
        %v6270 = vunpack.c.h.b16 %v5108
        %v6271 = vunpack.c.l.b16 %v5109
        %v6272 = vunpack.c.h.b16 %v5109
        %v6273 = vunpack.c.l.b16 %v5110
        %v6274 = vunpack.c.h.b16 %v5110
        %v6275 = vunpack.c.l.b16 %v5111
        %v6276 = vunpack.c.h.b16 %v5111
        %v6277 = vunpack.c.l.b16 %v5112
        %v6278 = vunpack.c.h.b16 %v5112
        %v6279 = vunpack.c.l.b16 %v5113
        %v6280 = vunpack.c.h.b16 %v5113
        %v6281 = vunpack.c.l.b16 %v5114
        %v6282 = vunpack.c.h.b16 %v5114
        %v6283 = vunpack.c.l.b16 %v5115
        %v6284 = vunpack.c.h.b16 %v5115
        %v6285 = vunpack.c.l.b16 %v5116
        %v6286 = vunpack.c.h.b16 %v5116
        %v6287 = vunpack.c.l.b16 %v5117
        %v6288 = vunpack.c.h.b16 %v5117
        %v6289 = vunpack.c.l.b16 %v5118
        %v6290 = vunpack.c.h.b16 %v5118
        %v6291 = vunpack.c.l.b16 %v5119
        %v6292 = vunpack.c.h.b16 %v5119
        %v6293 = vunpack.c.l.b16 %v5120
        %v6294 = vunpack.c.h.b16 %v5120
        %v6295 = vunpack.c.l.b16 %v5121
        %v6296 = vunpack.c.h.b16 %v5121
        %v6297 = vunpack.c.l.b16 %v5122
        %v6298 = vunpack.c.h.b16 %v5122
        %v6299 = vunpack.c.l.b16 %v5123
        %v6300 = vunpack.c.h.b16 %v5123
        %v6301 = vunpack.c.l.b16 %v5124
        %v6302 = vunpack.c.h.b16 %v5124
        %v6303 = vunpack.c.l.b16 %v5125
        %v6304 = vunpack.c.h.b16 %v5125
        %v6305 = vunpack.c.l.b16 %v5126
        %v6306 = vunpack.c.h.b16 %v5126
        %v6307 = vunpack.c.l.b16 %v5127
        %v6308 = vunpack.c.h.b16 %v5127
        %v6309 = vunpack.c.l.b16 %v5128
        %v6310 = vunpack.c.h.b16 %v5128
        %v6311 = vunpack.c.l.b16 %v5129
        %v6312 = vunpack.c.h.b16 %v5129
        %v6313 = vunpack.c.l.b16 %v5130
        %v6314 = vunpack.c.h.b16 %v5130
        %v6315 = vunpack.c.l.b16 %v5131
        %v6316 = vunpack.c.h.b16 %v5131
        %v6317 = vunpack.c.l.b16 %v5132
        %v6318 = vunpack.c.h.b16 %v5132
        %v6319 = vunpack.c.l.b16 %v5133
        %v6320 = vunpack.c.h.b16 %v5133
        %v6321 = vunpack.c.l.b16 %v5134
        %v6322 = vunpack.c.h.b16 %v5134
        %v6323 = vunpack.c.l.b16 %v5135
        %v6324 = vunpack.c.h.b16 %v5135
        %v6325 = vunpack.c.l.b16 %v5136
        %v6326 = vunpack.c.h.b16 %v5136
        %v6327 = vunpack.c.l.b16 %v5137
        %v6328 = vunpack.c.h.b16 %v5137
        %v6329 = vunpack.c.l.b16 %v5138
        %v6330 = vunpack.c.h.b16 %v5138
        %v6331 = vunpack.c.l.b16 %v5139
        %v6332 = vunpack.c.h.b16 %v5139
        %v6333 = vunpack.c.l.b16 %v5140
        %v6334 = vunpack.c.h.b16 %v5140
        %v6335 = vunpack.c.l.b16 %v5141
        %v6336 = vunpack.c.h.b16 %v5141
        %v6337 = vunpack.c.l.b16 %v5142
        %v6338 = vunpack.c.h.b16 %v5142
        %v6339 = vunpack.c.l.b16 %v5143
        %v6340 = vunpack.c.h.b16 %v5143
        %v6341 = vunpack.c.l.b16 %v5144
        %v6342 = vunpack.c.h.b16 %v5144
        %v6343 = vunpack.c.l.b16 %v5145
        %v6344 = vunpack.c.h.b16 %v5145
        %v6345 = vunpack.c.l.b16 %v5146
        %v6346 = vunpack.c.h.b16 %v5146
        %v6347 = vunpack.c.l.b16 %v5147
        %v6348 = vunpack.c.h.b16 %v5147
        %v6349 = vunpack.c.l.b16 %v5148
        %v6350 = vunpack.c.h.b16 %v5148
        %v6351 = vunpack.c.l.b16 %v5149
        %v6352 = vunpack.c.h.b16 %v5149
        %v6353 = vunpack.c.l.b16 %v5150
        %v6354 = vunpack.c.h.b16 %v5150
        %v6355 = vunpack.c.l.b16 %v5151
        %v6356 = vunpack.c.h.b16 %v5151
        %v6357 = vunpack.c.l.b16 %v5152
        %v6358 = vunpack.c.h.b16 %v5152
        %v6359 = vunpack.c.l.b16 %v5153
        %v6360 = vunpack.c.h.b16 %v5153
        %v6361 = vunpack.c.l.b16 %v5154
        %v6362 = vunpack.c.h.b16 %v5154
        %v6363 = vunpack.c.l.b16 %v5155
        %v6364 = vunpack.c.h.b16 %v5155
        %v6365 = vunpack.c.l.b16 %v5156
        %v6366 = vunpack.c.h.b16 %v5156
        %v6367 = vunpack.c.l.b16 %v5157
        %v6368 = vunpack.c.h.b16 %v5157
        %v6369 = vunpack.c.l.b16 %v5158
        %v6370 = vunpack.c.h.b16 %v5158
        %v6371 = vunpack.c.l.b16 %v5159
        %v6372 = vunpack.c.h.b16 %v5159
        %v6373 = vunpack.c.l.b16 %v5160
        %v6374 = vunpack.c.h.b16 %v5160
        %v6375 = vunpack.c.l.b16 %v5161
        %v6376 = vunpack.c.h.b16 %v5161
        %v6377 = vunpack.c.l.b16 %v5162
        %v6378 = vunpack.c.h.b16 %v5162
        %v6379 = vunpack.c.l.b16 %v5163
        %v6380 = vunpack.c.h.b16 %v5163
        %v6381 = vunpack.c.l.b16 %v5164
        %v6382 = vunpack.c.h.b16 %v5164
        %v6383 = vunpack.c.l.b16 %v5165
        %v6384 = vunpack.c.h.b16 %v5165
        %v6385 = vunpack.c.l.b16 %v5166
        %v6386 = vunpack.c.h.b16 %v5166
        %v6387 = vunpack.c.l.b16 %v5167
        %v6388 = vunpack.c.h.b16 %v5167
        %v6389 = vunpack.c.l.b16 %v5168
        %v6390 = vunpack.c.h.b16 %v5168
        %v6391 = vunpack.c.l.b16 %v5169
        %v6392 = vunpack.c.h.b16 %v5169
        %v6393 = vunpack.c.l.b16 %v5170
        %v6394 = vunpack.c.h.b16 %v5170
        %v6395 = vunpack.c.l.b16 %v5171
        %v6396 = vunpack.c.h.b16 %v5171
        %v6397 = vunpack.c.l.b16 %v5172
        %v6398 = vunpack.c.h.b16 %v5172
        %v6399 = vunpack.c.l.b16 %v5173
        %v6400 = vunpack.c.h.b16 %v5173
        %v6401 = vunpack.c.l.b16 %v5174
        %v6402 = vunpack.c.h.b16 %v5174
        %v6403 = vunpack.c.l.b16 %v5175
        %v6404 = vunpack.c.h.b16 %v5175
        %v6405 = vunpack.c.l.b16 %v5176
        %v6406 = vunpack.c.h.b16 %v5176
        %v6407 = vunpack.c.l.b16 %v5177
        %v6408 = vunpack.c.h.b16 %v5177
        %v6409 = vunpack.c.l.b16 %v5178
        %v6410 = vunpack.c.h.b16 %v5178
        %v6411 = vunpack.c.l.b16 %v5179
        %v6412 = vunpack.c.h.b16 %v5179
        %v6413 = vunpack.c.l.b16 %v5180
        %v6414 = vunpack.c.h.b16 %v5180
        %v6415 = vunpack.c.l.b16 %v5181
        %v6416 = vunpack.c.h.b16 %v5181
        %v6417 = vunpack.c.l.b16 %v5182
        %v6418 = vunpack.c.h.b16 %v5182
        %v6419 = vunpack.c.l.b16 %v5183
        %v6420 = vunpack.c.h.b16 %v5183
        %v6421 = vunpack.c.l.b16 %v5184
        %v6422 = vunpack.c.h.b16 %v5184
        %v6423 = vunpack.c.l.b16 %v5185
        %v6424 = vunpack.c.h.b16 %v5185
        %v6425 = vunpack.c.l.b16 %v5186
        %v6426 = vunpack.c.h.b16 %v5186
        %v6427 = vunpack.c.l.b16 %v5187
        %v6428 = vunpack.c.h.b16 %v5187
        %v6429 = vunpack.c.l.b16 %v5188
        %v6430 = vunpack.c.h.b16 %v5188
        %v6431 = vunpack.c.l.b16 %v5189
        %v6432 = vunpack.c.h.b16 %v5189
        %v6433 = vunpack.c.l.b16 %v5190
        %v6434 = vunpack.c.h.b16 %v5190
        %v6435 = vunpack.c.l.b16 %v5191
        %v6436 = vunpack.c.h.b16 %v5191
        %v6437 = vunpack.c.l.b16 %v5192
        %v6438 = vunpack.c.h.b16 %v5192
        %v6439 = vunpack.c.l.b16 %v5193
        %v6440 = vunpack.c.h.b16 %v5193
        %v6441 = vunpack.c.l.b16 %v5194
        %v6442 = vunpack.c.h.b16 %v5194
        %v6443 = vunpack.c.l.b16 %v5195
        %v6444 = vunpack.c.h.b16 %v5195
        %v6445 = vunpack.c.l.b16 %v5196
        %v6446 = vunpack.c.h.b16 %v5196
        %v6447 = vunpack.c.l.b16 %v5197
        %v6448 = vunpack.c.h.b16 %v5197
        %v6449 = vunpack.c.l.b16 %v5198
        %v6450 = vunpack.c.h.b16 %v5198
        %v6451 = vunpack.c.l.b16 %v5199
        %v6452 = vunpack.c.h.b16 %v5199
        %v6453 = vunpack.c.l.b16 %v5200
        %v6454 = vunpack.c.h.b16 %v5200
        %v6455 = vunpack.c.l.b16 %v5201
        %v6456 = vunpack.c.h.b16 %v5201
        %v6457 = vunpack.c.l.b16 %v5202
        %v6458 = vunpack.c.h.b16 %v5202
        %v6459 = vunpack.c.l.b16 %v5203
        %v6460 = vunpack.c.h.b16 %v5203
        %v6461 = vunpack.c.l.b16 %v5204
        %v6462 = vunpack.c.h.b16 %v5204
        %v6463 = vunpack.c.l.b16 %v5205
        %v6464 = vunpack.c.h.b16 %v5205
        %v6465 = vunpack.c.l.b16 %v5206
        %v6466 = vunpack.c.h.b16 %v5206
        %v6467 = vunpack.c.l.b16 %v5207
        %v6468 = vunpack.c.h.b16 %v5207
        %v6469 = vunpack.c.l.b16 %v5208
        %v6470 = vunpack.c.h.b16 %v5208
        %v6471 = vunpack.c.l.b16 %v5209
        %v6472 = vunpack.c.h.b16 %v5209
        %v6473 = vunpack.c.l.b16 %v5210
        %v6474 = vunpack.c.h.b16 %v5210
        %v6475 = vunpack.c.l.b16 %v5211
        %v6476 = vunpack.c.h.b16 %v5211
        %v6477 = vunpack.c.l.b16 %v5212
        %v6478 = vunpack.c.h.b16 %v5212
        %v6479 = vunpack.c.l.b16 %v5213
        %v6480 = vunpack.c.h.b16 %v5213
        %v6481 = vunpack.c.l.b16 %v5214
        %v6482 = vunpack.c.h.b16 %v5214
        %v6483 = vunpack.c.l.b16 %v5215
        %v6484 = vunpack.c.h.b16 %v5215
        %v6485 = vunpack.c.l.b16 %v5216
        %v6486 = vunpack.c.h.b16 %v5216
        %v6487 = vunpack.c.l.b16 %v5217
        %v6488 = vunpack.c.h.b16 %v5217
        %v6489 = vunpack.c.l.b16 %v5218
        %v6490 = vunpack.c.h.b16 %v5218
        %v6491 = vunpack.c.l.b16 %v5219
        %v6492 = vunpack.c.h.b16 %v5219
        %v6493 = vunpack.c.l.b16 %v5220
        %v6494 = vunpack.c.h.b16 %v5220
        %v6495 = vunpack.c.l.b16 %v5221
        %v6496 = vunpack.c.h.b16 %v5221
        %v6497 = vunpack.c.l.b16 %v5222
        %v6498 = vunpack.c.h.b16 %v5222
        %v6499 = vunpack.c.l.b16 %v5223
        %v6500 = vunpack.c.h.b16 %v5223
        %v6501 = vunpack.c.l.b16 %v5224
        %v6502 = vunpack.c.h.b16 %v5224
        %v6503 = vunpack.c.l.b16 %v5225
        %v6504 = vunpack.c.h.b16 %v5225
        %v6505 = vunpack.c.l.b16 %v5226
        %v6506 = vunpack.c.h.b16 %v5226
        %v6507 = vunpack.c.l.b16 %v5227
        %v6508 = vunpack.c.h.b16 %v5227
        %v6509 = vunpack.c.l.b16 %v5228
        %v6510 = vunpack.c.h.b16 %v5228
        %v6511 = vunpack.c.l.b16 %v5229
        %v6512 = vunpack.c.h.b16 %v5229
        %v6513 = vunpack.c.l.b16 %v5230
        %v6514 = vunpack.c.h.b16 %v5230
        %v6515 = vunpack.c.l.b16 %v5231
        %v6516 = vunpack.c.h.b16 %v5231
        %v6517 = vunpack.c.l.b16 %v5232
        %v6518 = vunpack.c.h.b16 %v5232
        %v6519 = vunpack.c.l.b16 %v5233
        %v6520 = vunpack.c.h.b16 %v5233
        %v6521 = vunpack.c.l.b16 %v5234
        %v6522 = vunpack.c.h.b16 %v5234
        %v6523 = vunpack.c.l.b16 %v5235
        %v6524 = vunpack.c.h.b16 %v5235
        %v6525 = vunpack.c.l.b16 %v5236
        %v6526 = vunpack.c.h.b16 %v5236
        %v6527 = vunpack.c.l.b16 %v5237
        %v6528 = vunpack.c.h.b16 %v5237
        %v6529 = vunpack.c.l.b16 %v5238
        %v6530 = vunpack.c.h.b16 %v5238
        %v6531 = vunpack.c.l.b16 %v5239
        %v6532 = vunpack.c.h.b16 %v5239
        %v6533 = vunpack.c.l.b16 %v5240
        %v6534 = vunpack.c.h.b16 %v5240
        %v6535 = vunpack.c.l.b16 %v5241
        %v6536 = vunpack.c.h.b16 %v5241
        %v6537 = vunpack.c.l.b16 %v5242
        %v6538 = vunpack.c.h.b16 %v5242
        %v6539 = vunpack.c.l.b16 %v5243
        %v6540 = vunpack.c.h.b16 %v5243
        %v6541 = vunpack.c.l.b16 %v5244
        %v6542 = vunpack.c.h.b16 %v5244
        %v6543 = vunpack.c.l.b16 %v5245
        %v6544 = vunpack.c.h.b16 %v5245
        %v6545 = vunpack.c.l.b16 %v5246
        %v6546 = vunpack.c.h.b16 %v5246
        %v6547 = vunpack.c.l.b16 %v5247
        %v6548 = vunpack.c.h.b16 %v5247
        %v6549 = vunpack.c.l.b16 %v5248
        %v6550 = vunpack.c.h.b16 %v5248
        %v6551 = vunpack.c.l.b16 %v5249
        %v6552 = vunpack.c.h.b16 %v5249
        %v6553 = vunpack.c.l.b16 %v5250
        %v6554 = vunpack.c.h.b16 %v5250
        %v6555 = vunpack.c.l.b16 %v5251
        %v6556 = vunpack.c.h.b16 %v5251
        %v6557 = vunpack.c.l.b16 %v5252
        %v6558 = vunpack.c.h.b16 %v5252
        %v6559 = vunpack.c.l.b16 %v5253
        %v6560 = vunpack.c.h.b16 %v5253
        %v6561 = vunpack.c.l.b16 %v5254
        %v6562 = vunpack.c.h.b16 %v5254
        %v6563 = vunpack.c.l.b16 %v5255
        %v6564 = vunpack.c.h.b16 %v5255
        %v6565 = vunpack.c.l.b16 %v5256
        %v6566 = vunpack.c.h.b16 %v5256
        %v6567 = vunpack.c.l.b16 %v5257
        %v6568 = vunpack.c.h.b16 %v5257
        %v6569 = vunpack.c.l.b16 %v5258
        %v6570 = vunpack.c.h.b16 %v5258
        %v6571 = vunpack.c.l.b16 %v5259
        %v6572 = vunpack.c.h.b16 %v5259
        %v6573 = vunpack.c.l.b16 %v5260
        %v6574 = vunpack.c.h.b16 %v5260
        %v6575 = vunpack.c.l.b16 %v5261
        %v6576 = vunpack.c.h.b16 %v5261
        %v6577 = vunpack.c.l.b16 %v5262
        %v6578 = vunpack.c.h.b16 %v5262
        %v6579 = vunpack.c.l.b16 %v5263
        %v6580 = vunpack.c.h.b16 %v5263
        %v6581 = vunpack.c.l.b16 %v5264
        %v6582 = vunpack.c.h.b16 %v5264
        %v6583 = vunpack.c.l.b16 %v5265
        %v6584 = vunpack.c.h.b16 %v5265
        %v6585 = vunpack.c.l.b16 %v5266
        %v6586 = vunpack.c.h.b16 %v5266
        %v6587 = vunpack.c.l.b16 %v5267
        %v6588 = vunpack.c.h.b16 %v5267
        %v6589 = vunpack.c.l.b16 %v5268
        %v6590 = vunpack.c.h.b16 %v5268
        %v6591 = vunpack.c.l.b16 %v5269
        %v6592 = vunpack.c.h.b16 %v5269
        %v6593 = vunpack.c.l.b16 %v5270
        %v6594 = vunpack.c.h.b16 %v5270
        %v6595 = vunpack.c.l.b16 %v5271
        %v6596 = vunpack.c.h.b16 %v5271
        %v6597 = vunpack.c.l.b16 %v5272
        %v6598 = vunpack.c.h.b16 %v5272
        %v6599 = vunpack.c.l.b16 %v5273
        %v6600 = vunpack.c.h.b16 %v5273
        %v6601 = vunpack.c.l.b16 %v5274
        %v6602 = vunpack.c.h.b16 %v5274
        %v6603 = vunpack.c.l.b16 %v5275
        %v6604 = vunpack.c.h.b16 %v5275
        %v6605 = vunpack.c.l.b16 %v5276
        %v6606 = vunpack.c.h.b16 %v5276
        %v6607 = vunpack.c.l.b16 %v5277
        %v6608 = vunpack.c.h.b16 %v5277
        %v6609 = vunpack.c.l.b16 %v5278
        %v6610 = vunpack.c.h.b16 %v5278
        %v6611 = vunpack.c.l.b16 %v5279
        %v6612 = vunpack.c.h.b16 %v5279
        %v6613 = vunpack.c.l.b16 %v5280
        %v6614 = vunpack.c.h.b16 %v5280
        %v6615 = vunpack.c.l.b16 %v5281
        %v6616 = vunpack.c.h.b16 %v5281
        %v6617 = vunpack.c.l.b16 %v5282
        %v6618 = vunpack.c.h.b16 %v5282
        %v6619 = vunpack.c.l.b16 %v5283
        %v6620 = vunpack.c.h.b16 %v5283
        %v6621 = vunpack.c.l.b16 %v5284
        %v6622 = vunpack.c.h.b16 %v5284
        %v6623 = vunpack.c.l.b16 %v5285
        %v6624 = vunpack.c.h.b16 %v5285
        %v6625 = vunpack.c.l.b16 %v5286
        %v6626 = vunpack.c.h.b16 %v5286
        %v6627 = vunpack.c.l.b16 %v5287
        %v6628 = vunpack.c.h.b16 %v5287
        %v6629 = vunpack.c.l.b16 %v5288
        %v6630 = vunpack.c.h.b16 %v5288
        %v6631 = vunpack.c.l.b16 %v5289
        %v6632 = vunpack.c.h.b16 %v5289
        %v6633 = vunpack.c.l.b16 %v5290
        %v6634 = vunpack.c.h.b16 %v5290
        %v6635 = vunpack.c.l.b16 %v5291
        %v6636 = vunpack.c.h.b16 %v5291
        %v6637 = vunpack.c.l.b16 %v5292
        %v6638 = vunpack.c.h.b16 %v5292
        %v6639 = vunpack.c.l.b16 %v5293
        %v6640 = vunpack.c.h.b16 %v5293
        %v6641 = vunpack.c.l.b16 %v5294
        %v6642 = vunpack.c.h.b16 %v5294
        %v6643 = vunpack.c.l.b16 %v5295
        %v6644 = vunpack.c.h.b16 %v5295
        %v6645 = vunpack.c.l.b16 %v5296
        %v6646 = vunpack.c.h.b16 %v5296
        %v6647 = vunpack.c.l.b16 %v5297
        %v6648 = vunpack.c.h.b16 %v5297
        %v6649 = vunpack.c.l.b16 %v5298
        %v6650 = vunpack.c.h.b16 %v5298
        %v6651 = vunpack.c.l.b16 %v5299
        %v6652 = vunpack.c.h.b16 %v5299
        %v6653 = vunpack.c.l.b16 %v5300
        %v6654 = vunpack.c.h.b16 %v5300
        %v6655 = vunpack.c.l.b16 %v5301
        %v6656 = vunpack.c.h.b16 %v5301
        %v6657 = vunpack.c.l.b16 %v5302
        %v6658 = vunpack.c.h.b16 %v5302
        %v6659 = vunpack.c.l.b16 %v5303
        %v6660 = vunpack.c.h.b16 %v5303
        %v6661 = vunpack.c.l.b16 %v5304
        %v6662 = vunpack.c.h.b16 %v5304
        %v6663 = vunpack.c.l.b16 %v5305
        %v6664 = vunpack.c.h.b16 %v5305
        %v6665 = vunpack.c.l.b16 %v5306
        %v6666 = vunpack.c.h.b16 %v5306
        %v6667 = vunpack.c.l.b16 %v5307
        %v6668 = vunpack.c.h.b16 %v5307
        %v6669 = vunpack.c.l.b16 %v5308
        %v6670 = vunpack.c.h.b16 %v5308
        %v6671 = vunpack.c.l.b16 %v5309
        %v6672 = vunpack.c.h.b16 %v5309
        %v6673 = vunpack.c.l.b16 %v5310
        %v6674 = vunpack.c.h.b16 %v5310
        %v6675 = vunpack.c.l.b16 %v5311
        %v6676 = vunpack.c.h.b16 %v5311
        %v6677 = vunpack.c.l.b16 %v5312
        %v6678 = vunpack.c.h.b16 %v5312
        %v6679 = vunpack.c.l.b16 %v5313
        %v6680 = vunpack.c.h.b16 %v5313
        %v6681 = vunpack.c.l.b16 %v5314
        %v6682 = vunpack.c.h.b16 %v5314
        %v6683 = vunpack.c.l.b16 %v5315
        %v6684 = vunpack.c.h.b16 %v5315
        %v6685 = vunpack.c.l.b16 %v5316
        %v6686 = vunpack.c.h.b16 %v5316
        %v6687 = vunpack.c.l.b16 %v5317
        %v6688 = vunpack.c.h.b16 %v5317
        %v6689 = vunpack.c.l.b16 %v5318
        %v6690 = vunpack.c.h.b16 %v5318
        %v6691 = vunpack.c.l.b16 %v5319
        %v6692 = vunpack.c.h.b16 %v5319
        %v6693 = vunpack.c.l.b16 %v5320
        %v6694 = vunpack.c.h.b16 %v5320
        %v6695 = vunpack.c.l.b16 %v5321
        %v6696 = vunpack.c.h.b16 %v5321
        %v6697 = vunpack.c.l.b16 %v5322
        %v6698 = vunpack.c.h.b16 %v5322
        %v6699 = vunpack.c.l.b16 %v5323
        %v6700 = vunpack.c.h.b16 %v5323
        %v6701 = vunpack.c.l.b16 %v5324
        %v6702 = vunpack.c.h.b16 %v5324
        %v6703 = vunpack.c.l.b16 %v5325
        %v6704 = vunpack.c.h.b16 %v5325
        %v6705 = vunpack.c.l.b16 %v5326
        %v6706 = vunpack.c.h.b16 %v5326
        %v6707 = vunpack.c.l.b16 %v5327
        %v6708 = vunpack.c.h.b16 %v5327
        %v6709 = vunpack.c.l.b16 %v5328
        %v6710 = vunpack.c.h.b16 %v5328
        %v6711 = vunpack.c.l.b16 %v5329
        %v6712 = vunpack.c.h.b16 %v5329
        %v6713 = vunpack.c.l.b16 %v5330
        %v6714 = vunpack.c.h.b16 %v5330
        %v6715 = vunpack.c.l.b16 %v5331
        %v6716 = vunpack.c.h.b16 %v5331
        %v6717 = vunpack.c.l.b16 %v5332
        %v6718 = vunpack.c.h.b16 %v5332
        %v6719 = vunpack.c.l.b16 %v5333
        %v6720 = vunpack.c.h.b16 %v5333
        %v6721 = vunpack.c.l.b16 %v5334
        %v6722 = vunpack.c.h.b16 %v5334
        %v6723 = vunpack.c.l.b16 %v5335
        %v6724 = vunpack.c.h.b16 %v5335
        %v6725 = vunpack.c.l.b16 %v5336
        %v6726 = vunpack.c.h.b16 %v5336
        %v6727 = vunpack.c.l.b16 %v5337
        %v6728 = vunpack.c.h.b16 %v5337
        %v6729 = vunpack.c.l.b16 %v5338
        %v6730 = vunpack.c.h.b16 %v5338
        %v6731 = vunpack.c.l.b16 %v5339
        %v6732 = vunpack.c.h.b16 %v5339
        %v6733 = vunpack.c.l.b16 %v5340
        %v6734 = vunpack.c.h.b16 %v5340
        %v6735 = vunpack.c.l.b16 %v5341
        %v6736 = vunpack.c.h.b16 %v5341
        %v6737 = vunpack.c.l.b16 %v5342
        %v6738 = vunpack.c.h.b16 %v5342
        %v6739 = vunpack.c.l.b16 %v5343
        %v6740 = vunpack.c.h.b16 %v5343
        %v6741 = vunpack.c.l.b16 %v5344
        %v6742 = vunpack.c.h.b16 %v5344
        %v6743 = vunpack.c.l.b16 %v5345
        %v6744 = vunpack.c.h.b16 %v5345
        %v6745 = vunpack.c.l.b16 %v5346
        %v6746 = vunpack.c.h.b16 %v5346
        %v6747 = vunpack.c.l.b16 %v5347
        %v6748 = vunpack.c.h.b16 %v5347
        %v6749 = vunpack.c.l.b16 %v5348
        %v6750 = vunpack.c.h.b16 %v5348
        %v6751 = vunpack.c.l.b16 %v5349
        %v6752 = vunpack.c.h.b16 %v5349
        %v6753 = vunpack.c.l.b16 %v5350
        %v6754 = vunpack.c.h.b16 %v5350
        %v6755 = vunpack.c.l.b16 %v5351
        %v6756 = vunpack.c.h.b16 %v5351
        %v6757 = vunpack.c.l.b16 %v5352
        %v6758 = vunpack.c.h.b16 %v5352
        %v6759 = vunpack.c.l.b16 %v5353
        %v6760 = vunpack.c.h.b16 %v5353
        %v6761 = vunpack.c.l.b16 %v5354
        %v6762 = vunpack.c.h.b16 %v5354
        %v6763 = vunpack.c.l.b16 %v5355
        %v6764 = vunpack.c.h.b16 %v5355
        %v6765 = vunpack.c.l.b16 %v5356
        %v6766 = vunpack.c.h.b16 %v5356
        %v6767 = vunpack.c.l.b16 %v5357
        %v6768 = vunpack.c.h.b16 %v5357
        %v6769 = vunpack.c.l.b16 %v5358
        %v6770 = vunpack.c.h.b16 %v5358
        %v6771 = vunpack.c.l.b16 %v5359
        %v6772 = vunpack.c.h.b16 %v5359
        %v6773 = vunpack.c.l.b16 %v5360
        %v6774 = vunpack.c.h.b16 %v5360
        %v6775 = vunpack.c.l.b16 %v5361
        %v6776 = vunpack.c.h.b16 %v5361
        %v6777 = vunpack.c.l.b16 %v5362
        %v6778 = vunpack.c.h.b16 %v5362
        %v6779 = vunpack.c.l.b16 %v5363
        %v6780 = vunpack.c.h.b16 %v5363
        %v6781 = vunpack.c.l.b16 %v5364
        %v6782 = vunpack.c.h.b16 %v5364
        %v6783 = vunpack.c.l.b16 %v5365
        %v6784 = vunpack.c.h.b16 %v5365
        %v6785 = vunpack.c.l.b16 %v5366
        %v6786 = vunpack.c.h.b16 %v5366
        %v6787 = vunpack.c.l.b16 %v5367
        %v6788 = vunpack.c.h.b16 %v5367
        %v6789 = vunpack.c.l.b16 %v5368
        %v6790 = vunpack.c.h.b16 %v5368
        %v6791 = vunpack.c.l.b16 %v5369
        %v6792 = vunpack.c.h.b16 %v5369
        %v6793 = vunpack.c.l.b16 %v5370
        %v6794 = vunpack.c.h.b16 %v5370
        %v6795 = vunpack.c.l.b16 %v5371
        %v6796 = vunpack.c.h.b16 %v5371
        %v6797 = vunpack.c.l.b16 %v5372
        %v6798 = vunpack.c.h.b16 %v5372
        %v6799 = vunpack.c.l.b16 %v5373
        %v6800 = vunpack.c.h.b16 %v5373
        %v6801 = vunpack.c.l.b16 %v5374
        %v6802 = vunpack.c.h.b16 %v5374
        %v6803 = vunpack.c.l.b16 %v5375
        %v6804 = vunpack.c.h.b16 %v5375
        %v6805 = vunpack.c.l.b16 %v5376
        %v6806 = vunpack.c.h.b16 %v5376
        %v6807 = vunpack.c.l.b16 %v5377
        %v6808 = vunpack.c.h.b16 %v5377
        %v6809 = vunpack.c.l.b16 %v5378
        %v6810 = vunpack.c.h.b16 %v5378
        %v6811 = vunpack.c.l.b16 %v5379
        %v6812 = vunpack.c.h.b16 %v5379
        %v6813 = vunpack.c.l.b16 %v5380
        %v6814 = vunpack.c.h.b16 %v5380
        %v6815 = vunpack.c.l.b16 %v5381
        %v6816 = vunpack.c.h.b16 %v5381
        %v6817 = vunpack.c.l.b16 %v5382
        %v6818 = vunpack.c.h.b16 %v5382
        %v6819 = vunpack.c.l.b16 %v5383
        %v6820 = vunpack.c.h.b16 %v5383
        %v6821 = vunpack.c.l.b16 %v5384
        %v6822 = vunpack.c.h.b16 %v5384
        %v6823 = vunpack.c.l.b16 %v5385
        %v6824 = vunpack.c.h.b16 %v5385
        %v6825 = vunpack.c.l.b16 %v5386
        %v6826 = vunpack.c.h.b16 %v5386
        %v6827 = vunpack.c.l.b16 %v5387
        %v6828 = vunpack.c.h.b16 %v5387
        %v6829 = vunpack.c.l.b16 %v5388
        %v6830 = vunpack.c.h.b16 %v5388
        %v6831 = vunpack.c.l.b16 %v5389
        %v6832 = vunpack.c.h.b16 %v5389
        %v6833 = vunpack.c.l.b16 %v5390
        %v6834 = vunpack.c.h.b16 %v5390
        %v6835 = vunpack.c.l.b16 %v5391
        %v6836 = vunpack.c.h.b16 %v5391
        %v6837 = vunpack.c.l.b16 %v5392
        %v6838 = vunpack.c.h.b16 %v5392
        %v6839 = vunpack.c.l.b16 %v5393
        %v6840 = vunpack.c.h.b16 %v5393
        %v6841 = vunpack.c.l.b16 %v5394
        %v6842 = vunpack.c.h.b16 %v5394
        %v6843 = vunpack.c.l.b16 %v5395
        %v6844 = vunpack.c.h.b16 %v5395
        %v6845 = vunpack.c.l.b16 %v5396
        %v6846 = vunpack.c.h.b16 %v5396
        %v6847 = vunpack.c.l.b16 %v5397
        %v6848 = vunpack.c.h.b16 %v5397
        %v6849 = vunpack.c.l.b16 %v5398
        %v6850 = vunpack.c.h.b16 %v5398
        %v6851 = vunpack.c.l.b16 %v5399
        %v6852 = vunpack.c.h.b16 %v5399
        %v6853 = vunpack.c.l.b16 %v5400
        %v6854 = vunpack.c.h.b16 %v5400
        %v6855 = vunpack.c.l.b16 %v5401
        %v6856 = vunpack.c.h.b16 %v5401
        %v6857 = vunpack.c.l.b16 %v5402
        %v6858 = vunpack.c.h.b16 %v5402
        %v6859 = vunpack.c.l.b16 %v5403
        %v6860 = vunpack.c.h.b16 %v5403
        %v6861 = vunpack.c.l.b16 %v5404
        %v6862 = vunpack.c.h.b16 %v5404
        %v6863 = vunpack.c.l.b16 %v5405
        %v6864 = vunpack.c.h.b16 %v5405
        %v6865 = vunpack.c.l.b16 %v5406
        %v6866 = vunpack.c.h.b16 %v5406
        %v6867 = vunpack.c.l.b16 %v5407
        %v6868 = vunpack.c.h.b16 %v5407
        %v6869 = vunpack.c.l.b16 %v5408
        %v6870 = vunpack.c.h.b16 %v5408
        %v6871 = vunpack.c.l.b16 %v5409
        %v6872 = vunpack.c.h.b16 %v5409
        %v6873 = vunpack.c.l.b16 %v5410
        %v6874 = vunpack.c.h.b16 %v5410
        %v6875 = vunpack.c.l.b16 %v5411
        %v6876 = vunpack.c.h.b16 %v5411
        %v6877 = vunpack.c.l.b16 %v5412
        %v6878 = vunpack.c.h.b16 %v5412
        %v6879 = vunpack.c.l.b16 %v5413
        %v6880 = vunpack.c.h.b16 %v5413
        %v6881 = vunpack.c.l.b16 %v5414
        %v6882 = vunpack.c.h.b16 %v5414
        %v6883 = vunpack.c.l.b16 %v5415
        %v6884 = vunpack.c.h.b16 %v5415
        %v6885 = vunpack.c.l.b16 %v5416
        %v6886 = vunpack.c.h.b16 %v5416
        %v6887 = vunpack.c.l.b16 %v5417
        %v6888 = vunpack.c.h.b16 %v5417
        %v6889 = vunpack.c.l.b16 %v5418
        %v6890 = vunpack.c.h.b16 %v5418
        %v6891 = vunpack.c.l.b16 %v5419
        %v6892 = vunpack.c.h.b16 %v5419
        %v6893 = vunpack.c.l.b16 %v5420
        %v6894 = vunpack.c.h.b16 %v5420
        %v6895 = vunpack.c.l.b16 %v5421
        %v6896 = vunpack.c.h.b16 %v5421
        %v6897 = vunpack.c.l.b16 %v5422
        %v6898 = vunpack.c.h.b16 %v5422
        %v6899 = vunpack.c.l.b16 %v5423
        %v6900 = vunpack.c.h.b16 %v5423
        %v6901 = vunpack.c.l.b16 %v5424
        %v6902 = vunpack.c.h.b16 %v5424
        %v6903 = vunpack.c.l.b16 %v5425
        %v6904 = vunpack.c.h.b16 %v5425
        %v6905 = vunpack.c.l.b16 %v5426
        %v6906 = vunpack.c.h.b16 %v5426
        %v6907 = vunpack.c.l.b16 %v5427
        %v6908 = vunpack.c.h.b16 %v5427
        %v6909 = vunpack.c.l.b16 %v5428
        %v6910 = vunpack.c.h.b16 %v5428
        %v6911 = vunpack.c.l.b16 %v5429
        %v6912 = vunpack.c.h.b16 %v5429
        %v6913 = vunpack.c.l.b16 %v5430
        %v6914 = vunpack.c.h.b16 %v5430
        %v6915 = vunpack.c.l.b16 %v5431
        %v6916 = vunpack.c.h.b16 %v5431
        %v6917 = vunpack.c.l.b16 %v5432
        %v6918 = vunpack.c.h.b16 %v5432
        %v6919 = vunpack.c.l.b16 %v5433
        %v6920 = vunpack.c.h.b16 %v5433
        %v6921 = vunpack.c.l.b16 %v5434
        %v6922 = vunpack.c.h.b16 %v5434
        %v6923 = vunpack.c.l.b16 %v5435
        %v6924 = vunpack.c.h.b16 %v5435
        %v6925 = vunpack.c.l.b16 %v5436
        %v6926 = vunpack.c.h.b16 %v5436
        %v6927 = vunpack.c.l.b16 %v5437
        %v6928 = vunpack.c.h.b16 %v5437
        %v6929 = vunpack.c.l.b16 %v5438
        %v6930 = vunpack.c.h.b16 %v5438
        %v6931 = vunpack.c.l.b16 %v5439
        %v6932 = vunpack.c.h.b16 %v5439
        %v6933 = vunpack.c.l.b16 %v5440
        %v6934 = vunpack.c.h.b16 %v5440
        %v6935 = vunpack.c.l.b16 %v5441
        %v6936 = vunpack.c.h.b16 %v5441
        %v6937 = vunpack.c.l.b16 %v5442
        %v6938 = vunpack.c.h.b16 %v5442
        %v6939 = vunpack.c.l.b16 %v5443
        %v6940 = vunpack.c.h.b16 %v5443
        %v6941 = vunpack.c.l.b16 %v5444
        %v6942 = vunpack.c.h.b16 %v5444
        %v6943 = vunpack.c.l.b16 %v5445
        %v6944 = vunpack.c.h.b16 %v5445
        %v6945 = vunpack.c.l.b16 %v5446
        %v6946 = vunpack.c.h.b16 %v5446
        %v6947 = vunpack.c.l.b16 %v5447
        %v6948 = vunpack.c.h.b16 %v5447
        %v6949 = vunpack.c.l.b16 %v5448
        %v6950 = vunpack.c.h.b16 %v5448
        %v6951 = vunpack.c.l.b16 %v5449
        %v6952 = vunpack.c.h.b16 %v5449
        %v6953 = vunpack.c.l.b16 %v5450
        %v6954 = vunpack.c.h.b16 %v5450
        %v6955 = vunpack.c.l.b16 %v5451
        %v6956 = vunpack.c.h.b16 %v5451
        %v6957 = vunpack.c.l.b16 %v5452
        %v6958 = vunpack.c.h.b16 %v5452
        %v6959 = vunpack.c.l.b16 %v5453
        %v6960 = vunpack.c.h.b16 %v5453
        %v6961 = vunpack.c.l.b16 %v5454
        %v6962 = vunpack.c.h.b16 %v5454
        %v6963 = vunpack.c.l.b16 %v5455
        %v6964 = vunpack.c.h.b16 %v5455
        %v6965 = vunpack.c.l.b16 %v5456
        %v6966 = vunpack.c.h.b16 %v5456
        %v6967 = vunpack.c.l.b16 %v5457
        %v6968 = vunpack.c.h.b16 %v5457
        %v6969 = vunpack.c.l.b16 %v5458
        %v6970 = vunpack.c.h.b16 %v5458
        %v6971 = vunpack.c.l.b16 %v5459
        %v6972 = vunpack.c.h.b16 %v5459
        %v6973 = vunpack.c.l.b16 %v5460
        %v6974 = vunpack.c.h.b16 %v5460
        %v6975 = vunpack.c.l.b16 %v5461
        %v6976 = vunpack.c.h.b16 %v5461
        %v6977 = vunpack.c.l.b16 %v5462
        %v6978 = vunpack.c.h.b16 %v5462
        %v6979 = vunpack.c.l.b16 %v5463
        %v6980 = vunpack.c.h.b16 %v5463
        %v6981 = vunpack.c.l.b16 %v5464
        %v6982 = vunpack.c.h.b16 %v5464
        %v6983 = vunpack.c.l.b16 %v5465
        %v6984 = vunpack.c.h.b16 %v5465
        %v6985 = vunpack.c.l.b16 %v5466
        %v6986 = vunpack.c.h.b16 %v5466
        %v6987 = vunpack.c.l.b16 %v5467
        %v6988 = vunpack.c.h.b16 %v5467
        %v6989 = vunpack.c.l.b16 %v5468
        %v6990 = vunpack.c.h.b16 %v5468
        %v6991 = vunpack.c.l.b16 %v5469
        %v6992 = vunpack.c.h.b16 %v5469
        %v6993 = vunpack.c.l.b16 %v5470
        %v6994 = vunpack.c.h.b16 %v5470
        %v6995 = vunpack.c.l.b16 %v5471
        %v6996 = vunpack.c.h.b16 %v5471
        %v6997 = vunpack.c.l.b16 %v5472
        %v6998 = vunpack.c.h.b16 %v5472
        %v6999 = vunpack.c.l.b16 %v5473
        %v7000 = vunpack.c.h.b16 %v5473
        %v7001 = vunpack.c.l.b16 %v5474
        %v7002 = vunpack.c.h.b16 %v5474
        %v7003 = vunpack.c.l.b16 %v5475
        %v7004 = vunpack.c.h.b16 %v5475
        %v7005 = vunpack.c.l.b16 %v5476
        %v7006 = vunpack.c.h.b16 %v5476
        %v7007 = vunpack.c.l.b16 %v5477
        %v7008 = vunpack.c.h.b16 %v5477
        %v7009 = vunpack.c.l.b16 %v5478
        %v7010 = vunpack.c.h.b16 %v5478
        %v7011 = vunpack.c.l.b16 %v5479
        %v7012 = vunpack.c.h.b16 %v5479
        %v7013 = vunpack.c.l.b16 %v5480
        %v7014 = vunpack.c.h.b16 %v5480
        %v7015 = vunpack.c.l.b16 %v5481
        %v7016 = vunpack.c.h.b16 %v5481
        %v7017 = vunpack.c.l.b16 %v5482
        %v7018 = vunpack.c.h.b16 %v5482
        %v7019 = vunpack.c.l.b16 %v5483
        %v7020 = vunpack.c.h.b16 %v5483
        %v7021 = vunpack.c.l.b16 %v5484
        %v7022 = vunpack.c.h.b16 %v5484
        %v7023 = vunpack.c.l.b16 %v5485
        %v7024 = vunpack.c.h.b16 %v5485
        %v7025 = vunpack.c.l.b16 %v5486
        %v7026 = vunpack.c.h.b16 %v5486
        %v7027 = vunpack.c.l.b16 %v5487
        %v7028 = vunpack.c.h.b16 %v5487
        %v7029 = vunpack.c.l.b16 %v5488
        %v7030 = vunpack.c.h.b16 %v5488
        %v7031 = vunpack.c.l.b16 %v5489
        %v7032 = vunpack.c.h.b16 %v5489
        %v7033 = vunpack.c.l.b16 %v5490
        %v7034 = vunpack.c.h.b16 %v5490
        %v7035 = vunpack.c.l.b16 %v5491
        %v7036 = vunpack.c.h.b16 %v5491
        %v7037 = vunpack.c.l.b16 %v5492
        %v7038 = vunpack.c.h.b16 %v5492
        %v7039 = vpack.c.b16 %v6031, %v6015
        %v7040 = vpack.c.b16 %v6032, %v6016
        %v7041 = vpack.c.b16 %v6033, %v6017
        %v7042 = vpack.c.b16 %v6034, %v6018
        %v7043 = vpack.c.b16 %v6035, %v6019
        %v7044 = vpack.c.b16 %v6036, %v6020
        %v7045 = vpack.c.b16 %v6037, %v6021
        %v7046 = vpack.c.b16 %v6038, %v6022
        %v7047 = vpack.c.b16 %v6039, %v6023
        %v7048 = vpack.c.b16 %v6040, %v6024
        %v7049 = vpack.c.b16 %v6041, %v6025
        %v7050 = vpack.c.b16 %v6042, %v6026
        %v7051 = vpack.c.b16 %v6043, %v6027
        %v7052 = vpack.c.b16 %v6044, %v6028
        %v7053 = vpack.c.b16 %v6045, %v6029
        %v7054 = vpack.c.b16 %v6046, %v6030
        %v7055 = vpack.c.b16 %v6063, %v6047
        %v7056 = vpack.c.b16 %v6064, %v6048
        %v7057 = vpack.c.b16 %v6065, %v6049
        %v7058 = vpack.c.b16 %v6066, %v6050
        %v7059 = vpack.c.b16 %v6067, %v6051
        %v7060 = vpack.c.b16 %v6068, %v6052
        %v7061 = vpack.c.b16 %v6069, %v6053
        %v7062 = vpack.c.b16 %v6070, %v6054
        %v7063 = vpack.c.b16 %v6071, %v6055
        %v7064 = vpack.c.b16 %v6072, %v6056
        %v7065 = vpack.c.b16 %v6073, %v6057
        %v7066 = vpack.c.b16 %v6074, %v6058
        %v7067 = vpack.c.b16 %v6075, %v6059
        %v7068 = vpack.c.b16 %v6076, %v6060
        %v7069 = vpack.c.b16 %v6077, %v6061
        %v7070 = vpack.c.b16 %v6078, %v6062
        %v7071 = vpack.c.b16 %v6095, %v6079
        %v7072 = vpack.c.b16 %v6096, %v6080
        %v7073 = vpack.c.b16 %v6097, %v6081
        %v7074 = vpack.c.b16 %v6098, %v6082
        %v7075 = vpack.c.b16 %v6099, %v6083
        %v7076 = vpack.c.b16 %v6100, %v6084
        %v7077 = vpack.c.b16 %v6101, %v6085
        %v7078 = vpack.c.b16 %v6102, %v6086
        %v7079 = vpack.c.b16 %v6103, %v6087
        %v7080 = vpack.c.b16 %v6104, %v6088
        %v7081 = vpack.c.b16 %v6105, %v6089
        %v7082 = vpack.c.b16 %v6106, %v6090
        %v7083 = vpack.c.b16 %v6107, %v6091
        %v7084 = vpack.c.b16 %v6108, %v6092
        %v7085 = vpack.c.b16 %v6109, %v6093
        %v7086 = vpack.c.b16 %v6110, %v6094
        %v7087 = vpack.c.b16 %v6127, %v6111
        %v7088 = vpack.c.b16 %v6128, %v6112
        %v7089 = vpack.c.b16 %v6129, %v6113
        %v7090 = vpack.c.b16 %v6130, %v6114
        %v7091 = vpack.c.b16 %v6131, %v6115
        %v7092 = vpack.c.b16 %v6132, %v6116
        %v7093 = vpack.c.b16 %v6133, %v6117
        %v7094 = vpack.c.b16 %v6134, %v6118
        %v7095 = vpack.c.b16 %v6135, %v6119
        %v7096 = vpack.c.b16 %v6136, %v6120
        %v7097 = vpack.c.b16 %v6137, %v6121
        %v7098 = vpack.c.b16 %v6138, %v6122
        %v7099 = vpack.c.b16 %v6139, %v6123
        %v7100 = vpack.c.b16 %v6140, %v6124
        %v7101 = vpack.c.b16 %v6141, %v6125
        %v7102 = vpack.c.b16 %v6142, %v6126
        %v7103 = vpack.c.b16 %v6159, %v6143
        %v7104 = vpack.c.b16 %v6160, %v6144
        %v7105 = vpack.c.b16 %v6161, %v6145
        %v7106 = vpack.c.b16 %v6162, %v6146
        %v7107 = vpack.c.b16 %v6163, %v6147
        %v7108 = vpack.c.b16 %v6164, %v6148
        %v7109 = vpack.c.b16 %v6165, %v6149
        %v7110 = vpack.c.b16 %v6166, %v6150
        %v7111 = vpack.c.b16 %v6167, %v6151
        %v7112 = vpack.c.b16 %v6168, %v6152
        %v7113 = vpack.c.b16 %v6169, %v6153
        %v7114 = vpack.c.b16 %v6170, %v6154
        %v7115 = vpack.c.b16 %v6171, %v6155
        %v7116 = vpack.c.b16 %v6172, %v6156
        %v7117 = vpack.c.b16 %v6173, %v6157
        %v7118 = vpack.c.b16 %v6174, %v6158
        %v7119 = vpack.c.b16 %v6191, %v6175
        %v7120 = vpack.c.b16 %v6192, %v6176
        %v7121 = vpack.c.b16 %v6193, %v6177
        %v7122 = vpack.c.b16 %v6194, %v6178
        %v7123 = vpack.c.b16 %v6195, %v6179
        %v7124 = vpack.c.b16 %v6196, %v6180
        %v7125 = vpack.c.b16 %v6197, %v6181
        %v7126 = vpack.c.b16 %v6198, %v6182
        %v7127 = vpack.c.b16 %v6199, %v6183
        %v7128 = vpack.c.b16 %v6200, %v6184
        %v7129 = vpack.c.b16 %v6201, %v6185
        %v7130 = vpack.c.b16 %v6202, %v6186
        %v7131 = vpack.c.b16 %v6203, %v6187
        %v7132 = vpack.c.b16 %v6204, %v6188
        %v7133 = vpack.c.b16 %v6205, %v6189
        %v7134 = vpack.c.b16 %v6206, %v6190
        %v7135 = vpack.c.b16 %v6223, %v6207
        %v7136 = vpack.c.b16 %v6224, %v6208
        %v7137 = vpack.c.b16 %v6225, %v6209
        %v7138 = vpack.c.b16 %v6226, %v6210
        %v7139 = vpack.c.b16 %v6227, %v6211
        %v7140 = vpack.c.b16 %v6228, %v6212
        %v7141 = vpack.c.b16 %v6229, %v6213
        %v7142 = vpack.c.b16 %v6230, %v6214
        %v7143 = vpack.c.b16 %v6231, %v6215
        %v7144 = vpack.c.b16 %v6232, %v6216
        %v7145 = vpack.c.b16 %v6233, %v6217
        %v7146 = vpack.c.b16 %v6234, %v6218
        %v7147 = vpack.c.b16 %v6235, %v6219
        %v7148 = vpack.c.b16 %v6236, %v6220
        %v7149 = vpack.c.b16 %v6237, %v6221
        %v7150 = vpack.c.b16 %v6238, %v6222
        %v7151 = vpack.c.b16 %v6255, %v6239
        %v7152 = vpack.c.b16 %v6256, %v6240
        %v7153 = vpack.c.b16 %v6257, %v6241
        %v7154 = vpack.c.b16 %v6258, %v6242
        %v7155 = vpack.c.b16 %v6259, %v6243
        %v7156 = vpack.c.b16 %v6260, %v6244
        %v7157 = vpack.c.b16 %v6261, %v6245
        %v7158 = vpack.c.b16 %v6262, %v6246
        %v7159 = vpack.c.b16 %v6263, %v6247
        %v7160 = vpack.c.b16 %v6264, %v6248
        %v7161 = vpack.c.b16 %v6265, %v6249
        %v7162 = vpack.c.b16 %v6266, %v6250
        %v7163 = vpack.c.b16 %v6267, %v6251
        %v7164 = vpack.c.b16 %v6268, %v6252
        %v7165 = vpack.c.b16 %v6269, %v6253
        %v7166 = vpack.c.b16 %v6270, %v6254
        %v7167 = vpack.c.b16 %v6287, %v6271
        %v7168 = vpack.c.b16 %v6288, %v6272
        %v7169 = vpack.c.b16 %v6289, %v6273
        %v7170 = vpack.c.b16 %v6290, %v6274
        %v7171 = vpack.c.b16 %v6291, %v6275
        %v7172 = vpack.c.b16 %v6292, %v6276
        %v7173 = vpack.c.b16 %v6293, %v6277
        %v7174 = vpack.c.b16 %v6294, %v6278
        %v7175 = vpack.c.b16 %v6295, %v6279
        %v7176 = vpack.c.b16 %v6296, %v6280
        %v7177 = vpack.c.b16 %v6297, %v6281
        %v7178 = vpack.c.b16 %v6298, %v6282
        %v7179 = vpack.c.b16 %v6299, %v6283
        %v7180 = vpack.c.b16 %v6300, %v6284
        %v7181 = vpack.c.b16 %v6301, %v6285
        %v7182 = vpack.c.b16 %v6302, %v6286
        %v7183 = vpack.c.b16 %v6319, %v6303
        %v7184 = vpack.c.b16 %v6320, %v6304
        %v7185 = vpack.c.b16 %v6321, %v6305
        %v7186 = vpack.c.b16 %v6322, %v6306
        %v7187 = vpack.c.b16 %v6323, %v6307
        %v7188 = vpack.c.b16 %v6324, %v6308
        %v7189 = vpack.c.b16 %v6325, %v6309
        %v7190 = vpack.c.b16 %v6326, %v6310
        %v7191 = vpack.c.b16 %v6327, %v6311
        %v7192 = vpack.c.b16 %v6328, %v6312
        %v7193 = vpack.c.b16 %v6329, %v6313
        %v7194 = vpack.c.b16 %v6330, %v6314
        %v7195 = vpack.c.b16 %v6331, %v6315
        %v7196 = vpack.c.b16 %v6332, %v6316
        %v7197 = vpack.c.b16 %v6333, %v6317
        %v7198 = vpack.c.b16 %v6334, %v6318
        %v7199 = vpack.c.b16 %v6351, %v6335
        %v7200 = vpack.c.b16 %v6352, %v6336
        %v7201 = vpack.c.b16 %v6353, %v6337
        %v7202 = vpack.c.b16 %v6354, %v6338
        %v7203 = vpack.c.b16 %v6355, %v6339
        %v7204 = vpack.c.b16 %v6356, %v6340
        %v7205 = vpack.c.b16 %v6357, %v6341
        %v7206 = vpack.c.b16 %v6358, %v6342
        %v7207 = vpack.c.b16 %v6359, %v6343
        %v7208 = vpack.c.b16 %v6360, %v6344
        %v7209 = vpack.c.b16 %v6361, %v6345
        %v7210 = vpack.c.b16 %v6362, %v6346
        %v7211 = vpack.c.b16 %v6363, %v6347
        %v7212 = vpack.c.b16 %v6364, %v6348
        %v7213 = vpack.c.b16 %v6365, %v6349
        %v7214 = vpack.c.b16 %v6366, %v6350
        %v7215 = vpack.c.b16 %v6383, %v6367
        %v7216 = vpack.c.b16 %v6384, %v6368
        %v7217 = vpack.c.b16 %v6385, %v6369
        %v7218 = vpack.c.b16 %v6386, %v6370
        %v7219 = vpack.c.b16 %v6387, %v6371
        %v7220 = vpack.c.b16 %v6388, %v6372
        %v7221 = vpack.c.b16 %v6389, %v6373
        %v7222 = vpack.c.b16 %v6390, %v6374
        %v7223 = vpack.c.b16 %v6391, %v6375
        %v7224 = vpack.c.b16 %v6392, %v6376
        %v7225 = vpack.c.b16 %v6393, %v6377
        %v7226 = vpack.c.b16 %v6394, %v6378
        %v7227 = vpack.c.b16 %v6395, %v6379
        %v7228 = vpack.c.b16 %v6396, %v6380
        %v7229 = vpack.c.b16 %v6397, %v6381
        %v7230 = vpack.c.b16 %v6398, %v6382
        %v7231 = vpack.c.b16 %v6415, %v6399
        %v7232 = vpack.c.b16 %v6416, %v6400
        %v7233 = vpack.c.b16 %v6417, %v6401
        %v7234 = vpack.c.b16 %v6418, %v6402
        %v7235 = vpack.c.b16 %v6419, %v6403
        %v7236 = vpack.c.b16 %v6420, %v6404
        %v7237 = vpack.c.b16 %v6421, %v6405
        %v7238 = vpack.c.b16 %v6422, %v6406
        %v7239 = vpack.c.b16 %v6423, %v6407
        %v7240 = vpack.c.b16 %v6424, %v6408
        %v7241 = vpack.c.b16 %v6425, %v6409
        %v7242 = vpack.c.b16 %v6426, %v6410
        %v7243 = vpack.c.b16 %v6427, %v6411
        %v7244 = vpack.c.b16 %v6428, %v6412
        %v7245 = vpack.c.b16 %v6429, %v6413
        %v7246 = vpack.c.b16 %v6430, %v6414
        %v7247 = vpack.c.b16 %v6447, %v6431
        %v7248 = vpack.c.b16 %v6448, %v6432
        %v7249 = vpack.c.b16 %v6449, %v6433
        %v7250 = vpack.c.b16 %v6450, %v6434
        %v7251 = vpack.c.b16 %v6451, %v6435
        %v7252 = vpack.c.b16 %v6452, %v6436
        %v7253 = vpack.c.b16 %v6453, %v6437
        %v7254 = vpack.c.b16 %v6454, %v6438
        %v7255 = vpack.c.b16 %v6455, %v6439
        %v7256 = vpack.c.b16 %v6456, %v6440
        %v7257 = vpack.c.b16 %v6457, %v6441
        %v7258 = vpack.c.b16 %v6458, %v6442
        %v7259 = vpack.c.b16 %v6459, %v6443
        %v7260 = vpack.c.b16 %v6460, %v6444
        %v7261 = vpack.c.b16 %v6461, %v6445
        %v7262 = vpack.c.b16 %v6462, %v6446
        %v7263 = vpack.c.b16 %v6479, %v6463
        %v7264 = vpack.c.b16 %v6480, %v6464
        %v7265 = vpack.c.b16 %v6481, %v6465
        %v7266 = vpack.c.b16 %v6482, %v6466
        %v7267 = vpack.c.b16 %v6483, %v6467
        %v7268 = vpack.c.b16 %v6484, %v6468
        %v7269 = vpack.c.b16 %v6485, %v6469
        %v7270 = vpack.c.b16 %v6486, %v6470
        %v7271 = vpack.c.b16 %v6487, %v6471
        %v7272 = vpack.c.b16 %v6488, %v6472
        %v7273 = vpack.c.b16 %v6489, %v6473
        %v7274 = vpack.c.b16 %v6490, %v6474
        %v7275 = vpack.c.b16 %v6491, %v6475
        %v7276 = vpack.c.b16 %v6492, %v6476
        %v7277 = vpack.c.b16 %v6493, %v6477
        %v7278 = vpack.c.b16 %v6494, %v6478
        %v7279 = vpack.c.b16 %v6511, %v6495
        %v7280 = vpack.c.b16 %v6512, %v6496
        %v7281 = vpack.c.b16 %v6513, %v6497
        %v7282 = vpack.c.b16 %v6514, %v6498
        %v7283 = vpack.c.b16 %v6515, %v6499
        %v7284 = vpack.c.b16 %v6516, %v6500
        %v7285 = vpack.c.b16 %v6517, %v6501
        %v7286 = vpack.c.b16 %v6518, %v6502
        %v7287 = vpack.c.b16 %v6519, %v6503
        %v7288 = vpack.c.b16 %v6520, %v6504
        %v7289 = vpack.c.b16 %v6521, %v6505
        %v7290 = vpack.c.b16 %v6522, %v6506
        %v7291 = vpack.c.b16 %v6523, %v6507
        %v7292 = vpack.c.b16 %v6524, %v6508
        %v7293 = vpack.c.b16 %v6525, %v6509
        %v7294 = vpack.c.b16 %v6526, %v6510
        %v7295 = vpack.c.b16 %v6543, %v6527
        %v7296 = vpack.c.b16 %v6544, %v6528
        %v7297 = vpack.c.b16 %v6545, %v6529
        %v7298 = vpack.c.b16 %v6546, %v6530
        %v7299 = vpack.c.b16 %v6547, %v6531
        %v7300 = vpack.c.b16 %v6548, %v6532
        %v7301 = vpack.c.b16 %v6549, %v6533
        %v7302 = vpack.c.b16 %v6550, %v6534
        %v7303 = vpack.c.b16 %v6551, %v6535
        %v7304 = vpack.c.b16 %v6552, %v6536
        %v7305 = vpack.c.b16 %v6553, %v6537
        %v7306 = vpack.c.b16 %v6554, %v6538
        %v7307 = vpack.c.b16 %v6555, %v6539
        %v7308 = vpack.c.b16 %v6556, %v6540
        %v7309 = vpack.c.b16 %v6557, %v6541
        %v7310 = vpack.c.b16 %v6558, %v6542
        %v7311 = vpack.c.b16 %v6575, %v6559
        %v7312 = vpack.c.b16 %v6576, %v6560
        %v7313 = vpack.c.b16 %v6577, %v6561
        %v7314 = vpack.c.b16 %v6578, %v6562
        %v7315 = vpack.c.b16 %v6579, %v6563
        %v7316 = vpack.c.b16 %v6580, %v6564
        %v7317 = vpack.c.b16 %v6581, %v6565
        %v7318 = vpack.c.b16 %v6582, %v6566
        %v7319 = vpack.c.b16 %v6583, %v6567
        %v7320 = vpack.c.b16 %v6584, %v6568
        %v7321 = vpack.c.b16 %v6585, %v6569
        %v7322 = vpack.c.b16 %v6586, %v6570
        %v7323 = vpack.c.b16 %v6587, %v6571
        %v7324 = vpack.c.b16 %v6588, %v6572
        %v7325 = vpack.c.b16 %v6589, %v6573
        %v7326 = vpack.c.b16 %v6590, %v6574
        %v7327 = vpack.c.b16 %v6607, %v6591
        %v7328 = vpack.c.b16 %v6608, %v6592
        %v7329 = vpack.c.b16 %v6609, %v6593
        %v7330 = vpack.c.b16 %v6610, %v6594
        %v7331 = vpack.c.b16 %v6611, %v6595
        %v7332 = vpack.c.b16 %v6612, %v6596
        %v7333 = vpack.c.b16 %v6613, %v6597
        %v7334 = vpack.c.b16 %v6614, %v6598
        %v7335 = vpack.c.b16 %v6615, %v6599
        %v7336 = vpack.c.b16 %v6616, %v6600
        %v7337 = vpack.c.b16 %v6617, %v6601
        %v7338 = vpack.c.b16 %v6618, %v6602
        %v7339 = vpack.c.b16 %v6619, %v6603
        %v7340 = vpack.c.b16 %v6620, %v6604
        %v7341 = vpack.c.b16 %v6621, %v6605
        %v7342 = vpack.c.b16 %v6622, %v6606
        %v7343 = vpack.c.b16 %v6639, %v6623
        %v7344 = vpack.c.b16 %v6640, %v6624
        %v7345 = vpack.c.b16 %v6641, %v6625
        %v7346 = vpack.c.b16 %v6642, %v6626
        %v7347 = vpack.c.b16 %v6643, %v6627
        %v7348 = vpack.c.b16 %v6644, %v6628
        %v7349 = vpack.c.b16 %v6645, %v6629
        %v7350 = vpack.c.b16 %v6646, %v6630
        %v7351 = vpack.c.b16 %v6647, %v6631
        %v7352 = vpack.c.b16 %v6648, %v6632
        %v7353 = vpack.c.b16 %v6649, %v6633
        %v7354 = vpack.c.b16 %v6650, %v6634
        %v7355 = vpack.c.b16 %v6651, %v6635
        %v7356 = vpack.c.b16 %v6652, %v6636
        %v7357 = vpack.c.b16 %v6653, %v6637
        %v7358 = vpack.c.b16 %v6654, %v6638
        %v7359 = vpack.c.b16 %v6671, %v6655
        %v7360 = vpack.c.b16 %v6672, %v6656
        %v7361 = vpack.c.b16 %v6673, %v6657
        %v7362 = vpack.c.b16 %v6674, %v6658
        %v7363 = vpack.c.b16 %v6675, %v6659
        %v7364 = vpack.c.b16 %v6676, %v6660
        %v7365 = vpack.c.b16 %v6677, %v6661
        %v7366 = vpack.c.b16 %v6678, %v6662
        %v7367 = vpack.c.b16 %v6679, %v6663
        %v7368 = vpack.c.b16 %v6680, %v6664
        %v7369 = vpack.c.b16 %v6681, %v6665
        %v7370 = vpack.c.b16 %v6682, %v6666
        %v7371 = vpack.c.b16 %v6683, %v6667
        %v7372 = vpack.c.b16 %v6684, %v6668
        %v7373 = vpack.c.b16 %v6685, %v6669
        %v7374 = vpack.c.b16 %v6686, %v6670
        %v7375 = vpack.c.b16 %v6703, %v6687
        %v7376 = vpack.c.b16 %v6704, %v6688
        %v7377 = vpack.c.b16 %v6705, %v6689
        %v7378 = vpack.c.b16 %v6706, %v6690
        %v7379 = vpack.c.b16 %v6707, %v6691
        %v7380 = vpack.c.b16 %v6708, %v6692
        %v7381 = vpack.c.b16 %v6709, %v6693
        %v7382 = vpack.c.b16 %v6710, %v6694
        %v7383 = vpack.c.b16 %v6711, %v6695
        %v7384 = vpack.c.b16 %v6712, %v6696
        %v7385 = vpack.c.b16 %v6713, %v6697
        %v7386 = vpack.c.b16 %v6714, %v6698
        %v7387 = vpack.c.b16 %v6715, %v6699
        %v7388 = vpack.c.b16 %v6716, %v6700
        %v7389 = vpack.c.b16 %v6717, %v6701
        %v7390 = vpack.c.b16 %v6718, %v6702
        %v7391 = vpack.c.b16 %v6735, %v6719
        %v7392 = vpack.c.b16 %v6736, %v6720
        %v7393 = vpack.c.b16 %v6737, %v6721
        %v7394 = vpack.c.b16 %v6738, %v6722
        %v7395 = vpack.c.b16 %v6739, %v6723
        %v7396 = vpack.c.b16 %v6740, %v6724
        %v7397 = vpack.c.b16 %v6741, %v6725
        %v7398 = vpack.c.b16 %v6742, %v6726
        %v7399 = vpack.c.b16 %v6743, %v6727
        %v7400 = vpack.c.b16 %v6744, %v6728
        %v7401 = vpack.c.b16 %v6745, %v6729
        %v7402 = vpack.c.b16 %v6746, %v6730
        %v7403 = vpack.c.b16 %v6747, %v6731
        %v7404 = vpack.c.b16 %v6748, %v6732
        %v7405 = vpack.c.b16 %v6749, %v6733
        %v7406 = vpack.c.b16 %v6750, %v6734
        %v7407 = vpack.c.b16 %v6767, %v6751
        %v7408 = vpack.c.b16 %v6768, %v6752
        %v7409 = vpack.c.b16 %v6769, %v6753
        %v7410 = vpack.c.b16 %v6770, %v6754
        %v7411 = vpack.c.b16 %v6771, %v6755
        %v7412 = vpack.c.b16 %v6772, %v6756
        %v7413 = vpack.c.b16 %v6773, %v6757
        %v7414 = vpack.c.b16 %v6774, %v6758
        %v7415 = vpack.c.b16 %v6775, %v6759
        %v7416 = vpack.c.b16 %v6776, %v6760
        %v7417 = vpack.c.b16 %v6777, %v6761
        %v7418 = vpack.c.b16 %v6778, %v6762
        %v7419 = vpack.c.b16 %v6779, %v6763
        %v7420 = vpack.c.b16 %v6780, %v6764
        %v7421 = vpack.c.b16 %v6781, %v6765
        %v7422 = vpack.c.b16 %v6782, %v6766
        %v7423 = vpack.c.b16 %v6799, %v6783
        %v7424 = vpack.c.b16 %v6800, %v6784
        %v7425 = vpack.c.b16 %v6801, %v6785
        %v7426 = vpack.c.b16 %v6802, %v6786
        %v7427 = vpack.c.b16 %v6803, %v6787
        %v7428 = vpack.c.b16 %v6804, %v6788
        %v7429 = vpack.c.b16 %v6805, %v6789
        %v7430 = vpack.c.b16 %v6806, %v6790
        %v7431 = vpack.c.b16 %v6807, %v6791
        %v7432 = vpack.c.b16 %v6808, %v6792
        %v7433 = vpack.c.b16 %v6809, %v6793
        %v7434 = vpack.c.b16 %v6810, %v6794
        %v7435 = vpack.c.b16 %v6811, %v6795
        %v7436 = vpack.c.b16 %v6812, %v6796
        %v7437 = vpack.c.b16 %v6813, %v6797
        %v7438 = vpack.c.b16 %v6814, %v6798
        %v7439 = vpack.c.b16 %v6831, %v6815
        %v7440 = vpack.c.b16 %v6832, %v6816
        %v7441 = vpack.c.b16 %v6833, %v6817
        %v7442 = vpack.c.b16 %v6834, %v6818
        %v7443 = vpack.c.b16 %v6835, %v6819
        %v7444 = vpack.c.b16 %v6836, %v6820
        %v7445 = vpack.c.b16 %v6837, %v6821
        %v7446 = vpack.c.b16 %v6838, %v6822
        %v7447 = vpack.c.b16 %v6839, %v6823
        %v7448 = vpack.c.b16 %v6840, %v6824
        %v7449 = vpack.c.b16 %v6841, %v6825
        %v7450 = vpack.c.b16 %v6842, %v6826
        %v7451 = vpack.c.b16 %v6843, %v6827
        %v7452 = vpack.c.b16 %v6844, %v6828
        %v7453 = vpack.c.b16 %v6845, %v6829
        %v7454 = vpack.c.b16 %v6846, %v6830
        %v7455 = vpack.c.b16 %v6863, %v6847
        %v7456 = vpack.c.b16 %v6864, %v6848
        %v7457 = vpack.c.b16 %v6865, %v6849
        %v7458 = vpack.c.b16 %v6866, %v6850
        %v7459 = vpack.c.b16 %v6867, %v6851
        %v7460 = vpack.c.b16 %v6868, %v6852
        %v7461 = vpack.c.b16 %v6869, %v6853
        %v7462 = vpack.c.b16 %v6870, %v6854
        %v7463 = vpack.c.b16 %v6871, %v6855
        %v7464 = vpack.c.b16 %v6872, %v6856
        %v7465 = vpack.c.b16 %v6873, %v6857
        %v7466 = vpack.c.b16 %v6874, %v6858
        %v7467 = vpack.c.b16 %v6875, %v6859
        %v7468 = vpack.c.b16 %v6876, %v6860
        %v7469 = vpack.c.b16 %v6877, %v6861
        %v7470 = vpack.c.b16 %v6878, %v6862
        %v7471 = vpack.c.b16 %v6895, %v6879
        %v7472 = vpack.c.b16 %v6896, %v6880
        %v7473 = vpack.c.b16 %v6897, %v6881
        %v7474 = vpack.c.b16 %v6898, %v6882
        %v7475 = vpack.c.b16 %v6899, %v6883
        %v7476 = vpack.c.b16 %v6900, %v6884
        %v7477 = vpack.c.b16 %v6901, %v6885
        %v7478 = vpack.c.b16 %v6902, %v6886
        %v7479 = vpack.c.b16 %v6903, %v6887
        %v7480 = vpack.c.b16 %v6904, %v6888
        %v7481 = vpack.c.b16 %v6905, %v6889
        %v7482 = vpack.c.b16 %v6906, %v6890
        %v7483 = vpack.c.b16 %v6907, %v6891
        %v7484 = vpack.c.b16 %v6908, %v6892
        %v7485 = vpack.c.b16 %v6909, %v6893
        %v7486 = vpack.c.b16 %v6910, %v6894
        %v7487 = vpack.c.b16 %v6927, %v6911
        %v7488 = vpack.c.b16 %v6928, %v6912
        %v7489 = vpack.c.b16 %v6929, %v6913
        %v7490 = vpack.c.b16 %v6930, %v6914
        %v7491 = vpack.c.b16 %v6931, %v6915
        %v7492 = vpack.c.b16 %v6932, %v6916
        %v7493 = vpack.c.b16 %v6933, %v6917
        %v7494 = vpack.c.b16 %v6934, %v6918
        %v7495 = vpack.c.b16 %v6935, %v6919
        %v7496 = vpack.c.b16 %v6936, %v6920
        %v7497 = vpack.c.b16 %v6937, %v6921
        %v7498 = vpack.c.b16 %v6938, %v6922
        %v7499 = vpack.c.b16 %v6939, %v6923
        %v7500 = vpack.c.b16 %v6940, %v6924
        %v7501 = vpack.c.b16 %v6941, %v6925
        %v7502 = vpack.c.b16 %v6942, %v6926
        %v7503 = vpack.c.b16 %v6959, %v6943
        %v7504 = vpack.c.b16 %v6960, %v6944
        %v7505 = vpack.c.b16 %v6961, %v6945
        %v7506 = vpack.c.b16 %v6962, %v6946
        %v7507 = vpack.c.b16 %v6963, %v6947
        %v7508 = vpack.c.b16 %v6964, %v6948
        %v7509 = vpack.c.b16 %v6965, %v6949
        %v7510 = vpack.c.b16 %v6966, %v6950
        %v7511 = vpack.c.b16 %v6967, %v6951
        %v7512 = vpack.c.b16 %v6968, %v6952
        %v7513 = vpack.c.b16 %v6969, %v6953
        %v7514 = vpack.c.b16 %v6970, %v6954
        %v7515 = vpack.c.b16 %v6971, %v6955
        %v7516 = vpack.c.b16 %v6972, %v6956
        %v7517 = vpack.c.b16 %v6973, %v6957
        %v7518 = vpack.c.b16 %v6974, %v6958
        %v7519 = vpack.c.b16 %v6991, %v6975
        %v7520 = vpack.c.b16 %v6992, %v6976
        %v7521 = vpack.c.b16 %v6993, %v6977
        %v7522 = vpack.c.b16 %v6994, %v6978
        %v7523 = vpack.c.b16 %v6995, %v6979
        %v7524 = vpack.c.b16 %v6996, %v6980
        %v7525 = vpack.c.b16 %v6997, %v6981
        %v7526 = vpack.c.b16 %v6998, %v6982
        %v7527 = vpack.c.b16 %v6999, %v6983
        %v7528 = vpack.c.b16 %v7000, %v6984
        %v7529 = vpack.c.b16 %v7001, %v6985
        %v7530 = vpack.c.b16 %v7002, %v6986
        %v7531 = vpack.c.b16 %v7003, %v6987
        %v7532 = vpack.c.b16 %v7004, %v6988
        %v7533 = vpack.c.b16 %v7005, %v6989
        %v7534 = vpack.c.b16 %v7006, %v6990
        %v7535 = vpack.c.b16 %v7023, %v7007
        %v7536 = vpack.c.b16 %v7024, %v7008
        %v7537 = vpack.c.b16 %v7025, %v7009
        %v7538 = vpack.c.b16 %v7026, %v7010
        %v7539 = vpack.c.b16 %v7027, %v7011
        %v7540 = vpack.c.b16 %v7028, %v7012
        %v7541 = vpack.c.b16 %v7029, %v7013
        %v7542 = vpack.c.b16 %v7030, %v7014
        %v7543 = vpack.c.b16 %v7031, %v7015
        %v7544 = vpack.c.b16 %v7032, %v7016
        %v7545 = vpack.c.b16 %v7033, %v7017
        %v7546 = vpack.c.b16 %v7034, %v7018
        %v7547 = vpack.c.b16 %v7035, %v7019
        %v7548 = vpack.c.b16 %v7036, %v7020
        %v7549 = vpack.c.b16 %v7037, %v7021
        %v7550 = vpack.c.b16 %v7038, %v7022
        %8063 = vmatpush.bf16.xpose.msra.mxu0 %v7151
        %8064 = vmatpush.bf16.xpose.msra.mxu0 %v7135
        %8065 = vmatpush.bf16.xpose.msra.mxu0 %v7119
        %8066 = vmatpush.bf16.xpose.msra.mxu0 %v7103
        %8067 = vmatpush.bf16.xpose.msra.mxu0 %v7087
        %8068 = vmatpush.bf16.xpose.msra.mxu0 %v7071
        %8069 = vmatpush.bf16.xpose.msra.mxu0 %v7055
        %8070 = vmatpush.bf16.xpose.msra.mxu0 %v7039
        %8071 = vmatmul.bf16.gmra.mxu0 %v4965
        %v8072 = vpop.f32.mrf.mxu0
        %v8073 = vadd.f32 %v5495, %v8072
        %v8074 = vpop.f32.mrf.mxu0
        %8075 = vdwg.mxu0
        %8076 = vmatpush.bf16.xpose.msra.mxu0 %v7152
        %8077 = vmatpush.bf16.xpose.msra.mxu0 %v7136
        %8078 = vmatpush.bf16.xpose.msra.mxu0 %v7120
        %8079 = vmatpush.bf16.xpose.msra.mxu0 %v7104
        %8080 = vmatpush.bf16.xpose.msra.mxu0 %v7088
        %8081 = vmatpush.bf16.xpose.msra.mxu0 %v7072
        %8082 = vmatpush.bf16.xpose.msra.mxu0 %v7056
        %8083 = vmatpush.bf16.xpose.msra.mxu0 %v7040
        %8084 = vmatmul.bf16.gmra.mxu0 %v4966
        %v8085 = vpop.f32.mrf.mxu0
        %v8086 = vadd.f32 %v8073, %v8085
        %v8087 = vpop.f32.mrf.mxu0
        %8088 = vdwg.mxu0
        %8089 = vmatpush.bf16.xpose.msra.mxu0 %v7153
        %8090 = vmatpush.bf16.xpose.msra.mxu0 %v7137
        %8091 = vmatpush.bf16.xpose.msra.mxu0 %v7121
        %8092 = vmatpush.bf16.xpose.msra.mxu0 %v7105
        %8093 = vmatpush.bf16.xpose.msra.mxu0 %v7089
        %8094 = vmatpush.bf16.xpose.msra.mxu0 %v7073
        %8095 = vmatpush.bf16.xpose.msra.mxu0 %v7057
        %8096 = vmatpush.bf16.xpose.msra.mxu0 %v7041
        %8097 = vmatmul.bf16.gmra.mxu0 %v4967
        %v8098 = vpop.f32.mrf.mxu0
        %v8099 = vadd.f32 %v8086, %v8098
        %v8100 = vpop.f32.mrf.mxu0
        %8101 = vdwg.mxu0
        %8102 = vmatpush.bf16.xpose.msra.mxu0 %v7154
        %8103 = vmatpush.bf16.xpose.msra.mxu0 %v7138
        %8104 = vmatpush.bf16.xpose.msra.mxu0 %v7122
        %8105 = vmatpush.bf16.xpose.msra.mxu0 %v7106
        %8106 = vmatpush.bf16.xpose.msra.mxu0 %v7090
        %8107 = vmatpush.bf16.xpose.msra.mxu0 %v7074
        %8108 = vmatpush.bf16.xpose.msra.mxu0 %v7058
        %8109 = vmatpush.bf16.xpose.msra.mxu0 %v7042
        %8110 = vmatmul.bf16.gmra.mxu0 %v4968
        %v8111 = vpop.f32.mrf.mxu0
        %v8112 = vadd.f32 %v8099, %v8111
        %v8113 = vpop.f32.mrf.mxu0
        %8114 = vdwg.mxu0
        %8115 = vmatpush.bf16.xpose.msra.mxu0 %v7155
        %8116 = vmatpush.bf16.xpose.msra.mxu0 %v7139
        %8117 = vmatpush.bf16.xpose.msra.mxu0 %v7123
        %8118 = vmatpush.bf16.xpose.msra.mxu0 %v7107
        %8119 = vmatpush.bf16.xpose.msra.mxu0 %v7091
        %8120 = vmatpush.bf16.xpose.msra.mxu0 %v7075
        %8121 = vmatpush.bf16.xpose.msra.mxu0 %v7059
        %8122 = vmatpush.bf16.xpose.msra.mxu0 %v7043
        %8123 = vmatmul.bf16.gmra.mxu0 %v4969
        %v8124 = vpop.f32.mrf.mxu0
        %v8125 = vadd.f32 %v8112, %v8124
        %v8126 = vpop.f32.mrf.mxu0
        %8127 = vdwg.mxu0
        %8128 = vmatpush.bf16.xpose.msra.mxu0 %v7156
        %8129 = vmatpush.bf16.xpose.msra.mxu0 %v7140
        %8130 = vmatpush.bf16.xpose.msra.mxu0 %v7124
        %8131 = vmatpush.bf16.xpose.msra.mxu0 %v7108
        %8132 = vmatpush.bf16.xpose.msra.mxu0 %v7092
        %8133 = vmatpush.bf16.xpose.msra.mxu0 %v7076
        %8134 = vmatpush.bf16.xpose.msra.mxu0 %v7060
        %8135 = vmatpush.bf16.xpose.msra.mxu0 %v7044
        %8136 = vmatmul.bf16.gmra.mxu0 %v4970
        %v8137 = vpop.f32.mrf.mxu0
        %v8138 = vadd.f32 %v8125, %v8137
        %v8139 = vpop.f32.mrf.mxu0
        %8140 = vdwg.mxu0
        %8141 = vmatpush.bf16.xpose.msra.mxu0 %v7157
        %8142 = vmatpush.bf16.xpose.msra.mxu0 %v7141
        %8143 = vmatpush.bf16.xpose.msra.mxu0 %v7125
        %8144 = vmatpush.bf16.xpose.msra.mxu0 %v7109
        %8145 = vmatpush.bf16.xpose.msra.mxu0 %v7093
        %8146 = vmatpush.bf16.xpose.msra.mxu0 %v7077
        %8147 = vmatpush.bf16.xpose.msra.mxu0 %v7061
        %8148 = vmatpush.bf16.xpose.msra.mxu0 %v7045
        %8149 = vmatmul.bf16.gmra.mxu0 %v4971
        %v8150 = vpop.f32.mrf.mxu0
        %v8151 = vadd.f32 %v8138, %v8150
        %v8152 = vpop.f32.mrf.mxu0
        %8153 = vdwg.mxu0
        %8154 = vmatpush.bf16.xpose.msra.mxu0 %v7158
        %8155 = vmatpush.bf16.xpose.msra.mxu0 %v7142
        %8156 = vmatpush.bf16.xpose.msra.mxu0 %v7126
        %8157 = vmatpush.bf16.xpose.msra.mxu0 %v7110
        %8158 = vmatpush.bf16.xpose.msra.mxu0 %v7094
        %8159 = vmatpush.bf16.xpose.msra.mxu0 %v7078
        %8160 = vmatpush.bf16.xpose.msra.mxu0 %v7062
        %8161 = vmatpush.bf16.xpose.msra.mxu0 %v7046
        %8162 = vmatmul.bf16.gmra.mxu0 %v4972
        %v8163 = vpop.f32.mrf.mxu0
        %v8164 = vadd.f32 %v8151, %v8163
        %v8165 = vpop.f32.mrf.mxu0
        %8166 = vdwg.mxu0
        %8167 = vmatpush.bf16.xpose.msra.mxu0 %v7159
        %8168 = vmatpush.bf16.xpose.msra.mxu0 %v7143
        %8169 = vmatpush.bf16.xpose.msra.mxu0 %v7127
        %8170 = vmatpush.bf16.xpose.msra.mxu0 %v7111
        %8171 = vmatpush.bf16.xpose.msra.mxu0 %v7095
        %8172 = vmatpush.bf16.xpose.msra.mxu0 %v7079
        %8173 = vmatpush.bf16.xpose.msra.mxu0 %v7063
        %8174 = vmatpush.bf16.xpose.msra.mxu0 %v7047
        %8175 = vmatmul.bf16.gmra.mxu0 %v4973
        %v8176 = vpop.f32.mrf.mxu0
        %v8177 = vadd.f32 %v8164, %v8176
        %v8178 = vpop.f32.mrf.mxu0
        %8179 = vdwg.mxu0
        %8180 = vmatpush.bf16.xpose.msra.mxu0 %v7160
        %8181 = vmatpush.bf16.xpose.msra.mxu0 %v7144
        %8182 = vmatpush.bf16.xpose.msra.mxu0 %v7128
        %8183 = vmatpush.bf16.xpose.msra.mxu0 %v7112
        %8184 = vmatpush.bf16.xpose.msra.mxu0 %v7096
        %8185 = vmatpush.bf16.xpose.msra.mxu0 %v7080
        %8186 = vmatpush.bf16.xpose.msra.mxu0 %v7064
        %8187 = vmatpush.bf16.xpose.msra.mxu0 %v7048
        %8188 = vmatmul.bf16.gmra.mxu0 %v4974
        %v8189 = vpop.f32.mrf.mxu0
        %v8190 = vadd.f32 %v8177, %v8189
        %v8191 = vpop.f32.mrf.mxu0
        %8192 = vdwg.mxu0
        %8193 = vmatpush.bf16.xpose.msra.mxu0 %v7161
        %8194 = vmatpush.bf16.xpose.msra.mxu0 %v7145
        %8195 = vmatpush.bf16.xpose.msra.mxu0 %v7129
        %8196 = vmatpush.bf16.xpose.msra.mxu0 %v7113
        %8197 = vmatpush.bf16.xpose.msra.mxu0 %v7097
        %8198 = vmatpush.bf16.xpose.msra.mxu0 %v7081
        %8199 = vmatpush.bf16.xpose.msra.mxu0 %v7065
        %8200 = vmatpush.bf16.xpose.msra.mxu0 %v7049
        %8201 = vmatmul.bf16.gmra.mxu0 %v4975
        %v8202 = vpop.f32.mrf.mxu0
        %v8203 = vadd.f32 %v8190, %v8202
        %v8204 = vpop.f32.mrf.mxu0
        %8205 = vdwg.mxu0
        %8206 = vmatpush.bf16.xpose.msra.mxu0 %v7162
        %8207 = vmatpush.bf16.xpose.msra.mxu0 %v7146
        %8208 = vmatpush.bf16.xpose.msra.mxu0 %v7130
        %8209 = vmatpush.bf16.xpose.msra.mxu0 %v7114
        %8210 = vmatpush.bf16.xpose.msra.mxu0 %v7098
        %8211 = vmatpush.bf16.xpose.msra.mxu0 %v7082
        %8212 = vmatpush.bf16.xpose.msra.mxu0 %v7066
        %8213 = vmatpush.bf16.xpose.msra.mxu0 %v7050
        %8214 = vmatmul.bf16.gmra.mxu0 %v4976
        %v8215 = vpop.f32.mrf.mxu0
        %v8216 = vadd.f32 %v8203, %v8215
        %v8217 = vpop.f32.mrf.mxu0
        %8218 = vdwg.mxu0
        %8219 = vmatpush.bf16.xpose.msra.mxu0 %v7163
        %8220 = vmatpush.bf16.xpose.msra.mxu0 %v7147
        %8221 = vmatpush.bf16.xpose.msra.mxu0 %v7131
        %8222 = vmatpush.bf16.xpose.msra.mxu0 %v7115
        %8223 = vmatpush.bf16.xpose.msra.mxu0 %v7099
        %8224 = vmatpush.bf16.xpose.msra.mxu0 %v7083
        %8225 = vmatpush.bf16.xpose.msra.mxu0 %v7067
        %8226 = vmatpush.bf16.xpose.msra.mxu0 %v7051
        %8227 = vmatmul.bf16.gmra.mxu0 %v4977
        %v8228 = vpop.f32.mrf.mxu0
        %v8229 = vadd.f32 %v8216, %v8228
        %v8230 = vpop.f32.mrf.mxu0
        %8231 = vdwg.mxu0
        %8232 = vmatpush.bf16.xpose.msra.mxu0 %v7164
        %8233 = vmatpush.bf16.xpose.msra.mxu0 %v7148
        %8234 = vmatpush.bf16.xpose.msra.mxu0 %v7132
        %8235 = vmatpush.bf16.xpose.msra.mxu0 %v7116
        %8236 = vmatpush.bf16.xpose.msra.mxu0 %v7100
        %8237 = vmatpush.bf16.xpose.msra.mxu0 %v7084
        %8238 = vmatpush.bf16.xpose.msra.mxu0 %v7068
        %8239 = vmatpush.bf16.xpose.msra.mxu0 %v7052
        %8240 = vmatmul.bf16.gmra.mxu0 %v4978
        %v8241 = vpop.f32.mrf.mxu0
        %v8242 = vadd.f32 %v8229, %v8241
        %v8243 = vpop.f32.mrf.mxu0
        %8244 = vdwg.mxu0
        %8245 = vmatpush.bf16.xpose.msra.mxu0 %v7165
        %8246 = vmatpush.bf16.xpose.msra.mxu0 %v7149
        %8247 = vmatpush.bf16.xpose.msra.mxu0 %v7133
        %8248 = vmatpush.bf16.xpose.msra.mxu0 %v7117
        %8249 = vmatpush.bf16.xpose.msra.mxu0 %v7101
        %8250 = vmatpush.bf16.xpose.msra.mxu0 %v7085
        %8251 = vmatpush.bf16.xpose.msra.mxu0 %v7069
        %8252 = vmatpush.bf16.xpose.msra.mxu0 %v7053
        %8253 = vmatmul.bf16.gmra.mxu0 %v4979
        %v8254 = vpop.f32.mrf.mxu0
        %v8255 = vadd.f32 %v8242, %v8254
        %v8256 = vpop.f32.mrf.mxu0
        %8257 = vdwg.mxu0
        %8258 = vmatpush.bf16.xpose.msra.mxu0 %v7166
        %8259 = vmatpush.bf16.xpose.msra.mxu0 %v7150
        %8260 = vmatpush.bf16.xpose.msra.mxu0 %v7134
        %8261 = vmatpush.bf16.xpose.msra.mxu0 %v7118
        %8262 = vmatpush.bf16.xpose.msra.mxu0 %v7102
        %8263 = vmatpush.bf16.xpose.msra.mxu0 %v7086
        %8264 = vmatpush.bf16.xpose.msra.mxu0 %v7070
        %8265 = vmatpush.bf16.xpose.msra.mxu0 %v7054
        %8266 = vmatmul.bf16.gmra.mxu0 %v4980
        %v8267 = vpop.f32.mrf.mxu0
        %v8268 = vadd.f32 %v8255, %v8267
        %v8269 = vpop.f32.mrf.mxu0
        %8270 = vdwg.mxu0
        %8271 = vmatpush.bf16.xpose.msra.mxu0 %v7279
        %8272 = vmatpush.bf16.xpose.msra.mxu0 %v7263
        %8273 = vmatpush.bf16.xpose.msra.mxu0 %v7247
        %8274 = vmatpush.bf16.xpose.msra.mxu0 %v7231
        %8275 = vmatpush.bf16.xpose.msra.mxu0 %v7215
        %8276 = vmatpush.bf16.xpose.msra.mxu0 %v7199
        %8277 = vmatpush.bf16.xpose.msra.mxu0 %v7183
        %8278 = vmatpush.bf16.xpose.msra.mxu0 %v7167
        %8279 = vmatmul.bf16.gmra.mxu0 %v4965
        %v8280 = vpop.f32.mrf.mxu0
        %v8281 = vadd.f32 %v5496, %v8280
        %v8282 = vpop.f32.mrf.mxu0
        %8283 = vdwg.mxu0
        %8284 = vmatpush.bf16.xpose.msra.mxu0 %v7280
        %8285 = vmatpush.bf16.xpose.msra.mxu0 %v7264
        %8286 = vmatpush.bf16.xpose.msra.mxu0 %v7248
        %8287 = vmatpush.bf16.xpose.msra.mxu0 %v7232
        %8288 = vmatpush.bf16.xpose.msra.mxu0 %v7216
        %8289 = vmatpush.bf16.xpose.msra.mxu0 %v7200
        %8290 = vmatpush.bf16.xpose.msra.mxu0 %v7184
        %8291 = vmatpush.bf16.xpose.msra.mxu0 %v7168
        %8292 = vmatmul.bf16.gmra.mxu0 %v4966
        %v8293 = vpop.f32.mrf.mxu0
        %v8294 = vadd.f32 %v8281, %v8293
        %v8295 = vpop.f32.mrf.mxu0
        %8296 = vdwg.mxu0
        %8297 = vmatpush.bf16.xpose.msra.mxu0 %v7281
        %8298 = vmatpush.bf16.xpose.msra.mxu0 %v7265
        %8299 = vmatpush.bf16.xpose.msra.mxu0 %v7249
        %8300 = vmatpush.bf16.xpose.msra.mxu0 %v7233
        %8301 = vmatpush.bf16.xpose.msra.mxu0 %v7217
        %8302 = vmatpush.bf16.xpose.msra.mxu0 %v7201
        %8303 = vmatpush.bf16.xpose.msra.mxu0 %v7185
        %8304 = vmatpush.bf16.xpose.msra.mxu0 %v7169
        %8305 = vmatmul.bf16.gmra.mxu0 %v4967
        %v8306 = vpop.f32.mrf.mxu0
        %v8307 = vadd.f32 %v8294, %v8306
        %v8308 = vpop.f32.mrf.mxu0
        %8309 = vdwg.mxu0
        %8310 = vmatpush.bf16.xpose.msra.mxu0 %v7282
        %8311 = vmatpush.bf16.xpose.msra.mxu0 %v7266
        %8312 = vmatpush.bf16.xpose.msra.mxu0 %v7250
        %8313 = vmatpush.bf16.xpose.msra.mxu0 %v7234
        %8314 = vmatpush.bf16.xpose.msra.mxu0 %v7218
        %8315 = vmatpush.bf16.xpose.msra.mxu0 %v7202
        %8316 = vmatpush.bf16.xpose.msra.mxu0 %v7186
        %8317 = vmatpush.bf16.xpose.msra.mxu0 %v7170
        %8318 = vmatmul.bf16.gmra.mxu0 %v4968
        %v8319 = vpop.f32.mrf.mxu0
        %v8320 = vadd.f32 %v8307, %v8319
        %v8321 = vpop.f32.mrf.mxu0
        %8322 = vdwg.mxu0
        %8323 = vmatpush.bf16.xpose.msra.mxu0 %v7283
        %8324 = vmatpush.bf16.xpose.msra.mxu0 %v7267
        %8325 = vmatpush.bf16.xpose.msra.mxu0 %v7251
        %8326 = vmatpush.bf16.xpose.msra.mxu0 %v7235
        %8327 = vmatpush.bf16.xpose.msra.mxu0 %v7219
        %8328 = vmatpush.bf16.xpose.msra.mxu0 %v7203
        %8329 = vmatpush.bf16.xpose.msra.mxu0 %v7187
        %8330 = vmatpush.bf16.xpose.msra.mxu0 %v7171
        %8331 = vmatmul.bf16.gmra.mxu0 %v4969
        %v8332 = vpop.f32.mrf.mxu0
        %v8333 = vadd.f32 %v8320, %v8332
        %v8334 = vpop.f32.mrf.mxu0
        %8335 = vdwg.mxu0
        %8336 = vmatpush.bf16.xpose.msra.mxu0 %v7284
        %8337 = vmatpush.bf16.xpose.msra.mxu0 %v7268
        %8338 = vmatpush.bf16.xpose.msra.mxu0 %v7252
        %8339 = vmatpush.bf16.xpose.msra.mxu0 %v7236
        %8340 = vmatpush.bf16.xpose.msra.mxu0 %v7220
        %8341 = vmatpush.bf16.xpose.msra.mxu0 %v7204
        %8342 = vmatpush.bf16.xpose.msra.mxu0 %v7188
        %8343 = vmatpush.bf16.xpose.msra.mxu0 %v7172
        %8344 = vmatmul.bf16.gmra.mxu0 %v4970
        %v8345 = vpop.f32.mrf.mxu0
        %v8346 = vadd.f32 %v8333, %v8345
        %v8347 = vpop.f32.mrf.mxu0
        %8348 = vdwg.mxu0
        %8349 = vmatpush.bf16.xpose.msra.mxu0 %v7285
        %8350 = vmatpush.bf16.xpose.msra.mxu0 %v7269
        %8351 = vmatpush.bf16.xpose.msra.mxu0 %v7253
        %8352 = vmatpush.bf16.xpose.msra.mxu0 %v7237
        %8353 = vmatpush.bf16.xpose.msra.mxu0 %v7221
        %8354 = vmatpush.bf16.xpose.msra.mxu0 %v7205
        %8355 = vmatpush.bf16.xpose.msra.mxu0 %v7189
        %8356 = vmatpush.bf16.xpose.msra.mxu0 %v7173
        %8357 = vmatmul.bf16.gmra.mxu0 %v4971
        %v8358 = vpop.f32.mrf.mxu0
        %v8359 = vadd.f32 %v8346, %v8358
        %v8360 = vpop.f32.mrf.mxu0
        %8361 = vdwg.mxu0
        %8362 = vmatpush.bf16.xpose.msra.mxu0 %v7286
        %8363 = vmatpush.bf16.xpose.msra.mxu0 %v7270
        %8364 = vmatpush.bf16.xpose.msra.mxu0 %v7254
        %8365 = vmatpush.bf16.xpose.msra.mxu0 %v7238
        %8366 = vmatpush.bf16.xpose.msra.mxu0 %v7222
        %8367 = vmatpush.bf16.xpose.msra.mxu0 %v7206
        %8368 = vmatpush.bf16.xpose.msra.mxu0 %v7190
        %8369 = vmatpush.bf16.xpose.msra.mxu0 %v7174
        %8370 = vmatmul.bf16.gmra.mxu0 %v4972
        %v8371 = vpop.f32.mrf.mxu0
        %v8372 = vadd.f32 %v8359, %v8371
        %v8373 = vpop.f32.mrf.mxu0
        %8374 = vdwg.mxu0
        %8375 = vmatpush.bf16.xpose.msra.mxu0 %v7287
        %8376 = vmatpush.bf16.xpose.msra.mxu0 %v7271
        %8377 = vmatpush.bf16.xpose.msra.mxu0 %v7255
        %8378 = vmatpush.bf16.xpose.msra.mxu0 %v7239
        %8379 = vmatpush.bf16.xpose.msra.mxu0 %v7223
        %8380 = vmatpush.bf16.xpose.msra.mxu0 %v7207
        %8381 = vmatpush.bf16.xpose.msra.mxu0 %v7191
        %8382 = vmatpush.bf16.xpose.msra.mxu0 %v7175
        %8383 = vmatmul.bf16.gmra.mxu0 %v4973
        %v8384 = vpop.f32.mrf.mxu0
        %v8385 = vadd.f32 %v8372, %v8384
        %v8386 = vpop.f32.mrf.mxu0
        %8387 = vdwg.mxu0
        %8388 = vmatpush.bf16.xpose.msra.mxu0 %v7288
        %8389 = vmatpush.bf16.xpose.msra.mxu0 %v7272
        %8390 = vmatpush.bf16.xpose.msra.mxu0 %v7256
        %8391 = vmatpush.bf16.xpose.msra.mxu0 %v7240
        %8392 = vmatpush.bf16.xpose.msra.mxu0 %v7224
        %8393 = vmatpush.bf16.xpose.msra.mxu0 %v7208
        %8394 = vmatpush.bf16.xpose.msra.mxu0 %v7192
        %8395 = vmatpush.bf16.xpose.msra.mxu0 %v7176
        %8396 = vmatmul.bf16.gmra.mxu0 %v4974
        %v8397 = vpop.f32.mrf.mxu0
        %v8398 = vadd.f32 %v8385, %v8397
        %v8399 = vpop.f32.mrf.mxu0
        %8400 = vdwg.mxu0
        %8401 = vmatpush.bf16.xpose.msra.mxu0 %v7289
        %8402 = vmatpush.bf16.xpose.msra.mxu0 %v7273
        %8403 = vmatpush.bf16.xpose.msra.mxu0 %v7257
        %8404 = vmatpush.bf16.xpose.msra.mxu0 %v7241
        %8405 = vmatpush.bf16.xpose.msra.mxu0 %v7225
        %8406 = vmatpush.bf16.xpose.msra.mxu0 %v7209
        %8407 = vmatpush.bf16.xpose.msra.mxu0 %v7193
        %8408 = vmatpush.bf16.xpose.msra.mxu0 %v7177
        %8409 = vmatmul.bf16.gmra.mxu0 %v4975
        %v8410 = vpop.f32.mrf.mxu0
        %v8411 = vadd.f32 %v8398, %v8410
        %v8412 = vpop.f32.mrf.mxu0
        %8413 = vdwg.mxu0
        %8414 = vmatpush.bf16.xpose.msra.mxu0 %v7290
        %8415 = vmatpush.bf16.xpose.msra.mxu0 %v7274
        %8416 = vmatpush.bf16.xpose.msra.mxu0 %v7258
        %8417 = vmatpush.bf16.xpose.msra.mxu0 %v7242
        %8418 = vmatpush.bf16.xpose.msra.mxu0 %v7226
        %8419 = vmatpush.bf16.xpose.msra.mxu0 %v7210
        %8420 = vmatpush.bf16.xpose.msra.mxu0 %v7194
        %8421 = vmatpush.bf16.xpose.msra.mxu0 %v7178
        %8422 = vmatmul.bf16.gmra.mxu0 %v4976
        %v8423 = vpop.f32.mrf.mxu0
        %v8424 = vadd.f32 %v8411, %v8423
        %v8425 = vpop.f32.mrf.mxu0
        %8426 = vdwg.mxu0
        %8427 = vmatpush.bf16.xpose.msra.mxu0 %v7291
        %8428 = vmatpush.bf16.xpose.msra.mxu0 %v7275
        %8429 = vmatpush.bf16.xpose.msra.mxu0 %v7259
        %8430 = vmatpush.bf16.xpose.msra.mxu0 %v7243
        %8431 = vmatpush.bf16.xpose.msra.mxu0 %v7227
        %8432 = vmatpush.bf16.xpose.msra.mxu0 %v7211
        %8433 = vmatpush.bf16.xpose.msra.mxu0 %v7195
        %8434 = vmatpush.bf16.xpose.msra.mxu0 %v7179
        %8435 = vmatmul.bf16.gmra.mxu0 %v4977
        %v8436 = vpop.f32.mrf.mxu0
        %v8437 = vadd.f32 %v8424, %v8436
        %v8438 = vpop.f32.mrf.mxu0
        %8439 = vdwg.mxu0
        %8440 = vmatpush.bf16.xpose.msra.mxu0 %v7292
        %8441 = vmatpush.bf16.xpose.msra.mxu0 %v7276
        %8442 = vmatpush.bf16.xpose.msra.mxu0 %v7260
        %8443 = vmatpush.bf16.xpose.msra.mxu0 %v7244
        %8444 = vmatpush.bf16.xpose.msra.mxu0 %v7228
        %8445 = vmatpush.bf16.xpose.msra.mxu0 %v7212
        %8446 = vmatpush.bf16.xpose.msra.mxu0 %v7196
        %8447 = vmatpush.bf16.xpose.msra.mxu0 %v7180
        %8448 = vmatmul.bf16.gmra.mxu0 %v4978
        %v8449 = vpop.f32.mrf.mxu0
        %v8450 = vadd.f32 %v8437, %v8449
        %v8451 = vpop.f32.mrf.mxu0
        %8452 = vdwg.mxu0
        %8453 = vmatpush.bf16.xpose.msra.mxu0 %v7293
        %8454 = vmatpush.bf16.xpose.msra.mxu0 %v7277
        %8455 = vmatpush.bf16.xpose.msra.mxu0 %v7261
        %8456 = vmatpush.bf16.xpose.msra.mxu0 %v7245
        %8457 = vmatpush.bf16.xpose.msra.mxu0 %v7229
        %8458 = vmatpush.bf16.xpose.msra.mxu0 %v7213
        %8459 = vmatpush.bf16.xpose.msra.mxu0 %v7197
        %8460 = vmatpush.bf16.xpose.msra.mxu0 %v7181
        %8461 = vmatmul.bf16.gmra.mxu0 %v4979
        %v8462 = vpop.f32.mrf.mxu0
        %v8463 = vadd.f32 %v8450, %v8462
        %v8464 = vpop.f32.mrf.mxu0
        %8465 = vdwg.mxu0
        %8466 = vmatpush.bf16.xpose.msra.mxu0 %v7294
        %8467 = vmatpush.bf16.xpose.msra.mxu0 %v7278
        %8468 = vmatpush.bf16.xpose.msra.mxu0 %v7262
        %8469 = vmatpush.bf16.xpose.msra.mxu0 %v7246
        %8470 = vmatpush.bf16.xpose.msra.mxu0 %v7230
        %8471 = vmatpush.bf16.xpose.msra.mxu0 %v7214
        %8472 = vmatpush.bf16.xpose.msra.mxu0 %v7198
        %8473 = vmatpush.bf16.xpose.msra.mxu0 %v7182
        %8474 = vmatmul.bf16.gmra.mxu0 %v4980
        %v8475 = vpop.f32.mrf.mxu0
        %v8476 = vadd.f32 %v8463, %v8475
        %v8477 = vpop.f32.mrf.mxu0
        %8478 = vdwg.mxu0
        %8479 = vmatpush.bf16.xpose.msra.mxu0 %v7407
        %8480 = vmatpush.bf16.xpose.msra.mxu0 %v7391
        %8481 = vmatpush.bf16.xpose.msra.mxu0 %v7375
        %8482 = vmatpush.bf16.xpose.msra.mxu0 %v7359
        %8483 = vmatpush.bf16.xpose.msra.mxu0 %v7343
        %8484 = vmatpush.bf16.xpose.msra.mxu0 %v7327
        %8485 = vmatpush.bf16.xpose.msra.mxu0 %v7311
        %8486 = vmatpush.bf16.xpose.msra.mxu0 %v7295
        %8487 = vmatmul.bf16.gmra.mxu0 %v4965
        %v8488 = vpop.f32.mrf.mxu0
        %v8489 = vadd.f32 %v5497, %v8488
        %v8490 = vpop.f32.mrf.mxu0
        %8491 = vdwg.mxu0
        %8492 = vmatpush.bf16.xpose.msra.mxu0 %v7408
        %8493 = vmatpush.bf16.xpose.msra.mxu0 %v7392
        %8494 = vmatpush.bf16.xpose.msra.mxu0 %v7376
        %8495 = vmatpush.bf16.xpose.msra.mxu0 %v7360
        %8496 = vmatpush.bf16.xpose.msra.mxu0 %v7344
        %8497 = vmatpush.bf16.xpose.msra.mxu0 %v7328
        %8498 = vmatpush.bf16.xpose.msra.mxu0 %v7312
        %8499 = vmatpush.bf16.xpose.msra.mxu0 %v7296
        %8500 = vmatmul.bf16.gmra.mxu0 %v4966
        %v8501 = vpop.f32.mrf.mxu0
        %v8502 = vadd.f32 %v8489, %v8501
        %v8503 = vpop.f32.mrf.mxu0
        %8504 = vdwg.mxu0
        %8505 = vmatpush.bf16.xpose.msra.mxu0 %v7409
        %8506 = vmatpush.bf16.xpose.msra.mxu0 %v7393
        %8507 = vmatpush.bf16.xpose.msra.mxu0 %v7377
        %8508 = vmatpush.bf16.xpose.msra.mxu0 %v7361
        %8509 = vmatpush.bf16.xpose.msra.mxu0 %v7345
        %8510 = vmatpush.bf16.xpose.msra.mxu0 %v7329
        %8511 = vmatpush.bf16.xpose.msra.mxu0 %v7313
        %8512 = vmatpush.bf16.xpose.msra.mxu0 %v7297
        %8513 = vmatmul.bf16.gmra.mxu0 %v4967
        %v8514 = vpop.f32.mrf.mxu0
        %v8515 = vadd.f32 %v8502, %v8514
        %v8516 = vpop.f32.mrf.mxu0
        %8517 = vdwg.mxu0
        %8518 = vmatpush.bf16.xpose.msra.mxu0 %v7410
        %8519 = vmatpush.bf16.xpose.msra.mxu0 %v7394
        %8520 = vmatpush.bf16.xpose.msra.mxu0 %v7378
        %8521 = vmatpush.bf16.xpose.msra.mxu0 %v7362
        %8522 = vmatpush.bf16.xpose.msra.mxu0 %v7346
        %8523 = vmatpush.bf16.xpose.msra.mxu0 %v7330
        %8524 = vmatpush.bf16.xpose.msra.mxu0 %v7314
        %8525 = vmatpush.bf16.xpose.msra.mxu0 %v7298
        %8526 = vmatmul.bf16.gmra.mxu0 %v4968
        %v8527 = vpop.f32.mrf.mxu0
        %v8528 = vadd.f32 %v8515, %v8527
        %v8529 = vpop.f32.mrf.mxu0
        %8530 = vdwg.mxu0
        %8531 = vmatpush.bf16.xpose.msra.mxu0 %v7411
        %8532 = vmatpush.bf16.xpose.msra.mxu0 %v7395
        %8533 = vmatpush.bf16.xpose.msra.mxu0 %v7379
        %8534 = vmatpush.bf16.xpose.msra.mxu0 %v7363
        %8535 = vmatpush.bf16.xpose.msra.mxu0 %v7347
        %8536 = vmatpush.bf16.xpose.msra.mxu0 %v7331
        %8537 = vmatpush.bf16.xpose.msra.mxu0 %v7315
        %8538 = vmatpush.bf16.xpose.msra.mxu0 %v7299
        %8539 = vmatmul.bf16.gmra.mxu0 %v4969
        %v8540 = vpop.f32.mrf.mxu0
        %v8541 = vadd.f32 %v8528, %v8540
        %v8542 = vpop.f32.mrf.mxu0
        %8543 = vdwg.mxu0
        %8544 = vmatpush.bf16.xpose.msra.mxu0 %v7412
        %8545 = vmatpush.bf16.xpose.msra.mxu0 %v7396
        %8546 = vmatpush.bf16.xpose.msra.mxu0 %v7380
        %8547 = vmatpush.bf16.xpose.msra.mxu0 %v7364
        %8548 = vmatpush.bf16.xpose.msra.mxu0 %v7348
        %8549 = vmatpush.bf16.xpose.msra.mxu0 %v7332
        %8550 = vmatpush.bf16.xpose.msra.mxu0 %v7316
        %8551 = vmatpush.bf16.xpose.msra.mxu0 %v7300
        %8552 = vmatmul.bf16.gmra.mxu0 %v4970
        %v8553 = vpop.f32.mrf.mxu0
        %v8554 = vadd.f32 %v8541, %v8553
        %v8555 = vpop.f32.mrf.mxu0
        %8556 = vdwg.mxu0
        %8557 = vmatpush.bf16.xpose.msra.mxu0 %v7413
        %8558 = vmatpush.bf16.xpose.msra.mxu0 %v7397
        %8559 = vmatpush.bf16.xpose.msra.mxu0 %v7381
        %8560 = vmatpush.bf16.xpose.msra.mxu0 %v7365
        %8561 = vmatpush.bf16.xpose.msra.mxu0 %v7349
        %8562 = vmatpush.bf16.xpose.msra.mxu0 %v7333
        %8563 = vmatpush.bf16.xpose.msra.mxu0 %v7317
        %8564 = vmatpush.bf16.xpose.msra.mxu0 %v7301
        %8565 = vmatmul.bf16.gmra.mxu0 %v4971
        %v8566 = vpop.f32.mrf.mxu0
        %v8567 = vadd.f32 %v8554, %v8566
        %v8568 = vpop.f32.mrf.mxu0
        %8569 = vdwg.mxu0
        %8570 = vmatpush.bf16.xpose.msra.mxu0 %v7414
        %8571 = vmatpush.bf16.xpose.msra.mxu0 %v7398
        %8572 = vmatpush.bf16.xpose.msra.mxu0 %v7382
        %8573 = vmatpush.bf16.xpose.msra.mxu0 %v7366
        %8574 = vmatpush.bf16.xpose.msra.mxu0 %v7350
        %8575 = vmatpush.bf16.xpose.msra.mxu0 %v7334
        %8576 = vmatpush.bf16.xpose.msra.mxu0 %v7318
        %8577 = vmatpush.bf16.xpose.msra.mxu0 %v7302
        %8578 = vmatmul.bf16.gmra.mxu0 %v4972
        %v8579 = vpop.f32.mrf.mxu0
        %v8580 = vadd.f32 %v8567, %v8579
        %v8581 = vpop.f32.mrf.mxu0
        %8582 = vdwg.mxu0
        %8583 = vmatpush.bf16.xpose.msra.mxu0 %v7415
        %8584 = vmatpush.bf16.xpose.msra.mxu0 %v7399
        %8585 = vmatpush.bf16.xpose.msra.mxu0 %v7383
        %8586 = vmatpush.bf16.xpose.msra.mxu0 %v7367
        %8587 = vmatpush.bf16.xpose.msra.mxu0 %v7351
        %8588 = vmatpush.bf16.xpose.msra.mxu0 %v7335
        %8589 = vmatpush.bf16.xpose.msra.mxu0 %v7319
        %8590 = vmatpush.bf16.xpose.msra.mxu0 %v7303
        %8591 = vmatmul.bf16.gmra.mxu0 %v4973
        %v8592 = vpop.f32.mrf.mxu0
        %v8593 = vadd.f32 %v8580, %v8592
        %v8594 = vpop.f32.mrf.mxu0
        %8595 = vdwg.mxu0
        %8596 = vmatpush.bf16.xpose.msra.mxu0 %v7416
        %8597 = vmatpush.bf16.xpose.msra.mxu0 %v7400
        %8598 = vmatpush.bf16.xpose.msra.mxu0 %v7384
        %8599 = vmatpush.bf16.xpose.msra.mxu0 %v7368
        %8600 = vmatpush.bf16.xpose.msra.mxu0 %v7352
        %8601 = vmatpush.bf16.xpose.msra.mxu0 %v7336
        %8602 = vmatpush.bf16.xpose.msra.mxu0 %v7320
        %8603 = vmatpush.bf16.xpose.msra.mxu0 %v7304
        %8604 = vmatmul.bf16.gmra.mxu0 %v4974
        %v8605 = vpop.f32.mrf.mxu0
        %v8606 = vadd.f32 %v8593, %v8605
        %v8607 = vpop.f32.mrf.mxu0
        %8608 = vdwg.mxu0
        %8609 = vmatpush.bf16.xpose.msra.mxu0 %v7417
        %8610 = vmatpush.bf16.xpose.msra.mxu0 %v7401
        %8611 = vmatpush.bf16.xpose.msra.mxu0 %v7385
        %8612 = vmatpush.bf16.xpose.msra.mxu0 %v7369
        %8613 = vmatpush.bf16.xpose.msra.mxu0 %v7353
        %8614 = vmatpush.bf16.xpose.msra.mxu0 %v7337
        %8615 = vmatpush.bf16.xpose.msra.mxu0 %v7321
        %8616 = vmatpush.bf16.xpose.msra.mxu0 %v7305
        %8617 = vmatmul.bf16.gmra.mxu0 %v4975
        %v8618 = vpop.f32.mrf.mxu0
        %v8619 = vadd.f32 %v8606, %v8618
        %v8620 = vpop.f32.mrf.mxu0
        %8621 = vdwg.mxu0
        %8622 = vmatpush.bf16.xpose.msra.mxu0 %v7418
        %8623 = vmatpush.bf16.xpose.msra.mxu0 %v7402
        %8624 = vmatpush.bf16.xpose.msra.mxu0 %v7386
        %8625 = vmatpush.bf16.xpose.msra.mxu0 %v7370
        %8626 = vmatpush.bf16.xpose.msra.mxu0 %v7354
        %8627 = vmatpush.bf16.xpose.msra.mxu0 %v7338
        %8628 = vmatpush.bf16.xpose.msra.mxu0 %v7322
        %8629 = vmatpush.bf16.xpose.msra.mxu0 %v7306
        %8630 = vmatmul.bf16.gmra.mxu0 %v4976
        %v8631 = vpop.f32.mrf.mxu0
        %v8632 = vadd.f32 %v8619, %v8631
        %v8633 = vpop.f32.mrf.mxu0
        %8634 = vdwg.mxu0
        %8635 = vmatpush.bf16.xpose.msra.mxu0 %v7419
        %8636 = vmatpush.bf16.xpose.msra.mxu0 %v7403
        %8637 = vmatpush.bf16.xpose.msra.mxu0 %v7387
        %8638 = vmatpush.bf16.xpose.msra.mxu0 %v7371
        %8639 = vmatpush.bf16.xpose.msra.mxu0 %v7355
        %8640 = vmatpush.bf16.xpose.msra.mxu0 %v7339
        %8641 = vmatpush.bf16.xpose.msra.mxu0 %v7323
        %8642 = vmatpush.bf16.xpose.msra.mxu0 %v7307
        %8643 = vmatmul.bf16.gmra.mxu0 %v4977
        %v8644 = vpop.f32.mrf.mxu0
        %v8645 = vadd.f32 %v8632, %v8644
        %v8646 = vpop.f32.mrf.mxu0
        %8647 = vdwg.mxu0
        %8648 = vmatpush.bf16.xpose.msra.mxu0 %v7420
        %8649 = vmatpush.bf16.xpose.msra.mxu0 %v7404
        %8650 = vmatpush.bf16.xpose.msra.mxu0 %v7388
        %8651 = vmatpush.bf16.xpose.msra.mxu0 %v7372
        %8652 = vmatpush.bf16.xpose.msra.mxu0 %v7356
        %8653 = vmatpush.bf16.xpose.msra.mxu0 %v7340
        %8654 = vmatpush.bf16.xpose.msra.mxu0 %v7324
        %8655 = vmatpush.bf16.xpose.msra.mxu0 %v7308
        %8656 = vmatmul.bf16.gmra.mxu0 %v4978
        %v8657 = vpop.f32.mrf.mxu0
        %v8658 = vadd.f32 %v8645, %v8657
        %v8659 = vpop.f32.mrf.mxu0
        %8660 = vdwg.mxu0
        %8661 = vmatpush.bf16.xpose.msra.mxu0 %v7421
        %8662 = vmatpush.bf16.xpose.msra.mxu0 %v7405
        %8663 = vmatpush.bf16.xpose.msra.mxu0 %v7389
        %8664 = vmatpush.bf16.xpose.msra.mxu0 %v7373
        %8665 = vmatpush.bf16.xpose.msra.mxu0 %v7357
        %8666 = vmatpush.bf16.xpose.msra.mxu0 %v7341
        %8667 = vmatpush.bf16.xpose.msra.mxu0 %v7325
        %8668 = vmatpush.bf16.xpose.msra.mxu0 %v7309
        %8669 = vmatmul.bf16.gmra.mxu0 %v4979
        %v8670 = vpop.f32.mrf.mxu0
        %v8671 = vadd.f32 %v8658, %v8670
        %v8672 = vpop.f32.mrf.mxu0
        %8673 = vdwg.mxu0
        %8674 = vmatpush.bf16.xpose.msra.mxu0 %v7422
        %8675 = vmatpush.bf16.xpose.msra.mxu0 %v7406
        %8676 = vmatpush.bf16.xpose.msra.mxu0 %v7390
        %8677 = vmatpush.bf16.xpose.msra.mxu0 %v7374
        %8678 = vmatpush.bf16.xpose.msra.mxu0 %v7358
        %8679 = vmatpush.bf16.xpose.msra.mxu0 %v7342
        %8680 = vmatpush.bf16.xpose.msra.mxu0 %v7326
        %8681 = vmatpush.bf16.xpose.msra.mxu0 %v7310
        %8682 = vmatmul.bf16.gmra.mxu0 %v4980
        %v8683 = vpop.f32.mrf.mxu0
        %v8684 = vadd.f32 %v8671, %v8683
        %v8685 = vpop.f32.mrf.mxu0
        %8686 = vdwg.mxu0
        %8687 = vmatpush.bf16.xpose.msra.mxu0 %v7535
        %8688 = vmatpush.bf16.xpose.msra.mxu0 %v7519
        %8689 = vmatpush.bf16.xpose.msra.mxu0 %v7503
        %8690 = vmatpush.bf16.xpose.msra.mxu0 %v7487
        %8691 = vmatpush.bf16.xpose.msra.mxu0 %v7471
        %8692 = vmatpush.bf16.xpose.msra.mxu0 %v7455
        %8693 = vmatpush.bf16.xpose.msra.mxu0 %v7439
        %8694 = vmatpush.bf16.xpose.msra.mxu0 %v7423
        %8695 = vmatmul.bf16.gmra.mxu0 %v4965
        %v8696 = vpop.f32.mrf.mxu0
        %v8697 = vadd.f32 %v5498, %v8696
        %v8698 = vpop.f32.mrf.mxu0
        %8699 = vdwg.mxu0
        %8700 = vmatpush.bf16.xpose.msra.mxu0 %v7536
        %8701 = vmatpush.bf16.xpose.msra.mxu0 %v7520
        %8702 = vmatpush.bf16.xpose.msra.mxu0 %v7504
        %8703 = vmatpush.bf16.xpose.msra.mxu0 %v7488
        %8704 = vmatpush.bf16.xpose.msra.mxu0 %v7472
        %8705 = vmatpush.bf16.xpose.msra.mxu0 %v7456
        %8706 = vmatpush.bf16.xpose.msra.mxu0 %v7440
        %8707 = vmatpush.bf16.xpose.msra.mxu0 %v7424
        %8708 = vmatmul.bf16.gmra.mxu0 %v4966
        %v8709 = vpop.f32.mrf.mxu0
        %v8710 = vadd.f32 %v8697, %v8709
        %v8711 = vpop.f32.mrf.mxu0
        %8712 = vdwg.mxu0
        %8713 = vmatpush.bf16.xpose.msra.mxu0 %v7537
        %8714 = vmatpush.bf16.xpose.msra.mxu0 %v7521
        %8715 = vmatpush.bf16.xpose.msra.mxu0 %v7505
        %8716 = vmatpush.bf16.xpose.msra.mxu0 %v7489
        %8717 = vmatpush.bf16.xpose.msra.mxu0 %v7473
        %8718 = vmatpush.bf16.xpose.msra.mxu0 %v7457
        %8719 = vmatpush.bf16.xpose.msra.mxu0 %v7441
        %8720 = vmatpush.bf16.xpose.msra.mxu0 %v7425
        %8721 = vmatmul.bf16.gmra.mxu0 %v4967
        %v8722 = vpop.f32.mrf.mxu0
        %v8723 = vadd.f32 %v8710, %v8722
        %v8724 = vpop.f32.mrf.mxu0
        %8725 = vdwg.mxu0
        %8726 = vmatpush.bf16.xpose.msra.mxu0 %v7538
        %8727 = vmatpush.bf16.xpose.msra.mxu0 %v7522
        %8728 = vmatpush.bf16.xpose.msra.mxu0 %v7506
        %8729 = vmatpush.bf16.xpose.msra.mxu0 %v7490
        %8730 = vmatpush.bf16.xpose.msra.mxu0 %v7474
        %8731 = vmatpush.bf16.xpose.msra.mxu0 %v7458
        %8732 = vmatpush.bf16.xpose.msra.mxu0 %v7442
        %8733 = vmatpush.bf16.xpose.msra.mxu0 %v7426
        %8734 = vmatmul.bf16.gmra.mxu0 %v4968
        %v8735 = vpop.f32.mrf.mxu0
        %v8736 = vadd.f32 %v8723, %v8735
        %v8737 = vpop.f32.mrf.mxu0
        %8738 = vdwg.mxu0
        %8739 = vmatpush.bf16.xpose.msra.mxu0 %v7539
        %8740 = vmatpush.bf16.xpose.msra.mxu0 %v7523
        %8741 = vmatpush.bf16.xpose.msra.mxu0 %v7507
        %8742 = vmatpush.bf16.xpose.msra.mxu0 %v7491
        %8743 = vmatpush.bf16.xpose.msra.mxu0 %v7475
        %8744 = vmatpush.bf16.xpose.msra.mxu0 %v7459
        %8745 = vmatpush.bf16.xpose.msra.mxu0 %v7443
        %8746 = vmatpush.bf16.xpose.msra.mxu0 %v7427
        %8747 = vmatmul.bf16.gmra.mxu0 %v4969
        %v8748 = vpop.f32.mrf.mxu0
        %v8749 = vadd.f32 %v8736, %v8748
        %v8750 = vpop.f32.mrf.mxu0
        %8751 = vdwg.mxu0
        %8752 = vmatpush.bf16.xpose.msra.mxu0 %v7540
        %8753 = vmatpush.bf16.xpose.msra.mxu0 %v7524
        %8754 = vmatpush.bf16.xpose.msra.mxu0 %v7508
        %8755 = vmatpush.bf16.xpose.msra.mxu0 %v7492
        %8756 = vmatpush.bf16.xpose.msra.mxu0 %v7476
        %8757 = vmatpush.bf16.xpose.msra.mxu0 %v7460
        %8758 = vmatpush.bf16.xpose.msra.mxu0 %v7444
        %8759 = vmatpush.bf16.xpose.msra.mxu0 %v7428
        %8760 = vmatmul.bf16.gmra.mxu0 %v4970
        %v8761 = vpop.f32.mrf.mxu0
        %v8762 = vadd.f32 %v8749, %v8761
        %v8763 = vpop.f32.mrf.mxu0
        %8764 = vdwg.mxu0
        %8765 = vmatpush.bf16.xpose.msra.mxu0 %v7541
        %8766 = vmatpush.bf16.xpose.msra.mxu0 %v7525
        %8767 = vmatpush.bf16.xpose.msra.mxu0 %v7509
        %8768 = vmatpush.bf16.xpose.msra.mxu0 %v7493
        %8769 = vmatpush.bf16.xpose.msra.mxu0 %v7477
        %8770 = vmatpush.bf16.xpose.msra.mxu0 %v7461
        %8771 = vmatpush.bf16.xpose.msra.mxu0 %v7445
        %8772 = vmatpush.bf16.xpose.msra.mxu0 %v7429
        %8773 = vmatmul.bf16.gmra.mxu0 %v4971
        %v8774 = vpop.f32.mrf.mxu0
        %v8775 = vadd.f32 %v8762, %v8774
        %v8776 = vpop.f32.mrf.mxu0
        %8777 = vdwg.mxu0
        %8778 = vmatpush.bf16.xpose.msra.mxu0 %v7542
        %8779 = vmatpush.bf16.xpose.msra.mxu0 %v7526
        %8780 = vmatpush.bf16.xpose.msra.mxu0 %v7510
        %8781 = vmatpush.bf16.xpose.msra.mxu0 %v7494
        %8782 = vmatpush.bf16.xpose.msra.mxu0 %v7478
        %8783 = vmatpush.bf16.xpose.msra.mxu0 %v7462
        %8784 = vmatpush.bf16.xpose.msra.mxu0 %v7446
        %8785 = vmatpush.bf16.xpose.msra.mxu0 %v7430
        %8786 = vmatmul.bf16.gmra.mxu0 %v4972
        %v8787 = vpop.f32.mrf.mxu0
        %v8788 = vadd.f32 %v8775, %v8787
        %v8789 = vpop.f32.mrf.mxu0
        %8790 = vdwg.mxu0
        %8791 = vmatpush.bf16.xpose.msra.mxu0 %v7543
        %8792 = vmatpush.bf16.xpose.msra.mxu0 %v7527
        %8793 = vmatpush.bf16.xpose.msra.mxu0 %v7511
        %8794 = vmatpush.bf16.xpose.msra.mxu0 %v7495
        %8795 = vmatpush.bf16.xpose.msra.mxu0 %v7479
        %8796 = vmatpush.bf16.xpose.msra.mxu0 %v7463
        %8797 = vmatpush.bf16.xpose.msra.mxu0 %v7447
        %8798 = vmatpush.bf16.xpose.msra.mxu0 %v7431
        %8799 = vmatmul.bf16.gmra.mxu0 %v4973
        %v8800 = vpop.f32.mrf.mxu0
        %v8801 = vadd.f32 %v8788, %v8800
        %v8802 = vpop.f32.mrf.mxu0
        %8803 = vdwg.mxu0
        %8804 = vmatpush.bf16.xpose.msra.mxu0 %v7544
        %8805 = vmatpush.bf16.xpose.msra.mxu0 %v7528
        %8806 = vmatpush.bf16.xpose.msra.mxu0 %v7512
        %8807 = vmatpush.bf16.xpose.msra.mxu0 %v7496
        %8808 = vmatpush.bf16.xpose.msra.mxu0 %v7480
        %8809 = vmatpush.bf16.xpose.msra.mxu0 %v7464
        %8810 = vmatpush.bf16.xpose.msra.mxu0 %v7448
        %8811 = vmatpush.bf16.xpose.msra.mxu0 %v7432
        %8812 = vmatmul.bf16.gmra.mxu0 %v4974
        %v8813 = vpop.f32.mrf.mxu0
        %v8814 = vadd.f32 %v8801, %v8813
        %v8815 = vpop.f32.mrf.mxu0
        %8816 = vdwg.mxu0
        %8817 = vmatpush.bf16.xpose.msra.mxu0 %v7545
        %8818 = vmatpush.bf16.xpose.msra.mxu0 %v7529
        %8819 = vmatpush.bf16.xpose.msra.mxu0 %v7513
        %8820 = vmatpush.bf16.xpose.msra.mxu0 %v7497
        %8821 = vmatpush.bf16.xpose.msra.mxu0 %v7481
        %8822 = vmatpush.bf16.xpose.msra.mxu0 %v7465
        %8823 = vmatpush.bf16.xpose.msra.mxu0 %v7449
        %8824 = vmatpush.bf16.xpose.msra.mxu0 %v7433
        %8825 = vmatmul.bf16.gmra.mxu0 %v4975
        %v8826 = vpop.f32.mrf.mxu0
        %v8827 = vadd.f32 %v8814, %v8826
        %v8828 = vpop.f32.mrf.mxu0
        %8829 = vdwg.mxu0
        %8830 = vmatpush.bf16.xpose.msra.mxu0 %v7546
        %8831 = vmatpush.bf16.xpose.msra.mxu0 %v7530
        %8832 = vmatpush.bf16.xpose.msra.mxu0 %v7514
        %8833 = vmatpush.bf16.xpose.msra.mxu0 %v7498
        %8834 = vmatpush.bf16.xpose.msra.mxu0 %v7482
        %8835 = vmatpush.bf16.xpose.msra.mxu0 %v7466
        %8836 = vmatpush.bf16.xpose.msra.mxu0 %v7450
        %8837 = vmatpush.bf16.xpose.msra.mxu0 %v7434
        %8838 = vmatmul.bf16.gmra.mxu0 %v4976
        %v8839 = vpop.f32.mrf.mxu0
        %v8840 = vadd.f32 %v8827, %v8839
        %v8841 = vpop.f32.mrf.mxu0
        %8842 = vdwg.mxu0
        %8843 = vmatpush.bf16.xpose.msra.mxu0 %v7547
        %8844 = vmatpush.bf16.xpose.msra.mxu0 %v7531
        %8845 = vmatpush.bf16.xpose.msra.mxu0 %v7515
        %8846 = vmatpush.bf16.xpose.msra.mxu0 %v7499
        %8847 = vmatpush.bf16.xpose.msra.mxu0 %v7483
        %8848 = vmatpush.bf16.xpose.msra.mxu0 %v7467
        %8849 = vmatpush.bf16.xpose.msra.mxu0 %v7451
        %8850 = vmatpush.bf16.xpose.msra.mxu0 %v7435
        %8851 = vmatmul.bf16.gmra.mxu0 %v4977
        %v8852 = vpop.f32.mrf.mxu0
        %v8853 = vadd.f32 %v8840, %v8852
        %v8854 = vpop.f32.mrf.mxu0
        %8855 = vdwg.mxu0
        %8856 = vmatpush.bf16.xpose.msra.mxu0 %v7548
        %8857 = vmatpush.bf16.xpose.msra.mxu0 %v7532
        %8858 = vmatpush.bf16.xpose.msra.mxu0 %v7516
        %8859 = vmatpush.bf16.xpose.msra.mxu0 %v7500
        %8860 = vmatpush.bf16.xpose.msra.mxu0 %v7484
        %8861 = vmatpush.bf16.xpose.msra.mxu0 %v7468
        %8862 = vmatpush.bf16.xpose.msra.mxu0 %v7452
        %8863 = vmatpush.bf16.xpose.msra.mxu0 %v7436
        %8864 = vmatmul.bf16.gmra.mxu0 %v4978
        %v8865 = vpop.f32.mrf.mxu0
        %v8866 = vadd.f32 %v8853, %v8865
        %v8867 = vpop.f32.mrf.mxu0
        %8868 = vdwg.mxu0
        %8869 = vmatpush.bf16.xpose.msra.mxu0 %v7549
        %8870 = vmatpush.bf16.xpose.msra.mxu0 %v7533
        %8871 = vmatpush.bf16.xpose.msra.mxu0 %v7517
        %8872 = vmatpush.bf16.xpose.msra.mxu0 %v7501
        %8873 = vmatpush.bf16.xpose.msra.mxu0 %v7485
        %8874 = vmatpush.bf16.xpose.msra.mxu0 %v7469
        %8875 = vmatpush.bf16.xpose.msra.mxu0 %v7453
        %8876 = vmatpush.bf16.xpose.msra.mxu0 %v7437
        %8877 = vmatmul.bf16.gmra.mxu0 %v4979
        %v8878 = vpop.f32.mrf.mxu0
        %v8879 = vadd.f32 %v8866, %v8878
        %v8880 = vpop.f32.mrf.mxu0
        %8881 = vdwg.mxu0
        %8882 = vmatpush.bf16.xpose.msra.mxu0 %v7550
        %8883 = vmatpush.bf16.xpose.msra.mxu0 %v7534
        %8884 = vmatpush.bf16.xpose.msra.mxu0 %v7518
        %8885 = vmatpush.bf16.xpose.msra.mxu0 %v7502
        %8886 = vmatpush.bf16.xpose.msra.mxu0 %v7486
        %8887 = vmatpush.bf16.xpose.msra.mxu0 %v7470
        %8888 = vmatpush.bf16.xpose.msra.mxu0 %v7454
        %8889 = vmatpush.bf16.xpose.msra.mxu0 %v7438
        %8890 = vmatmul.bf16.gmra.mxu0 %v4980
        %v8891 = vpop.f32.mrf.mxu0
        %v8892 = vadd.f32 %v8879, %v8891
        %v8893 = vpop.f32.mrf.mxu0
        %8894 = vdwg.mxu0
        %8895 = vst [vmem:[%s304] sm:$0xff] %v8268
        %8896 = vst [vmem:[%s304 + $0x8] sm:$0xff] %v8476
        %8897 = vst [vmem:[%s304 + $0x10] sm:$0xff] %v8684
        %8898 = vst [vmem:[%s304 + $0x18] sm:$0xff] %v8892
        %s8899 = sand.u32 %s142, 1
        %s8900 = scalar_lea.sflag [#allocation4], %s8899
        %s8901 = sand.u32 %s142, 1
        %s8902 = smul.addr %s8901, 32
        %s8903 = scalar_lea.vmem [#allocation11], %s8902
        // Predicated region
        $region61: #{tpu_custom_call.1} parent=39 // pred_check
          %p8904 = pneg %p152
        $region62: #{tpu_custom_call.1} parent=39 // pred_check_branch
          %8906 = sbr.rel (%p8904) target = $region64
        $region63: #{tpu_custom_call.1} parent=39 // pred_region
          %8908 = vsyncadd %s8900, 0
          %s8909 = smul.addr %s24, 4
          %s8910 = smul.addr %s8909, 8
          %s8911 = scalar_lea.hbm %s5, %s8910
          %s8913 = sshll.u32 %s8903, 4
          %s8914 = int_to_ptr.vmem [resolvable:$true] %s8913
          %s8915 = sshll.u32 %s8911, 4
          %s8916 = int_to_ptr.hbm [resolvable:$true] %s8915
          %8918 = dma.vmem_to_hbm [thread:$0]  %s8914, 512, %s8916, %s8900
        $region64: #{tpu_custom_call.1} parent=39 // pred_fallthru
          _
      $region40: #{tpu_custom_call.1} parent=5 // pred_fallthru
        _
      %p8919 = scmp.le.s32.totalorder 2, %s19
      // Predicated region
      $region65: #{tpu_custom_call.1} parent=5 // pred_check
        %p8920 = pneg %p8919
      $region66: #{tpu_custom_call.1} parent=5 // pred_check_branch
        %8922 = sbr.rel (%p8920) target = $region68
      $region67: #{tpu_custom_call.1} parent=5 // pred_region
        %s8923 = ssub.s32 %s19, 2
        // Predicated region
        $region69: #{tpu_custom_call.1} parent=67 // pred_check
          %p8924 = pneg %p158
        $region70: #{tpu_custom_call.1} parent=67 // pred_check_branch
          %8926 = sbr.rel (%p8924) target = $region72
        $region71: #{tpu_custom_call.1} parent=67 // pred_region
          %s8927 = sand.u32 %s143, 1
          %s8928 = scalar_lea.sflag [#allocation4], %s8927
          %s8929 = sand.u32 %s143, 1
          %s8930 = smul.addr %s8929, 32
          %s8931 = scalar_lea.vmem [#allocation11], %s8930
          %8933 = dma.done %s8928, 512
        $region72: #{tpu_custom_call.1} parent=67 // pred_fallthru
          _
      $region68: #{tpu_custom_call.1} parent=5 // pred_fallthru
        _
    $region6: #{tpu_custom_call.1} parent=1 // loop_footer
      %s23 = sadd.s32 1, %s19
    $region7: #{tpu_custom_call.1} parent=1 // loop_footer_branch
      %18 = sbr.rel target = $region3
    $region8: #{tpu_custom_call.1} parent=1 // loop_exit
      _
    %8934 = vsyncpa [#allocation3], 1
    %s8935 = scalar_lea.sflag [#allocation3], 1
    %8936 = vsyncpa %s8935, 1
    %8937 = vsyncpa [#allocation6], 1
    %8938 = vsyncpa [#allocation9], 1
    %8939 = vsyncpa [#allocation4], 1
    %s8940 = scalar_lea.sflag [#allocation4], 1
    %8941 = vsyncpa %s8940, 1

</llo_original>
